<compile_context>
chip_gen: v6e
topology: v6e:2x2x1
jax: 0.10.0
libtpu: 0.0.40
codegen_flags: <defaults>
</compile_context>

<pallas_src>
import jax
import jax.numpy as jnp
from jax.experimental import pallas as pl
from jax.experimental.pallas import tpu as pltpu

CPAD = 128  # lane-dense channel padding


# ----------------------------------------------------------------------------
# Pallas kernels (fused matmul epilogues)
# ----------------------------------------------------------------------------
def matmul_bias_bn_relu_kernel(a_ref, b_ref, bias_ref, g_ref, beta_ref, o_ref):
    """o = relu(batchnorm(a @ b + bias)); batch stats over all M rows."""
    y = jnp.dot(a_ref[...], b_ref[...], preferred_element_type=jnp.float32)
    y = y + bias_ref[...]
    m = y.shape[0]
    inv_m = 1.0 / m
    # One-pass batch statistics (biased variance), per channel (column).
    s1 = jnp.sum(y, axis=0, keepdims=True)
    s2 = jnp.sum(y * y, axis=0, keepdims=True)
    mean = s1 * inv_m
    var = jnp.maximum(s2 * inv_m - mean * mean, 0.0)  # guard tiny cancellation
    inv = jax.lax.rsqrt(var + 1e-5)
    out = (y - mean) * (inv * g_ref[...]) + beta_ref[...]
    o_ref[...] = jnp.maximum(out, 0.0).astype(o_ref.dtype)


def matmul_bias_tanh_kernel(a_ref, b_ref, bias_ref, o_ref):
    """o = tanh(a @ b + bias)."""
    y = jnp.dot(a_ref[...], b_ref[...], preferred_element_type=jnp.float32)
    o_ref[...] = jnp.tanh(y + bias_ref[...]).astype(o_ref.dtype)


# ----------------------------------------------------------------------------
# Pallas wrappers
# ----------------------------------------------------------------------------
def matmul_bias_bn_relu(a, b, bias, gamma, beta):
    """a: [M, K], b: [K, N], bias/gamma/beta: [1, N]. Single VMEM block."""
    M, K = a.shape
    K2, N = b.shape
    assert K == K2, (a.shape, b.shape)
    vec_spec = pl.BlockSpec((1, N), lambda i: (0, 0))
    return pl.pallas_call(
        matmul_bias_bn_relu_kernel,
        out_shape=jax.ShapeDtypeStruct((M, N), jnp.float32),
        grid=(1,),
        in_specs=[
            pl.BlockSpec((M, K), lambda i: (0, 0)),
            pl.BlockSpec((K, N), lambda i: (0, 0)),
            vec_spec, vec_spec, vec_spec,
        ],
        out_specs=pl.BlockSpec((M, N), lambda i: (0, 0)),
        compiler_params=pltpu.CompilerParams(
            dimension_semantics=("arbitrary",)),
    )(a, b, bias, gamma, beta)


def matmul_bias_tanh(a, b, bias, tm=256):
    """a: [M, K], b: [K, N], bias: [1, N]; M tiled with a parallel grid axis."""
    M, K = a.shape
    _, N = b.shape
    if M % tm != 0 or M < tm:
        tm = M
    return pl.pallas_call(
        matmul_bias_tanh_kernel,
        out_shape=jax.ShapeDtypeStruct((M, N), jnp.float32),
        grid=(M // tm,),
        in_specs=[
            pl.BlockSpec((tm, K), lambda i: (i, 0)),
            pl.BlockSpec((K, N), lambda i: (0, 0)),
            pl.BlockSpec((1, N), lambda i: (0, 0)),
        ],
        out_specs=pl.BlockSpec((tm, N), lambda i: (i, 0)),
        compiler_params=pltpu.CompilerParams(
            dimension_semantics=("parallel",)),
    )(a, b, bias)


# ----------------------------------------------------------------------------
# ConvTranspose2d(k=4, stride=2, pad=1) == conv on dilated+padded input with a
# spatially flipped kernel.  Dilation / padding / im2col is layout-only glue;
# the channel contraction (the hot path) runs in the fused Pallas kernel.
# TODO(synk): for production sizes, replace JAX-side im2col with in-kernel
# shifted-window gathering (grid axis over kh,kw) to avoid 16x HBM
# materialization, and tile M with a two-pass BN to fit v7x's 64 MiB VMEM.
# ----------------------------------------------------------------------------
def _dilate_and_pad(x_nhwc, stride=2, pad=2):
    N, H, W, C = x_nhwc.shape
    Hd, Wd = (H - 1) * stride + 1, (W - 1) * stride + 1
    xd = jnp.zeros((N, Hd, Wd, C), x_nhwc.dtype)
    xd = xd.at[:, ::stride, ::stride, :].set(x_nhwc)
    return jnp.pad(xd, ((0, 0), (pad, pad), (pad, pad), (0, 0)))


def _im2col(xp, k, Ho, Wo):
    N, _, _, C = xp.shape
    cols = []
    for kh in range(k):
        for kw in range(k):
            cols.append(xp[:, kh:kh + Ho, kw:kw + Wo, :])
    patches = jnp.stack(cols, axis=3)               # [N, Ho, Wo, k*k, C]
    return patches.reshape(N * Ho * Wo, k * k * C)  # rows match (kh,kw,ci)


# ----------------------------------------------------------------------------
# Generator forward
# ----------------------------------------------------------------------------
def generator_forward(x, params, d, s16):
    # With s16 == 1 the linear output column index equals the BN channel index,
    # so per-column batch stats in the fused kernel == PyTorch's per-channel BN.
    assert s16 == 1, "fused linear+BN path assumes 1x1 spatial after the view"
    N = x.shape[0]

    # Linear(100 -> d*8) + BatchNorm2d + ReLU, fused. K padded 100 -> 128.
    xpad = jnp.pad(x, ((0, 0), (0, CPAD - x.shape[1])))
    h_flat = matmul_bias_bn_relu(xpad, params["lin_w"], params["lin_b"],
                                 params["bn0_g"], params["bn0_b"])  # [N, CPAD]
    h = h_flat.reshape(N, s16, s16, CPAD)                            # NHWC

    # Three ConvTranspose2d + BN + ReLU blocks (fused epilogue).
    for i in (1, 2, 3):
        Ho, Wo = 2 * h.shape[1], 2 * h.shape[2]
        patches = _im2col(_dilate_and_pad(h), 4, Ho, Wo)   # [N*Ho*Wo, 16*CPAD]
        y = matmul_bias_bn_relu(patches, params[f"dc{i}_w"], params[f"dc{i}_b"],
                                params[f"bn{i}_g"], params[f"bn{i}_b"])
        h = y.reshape(N, Ho, Wo, CPAD)

    # Final ConvTranspose2d + tanh (fused), lane-dense Cout (3 padded to 128).
    Ho, Wo = 2 * h.shape[1], 2 * h.shape[2]
    patches = _im2col(_dilate_and_pad(h), 4, Ho, Wo)
    y = matmul_bias_tanh(patches, params["dc4_w"], params["dc4_b"])
    out_nhwc = y.reshape(N, Ho, Wo, CPAD)[:, :, :, :3]
    return jnp.transpose(out_nhwc, (0, 3, 1, 2))            # back to NCHW


# ----------------------------------------------------------------------------
# Deterministic parameter construction (mirrors weight_init() distributions).
# All layout work (kernel flip, transpose, channel padding, reshape) is done
# here, once, instead of inside the forward pass.
# ----------------------------------------------------------------------------
def make_params(key, d, s16):
    d8 = d * 8
    ks = jax.random.split(key, 10)
    f32 = jnp.float32
    lin_out = s16 * s16 * d8
    assert lin_out <= CPAD and d8 <= CPAD

    # Linear: K padded 100 -> 128, output padded to CPAD (lane-dense).
    lin_w = 0.02 * jax.random.normal(ks[0], (100, lin_out), f32)
    lin_w = jnp.pad(lin_w, ((0, CPAD - 100), (0, CPAD - lin_out)))
    lin_b = jnp.zeros((1, CPAD), f32)

    def bn(k, c):
        g = 0.1 + 0.02 * jax.random.normal(k, (c,), f32)
        g = jnp.pad(g, (0, CPAD - c)).reshape(1, CPAD)      # padded gamma = 0
        return g, jnp.zeros((1, CPAD), f32)

    def deconv(k, cin, cout):
        w = 0.02 * jax.random.normal(k, (cin, cout, 4, 4), f32)  # PyTorch layout
        # Flip spatially, -> [4,4,cin,cout], zero-pad channels to CPAD,
        # flatten to the im2col contraction layout [16*CPAD, CPAD].
        w2 = jnp.transpose(w[:, :, ::-1, ::-1], (2, 3, 0, 1))
        w2 = jnp.pad(w2, ((0, 0), (0, 0), (0, CPAD - cin), (0, CPAD - cout)))
        w2 = w2.reshape(16 * CPAD, CPAD)
        return w2, jnp.zeros((1, CPAD), f32)

    p = {"lin_w": lin_w, "lin_b": lin_b}
    p["bn0_g"], p["bn0_b"] = bn(ks[1], d8)
    p["dc1_w"], p["dc1_b"] = deconv(ks[2], d * 8, d * 4)
    p["bn1_g"], p["bn1_b"] = bn(ks[3], d * 4)
    p["dc2_w"], p["dc2_b"] = deconv(ks[4], d * 4, d * 2)
    p["bn2_g"], p["bn2_b"] = bn(ks[5], d * 2)
    p["dc3_w"], p["dc3_b"] = deconv(ks[6], d * 2, d)
    p["bn3_g"], p["bn3_b"] = bn(ks[7], d)
    p["dc4_w"], p["dc4_b"] = deconv(ks[8], d, 3)
    return p


if __name__ == "__main__":
    D = 16                  # small "d" (PyTorch default 128)
    INPUT_SHAPE = (16, 16)  # small target image size (PyTorch default 64x64)
    S16 = 1                 # conv_out chain: 16 -> 8 -> 4 -> 2 -> 1
    BATCH = 2

    key = jax.random.PRNGKey(0)
    k_param, k_x = jax.random.split(key)
    params = make_params(k_param, D, S16)
    x = jax.random.normal(k_x, (BATCH, 100), jnp.float32)

    fwd = jax.jit(generator_forward, static_argnums=(2, 3))
    out = fwd(x, params, D, S16)
    out = jax.block_until_ready(out)

    assert out.shape == (BATCH, 3, INPUT_SHAPE[0], INPUT_SHAPE[1]), out.shape
    assert bool(jnp.all(jnp.isfinite(out)))
    print("KERNEL_OK")
</pallas_src>

<mosaic_0001>
module attributes {stable_mosaic.version = 11 : i64} {
  func.func @matmul_bias_bn_relu_kernel(%arg0: i32, %arg1: memref<2x128xf32, #tpu.memory_space<vmem>>, %arg2: memref<128x128xf32, #tpu.memory_space<vmem>>, %arg3: memref<1x128xf32, #tpu.memory_space<vmem>>, %arg4: memref<1x128xf32, #tpu.memory_space<vmem>>, %arg5: memref<1x128xf32, #tpu.memory_space<vmem>>, %arg6: memref<2x128xf32, #tpu.memory_space<vmem>>) attributes {dimension_semantics = [#tpu.dimension_semantics<arbitrary>], iteration_bounds = array<i64: 1>, scalar_prefetch = 0 : i64, scratch_operands = 0 : i64, tpu.core_type = #tpu.core_type<tc>, window_params = [{pipeline_mode = #tpu.pipeline_mode<synchronous>, transform_indices = @transform_0, window_bounds = array<i64: 2, 128>}, {pipeline_mode = #tpu.pipeline_mode<synchronous>, transform_indices = @transform_1, window_bounds = array<i64: 128, 128>}, {pipeline_mode = #tpu.pipeline_mode<synchronous>, transform_indices = @transform_2, window_bounds = array<i64: 1, 128>}, {pipeline_mode = #tpu.pipeline_mode<synchronous>, transform_indices = @transform_3, window_bounds = array<i64: 1, 128>}, {pipeline_mode = #tpu.pipeline_mode<synchronous>, transform_indices = @transform_4, window_bounds = array<i64: 1, 128>}, {pipeline_mode = #tpu.pipeline_mode<synchronous>, transform_indices = @transform_5, window_bounds = array<i64: 2, 128>}]} {
    %c0 = arith.constant 0 : index
    %c0_0 = arith.constant 0 : index
    %0 = vector.load %arg1[%c0, %c0_0] : memref<2x128xf32, #tpu.memory_space<vmem>>, vector<2x128xf32>
    %c0_1 = arith.constant 0 : index
    %c0_2 = arith.constant 0 : index
    %1 = vector.load %arg2[%c0_1, %c0_2] : memref<128x128xf32, #tpu.memory_space<vmem>>, vector<128x128xf32>
    %cst = arith.constant dense<0.000000e+00> : vector<2x128xf32>
    %2 = tpu.matmul %0, %1, %cst {dimension_numbers = #tpu.dot_dimension_numbers<[1], [0], [0], [1], [0, 0, 1, 1], [], []>} : vector<2x128xf32>, vector<128x128xf32>, vector<2x128xf32> -> vector<2x128xf32>
    %c0_3 = arith.constant 0 : index
    %c0_4 = arith.constant 0 : index
    %3 = vector.load %arg3[%c0_3, %c0_4] : memref<1x128xf32, #tpu.memory_space<vmem>>, vector<1x128xf32>
    %4 = vector.broadcast %3 : vector<1x128xf32> to vector<2x128xf32>
    %5 = arith.addf %2, %4 : vector<2x128xf32>
    %cst_5 = arith.constant dense<0.000000e+00> : vector<128xf32>
    %6 = vector.multi_reduction <add>, %5, %cst_5 [0] : vector<2x128xf32> to vector<128xf32>
    %7 = vector.shape_cast %6 : vector<128xf32> to vector<1x128xf32>
    %8 = arith.mulf %5, %5 : vector<2x128xf32>
    %cst_6 = arith.constant dense<0.000000e+00> : vector<128xf32>
    %9 = vector.multi_reduction <add>, %8, %cst_6 [0] : vector<2x128xf32> to vector<128xf32>
    %10 = vector.shape_cast %9 : vector<128xf32> to vector<1x128xf32>
    %cst_7 = arith.constant 5.000000e-01 : f32
    %11 = vector.broadcast %cst_7 : f32 to vector<1x128xf32>
    %12 = arith.mulf %7, %11 : vector<1x128xf32>
    %cst_8 = arith.constant 5.000000e-01 : f32
    %13 = vector.broadcast %cst_8 : f32 to vector<1x128xf32>
    %14 = arith.mulf %10, %13 : vector<1x128xf32>
    %15 = arith.mulf %12, %12 : vector<1x128xf32>
    %16 = arith.subf %14, %15 : vector<1x128xf32>
    %cst_9 = arith.constant 0.000000e+00 : f32
    %17 = vector.broadcast %cst_9 : f32 to vector<1x128xf32>
    %18 = arith.maximumf %16, %17 : vector<1x128xf32>
    %cst_10 = arith.constant 9.99999974E-6 : f32
    %19 = vector.broadcast %cst_10 : f32 to vector<1x128xf32>
    %20 = arith.addf %18, %19 : vector<1x128xf32>
    %21 = math.rsqrt %20 : vector<1x128xf32>
    %22 = vector.broadcast %12 : vector<1x128xf32> to vector<2x128xf32>
    %23 = arith.subf %5, %22 : vector<2x128xf32>
    %c0_11 = arith.constant 0 : index
    %c0_12 = arith.constant 0 : index
    %24 = vector.load %arg4[%c0_11, %c0_12] : memref<1x128xf32, #tpu.memory_space<vmem>>, vector<1x128xf32>
    %25 = arith.mulf %21, %24 : vector<1x128xf32>
    %26 = vector.broadcast %25 : vector<1x128xf32> to vector<2x128xf32>
    %27 = arith.mulf %23, %26 : vector<2x128xf32>
    %c0_13 = arith.constant 0 : index
    %c0_14 = arith.constant 0 : index
    %28 = vector.load %arg5[%c0_13, %c0_14] : memref<1x128xf32, #tpu.memory_space<vmem>>, vector<1x128xf32>
    %29 = vector.broadcast %28 : vector<1x128xf32> to vector<2x128xf32>
    %30 = arith.addf %27, %29 : vector<2x128xf32>
    %cst_15 = arith.constant 0.000000e+00 : f32
    %31 = vector.broadcast %cst_15 : f32 to vector<2x128xf32>
    %32 = arith.maximumf %30, %31 : vector<2x128xf32>
    %c0_16 = arith.constant 0 : index
    %c0_17 = arith.constant 0 : index
    %33 = vector.load %arg6[%c0_16, %c0_17] : memref<2x128xf32, #tpu.memory_space<vmem>>, vector<2x128xf32>
    tpu.vector_store %arg6[%c0_16, %c0_17], %32 {strides = array<i32>} : memref<2x128xf32, #tpu.memory_space<vmem>>, vector<2x128xf32>,
    return
  }
  func.func @transform_0(%arg0: i32) -> (i32, i32) {
    %c0_i32 = arith.constant 0 : i32
    %c0_i32_0 = arith.constant 0 : i32
    %c0_i32_1 = arith.constant 0 : i32
    return %c0_i32, %c0_i32_0 : i32, i32
  }
  func.func @transform_1(%arg0: i32) -> (i32, i32) {
    %c0_i32 = arith.constant 0 : i32
    %c0_i32_0 = arith.constant 0 : i32
    %c0_i32_1 = arith.constant 0 : i32
    return %c0_i32, %c0_i32_0 : i32, i32
  }
  func.func @transform_2(%arg0: i32) -> (i32, i32) {
    %c0_i32 = arith.constant 0 : i32
    %c0_i32_0 = arith.constant 0 : i32
    %c0_i32_1 = arith.constant 0 : i32
    return %c0_i32, %c0_i32_0 : i32, i32
  }
  func.func @transform_3(%arg0: i32) -> (i32, i32) {
    %c0_i32 = arith.constant 0 : i32
    %c0_i32_0 = arith.constant 0 : i32
    %c0_i32_1 = arith.constant 0 : i32
    return %c0_i32, %c0_i32_0 : i32, i32
  }
  func.func @transform_4(%arg0: i32) -> (i32, i32) {
    %c0_i32 = arith.constant 0 : i32
    %c0_i32_0 = arith.constant 0 : i32
    %c0_i32_1 = arith.constant 0 : i32
    return %c0_i32, %c0_i32_0 : i32, i32
  }
  func.func @transform_5(%arg0: i32) -> (i32, i32) {
    %c0_i32 = arith.constant 0 : i32
    %c0_i32_0 = arith.constant 0 : i32
    %c0_i32_1 = arith.constant 0 : i32
    return %c0_i32, %c0_i32_0 : i32, i32
  }
}

module attributes {stable_mosaic.version = 11 : i64} {
  func.func @matmul_bias_bn_relu_kernel(%arg0: i32, %arg1: memref<8x2048xf32, #tpu.memory_space<vmem>>, %arg2: memref<2048x128xf32, #tpu.memory_space<vmem>>, %arg3: memref<1x128xf32, #tpu.memory_space<vmem>>, %arg4: memref<1x128xf32, #tpu.memory_space<vmem>>, %arg5: memref<1x128xf32, #tpu.memory_space<vmem>>, %arg6: memref<8x128xf32, #tpu.memory_space<vmem>>) attributes {dimension_semantics = [#tpu.dimension_semantics<arbitrary>], iteration_bounds = array<i64: 1>, scalar_prefetch = 0 : i64, scratch_operands = 0 : i64, tpu.core_type = #tpu.core_type<tc>, window_params = [{pipeline_mode = #tpu.pipeline_mode<synchronous>, transform_indices = @transform_0, window_bounds = array<i64: 8, 2048>}, {pipeline_mode = #tpu.pipeline_mode<synchronous>, transform_indices = @transform_1, window_bounds = array<i64: 2048, 128>}, {pipeline_mode = #tpu.pipeline_mode<synchronous>, transform_indices = @transform_2, window_bounds = array<i64: 1, 128>}, {pipeline_mode = #tpu.pipeline_mode<synchronous>, transform_indices = @transform_3, window_bounds = array<i64: 1, 128>}, {pipeline_mode = #tpu.pipeline_mode<synchronous>, transform_indices = @transform_4, window_bounds = array<i64: 1, 128>}, {pipeline_mode = #tpu.pipeline_mode<synchronous>, transform_indices = @transform_5, window_bounds = array<i64: 8, 128>}]} {
    %c0 = arith.constant 0 : index
    %c0_0 = arith.constant 0 : index
    %0 = vector.load %arg1[%c0, %c0_0] : memref<8x2048xf32, #tpu.memory_space<vmem>>, vector<8x2048xf32>
    %c0_1 = arith.constant 0 : index
    %c0_2 = arith.constant 0 : index
    %1 = vector.load %arg2[%c0_1, %c0_2] : memref<2048x128xf32, #tpu.memory_space<vmem>>, vector<2048x128xf32>
    %cst = arith.constant dense<0.000000e+00> : vector<8x128xf32>
    %2 = tpu.matmul %0, %1, %cst {dimension_numbers = #tpu.dot_dimension_numbers<[1], [0], [0], [1], [0, 0, 1, 1], [], []>} : vector<8x2048xf32>, vector<2048x128xf32>, vector<8x128xf32> -> vector<8x128xf32>
    %c0_3 = arith.constant 0 : index
    %c0_4 = arith.constant 0 : index
    %3 = vector.load %arg3[%c0_3, %c0_4] : memref<1x128xf32, #tpu.memory_space<vmem>>, vector<1x128xf32>
    %4 = vector.broadcast %3 : vector<1x128xf32> to vector<8x128xf32>
    %5 = arith.addf %2, %4 : vector<8x128xf32>
    %cst_5 = arith.constant dense<0.000000e+00> : vector<128xf32>
    %6 = vector.multi_reduction <add>, %5, %cst_5 [0] : vector<8x128xf32> to vector<128xf32>
    %7 = vector.shape_cast %6 : vector<128xf32> to vector<1x128xf32>
    %8 = arith.mulf %5, %5 : vector<8x128xf32>
    %cst_6 = arith.constant dense<0.000000e+00> : vector<128xf32>
    %9 = vector.multi_reduction <add>, %8, %cst_6 [0] : vector<8x128xf32> to vector<128xf32>
    %10 = vector.shape_cast %9 : vector<128xf32> to vector<1x128xf32>
    %cst_7 = arith.constant 1.250000e-01 : f32
    %11 = vector.broadcast %cst_7 : f32 to vector<1x128xf32>
    %12 = arith.mulf %7, %11 : vector<1x128xf32>
    %cst_8 = arith.constant 1.250000e-01 : f32
    %13 = vector.broadcast %cst_8 : f32 to vector<1x128xf32>
    %14 = arith.mulf %10, %13 : vector<1x128xf32>
    %15 = arith.mulf %12, %12 : vector<1x128xf32>
    %16 = arith.subf %14, %15 : vector<1x128xf32>
    %cst_9 = arith.constant 0.000000e+00 : f32
    %17 = vector.broadcast %cst_9 : f32 to vector<1x128xf32>
    %18 = arith.maximumf %16, %17 : vector<1x128xf32>
    %cst_10 = arith.constant 9.99999974E-6 : f32
    %19 = vector.broadcast %cst_10 : f32 to vector<1x128xf32>
    %20 = arith.addf %18, %19 : vector<1x128xf32>
    %21 = math.rsqrt %20 : vector<1x128xf32>
    %22 = vector.broadcast %12 : vector<1x128xf32> to vector<8x128xf32>
    %23 = arith.subf %5, %22 : vector<8x128xf32>
    %c0_11 = arith.constant 0 : index
    %c0_12 = arith.constant 0 : index
    %24 = vector.load %arg4[%c0_11, %c0_12] : memref<1x128xf32, #tpu.memory_space<vmem>>, vector<1x128xf32>
    %25 = arith.mulf %21, %24 : vector<1x128xf32>
    %26 = vector.broadcast %25 : vector<1x128xf32> to vector<8x128xf32>
    %27 = arith.mulf %23, %26 : vector<8x128xf32>
    %c0_13 = arith.constant 0 : index
    %c0_14 = arith.constant 0 : index
    %28 = vector.load %arg5[%c0_13, %c0_14] : memref<1x128xf32, #tpu.memory_space<vmem>>, vector<1x128xf32>
    %29 = vector.broadcast %28 : vector<1x128xf32> to vector<8x128xf32>
    %30 = arith.addf %27, %29 : vector<8x128xf32>
    %cst_15 = arith.constant 0.000000e+00 : f32
    %31 = vector.broadcast %cst_15 : f32 to vector<8x128xf32>
    %32 = arith.maximumf %30, %31 : vector<8x128xf32>
    %c0_16 = arith.constant 0 : index
    %c0_17 = arith.constant 0 : index
    %33 = vector.load %arg6[%c0_16, %c0_17] : memref<8x128xf32, #tpu.memory_space<vmem>>, vector<8x128xf32>
    tpu.vector_store %arg6[%c0_16, %c0_17], %32 {strides = array<i32>} : memref<8x128xf32, #tpu.memory_space<vmem>>, vector<8x128xf32>,
    return
  }
  func.func @transform_0(%arg0: i32) -> (i32, i32) {
    %c0_i32 = arith.constant 0 : i32
    %c0_i32_0 = arith.constant 0 : i32
    %c0_i32_1 = arith.constant 0 : i32
    return %c0_i32, %c0_i32_0 : i32, i32
  }
  func.func @transform_1(%arg0: i32) -> (i32, i32) {
    %c0_i32 = arith.constant 0 : i32
    %c0_i32_0 = arith.constant 0 : i32
    %c0_i32_1 = arith.constant 0 : i32
    return %c0_i32, %c0_i32_0 : i32, i32
  }
  func.func @transform_2(%arg0: i32) -> (i32, i32) {
    %c0_i32 = arith.constant 0 : i32
    %c0_i32_0 = arith.constant 0 : i32
    %c0_i32_1 = arith.constant 0 : i32
    return %c0_i32, %c0_i32_0 : i32, i32
  }
  func.func @transform_3(%arg0: i32) -> (i32, i32) {
    %c0_i32 = arith.constant 0 : i32
    %c0_i32_0 = arith.constant 0 : i32
    %c0_i32_1 = arith.constant 0 : i32
    return %c0_i32, %c0_i32_0 : i32, i32
  }
  func.func @transform_4(%arg0: i32) -> (i32, i32) {
    %c0_i32 = arith.constant 0 : i32
    %c0_i32_0 = arith.constant 0 : i32
    %c0_i32_1 = arith.constant 0 : i32
    return %c0_i32, %c0_i32_0 : i32, i32
  }
  func.func @transform_5(%arg0: i32) -> (i32, i32) {
    %c0_i32 = arith.constant 0 : i32
    %c0_i32_0 = arith.constant 0 : i32
    %c0_i32_1 = arith.constant 0 : i32
    return %c0_i32, %c0_i32_0 : i32, i32
  }
}

module attributes {stable_mosaic.version = 11 : i64} {
  func.func @matmul_bias_bn_relu_kernel(%arg0: i32, %arg1: memref<32x2048xf32, #tpu.memory_space<vmem>>, %arg2: memref<2048x128xf32, #tpu.memory_space<vmem>>, %arg3: memref<1x128xf32, #tpu.memory_space<vmem>>, %arg4: memref<1x128xf32, #tpu.memory_space<vmem>>, %arg5: memref<1x128xf32, #tpu.memory_space<vmem>>, %arg6: memref<32x128xf32, #tpu.memory_space<vmem>>) attributes {dimension_semantics = [#tpu.dimension_semantics<arbitrary>], iteration_bounds = array<i64: 1>, scalar_prefetch = 0 : i64, scratch_operands = 0 : i64, tpu.core_type = #tpu.core_type<tc>, window_params = [{pipeline_mode = #tpu.pipeline_mode<synchronous>, transform_indices = @transform_0, window_bounds = array<i64: 32, 2048>}, {pipeline_mode = #tpu.pipeline_mode<synchronous>, transform_indices = @transform_1, window_bounds = array<i64: 2048, 128>}, {pipeline_mode = #tpu.pipeline_mode<synchronous>, transform_indices = @transform_2, window_bounds = array<i64: 1, 128>}, {pipeline_mode = #tpu.pipeline_mode<synchronous>, transform_indices = @transform_3, window_bounds = array<i64: 1, 128>}, {pipeline_mode = #tpu.pipeline_mode<synchronous>, transform_indices = @transform_4, window_bounds = array<i64: 1, 128>}, {pipeline_mode = #tpu.pipeline_mode<synchronous>, transform_indices = @transform_5, window_bounds = array<i64: 32, 128>}]} {
    %c0 = arith.constant 0 : index
    %c0_0 = arith.constant 0 : index
    %0 = vector.load %arg1[%c0, %c0_0] : memref<32x2048xf32, #tpu.memory_space<vmem>>, vector<32x2048xf32>
    %c0_1 = arith.constant 0 : index
    %c0_2 = arith.constant 0 : index
    %1 = vector.load %arg2[%c0_1, %c0_2] : memref<2048x128xf32, #tpu.memory_space<vmem>>, vector<2048x128xf32>
    %cst = arith.constant dense<0.000000e+00> : vector<32x128xf32>
    %2 = tpu.matmul %0, %1, %cst {dimension_numbers = #tpu.dot_dimension_numbers<[1], [0], [0], [1], [0, 0, 1, 1], [], []>} : vector<32x2048xf32>, vector<2048x128xf32>, vector<32x128xf32> -> vector<32x128xf32>
    %c0_3 = arith.constant 0 : index
    %c0_4 = arith.constant 0 : index
    %3 = vector.load %arg3[%c0_3, %c0_4] : memref<1x128xf32, #tpu.memory_space<vmem>>, vector<1x128xf32>
    %4 = vector.broadcast %3 : vector<1x128xf32> to vector<32x128xf32>
    %5 = arith.addf %2, %4 : vector<32x128xf32>
    %cst_5 = arith.constant dense<0.000000e+00> : vector<128xf32>
    %6 = vector.multi_reduction <add>, %5, %cst_5 [0] : vector<32x128xf32> to vector<128xf32>
    %7 = vector.shape_cast %6 : vector<128xf32> to vector<1x128xf32>
    %8 = arith.mulf %5, %5 : vector<32x128xf32>
    %cst_6 = arith.constant dense<0.000000e+00> : vector<128xf32>
    %9 = vector.multi_reduction <add>, %8, %cst_6 [0] : vector<32x128xf32> to vector<128xf32>
    %10 = vector.shape_cast %9 : vector<128xf32> to vector<1x128xf32>
    %cst_7 = arith.constant 3.125000e-02 : f32
    %11 = vector.broadcast %cst_7 : f32 to vector<1x128xf32>
    %12 = arith.mulf %7, %11 : vector<1x128xf32>
    %cst_8 = arith.constant 3.125000e-02 : f32
    %13 = vector.broadcast %cst_8 : f32 to vector<1x128xf32>
    %14 = arith.mulf %10, %13 : vector<1x128xf32>
    %15 = arith.mulf %12, %12 : vector<1x128xf32>
    %16 = arith.subf %14, %15 : vector<1x128xf32>
    %cst_9 = arith.constant 0.000000e+00 : f32
    %17 = vector.broadcast %cst_9 : f32 to vector<1x128xf32>
    %18 = arith.maximumf %16, %17 : vector<1x128xf32>
    %cst_10 = arith.constant 9.99999974E-6 : f32
    %19 = vector.broadcast %cst_10 : f32 to vector<1x128xf32>
    %20 = arith.addf %18, %19 : vector<1x128xf32>
    %21 = math.rsqrt %20 : vector<1x128xf32>
    %22 = vector.broadcast %12 : vector<1x128xf32> to vector<32x128xf32>
    %23 = arith.subf %5, %22 : vector<32x128xf32>
    %c0_11 = arith.constant 0 : index
    %c0_12 = arith.constant 0 : index
    %24 = vector.load %arg4[%c0_11, %c0_12] : memref<1x128xf32, #tpu.memory_space<vmem>>, vector<1x128xf32>
    %25 = arith.mulf %21, %24 : vector<1x128xf32>
    %26 = vector.broadcast %25 : vector<1x128xf32> to vector<32x128xf32>
    %27 = arith.mulf %23, %26 : vector<32x128xf32>
    %c0_13 = arith.constant 0 : index
    %c0_14 = arith.constant 0 : index
    %28 = vector.load %arg5[%c0_13, %c0_14] : memref<1x128xf32, #tpu.memory_space<vmem>>, vector<1x128xf32>
    %29 = vector.broadcast %28 : vector<1x128xf32> to vector<32x128xf32>
    %30 = arith.addf %27, %29 : vector<32x128xf32>
    %cst_15 = arith.constant 0.000000e+00 : f32
    %31 = vector.broadcast %cst_15 : f32 to vector<32x128xf32>
    %32 = arith.maximumf %30, %31 : vector<32x128xf32>
    %c0_16 = arith.constant 0 : index
    %c0_17 = arith.constant 0 : index
    %33 = vector.load %arg6[%c0_16, %c0_17] : memref<32x128xf32, #tpu.memory_space<vmem>>, vector<32x128xf32>
    tpu.vector_store %arg6[%c0_16, %c0_17], %32 {strides = array<i32>} : memref<32x128xf32, #tpu.memory_space<vmem>>, vector<32x128xf32>,
    return
  }
  func.func @transform_0(%arg0: i32) -> (i32, i32) {
    %c0_i32 = arith.constant 0 : i32
    %c0_i32_0 = arith.constant 0 : i32
    %c0_i32_1 = arith.constant 0 : i32
    return %c0_i32, %c0_i32_0 : i32, i32
  }
  func.func @transform_1(%arg0: i32) -> (i32, i32) {
    %c0_i32 = arith.constant 0 : i32
    %c0_i32_0 = arith.constant 0 : i32
    %c0_i32_1 = arith.constant 0 : i32
    return %c0_i32, %c0_i32_0 : i32, i32
  }
  func.func @transform_2(%arg0: i32) -> (i32, i32) {
    %c0_i32 = arith.constant 0 : i32
    %c0_i32_0 = arith.constant 0 : i32
    %c0_i32_1 = arith.constant 0 : i32
    return %c0_i32, %c0_i32_0 : i32, i32
  }
  func.func @transform_3(%arg0: i32) -> (i32, i32) {
    %c0_i32 = arith.constant 0 : i32
    %c0_i32_0 = arith.constant 0 : i32
    %c0_i32_1 = arith.constant 0 : i32
    return %c0_i32, %c0_i32_0 : i32, i32
  }
  func.func @transform_4(%arg0: i32) -> (i32, i32) {
    %c0_i32 = arith.constant 0 : i32
    %c0_i32_0 = arith.constant 0 : i32
    %c0_i32_1 = arith.constant 0 : i32
    return %c0_i32, %c0_i32_0 : i32, i32
  }
  func.func @transform_5(%arg0: i32) -> (i32, i32) {
    %c0_i32 = arith.constant 0 : i32
    %c0_i32_0 = arith.constant 0 : i32
    %c0_i32_1 = arith.constant 0 : i32
    return %c0_i32, %c0_i32_0 : i32, i32
  }
}

module attributes {stable_mosaic.version = 11 : i64} {
  func.func @matmul_bias_bn_relu_kernel(%arg0: i32, %arg1: memref<128x2048xf32, #tpu.memory_space<vmem>>, %arg2: memref<2048x128xf32, #tpu.memory_space<vmem>>, %arg3: memref<1x128xf32, #tpu.memory_space<vmem>>, %arg4: memref<1x128xf32, #tpu.memory_space<vmem>>, %arg5: memref<1x128xf32, #tpu.memory_space<vmem>>, %arg6: memref<128x128xf32, #tpu.memory_space<vmem>>) attributes {dimension_semantics = [#tpu.dimension_semantics<arbitrary>], iteration_bounds = array<i64: 1>, scalar_prefetch = 0 : i64, scratch_operands = 0 : i64, tpu.core_type = #tpu.core_type<tc>, window_params = [{pipeline_mode = #tpu.pipeline_mode<synchronous>, transform_indices = @transform_0, window_bounds = array<i64: 128, 2048>}, {pipeline_mode = #tpu.pipeline_mode<synchronous>, transform_indices = @transform_1, window_bounds = array<i64: 2048, 128>}, {pipeline_mode = #tpu.pipeline_mode<synchronous>, transform_indices = @transform_2, window_bounds = array<i64: 1, 128>}, {pipeline_mode = #tpu.pipeline_mode<synchronous>, transform_indices = @transform_3, window_bounds = array<i64: 1, 128>}, {pipeline_mode = #tpu.pipeline_mode<synchronous>, transform_indices = @transform_4, window_bounds = array<i64: 1, 128>}, {pipeline_mode = #tpu.pipeline_mode<synchronous>, transform_indices = @transform_5, window_bounds = array<i64: 128, 128>}]} {
    %c0 = arith.constant 0 : index
    %c0_0 = arith.constant 0 : index
    %0 = vector.load %arg1[%c0, %c0_0] : memref<128x2048xf32, #tpu.memory_space<vmem>>, vector<128x2048xf32>
    %c0_1 = arith.constant 0 : index
    %c0_2 = arith.constant 0 : index
    %1 = vector.load %arg2[%c0_1, %c0_2] : memref<2048x128xf32, #tpu.memory_space<vmem>>, vector<2048x128xf32>
    %cst = arith.constant dense<0.000000e+00> : vector<128x128xf32>
    %2 = tpu.matmul %0, %1, %cst {dimension_numbers = #tpu.dot_dimension_numbers<[1], [0], [0], [1], [0, 0, 1, 1], [], []>} : vector<128x2048xf32>, vector<2048x128xf32>, vector<128x128xf32> -> vector<128x128xf32>
    %c0_3 = arith.constant 0 : index
    %c0_4 = arith.constant 0 : index
    %3 = vector.load %arg3[%c0_3, %c0_4] : memref<1x128xf32, #tpu.memory_space<vmem>>, vector<1x128xf32>
    %4 = vector.broadcast %3 : vector<1x128xf32> to vector<128x128xf32>
    %5 = arith.addf %2, %4 : vector<128x128xf32>
    %cst_5 = arith.constant dense<0.000000e+00> : vector<128xf32>
    %6 = vector.multi_reduction <add>, %5, %cst_5 [0] : vector<128x128xf32> to vector<128xf32>
    %7 = vector.shape_cast %6 : vector<128xf32> to vector<1x128xf32>
    %8 = arith.mulf %5, %5 : vector<128x128xf32>
    %cst_6 = arith.constant dense<0.000000e+00> : vector<128xf32>
    %9 = vector.multi_reduction <add>, %8, %cst_6 [0] : vector<128x128xf32> to vector<128xf32>
    %10 = vector.shape_cast %9 : vector<128xf32> to vector<1x128xf32>
    %cst_7 = arith.constant 7.812500e-03 : f32
    %11 = vector.broadcast %cst_7 : f32 to vector<1x128xf32>
    %12 = arith.mulf %7, %11 : vector<1x128xf32>
    %cst_8 = arith.constant 7.812500e-03 : f32
    %13 = vector.broadcast %cst_8 : f32 to vector<1x128xf32>
    %14 = arith.mulf %10, %13 : vector<1x128xf32>
    %15 = arith.mulf %12, %12 : vector<1x128xf32>
    %16 = arith.subf %14, %15 : vector<1x128xf32>
    %cst_9 = arith.constant 0.000000e+00 : f32
    %17 = vector.broadcast %cst_9 : f32 to vector<1x128xf32>
    %18 = arith.maximumf %16, %17 : vector<1x128xf32>
    %cst_10 = arith.constant 9.99999974E-6 : f32
    %19 = vector.broadcast %cst_10 : f32 to vector<1x128xf32>
    %20 = arith.addf %18, %19 : vector<1x128xf32>
    %21 = math.rsqrt %20 : vector<1x128xf32>
    %22 = vector.broadcast %12 : vector<1x128xf32> to vector<128x128xf32>
    %23 = arith.subf %5, %22 : vector<128x128xf32>
    %c0_11 = arith.constant 0 : index
    %c0_12 = arith.constant 0 : index
    %24 = vector.load %arg4[%c0_11, %c0_12] : memref<1x128xf32, #tpu.memory_space<vmem>>, vector<1x128xf32>
    %25 = arith.mulf %21, %24 : vector<1x128xf32>
    %26 = vector.broadcast %25 : vector<1x128xf32> to vector<128x128xf32>
    %27 = arith.mulf %23, %26 : vector<128x128xf32>
    %c0_13 = arith.constant 0 : index
    %c0_14 = arith.constant 0 : index
    %28 = vector.load %arg5[%c0_13, %c0_14] : memref<1x128xf32, #tpu.memory_space<vmem>>, vector<1x128xf32>
    %29 = vector.broadcast %28 : vector<1x128xf32> to vector<128x128xf32>
    %30 = arith.addf %27, %29 : vector<128x128xf32>
    %cst_15 = arith.constant 0.000000e+00 : f32
    %31 = vector.broadcast %cst_15 : f32 to vector<128x128xf32>
    %32 = arith.maximumf %30, %31 : vector<128x128xf32>
    %c0_16 = arith.constant 0 : index
    %c0_17 = arith.constant 0 : index
    %33 = vector.load %arg6[%c0_16, %c0_17] : memref<128x128xf32, #tpu.memory_space<vmem>>, vector<128x128xf32>
    tpu.vector_store %arg6[%c0_16, %c0_17], %32 {strides = array<i32>} : memref<128x128xf32, #tpu.memory_space<vmem>>, vector<128x128xf32>,
    return
  }
  func.func @transform_0(%arg0: i32) -> (i32, i32) {
    %c0_i32 = arith.constant 0 : i32
    %c0_i32_0 = arith.constant 0 : i32
    %c0_i32_1 = arith.constant 0 : i32
    return %c0_i32, %c0_i32_0 : i32, i32
  }
  func.func @transform_1(%arg0: i32) -> (i32, i32) {
    %c0_i32 = arith.constant 0 : i32
    %c0_i32_0 = arith.constant 0 : i32
    %c0_i32_1 = arith.constant 0 : i32
    return %c0_i32, %c0_i32_0 : i32, i32
  }
  func.func @transform_2(%arg0: i32) -> (i32, i32) {
    %c0_i32 = arith.constant 0 : i32
    %c0_i32_0 = arith.constant 0 : i32
    %c0_i32_1 = arith.constant 0 : i32
    return %c0_i32, %c0_i32_0 : i32, i32
  }
  func.func @transform_3(%arg0: i32) -> (i32, i32) {
    %c0_i32 = arith.constant 0 : i32
    %c0_i32_0 = arith.constant 0 : i32
    %c0_i32_1 = arith.constant 0 : i32
    return %c0_i32, %c0_i32_0 : i32, i32
  }
  func.func @transform_4(%arg0: i32) -> (i32, i32) {
    %c0_i32 = arith.constant 0 : i32
    %c0_i32_0 = arith.constant 0 : i32
    %c0_i32_1 = arith.constant 0 : i32
    return %c0_i32, %c0_i32_0 : i32, i32
  }
  func.func @transform_5(%arg0: i32) -> (i32, i32) {
    %c0_i32 = arith.constant 0 : i32
    %c0_i32_0 = arith.constant 0 : i32
    %c0_i32_1 = arith.constant 0 : i32
    return %c0_i32, %c0_i32_0 : i32, i32
  }
}

module attributes {stable_mosaic.version = 11 : i64} {
  func.func @matmul_bias_tanh_kernel(%arg0: i32, %arg1: memref<256x2048xf32, #tpu.memory_space<vmem>>, %arg2: memref<2048x128xf32, #tpu.memory_space<vmem>>, %arg3: memref<1x128xf32, #tpu.memory_space<vmem>>, %arg4: memref<256x128xf32, #tpu.memory_space<vmem>>) attributes {dimension_semantics = [#tpu.dimension_semantics<parallel>], iteration_bounds = array<i64: 2>, scalar_prefetch = 0 : i64, scratch_operands = 0 : i64, tpu.core_type = #tpu.core_type<tc>, window_params = [{transform_indices = @transform_0, window_bounds = array<i64: 256, 2048>}, {pipeline_mode = #tpu.pipeline_mode<synchronous>, transform_indices = @transform_1, window_bounds = array<i64: 2048, 128>}, {pipeline_mode = #tpu.pipeline_mode<synchronous>, transform_indices = @transform_2, window_bounds = array<i64: 1, 128>}, {transform_indices = @transform_3, window_bounds = array<i64: 256, 128>}]} {
    %c0 = arith.constant 0 : index
    %c0_0 = arith.constant 0 : index
    %0 = vector.load %arg1[%c0, %c0_0] : memref<256x2048xf32, #tpu.memory_space<vmem>>, vector<256x2048xf32>
    %c0_1 = arith.constant 0 : index
    %c0_2 = arith.constant 0 : index
    %1 = vector.load %arg2[%c0_1, %c0_2] : memref<2048x128xf32, #tpu.memory_space<vmem>>, vector<2048x128xf32>
    %cst = arith.constant dense<0.000000e+00> : vector<256x128xf32>
    %2 = tpu.matmul %0, %1, %cst {dimension_numbers = #tpu.dot_dimension_numbers<[1], [0], [0], [1], [0, 0, 1, 1], [], []>} : vector<256x2048xf32>, vector<2048x128xf32>, vector<256x128xf32> -> vector<256x128xf32>
    %c0_3 = arith.constant 0 : index
    %c0_4 = arith.constant 0 : index
    %3 = vector.load %arg3[%c0_3, %c0_4] : memref<1x128xf32, #tpu.memory_space<vmem>>, vector<1x128xf32>
    %4 = vector.broadcast %3 : vector<1x128xf32> to vector<256x128xf32>
    %5 = arith.addf %2, %4 : vector<256x128xf32>
    %6 = math.tanh %5 : vector<256x128xf32>
    %c0_5 = arith.constant 0 : index
    %c0_6 = arith.constant 0 : index
    %7 = vector.load %arg4[%c0_5, %c0_6] : memref<256x128xf32, #tpu.memory_space<vmem>>, vector<256x128xf32>
    tpu.vector_store %arg4[%c0_5, %c0_6], %6 {strides = array<i32>} : memref<256x128xf32, #tpu.memory_space<vmem>>, vector<256x128xf32>,
    return
  }
  func.func @transform_0(%arg0: i32) -> (i32, i32) {
    %c0_i32 = arith.constant 0 : i32
    %c0_i32_0 = arith.constant 0 : i32
    return %arg0, %c0_i32 : i32, i32
  }
  func.func @transform_1(%arg0: i32) -> (i32, i32) {
    %c0_i32 = arith.constant 0 : i32
    %c0_i32_0 = arith.constant 0 : i32
    %c0_i32_1 = arith.constant 0 : i32
    return %c0_i32, %c0_i32_0 : i32, i32
  }
  func.func @transform_2(%arg0: i32) -> (i32, i32) {
    %c0_i32 = arith.constant 0 : i32
    %c0_i32_0 = arith.constant 0 : i32
    %c0_i32_1 = arith.constant 0 : i32
    return %c0_i32, %c0_i32_0 : i32, i32
  }
  func.func @transform_3(%arg0: i32) -> (i32, i32) {
    %c0_i32 = arith.constant 0 : i32
    %c0_i32_0 = arith.constant 0 : i32
    return %arg0, %c0_i32 : i32, i32
  }
}

</mosaic_0001>

<llo_original>
// kernel: generator_forward.5
$region0: #{generator_forward.5}
  #allocation0 [shape = 'u32[]', space=smem, size = 0x4, offset = 0x4, fixed_abs, tag = 'smem constant byte address 0x4 - core index']
  #allocation1 [shape = 'u32[144,128]{1,0:T(1,128)}', space=vmem, size = 0x12000, scoped, tag = 'internal scratch']
  %s0 = inlined_call_operand.vmem [shape: f32[2,128], index: 0, kind: input, shape index: {}]
  %s1 = inlined_call_operand.hbm [shape: f32[128,128], index: 1, kind: input, shape index: {}]
  %s2 = inlined_call_operand.hbm [shape: f32[1,128], index: 2, kind: input, shape index: {}]
  %s3 = inlined_call_operand.hbm [shape: f32[1,128], index: 3, kind: input, shape index: {}]
  %s4 = inlined_call_operand.hbm [shape: f32[1,128], index: 4, kind: input, shape index: {}]
  %s5 = inlined_call_operand.vmem [shape: f32[2,128], index: 5, kind: output, shape index: {}]
  %s6 = sld [smem:[#allocation0]]
  $region46: #{generator_forward.5} parent=0
    _
  %s8 = ssub.s32 1, %s6
  %s9 = scalar_select 0, %s8, %s6
  $region1: #{generator_forward.5} parent=0
    #allocation2 [shape = 'u8[65536]{0}', space=vmem, size = 0x10000, scoped, tag = 'input window, operand 1, single buffered']
    #allocation3 [shape = 's32[1]{0}', space=sflag, size = 0x4, scoped, tag = 'scoped memory for generator_forward.5']
    #allocation4 [shape = 'u8[512]{0}', space=vmem, size = 0x400, scoped, tag = 'input window, operand 2, single buffered']
    #allocation5 [shape = 's32[1]{0}', space=sflag, size = 0x4, scoped, tag = 'scoped memory for generator_forward.5']
    #allocation6 [shape = 'u8[512]{0}', space=vmem, size = 0x400, scoped, tag = 'input window, operand 3, single buffered']
    #allocation7 [shape = 'u8[512]{0}', space=vmem, size = 0x400, scoped, tag = 'input window, operand 4, single buffered']
    #allocation8 [shape = 's32[1]{0}', space=sflag, size = 0x4, scoped, tag = 'scoped memory for generator_forward.5']
    %10 = vsyncpa [#allocation3], 0
    %11 = vsyncpa [#allocation5], 0
    %12 = vsyncpa [#allocation8], 0
    // Predicated region
    $region2: #{generator_forward.5} parent=1 // pred_check
      _
    $region3: #{generator_forward.5} parent=1 // pred_check_branch
      %14 = sbr.rel (0) target = $region5
    $region4: #{generator_forward.5} parent=1 // pred_region
      _
    $region5: #{generator_forward.5} parent=1 // pred_fallthru
      _
    // Predicated region
    $region6: #{generator_forward.5} parent=1 // pred_check
      _
    $region7: #{generator_forward.5} parent=1 // pred_check_branch
      %16 = sbr.rel (0) target = $region9
    $region8: #{generator_forward.5} parent=1 // pred_region
      %s18 = ssub.s32 2048, 2048
      %19 = vsyncadd [#allocation3], %s18
      %s20 = sshll.u32 [#allocation2], 4
      %s21 = int_to_ptr.vmem [resolvable:$true] %s20
      %26 = dma.hbm_to_vmem [thread:$0]  %s1, 2048, %s21, [#allocation3], 128, 128, 8
    $region9: #{generator_forward.5} parent=1 // pred_fallthru
      _
    // Predicated region
    $region10: #{generator_forward.5} parent=1 // pred_check
      _
    $region11: #{generator_forward.5} parent=1 // pred_check_branch
      %28 = sbr.rel (0) target = $region13
    $region12: #{generator_forward.5} parent=1 // pred_region
      %s30 = ssub.s32 16, 16
      %31 = vsyncadd [#allocation5], %s30
      %s33 = sshll.u32 [#allocation4], 4
      %s34 = int_to_ptr.vmem [resolvable:$true] %s33
      %36 = dma.hbm_to_vmem [thread:$0]  %s2, 16, %s34, [#allocation5]
    $region13: #{generator_forward.5} parent=1 // pred_fallthru
      _
    // Predicated region
    $region14: #{generator_forward.5} parent=1 // pred_check
      _
    $region15: #{generator_forward.5} parent=1 // pred_check_branch
      %38 = sbr.rel (0) target = $region17
    $region16: #{generator_forward.5} parent=1 // pred_region
      %s40 = ssub.s32 16, 16
      %41 = vsyncadd [#allocation5], %s40
      %s43 = sshll.u32 [#allocation6], 4
      %s44 = int_to_ptr.vmem [resolvable:$true] %s43
      %46 = dma.hbm_to_vmem [thread:$0]  %s3, 16, %s44, [#allocation5]
    $region17: #{generator_forward.5} parent=1 // pred_fallthru
      _
    // Predicated region
    $region18: #{generator_forward.5} parent=1 // pred_check
      _
    $region19: #{generator_forward.5} parent=1 // pred_check_branch
      %48 = sbr.rel (0) target = $region21
    $region20: #{generator_forward.5} parent=1 // pred_region
      %s50 = ssub.s32 16, 16
      %51 = vsyncadd [#allocation8], %s50
      %s53 = sshll.u32 [#allocation7], 4
      %s54 = int_to_ptr.vmem [resolvable:$true] %s53
      %56 = dma.hbm_to_vmem [thread:$0]  %s4, 16, %s54, [#allocation8]
    $region21: #{generator_forward.5} parent=1 // pred_fallthru
      _
    // Predicated region
    $region22: #{generator_forward.5} parent=1 // pred_check
      _
    $region23: #{generator_forward.5} parent=1 // pred_check_branch
      %58 = sbr.rel (0) target = $region25
    $region24: #{generator_forward.5} parent=1 // pred_region
      %59 = dma.done [#allocation3], 2048
    $region25: #{generator_forward.5} parent=1 // pred_fallthru
      _
    // Predicated region
    $region26: #{generator_forward.5} parent=1 // pred_check
      _
    $region27: #{generator_forward.5} parent=1 // pred_check_branch
      %61 = sbr.rel (0) target = $region29
    $region28: #{generator_forward.5} parent=1 // pred_region
      %62 = dma.done [#allocation5], 16
    $region29: #{generator_forward.5} parent=1 // pred_fallthru
      _
    // Predicated region
    $region30: #{generator_forward.5} parent=1 // pred_check
      _
    $region31: #{generator_forward.5} parent=1 // pred_check_branch
      %64 = sbr.rel (0) target = $region33
    $region32: #{generator_forward.5} parent=1 // pred_region
      %65 = dma.done [#allocation5], 16
    $region33: #{generator_forward.5} parent=1 // pred_fallthru
      _
    // Predicated region
    $region34: #{generator_forward.5} parent=1 // pred_check
      _
    $region35: #{generator_forward.5} parent=1 // pred_check_branch
      %67 = sbr.rel (0) target = $region37
    $region36: #{generator_forward.5} parent=1 // pred_region
      %68 = dma.done [#allocation8], 16
    $region37: #{generator_forward.5} parent=1 // pred_fallthru
      _
    %v69 = vld [vmem:[%s0] sm:$0x3]
    %v70 = vld [vmem:[#allocation2] sm:$0xff]
    %v71 = vld [vmem:[#allocation2 + $0x8] sm:$0xff]
    %v72 = vld [vmem:[#allocation2 + $0x10] sm:$0xff]
    %v73 = vld [vmem:[#allocation2 + $0x18] sm:$0xff]
    %v74 = vld [vmem:[#allocation2 + $0x20] sm:$0xff]
    %v75 = vld [vmem:[#allocation2 + $0x28] sm:$0xff]
    %v76 = vld [vmem:[#allocation2 + $0x30] sm:$0xff]
    %v77 = vld [vmem:[#allocation2 + $0x38] sm:$0xff]
    %v78 = vld [vmem:[#allocation2 + $0x40] sm:$0xff]
    %v79 = vld [vmem:[#allocation2 + $0x48] sm:$0xff]
    %v80 = vld [vmem:[#allocation2 + $0x50] sm:$0xff]
    %v81 = vld [vmem:[#allocation2 + $0x58] sm:$0xff]
    %v82 = vld [vmem:[#allocation2 + $0x60] sm:$0xff]
    %v83 = vld [vmem:[#allocation2 + $0x68] sm:$0xff]
    %v84 = vld [vmem:[#allocation2 + $0x70] sm:$0xff]
    %v85 = vld [vmem:[#allocation2 + $0x78] sm:$0xff]
    %v86 = vld [vmem:[#allocation4] sm:$0x1]
    %v88 = vlaneseq
    %v89 = vshrl.u32 %v88, 7
    %v90 = vsub.s32 0, %v89
    %v91 = vrot.slane %v86, %v90
    %93 = vmatprep.subr.mxu0 0.0
    %94 = vmatpush1.msra.mxu0 %v85
    %95 = vmatprep.subr.mxu0 0.0
    %96 = vmatpush1.msra.mxu0 %v84
    %97 = vmatprep.subr.mxu0 0.0
    %98 = vmatpush1.msra.mxu0 %v83
    %99 = vmatprep.subr.mxu0 0.0
    %100 = vmatpush1.msra.mxu0 %v82
    %101 = vmatprep.subr.mxu0 0.0
    %102 = vmatpush1.msra.mxu0 %v81
    %103 = vmatprep.subr.mxu0 0.0
    %104 = vmatpush1.msra.mxu0 %v80
    %105 = vmatprep.subr.mxu0 0.0
    %106 = vmatpush1.msra.mxu0 %v79
    %107 = vmatprep.subr.mxu0 0.0
    %108 = vmatpush1.msra.mxu0 %v78
    %109 = vmatprep.subr.mxu0 0.0
    %110 = vmatpush1.msra.mxu0 %v77
    %111 = vmatprep.subr.mxu0 0.0
    %112 = vmatpush1.msra.mxu0 %v76
    %113 = vmatprep.subr.mxu0 0.0
    %114 = vmatpush1.msra.mxu0 %v75
    %115 = vmatprep.subr.mxu0 0.0
    %116 = vmatpush1.msra.mxu0 %v74
    %117 = vmatprep.subr.mxu0 0.0
    %118 = vmatpush1.msra.mxu0 %v73
    %119 = vmatprep.subr.mxu0 0.0
    %120 = vmatpush1.msra.mxu0 %v72
    %121 = vmatprep.subr.mxu0 0.0
    %122 = vmatpush1.msra.mxu0 %v71
    %123 = vmatprep.subr.mxu0 0.0
    %124 = vmatpush1.msra.mxu0 %v70
    %125 = vmatprep.subr.mxu0 0.0
    %126 = vmatpush2.msra.mxu0 0.0
    %127 = vmatprep.subr.mxu0 0.0
    %128 = vmatpush2.msra.mxu0 0.0
    %129 = vmatprep.subr.mxu0 0.0
    %130 = vmatpush2.msra.mxu0 0.0
    %131 = vmatprep.subr.mxu0 0.0
    %132 = vmatpush2.msra.mxu0 0.0
    %133 = vmatprep.subr.mxu0 0.0
    %134 = vmatpush2.msra.mxu0 0.0
    %135 = vmatprep.subr.mxu0 0.0
    %136 = vmatpush2.msra.mxu0 0.0
    %137 = vmatprep.subr.mxu0 0.0
    %138 = vmatpush2.msra.mxu0 0.0
    %139 = vmatprep.subr.mxu0 0.0
    %140 = vmatpush2.msra.mxu0 0.0
    %141 = vmatprep.subr.mxu0 0.0
    %142 = vmatpush2.msra.mxu0 0.0
    %143 = vmatprep.subr.mxu0 0.0
    %144 = vmatpush2.msra.mxu0 0.0
    %145 = vmatprep.subr.mxu0 0.0
    %146 = vmatpush2.msra.mxu0 0.0
    %147 = vmatprep.subr.mxu0 0.0
    %148 = vmatpush2.msra.mxu0 0.0
    %149 = vmatprep.subr.mxu0 0.0
    %150 = vmatpush2.msra.mxu0 0.0
    %151 = vmatprep.subr.mxu0 0.0
    %152 = vmatpush2.msra.mxu0 0.0
    %153 = vmatprep.subr.mxu0 0.0
    %154 = vmatpush2.msra.mxu0 0.0
    %155 = vmatprep.subr.mxu0 0.0
    %156 = vmatpush2.msra.mxu0 0.0
    %157 = vmatprep.mubr.f32.mxu0 0.0
    %158 = vmatmul.mubr.f32.gmra.mxu0 %v69
    %v159 = vpop.f32.mrf.mxu0
    %v160 = vadd.f32 %v91, %v159
    %v161 = vpop.f32.mrf.mxu0
    %162 = vdwg.mxu0
    %vm163 = vcmask 1041408
    %v164 = vsel %vm163, %v160, 0.0
    %v165 = vrot.slane %v164, 4
    %v166 = vadd.f32 %v164, %v165
    %v167 = vrot.slane %v166, 2
    %v168 = vadd.f32 %v166, %v167
    %v169 = vrot.slane %v168, 1
    %v170 = vadd.f32 %v168, %v169
    %v171 = vmul.f32 %v160, %v160
    %v172 = vsel %vm163, %v171, 0.0
    %v173 = vrot.slane %v172, 4
    %v174 = vadd.f32 %v172, %v173
    %v175 = vrot.slane %v174, 2
    %v176 = vadd.f32 %v174, %v175
    %v177 = vrot.slane %v176, 1
    %v178 = vadd.f32 %v176, %v177
    %v179 = vmul.f32 %v170, 0.5
    %v180 = vmul.f32 %v178, 0.5
    %v181 = vmul.f32 %v179, %v179
    %v182 = vsub.f32 %v180, %v181
    %v183 = vmax.f32 %v182, 0.0
    %v184 = vadd.f32 %v183, 1e-05
    %v185 = vrsqrt.pop %v184
    %v186 = vsub.f32 %v160, %v179
    %v187 = vld [vmem:[#allocation6] sm:$0x1]
    %v188 = vmul.f32 %v185, %v187
    %v189 = vlaneseq
    %v190 = vshrl.u32 %v189, 7
    %v191 = vsub.s32 0, %v190
    %v192 = vrot.slane %v188, %v191
    %v193 = vmul.f32 %v186, %v192
    %v194 = vld [vmem:[#allocation7] sm:$0x1]
    %v196 = vlaneseq
    %v197 = vshrl.u32 %v196, 7
    %v198 = vsub.s32 0, %v197
    %v199 = vrot.slane %v194, %v198
    %v201 = vadd.f32 %v193, %v199
    %v202 = vmax.f32 %v201, 0.0
    %203 = vst [vmem:[%s5] sm:$0x3] %v202
    // Predicated region
    $region38: #{generator_forward.5} parent=1 // pred_check
      _
    $region39: #{generator_forward.5} parent=1 // pred_check_branch
      %205 = sbr.rel (0) target = $region41
    $region40: #{generator_forward.5} parent=1 // pred_region
      _
    $region41: #{generator_forward.5} parent=1 // pred_fallthru
      _
    // Predicated region
    $region42: #{generator_forward.5} parent=1 // pred_check
      _
    $region43: #{generator_forward.5} parent=1 // pred_check_branch
      %207 = sbr.rel (0) target = $region45
    $region44: #{generator_forward.5} parent=1 // pred_region
      _
    $region45: #{generator_forward.5} parent=1 // pred_fallthru
      _
    %208 = vsyncpa [#allocation3], 1
    %209 = vsyncpa [#allocation5], 1
    %210 = vsyncpa [#allocation8], 1

// kernel: generator_forward.6
$region0: #{generator_forward.6}
  #allocation0 [shape = 'u32[]', space=smem, size = 0x4, offset = 0x4, fixed_abs, tag = 'smem constant byte address 0x4 - core index']
  #allocation1 [shape = 'u32[144,128]{1,0:T(1,128)}', space=vmem, size = 0x12000, scoped, tag = 'internal scratch']
  %s0 = inlined_call_operand.vmem [shape: f32[8,2048], index: 0, kind: input, shape index: {}]
  %s1 = inlined_call_operand.hbm [shape: f32[2048,128], index: 1, kind: input, shape index: {}]
  %s2 = inlined_call_operand.hbm [shape: f32[1,128], index: 2, kind: input, shape index: {}]
  %s3 = inlined_call_operand.hbm [shape: f32[1,128], index: 3, kind: input, shape index: {}]
  %s4 = inlined_call_operand.hbm [shape: f32[1,128], index: 4, kind: input, shape index: {}]
  %s5 = inlined_call_operand.vmem [shape: f32[8,128], index: 5, kind: output, shape index: {}]
  %s6 = sld [smem:[#allocation0]]
  $region46: #{generator_forward.6} parent=0
    _
  %s8 = ssub.s32 1, %s6
  %s9 = scalar_select 0, %s8, %s6
  $region1: #{generator_forward.6} parent=0
    #allocation2 [shape = 'u8[1048576]{0}', space=vmem, size = 0x100000, scoped, tag = 'input window, operand 1, single buffered']
    #allocation3 [shape = 's32[1]{0}', space=sflag, size = 0x4, scoped, tag = 'scoped memory for generator_forward.6']
    #allocation4 [shape = 'u8[512]{0}', space=vmem, size = 0x400, scoped, tag = 'input window, operand 2, single buffered']
    #allocation5 [shape = 's32[1]{0}', space=sflag, size = 0x4, scoped, tag = 'scoped memory for generator_forward.6']
    #allocation6 [shape = 'u8[512]{0}', space=vmem, size = 0x400, scoped, tag = 'input window, operand 3, single buffered']
    #allocation7 [shape = 'u8[512]{0}', space=vmem, size = 0x400, scoped, tag = 'input window, operand 4, single buffered']
    #allocation8 [shape = 's32[1]{0}', space=sflag, size = 0x4, scoped, tag = 'scoped memory for generator_forward.6']
    %10 = vsyncpa [#allocation3], 0
    %11 = vsyncpa [#allocation5], 0
    %12 = vsyncpa [#allocation8], 0
    // Predicated region
    $region2: #{generator_forward.6} parent=1 // pred_check
      _
    $region3: #{generator_forward.6} parent=1 // pred_check_branch
      %14 = sbr.rel (0) target = $region5
    $region4: #{generator_forward.6} parent=1 // pred_region
      _
    $region5: #{generator_forward.6} parent=1 // pred_fallthru
      _
    // Predicated region
    $region6: #{generator_forward.6} parent=1 // pred_check
      _
    $region7: #{generator_forward.6} parent=1 // pred_check_branch
      %16 = sbr.rel (0) target = $region9
    $region8: #{generator_forward.6} parent=1 // pred_region
      %s18 = ssub.s32 32768, 32768
      %19 = vsyncadd [#allocation3], %s18
      %s20 = sshll.u32 [#allocation2], 4
      %s21 = int_to_ptr.vmem [resolvable:$true] %s20
      %26 = dma.hbm_to_vmem [thread:$0]  %s1, 32768, %s21, [#allocation3], 128, 128, 8
    $region9: #{generator_forward.6} parent=1 // pred_fallthru
      _
    // Predicated region
    $region10: #{generator_forward.6} parent=1 // pred_check
      _
    $region11: #{generator_forward.6} parent=1 // pred_check_branch
      %28 = sbr.rel (0) target = $region13
    $region12: #{generator_forward.6} parent=1 // pred_region
      %s30 = ssub.s32 16, 16
      %31 = vsyncadd [#allocation5], %s30
      %s33 = sshll.u32 [#allocation4], 4
      %s34 = int_to_ptr.vmem [resolvable:$true] %s33
      %36 = dma.hbm_to_vmem [thread:$0]  %s2, 16, %s34, [#allocation5]
    $region13: #{generator_forward.6} parent=1 // pred_fallthru
      _
    // Predicated region
    $region14: #{generator_forward.6} parent=1 // pred_check
      _
    $region15: #{generator_forward.6} parent=1 // pred_check_branch
      %38 = sbr.rel (0) target = $region17
    $region16: #{generator_forward.6} parent=1 // pred_region
      %s40 = ssub.s32 16, 16
      %41 = vsyncadd [#allocation5], %s40
      %s43 = sshll.u32 [#allocation6], 4
      %s44 = int_to_ptr.vmem [resolvable:$true] %s43
      %46 = dma.hbm_to_vmem [thread:$0]  %s3, 16, %s44, [#allocation5]
    $region17: #{generator_forward.6} parent=1 // pred_fallthru
      _
    // Predicated region
    $region18: #{generator_forward.6} parent=1 // pred_check
      _
    $region19: #{generator_forward.6} parent=1 // pred_check_branch
      %48 = sbr.rel (0) target = $region21
    $region20: #{generator_forward.6} parent=1 // pred_region
      %s50 = ssub.s32 16, 16
      %51 = vsyncadd [#allocation8], %s50
      %s53 = sshll.u32 [#allocation7], 4
      %s54 = int_to_ptr.vmem [resolvable:$true] %s53
      %56 = dma.hbm_to_vmem [thread:$0]  %s4, 16, %s54, [#allocation8]
    $region21: #{generator_forward.6} parent=1 // pred_fallthru
      _
    // Predicated region
    $region22: #{generator_forward.6} parent=1 // pred_check
      _
    $region23: #{generator_forward.6} parent=1 // pred_check_branch
      %58 = sbr.rel (0) target = $region25
    $region24: #{generator_forward.6} parent=1 // pred_region
      %59 = dma.done [#allocation3], 32768
    $region25: #{generator_forward.6} parent=1 // pred_fallthru
      _
    // Predicated region
    $region26: #{generator_forward.6} parent=1 // pred_check
      _
    $region27: #{generator_forward.6} parent=1 // pred_check_branch
      %61 = sbr.rel (0) target = $region29
    $region28: #{generator_forward.6} parent=1 // pred_region
      %62 = dma.done [#allocation5], 16
    $region29: #{generator_forward.6} parent=1 // pred_fallthru
      _
    // Predicated region
    $region30: #{generator_forward.6} parent=1 // pred_check
      _
    $region31: #{generator_forward.6} parent=1 // pred_check_branch
      %64 = sbr.rel (0) target = $region33
    $region32: #{generator_forward.6} parent=1 // pred_region
      %65 = dma.done [#allocation5], 16
    $region33: #{generator_forward.6} parent=1 // pred_fallthru
      _
    // Predicated region
    $region34: #{generator_forward.6} parent=1 // pred_check
      _
    $region35: #{generator_forward.6} parent=1 // pred_check_branch
      %67 = sbr.rel (0) target = $region37
    $region36: #{generator_forward.6} parent=1 // pred_region
      %68 = dma.done [#allocation8], 16
    $region37: #{generator_forward.6} parent=1 // pred_fallthru
      _
    %v69 = vld [vmem:[%s0] sm:$0xff]
    %v70 = vld [vmem:[%s0 + $0x8] sm:$0xff]
    %v71 = vld [vmem:[%s0 + $0x10] sm:$0xff]
    %v72 = vld [vmem:[%s0 + $0x18] sm:$0xff]
    %v73 = vld [vmem:[%s0 + $0x20] sm:$0xff]
    %v74 = vld [vmem:[%s0 + $0x28] sm:$0xff]
    %v75 = vld [vmem:[%s0 + $0x30] sm:$0xff]
    %v76 = vld [vmem:[%s0 + $0x38] sm:$0xff]
    %v77 = vld [vmem:[%s0 + $0x40] sm:$0xff]
    %v78 = vld [vmem:[%s0 + $0x48] sm:$0xff]
    %v79 = vld [vmem:[%s0 + $0x50] sm:$0xff]
    %v80 = vld [vmem:[%s0 + $0x58] sm:$0xff]
    %v81 = vld [vmem:[%s0 + $0x60] sm:$0xff]
    %v82 = vld [vmem:[%s0 + $0x68] sm:$0xff]
    %v83 = vld [vmem:[%s0 + $0x70] sm:$0xff]
    %v84 = vld [vmem:[%s0 + $0x78] sm:$0xff]
    %v85 = vld [vmem:[#allocation2] sm:$0xff]
    %v86 = vld [vmem:[#allocation2 + $0x8] sm:$0xff]
    %v87 = vld [vmem:[#allocation2 + $0x10] sm:$0xff]
    %v88 = vld [vmem:[#allocation2 + $0x18] sm:$0xff]
    %v89 = vld [vmem:[#allocation2 + $0x20] sm:$0xff]
    %v90 = vld [vmem:[#allocation2 + $0x28] sm:$0xff]
    %v91 = vld [vmem:[#allocation2 + $0x30] sm:$0xff]
    %v92 = vld [vmem:[#allocation2 + $0x38] sm:$0xff]
    %v93 = vld [vmem:[#allocation2 + $0x40] sm:$0xff]
    %v94 = vld [vmem:[#allocation2 + $0x48] sm:$0xff]
    %v95 = vld [vmem:[#allocation2 + $0x50] sm:$0xff]
    %v96 = vld [vmem:[#allocation2 + $0x58] sm:$0xff]
    %v97 = vld [vmem:[#allocation2 + $0x60] sm:$0xff]
    %v98 = vld [vmem:[#allocation2 + $0x68] sm:$0xff]
    %v99 = vld [vmem:[#allocation2 + $0x70] sm:$0xff]
    %v100 = vld [vmem:[#allocation2 + $0x78] sm:$0xff]
    %v101 = vld [vmem:[#allocation2 + $0x80] sm:$0xff]
    %v102 = vld [vmem:[#allocation2 + $0x88] sm:$0xff]
    %v103 = vld [vmem:[#allocation2 + $0x90] sm:$0xff]
    %v104 = vld [vmem:[#allocation2 + $0x98] sm:$0xff]
    %v105 = vld [vmem:[#allocation2 + $0xa0] sm:$0xff]
    %v106 = vld [vmem:[#allocation2 + $0xa8] sm:$0xff]
    %v107 = vld [vmem:[#allocation2 + $0xb0] sm:$0xff]
    %v108 = vld [vmem:[#allocation2 + $0xb8] sm:$0xff]
    %v109 = vld [vmem:[#allocation2 + $0xc0] sm:$0xff]
    %v110 = vld [vmem:[#allocation2 + $0xc8] sm:$0xff]
    %v111 = vld [vmem:[#allocation2 + $0xd0] sm:$0xff]
    %v112 = vld [vmem:[#allocation2 + $0xd8] sm:$0xff]
    %v113 = vld [vmem:[#allocation2 + $0xe0] sm:$0xff]
    %v114 = vld [vmem:[#allocation2 + $0xe8] sm:$0xff]
    %v115 = vld [vmem:[#allocation2 + $0xf0] sm:$0xff]
    %v116 = vld [vmem:[#allocation2 + $0xf8] sm:$0xff]
    %v117 = vld [vmem:[#allocation2 + $0x100] sm:$0xff]
    %v118 = vld [vmem:[#allocation2 + $0x108] sm:$0xff]
    %v119 = vld [vmem:[#allocation2 + $0x110] sm:$0xff]
    %v120 = vld [vmem:[#allocation2 + $0x118] sm:$0xff]
    %v121 = vld [vmem:[#allocation2 + $0x120] sm:$0xff]
    %v122 = vld [vmem:[#allocation2 + $0x128] sm:$0xff]
    %v123 = vld [vmem:[#allocation2 + $0x130] sm:$0xff]
    %v124 = vld [vmem:[#allocation2 + $0x138] sm:$0xff]
    %v125 = vld [vmem:[#allocation2 + $0x140] sm:$0xff]
    %v126 = vld [vmem:[#allocation2 + $0x148] sm:$0xff]
    %v127 = vld [vmem:[#allocation2 + $0x150] sm:$0xff]
    %v128 = vld [vmem:[#allocation2 + $0x158] sm:$0xff]
    %v129 = vld [vmem:[#allocation2 + $0x160] sm:$0xff]
    %v130 = vld [vmem:[#allocation2 + $0x168] sm:$0xff]
    %v131 = vld [vmem:[#allocation2 + $0x170] sm:$0xff]
    %v132 = vld [vmem:[#allocation2 + $0x178] sm:$0xff]
    %v133 = vld [vmem:[#allocation2 + $0x180] sm:$0xff]
    %v134 = vld [vmem:[#allocation2 + $0x188] sm:$0xff]
    %v135 = vld [vmem:[#allocation2 + $0x190] sm:$0xff]
    %v136 = vld [vmem:[#allocation2 + $0x198] sm:$0xff]
    %v137 = vld [vmem:[#allocation2 + $0x1a0] sm:$0xff]
    %v138 = vld [vmem:[#allocation2 + $0x1a8] sm:$0xff]
    %v139 = vld [vmem:[#allocation2 + $0x1b0] sm:$0xff]
    %v140 = vld [vmem:[#allocation2 + $0x1b8] sm:$0xff]
    %v141 = vld [vmem:[#allocation2 + $0x1c0] sm:$0xff]
    %v142 = vld [vmem:[#allocation2 + $0x1c8] sm:$0xff]
    %v143 = vld [vmem:[#allocation2 + $0x1d0] sm:$0xff]
    %v144 = vld [vmem:[#allocation2 + $0x1d8] sm:$0xff]
    %v145 = vld [vmem:[#allocation2 + $0x1e0] sm:$0xff]
    %v146 = vld [vmem:[#allocation2 + $0x1e8] sm:$0xff]
    %v147 = vld [vmem:[#allocation2 + $0x1f0] sm:$0xff]
    %v148 = vld [vmem:[#allocation2 + $0x1f8] sm:$0xff]
    %v149 = vld [vmem:[#allocation2 + $0x200] sm:$0xff]
    %v150 = vld [vmem:[#allocation2 + $0x208] sm:$0xff]
    %v151 = vld [vmem:[#allocation2 + $0x210] sm:$0xff]
    %v152 = vld [vmem:[#allocation2 + $0x218] sm:$0xff]
    %v153 = vld [vmem:[#allocation2 + $0x220] sm:$0xff]
    %v154 = vld [vmem:[#allocation2 + $0x228] sm:$0xff]
    %v155 = vld [vmem:[#allocation2 + $0x230] sm:$0xff]
    %v156 = vld [vmem:[#allocation2 + $0x238] sm:$0xff]
    %v157 = vld [vmem:[#allocation2 + $0x240] sm:$0xff]
    %v158 = vld [vmem:[#allocation2 + $0x248] sm:$0xff]
    %v159 = vld [vmem:[#allocation2 + $0x250] sm:$0xff]
    %v160 = vld [vmem:[#allocation2 + $0x258] sm:$0xff]
    %v161 = vld [vmem:[#allocation2 + $0x260] sm:$0xff]
    %v162 = vld [vmem:[#allocation2 + $0x268] sm:$0xff]
    %v163 = vld [vmem:[#allocation2 + $0x270] sm:$0xff]
    %v164 = vld [vmem:[#allocation2 + $0x278] sm:$0xff]
    %v165 = vld [vmem:[#allocation2 + $0x280] sm:$0xff]
    %v166 = vld [vmem:[#allocation2 + $0x288] sm:$0xff]
    %v167 = vld [vmem:[#allocation2 + $0x290] sm:$0xff]
    %v168 = vld [vmem:[#allocation2 + $0x298] sm:$0xff]
    %v169 = vld [vmem:[#allocation2 + $0x2a0] sm:$0xff]
    %v170 = vld [vmem:[#allocation2 + $0x2a8] sm:$0xff]
    %v171 = vld [vmem:[#allocation2 + $0x2b0] sm:$0xff]
    %v172 = vld [vmem:[#allocation2 + $0x2b8] sm:$0xff]
    %v173 = vld [vmem:[#allocation2 + $0x2c0] sm:$0xff]
    %v174 = vld [vmem:[#allocation2 + $0x2c8] sm:$0xff]
    %v175 = vld [vmem:[#allocation2 + $0x2d0] sm:$0xff]
    %v176 = vld [vmem:[#allocation2 + $0x2d8] sm:$0xff]
    %v177 = vld [vmem:[#allocation2 + $0x2e0] sm:$0xff]
    %v178 = vld [vmem:[#allocation2 + $0x2e8] sm:$0xff]
    %v179 = vld [vmem:[#allocation2 + $0x2f0] sm:$0xff]
    %v180 = vld [vmem:[#allocation2 + $0x2f8] sm:$0xff]
    %v181 = vld [vmem:[#allocation2 + $0x300] sm:$0xff]
    %v182 = vld [vmem:[#allocation2 + $0x308] sm:$0xff]
    %v183 = vld [vmem:[#allocation2 + $0x310] sm:$0xff]
    %v184 = vld [vmem:[#allocation2 + $0x318] sm:$0xff]
    %v185 = vld [vmem:[#allocation2 + $0x320] sm:$0xff]
    %v186 = vld [vmem:[#allocation2 + $0x328] sm:$0xff]
    %v187 = vld [vmem:[#allocation2 + $0x330] sm:$0xff]
    %v188 = vld [vmem:[#allocation2 + $0x338] sm:$0xff]
    %v189 = vld [vmem:[#allocation2 + $0x340] sm:$0xff]
    %v190 = vld [vmem:[#allocation2 + $0x348] sm:$0xff]
    %v191 = vld [vmem:[#allocation2 + $0x350] sm:$0xff]
    %v192 = vld [vmem:[#allocation2 + $0x358] sm:$0xff]
    %v193 = vld [vmem:[#allocation2 + $0x360] sm:$0xff]
    %v194 = vld [vmem:[#allocation2 + $0x368] sm:$0xff]
    %v195 = vld [vmem:[#allocation2 + $0x370] sm:$0xff]
    %v196 = vld [vmem:[#allocation2 + $0x378] sm:$0xff]
    %v197 = vld [vmem:[#allocation2 + $0x380] sm:$0xff]
    %v198 = vld [vmem:[#allocation2 + $0x388] sm:$0xff]
    %v199 = vld [vmem:[#allocation2 + $0x390] sm:$0xff]
    %v200 = vld [vmem:[#allocation2 + $0x398] sm:$0xff]
    %v201 = vld [vmem:[#allocation2 + $0x3a0] sm:$0xff]
    %v202 = vld [vmem:[#allocation2 + $0x3a8] sm:$0xff]
    %v203 = vld [vmem:[#allocation2 + $0x3b0] sm:$0xff]
    %v204 = vld [vmem:[#allocation2 + $0x3b8] sm:$0xff]
    %v205 = vld [vmem:[#allocation2 + $0x3c0] sm:$0xff]
    %v206 = vld [vmem:[#allocation2 + $0x3c8] sm:$0xff]
    %v207 = vld [vmem:[#allocation2 + $0x3d0] sm:$0xff]
    %v208 = vld [vmem:[#allocation2 + $0x3d8] sm:$0xff]
    %v209 = vld [vmem:[#allocation2 + $0x3e0] sm:$0xff]
    %v210 = vld [vmem:[#allocation2 + $0x3e8] sm:$0xff]
    %v211 = vld [vmem:[#allocation2 + $0x3f0] sm:$0xff]
    %v212 = vld [vmem:[#allocation2 + $0x3f8] sm:$0xff]
    %v213 = vld [vmem:[#allocation2 + $0x400] sm:$0xff]
    %v214 = vld [vmem:[#allocation2 + $0x408] sm:$0xff]
    %v215 = vld [vmem:[#allocation2 + $0x410] sm:$0xff]
    %v216 = vld [vmem:[#allocation2 + $0x418] sm:$0xff]
    %v217 = vld [vmem:[#allocation2 + $0x420] sm:$0xff]
    %v218 = vld [vmem:[#allocation2 + $0x428] sm:$0xff]
    %v219 = vld [vmem:[#allocation2 + $0x430] sm:$0xff]
    %v220 = vld [vmem:[#allocation2 + $0x438] sm:$0xff]
    %v221 = vld [vmem:[#allocation2 + $0x440] sm:$0xff]
    %v222 = vld [vmem:[#allocation2 + $0x448] sm:$0xff]
    %v223 = vld [vmem:[#allocation2 + $0x450] sm:$0xff]
    %v224 = vld [vmem:[#allocation2 + $0x458] sm:$0xff]
    %v225 = vld [vmem:[#allocation2 + $0x460] sm:$0xff]
    %v226 = vld [vmem:[#allocation2 + $0x468] sm:$0xff]
    %v227 = vld [vmem:[#allocation2 + $0x470] sm:$0xff]
    %v228 = vld [vmem:[#allocation2 + $0x478] sm:$0xff]
    %v229 = vld [vmem:[#allocation2 + $0x480] sm:$0xff]
    %v230 = vld [vmem:[#allocation2 + $0x488] sm:$0xff]
    %v231 = vld [vmem:[#allocation2 + $0x490] sm:$0xff]
    %v232 = vld [vmem:[#allocation2 + $0x498] sm:$0xff]
    %v233 = vld [vmem:[#allocation2 + $0x4a0] sm:$0xff]
    %v234 = vld [vmem:[#allocation2 + $0x4a8] sm:$0xff]
    %v235 = vld [vmem:[#allocation2 + $0x4b0] sm:$0xff]
    %v236 = vld [vmem:[#allocation2 + $0x4b8] sm:$0xff]
    %v237 = vld [vmem:[#allocation2 + $0x4c0] sm:$0xff]
    %v238 = vld [vmem:[#allocation2 + $0x4c8] sm:$0xff]
    %v239 = vld [vmem:[#allocation2 + $0x4d0] sm:$0xff]
    %v240 = vld [vmem:[#allocation2 + $0x4d8] sm:$0xff]
    %v241 = vld [vmem:[#allocation2 + $0x4e0] sm:$0xff]
    %v242 = vld [vmem:[#allocation2 + $0x4e8] sm:$0xff]
    %v243 = vld [vmem:[#allocation2 + $0x4f0] sm:$0xff]
    %v244 = vld [vmem:[#allocation2 + $0x4f8] sm:$0xff]
    %v245 = vld [vmem:[#allocation2 + $0x500] sm:$0xff]
    %v246 = vld [vmem:[#allocation2 + $0x508] sm:$0xff]
    %v247 = vld [vmem:[#allocation2 + $0x510] sm:$0xff]
    %v248 = vld [vmem:[#allocation2 + $0x518] sm:$0xff]
    %v249 = vld [vmem:[#allocation2 + $0x520] sm:$0xff]
    %v250 = vld [vmem:[#allocation2 + $0x528] sm:$0xff]
    %v251 = vld [vmem:[#allocation2 + $0x530] sm:$0xff]
    %v252 = vld [vmem:[#allocation2 + $0x538] sm:$0xff]
    %v253 = vld [vmem:[#allocation2 + $0x540] sm:$0xff]
    %v254 = vld [vmem:[#allocation2 + $0x548] sm:$0xff]
    %v255 = vld [vmem:[#allocation2 + $0x550] sm:$0xff]
    %v256 = vld [vmem:[#allocation2 + $0x558] sm:$0xff]
    %v257 = vld [vmem:[#allocation2 + $0x560] sm:$0xff]
    %v258 = vld [vmem:[#allocation2 + $0x568] sm:$0xff]
    %v259 = vld [vmem:[#allocation2 + $0x570] sm:$0xff]
    %v260 = vld [vmem:[#allocation2 + $0x578] sm:$0xff]
    %v261 = vld [vmem:[#allocation2 + $0x580] sm:$0xff]
    %v262 = vld [vmem:[#allocation2 + $0x588] sm:$0xff]
    %v263 = vld [vmem:[#allocation2 + $0x590] sm:$0xff]
    %v264 = vld [vmem:[#allocation2 + $0x598] sm:$0xff]
    %v265 = vld [vmem:[#allocation2 + $0x5a0] sm:$0xff]
    %v266 = vld [vmem:[#allocation2 + $0x5a8] sm:$0xff]
    %v267 = vld [vmem:[#allocation2 + $0x5b0] sm:$0xff]
    %v268 = vld [vmem:[#allocation2 + $0x5b8] sm:$0xff]
    %v269 = vld [vmem:[#allocation2 + $0x5c0] sm:$0xff]
    %v270 = vld [vmem:[#allocation2 + $0x5c8] sm:$0xff]
    %v271 = vld [vmem:[#allocation2 + $0x5d0] sm:$0xff]
    %v272 = vld [vmem:[#allocation2 + $0x5d8] sm:$0xff]
    %v273 = vld [vmem:[#allocation2 + $0x5e0] sm:$0xff]
    %v274 = vld [vmem:[#allocation2 + $0x5e8] sm:$0xff]
    %v275 = vld [vmem:[#allocation2 + $0x5f0] sm:$0xff]
    %v276 = vld [vmem:[#allocation2 + $0x5f8] sm:$0xff]
    %v277 = vld [vmem:[#allocation2 + $0x600] sm:$0xff]
    %v278 = vld [vmem:[#allocation2 + $0x608] sm:$0xff]
    %v279 = vld [vmem:[#allocation2 + $0x610] sm:$0xff]
    %v280 = vld [vmem:[#allocation2 + $0x618] sm:$0xff]
    %v281 = vld [vmem:[#allocation2 + $0x620] sm:$0xff]
    %v282 = vld [vmem:[#allocation2 + $0x628] sm:$0xff]
    %v283 = vld [vmem:[#allocation2 + $0x630] sm:$0xff]
    %v284 = vld [vmem:[#allocation2 + $0x638] sm:$0xff]
    %v285 = vld [vmem:[#allocation2 + $0x640] sm:$0xff]
    %v286 = vld [vmem:[#allocation2 + $0x648] sm:$0xff]
    %v287 = vld [vmem:[#allocation2 + $0x650] sm:$0xff]
    %v288 = vld [vmem:[#allocation2 + $0x658] sm:$0xff]
    %v289 = vld [vmem:[#allocation2 + $0x660] sm:$0xff]
    %v290 = vld [vmem:[#allocation2 + $0x668] sm:$0xff]
    %v291 = vld [vmem:[#allocation2 + $0x670] sm:$0xff]
    %v292 = vld [vmem:[#allocation2 + $0x678] sm:$0xff]
    %v293 = vld [vmem:[#allocation2 + $0x680] sm:$0xff]
    %v294 = vld [vmem:[#allocation2 + $0x688] sm:$0xff]
    %v295 = vld [vmem:[#allocation2 + $0x690] sm:$0xff]
    %v296 = vld [vmem:[#allocation2 + $0x698] sm:$0xff]
    %v297 = vld [vmem:[#allocation2 + $0x6a0] sm:$0xff]
    %v298 = vld [vmem:[#allocation2 + $0x6a8] sm:$0xff]
    %v299 = vld [vmem:[#allocation2 + $0x6b0] sm:$0xff]
    %v300 = vld [vmem:[#allocation2 + $0x6b8] sm:$0xff]
    %v301 = vld [vmem:[#allocation2 + $0x6c0] sm:$0xff]
    %v302 = vld [vmem:[#allocation2 + $0x6c8] sm:$0xff]
    %v303 = vld [vmem:[#allocation2 + $0x6d0] sm:$0xff]
    %v304 = vld [vmem:[#allocation2 + $0x6d8] sm:$0xff]
    %v305 = vld [vmem:[#allocation2 + $0x6e0] sm:$0xff]
    %v306 = vld [vmem:[#allocation2 + $0x6e8] sm:$0xff]
    %v307 = vld [vmem:[#allocation2 + $0x6f0] sm:$0xff]
    %v308 = vld [vmem:[#allocation2 + $0x6f8] sm:$0xff]
    %v309 = vld [vmem:[#allocation2 + $0x700] sm:$0xff]
    %v310 = vld [vmem:[#allocation2 + $0x708] sm:$0xff]
    %v311 = vld [vmem:[#allocation2 + $0x710] sm:$0xff]
    %v312 = vld [vmem:[#allocation2 + $0x718] sm:$0xff]
    %v313 = vld [vmem:[#allocation2 + $0x720] sm:$0xff]
    %v314 = vld [vmem:[#allocation2 + $0x728] sm:$0xff]
    %v315 = vld [vmem:[#allocation2 + $0x730] sm:$0xff]
    %v316 = vld [vmem:[#allocation2 + $0x738] sm:$0xff]
    %v317 = vld [vmem:[#allocation2 + $0x740] sm:$0xff]
    %v318 = vld [vmem:[#allocation2 + $0x748] sm:$0xff]
    %v319 = vld [vmem:[#allocation2 + $0x750] sm:$0xff]
    %v320 = vld [vmem:[#allocation2 + $0x758] sm:$0xff]
    %v321 = vld [vmem:[#allocation2 + $0x760] sm:$0xff]
    %v322 = vld [vmem:[#allocation2 + $0x768] sm:$0xff]
    %v323 = vld [vmem:[#allocation2 + $0x770] sm:$0xff]
    %v324 = vld [vmem:[#allocation2 + $0x778] sm:$0xff]
    %v325 = vld [vmem:[#allocation2 + $0x780] sm:$0xff]
    %v326 = vld [vmem:[#allocation2 + $0x788] sm:$0xff]
    %v327 = vld [vmem:[#allocation2 + $0x790] sm:$0xff]
    %v328 = vld [vmem:[#allocation2 + $0x798] sm:$0xff]
    %v329 = vld [vmem:[#allocation2 + $0x7a0] sm:$0xff]
    %v330 = vld [vmem:[#allocation2 + $0x7a8] sm:$0xff]
    %v331 = vld [vmem:[#allocation2 + $0x7b0] sm:$0xff]
    %v332 = vld [vmem:[#allocation2 + $0x7b8] sm:$0xff]
    %v333 = vld [vmem:[#allocation2 + $0x7c0] sm:$0xff]
    %v334 = vld [vmem:[#allocation2 + $0x7c8] sm:$0xff]
    %v335 = vld [vmem:[#allocation2 + $0x7d0] sm:$0xff]
    %v336 = vld [vmem:[#allocation2 + $0x7d8] sm:$0xff]
    %v337 = vld [vmem:[#allocation2 + $0x7e0] sm:$0xff]
    %v338 = vld [vmem:[#allocation2 + $0x7e8] sm:$0xff]
    %v339 = vld [vmem:[#allocation2 + $0x7f0] sm:$0xff]
    %v340 = vld [vmem:[#allocation2 + $0x7f8] sm:$0xff]
    %v341 = vld [vmem:[#allocation4] sm:$0x1]
    %v343 = vlaneseq
    %v344 = vshrl.u32 %v343, 7
    %v345 = vsub.s32 0, %v344
    %v346 = vrot.slane %v341, %v345
    %348 = vmatprep.subr.mxu0 0.0
    %349 = vmatpush1.msra.mxu0 %v100
    %350 = vmatprep.subr.mxu0 0.0
    %351 = vmatpush1.msra.mxu0 %v99
    %352 = vmatprep.subr.mxu0 0.0
    %353 = vmatpush1.msra.mxu0 %v98
    %354 = vmatprep.subr.mxu0 0.0
    %355 = vmatpush1.msra.mxu0 %v97
    %356 = vmatprep.subr.mxu0 0.0
    %357 = vmatpush1.msra.mxu0 %v96
    %358 = vmatprep.subr.mxu0 0.0
    %359 = vmatpush1.msra.mxu0 %v95
    %360 = vmatprep.subr.mxu0 0.0
    %361 = vmatpush1.msra.mxu0 %v94
    %362 = vmatprep.subr.mxu0 0.0
    %363 = vmatpush1.msra.mxu0 %v93
    %364 = vmatprep.subr.mxu0 0.0
    %365 = vmatpush1.msra.mxu0 %v92
    %366 = vmatprep.subr.mxu0 0.0
    %367 = vmatpush1.msra.mxu0 %v91
    %368 = vmatprep.subr.mxu0 0.0
    %369 = vmatpush1.msra.mxu0 %v90
    %370 = vmatprep.subr.mxu0 0.0
    %371 = vmatpush1.msra.mxu0 %v89
    %372 = vmatprep.subr.mxu0 0.0
    %373 = vmatpush1.msra.mxu0 %v88
    %374 = vmatprep.subr.mxu0 0.0
    %375 = vmatpush1.msra.mxu0 %v87
    %376 = vmatprep.subr.mxu0 0.0
    %377 = vmatpush1.msra.mxu0 %v86
    %378 = vmatprep.subr.mxu0 0.0
    %379 = vmatpush1.msra.mxu0 %v85
    %380 = vmatprep.subr.mxu0 0.0
    %381 = vmatpush2.msra.mxu0 %v116
    %382 = vmatprep.subr.mxu0 0.0
    %383 = vmatpush2.msra.mxu0 %v115
    %384 = vmatprep.subr.mxu0 0.0
    %385 = vmatpush2.msra.mxu0 %v114
    %386 = vmatprep.subr.mxu0 0.0
    %387 = vmatpush2.msra.mxu0 %v113
    %388 = vmatprep.subr.mxu0 0.0
    %389 = vmatpush2.msra.mxu0 %v112
    %390 = vmatprep.subr.mxu0 0.0
    %391 = vmatpush2.msra.mxu0 %v111
    %392 = vmatprep.subr.mxu0 0.0
    %393 = vmatpush2.msra.mxu0 %v110
    %394 = vmatprep.subr.mxu0 0.0
    %395 = vmatpush2.msra.mxu0 %v109
    %396 = vmatprep.subr.mxu0 0.0
    %397 = vmatpush2.msra.mxu0 %v108
    %398 = vmatprep.subr.mxu0 0.0
    %399 = vmatpush2.msra.mxu0 %v107
    %400 = vmatprep.subr.mxu0 0.0
    %401 = vmatpush2.msra.mxu0 %v106
    %402 = vmatprep.subr.mxu0 0.0
    %403 = vmatpush2.msra.mxu0 %v105
    %404 = vmatprep.subr.mxu0 0.0
    %405 = vmatpush2.msra.mxu0 %v104
    %406 = vmatprep.subr.mxu0 0.0
    %407 = vmatpush2.msra.mxu0 %v103
    %408 = vmatprep.subr.mxu0 0.0
    %409 = vmatpush2.msra.mxu0 %v102
    %410 = vmatprep.subr.mxu0 0.0
    %411 = vmatpush2.msra.mxu0 %v101
    %412 = vmatprep.mubr.f32.mxu0 %v70
    %413 = vmatmul.mubr.f32.gmra.mxu0 %v69
    %v414 = vpop.f32.mrf.mxu0
    %v415 = vadd.f32 %v346, %v414
    %v416 = vpop.f32.mrf.mxu0
    %417 = vdwg.mxu0
    %418 = vmatprep.subr.mxu0 0.0
    %419 = vmatpush1.msra.mxu0 %v132
    %420 = vmatprep.subr.mxu0 0.0
    %421 = vmatpush1.msra.mxu0 %v131
    %422 = vmatprep.subr.mxu0 0.0
    %423 = vmatpush1.msra.mxu0 %v130
    %424 = vmatprep.subr.mxu0 0.0
    %425 = vmatpush1.msra.mxu0 %v129
    %426 = vmatprep.subr.mxu0 0.0
    %427 = vmatpush1.msra.mxu0 %v128
    %428 = vmatprep.subr.mxu0 0.0
    %429 = vmatpush1.msra.mxu0 %v127
    %430 = vmatprep.subr.mxu0 0.0
    %431 = vmatpush1.msra.mxu0 %v126
    %432 = vmatprep.subr.mxu0 0.0
    %433 = vmatpush1.msra.mxu0 %v125
    %434 = vmatprep.subr.mxu0 0.0
    %435 = vmatpush1.msra.mxu0 %v124
    %436 = vmatprep.subr.mxu0 0.0
    %437 = vmatpush1.msra.mxu0 %v123
    %438 = vmatprep.subr.mxu0 0.0
    %439 = vmatpush1.msra.mxu0 %v122
    %440 = vmatprep.subr.mxu0 0.0
    %441 = vmatpush1.msra.mxu0 %v121
    %442 = vmatprep.subr.mxu0 0.0
    %443 = vmatpush1.msra.mxu0 %v120
    %444 = vmatprep.subr.mxu0 0.0
    %445 = vmatpush1.msra.mxu0 %v119
    %446 = vmatprep.subr.mxu0 0.0
    %447 = vmatpush1.msra.mxu0 %v118
    %448 = vmatprep.subr.mxu0 0.0
    %449 = vmatpush1.msra.mxu0 %v117
    %450 = vmatprep.subr.mxu0 0.0
    %451 = vmatpush2.msra.mxu0 %v148
    %452 = vmatprep.subr.mxu0 0.0
    %453 = vmatpush2.msra.mxu0 %v147
    %454 = vmatprep.subr.mxu0 0.0
    %455 = vmatpush2.msra.mxu0 %v146
    %456 = vmatprep.subr.mxu0 0.0
    %457 = vmatpush2.msra.mxu0 %v145
    %458 = vmatprep.subr.mxu0 0.0
    %459 = vmatpush2.msra.mxu0 %v144
    %460 = vmatprep.subr.mxu0 0.0
    %461 = vmatpush2.msra.mxu0 %v143
    %462 = vmatprep.subr.mxu0 0.0
    %463 = vmatpush2.msra.mxu0 %v142
    %464 = vmatprep.subr.mxu0 0.0
    %465 = vmatpush2.msra.mxu0 %v141
    %466 = vmatprep.subr.mxu0 0.0
    %467 = vmatpush2.msra.mxu0 %v140
    %468 = vmatprep.subr.mxu0 0.0
    %469 = vmatpush2.msra.mxu0 %v139
    %470 = vmatprep.subr.mxu0 0.0
    %471 = vmatpush2.msra.mxu0 %v138
    %472 = vmatprep.subr.mxu0 0.0
    %473 = vmatpush2.msra.mxu0 %v137
    %474 = vmatprep.subr.mxu0 0.0
    %475 = vmatpush2.msra.mxu0 %v136
    %476 = vmatprep.subr.mxu0 0.0
    %477 = vmatpush2.msra.mxu0 %v135
    %478 = vmatprep.subr.mxu0 0.0
    %479 = vmatpush2.msra.mxu0 %v134
    %480 = vmatprep.subr.mxu0 0.0
    %481 = vmatpush2.msra.mxu0 %v133
    %482 = vmatprep.mubr.f32.mxu0 %v72
    %483 = vmatmul.mubr.f32.gmra.mxu0 %v71
    %v484 = vpop.f32.mrf.mxu0
    %v485 = vadd.f32 %v415, %v484
    %v486 = vpop.f32.mrf.mxu0
    %487 = vdwg.mxu0
    %488 = vmatprep.subr.mxu0 0.0
    %489 = vmatpush1.msra.mxu0 %v164
    %490 = vmatprep.subr.mxu0 0.0
    %491 = vmatpush1.msra.mxu0 %v163
    %492 = vmatprep.subr.mxu0 0.0
    %493 = vmatpush1.msra.mxu0 %v162
    %494 = vmatprep.subr.mxu0 0.0
    %495 = vmatpush1.msra.mxu0 %v161
    %496 = vmatprep.subr.mxu0 0.0
    %497 = vmatpush1.msra.mxu0 %v160
    %498 = vmatprep.subr.mxu0 0.0
    %499 = vmatpush1.msra.mxu0 %v159
    %500 = vmatprep.subr.mxu0 0.0
    %501 = vmatpush1.msra.mxu0 %v158
    %502 = vmatprep.subr.mxu0 0.0
    %503 = vmatpush1.msra.mxu0 %v157
    %504 = vmatprep.subr.mxu0 0.0
    %505 = vmatpush1.msra.mxu0 %v156
    %506 = vmatprep.subr.mxu0 0.0
    %507 = vmatpush1.msra.mxu0 %v155
    %508 = vmatprep.subr.mxu0 0.0
    %509 = vmatpush1.msra.mxu0 %v154
    %510 = vmatprep.subr.mxu0 0.0
    %511 = vmatpush1.msra.mxu0 %v153
    %512 = vmatprep.subr.mxu0 0.0
    %513 = vmatpush1.msra.mxu0 %v152
    %514 = vmatprep.subr.mxu0 0.0
    %515 = vmatpush1.msra.mxu0 %v151
    %516 = vmatprep.subr.mxu0 0.0
    %517 = vmatpush1.msra.mxu0 %v150
    %518 = vmatprep.subr.mxu0 0.0
    %519 = vmatpush1.msra.mxu0 %v149
    %520 = vmatprep.subr.mxu0 0.0
    %521 = vmatpush2.msra.mxu0 %v180
    %522 = vmatprep.subr.mxu0 0.0
    %523 = vmatpush2.msra.mxu0 %v179
    %524 = vmatprep.subr.mxu0 0.0
    %525 = vmatpush2.msra.mxu0 %v178
    %526 = vmatprep.subr.mxu0 0.0
    %527 = vmatpush2.msra.mxu0 %v177
    %528 = vmatprep.subr.mxu0 0.0
    %529 = vmatpush2.msra.mxu0 %v176
    %530 = vmatprep.subr.mxu0 0.0
    %531 = vmatpush2.msra.mxu0 %v175
    %532 = vmatprep.subr.mxu0 0.0
    %533 = vmatpush2.msra.mxu0 %v174
    %534 = vmatprep.subr.mxu0 0.0
    %535 = vmatpush2.msra.mxu0 %v173
    %536 = vmatprep.subr.mxu0 0.0
    %537 = vmatpush2.msra.mxu0 %v172
    %538 = vmatprep.subr.mxu0 0.0
    %539 = vmatpush2.msra.mxu0 %v171
    %540 = vmatprep.subr.mxu0 0.0
    %541 = vmatpush2.msra.mxu0 %v170
    %542 = vmatprep.subr.mxu0 0.0
    %543 = vmatpush2.msra.mxu0 %v169
    %544 = vmatprep.subr.mxu0 0.0
    %545 = vmatpush2.msra.mxu0 %v168
    %546 = vmatprep.subr.mxu0 0.0
    %547 = vmatpush2.msra.mxu0 %v167
    %548 = vmatprep.subr.mxu0 0.0
    %549 = vmatpush2.msra.mxu0 %v166
    %550 = vmatprep.subr.mxu0 0.0
    %551 = vmatpush2.msra.mxu0 %v165
    %552 = vmatprep.mubr.f32.mxu0 %v74
    %553 = vmatmul.mubr.f32.gmra.mxu0 %v73
    %v554 = vpop.f32.mrf.mxu0
    %v555 = vadd.f32 %v485, %v554
    %v556 = vpop.f32.mrf.mxu0
    %557 = vdwg.mxu0
    %558 = vmatprep.subr.mxu0 0.0
    %559 = vmatpush1.msra.mxu0 %v196
    %560 = vmatprep.subr.mxu0 0.0
    %561 = vmatpush1.msra.mxu0 %v195
    %562 = vmatprep.subr.mxu0 0.0
    %563 = vmatpush1.msra.mxu0 %v194
    %564 = vmatprep.subr.mxu0 0.0
    %565 = vmatpush1.msra.mxu0 %v193
    %566 = vmatprep.subr.mxu0 0.0
    %567 = vmatpush1.msra.mxu0 %v192
    %568 = vmatprep.subr.mxu0 0.0
    %569 = vmatpush1.msra.mxu0 %v191
    %570 = vmatprep.subr.mxu0 0.0
    %571 = vmatpush1.msra.mxu0 %v190
    %572 = vmatprep.subr.mxu0 0.0
    %573 = vmatpush1.msra.mxu0 %v189
    %574 = vmatprep.subr.mxu0 0.0
    %575 = vmatpush1.msra.mxu0 %v188
    %576 = vmatprep.subr.mxu0 0.0
    %577 = vmatpush1.msra.mxu0 %v187
    %578 = vmatprep.subr.mxu0 0.0
    %579 = vmatpush1.msra.mxu0 %v186
    %580 = vmatprep.subr.mxu0 0.0
    %581 = vmatpush1.msra.mxu0 %v185
    %582 = vmatprep.subr.mxu0 0.0
    %583 = vmatpush1.msra.mxu0 %v184
    %584 = vmatprep.subr.mxu0 0.0
    %585 = vmatpush1.msra.mxu0 %v183
    %586 = vmatprep.subr.mxu0 0.0
    %587 = vmatpush1.msra.mxu0 %v182
    %588 = vmatprep.subr.mxu0 0.0
    %589 = vmatpush1.msra.mxu0 %v181
    %590 = vmatprep.subr.mxu0 0.0
    %591 = vmatpush2.msra.mxu0 %v212
    %592 = vmatprep.subr.mxu0 0.0
    %593 = vmatpush2.msra.mxu0 %v211
    %594 = vmatprep.subr.mxu0 0.0
    %595 = vmatpush2.msra.mxu0 %v210
    %596 = vmatprep.subr.mxu0 0.0
    %597 = vmatpush2.msra.mxu0 %v209
    %598 = vmatprep.subr.mxu0 0.0
    %599 = vmatpush2.msra.mxu0 %v208
    %600 = vmatprep.subr.mxu0 0.0
    %601 = vmatpush2.msra.mxu0 %v207
    %602 = vmatprep.subr.mxu0 0.0
    %603 = vmatpush2.msra.mxu0 %v206
    %604 = vmatprep.subr.mxu0 0.0
    %605 = vmatpush2.msra.mxu0 %v205
    %606 = vmatprep.subr.mxu0 0.0
    %607 = vmatpush2.msra.mxu0 %v204
    %608 = vmatprep.subr.mxu0 0.0
    %609 = vmatpush2.msra.mxu0 %v203
    %610 = vmatprep.subr.mxu0 0.0
    %611 = vmatpush2.msra.mxu0 %v202
    %612 = vmatprep.subr.mxu0 0.0
    %613 = vmatpush2.msra.mxu0 %v201
    %614 = vmatprep.subr.mxu0 0.0
    %615 = vmatpush2.msra.mxu0 %v200
    %616 = vmatprep.subr.mxu0 0.0
    %617 = vmatpush2.msra.mxu0 %v199
    %618 = vmatprep.subr.mxu0 0.0
    %619 = vmatpush2.msra.mxu0 %v198
    %620 = vmatprep.subr.mxu0 0.0
    %621 = vmatpush2.msra.mxu0 %v197
    %622 = vmatprep.mubr.f32.mxu0 %v76
    %623 = vmatmul.mubr.f32.gmra.mxu0 %v75
    %v624 = vpop.f32.mrf.mxu0
    %v625 = vadd.f32 %v555, %v624
    %v626 = vpop.f32.mrf.mxu0
    %627 = vdwg.mxu0
    %628 = vmatprep.subr.mxu0 0.0
    %629 = vmatpush1.msra.mxu0 %v228
    %630 = vmatprep.subr.mxu0 0.0
    %631 = vmatpush1.msra.mxu0 %v227
    %632 = vmatprep.subr.mxu0 0.0
    %633 = vmatpush1.msra.mxu0 %v226
    %634 = vmatprep.subr.mxu0 0.0
    %635 = vmatpush1.msra.mxu0 %v225
    %636 = vmatprep.subr.mxu0 0.0
    %637 = vmatpush1.msra.mxu0 %v224
    %638 = vmatprep.subr.mxu0 0.0
    %639 = vmatpush1.msra.mxu0 %v223
    %640 = vmatprep.subr.mxu0 0.0
    %641 = vmatpush1.msra.mxu0 %v222
    %642 = vmatprep.subr.mxu0 0.0
    %643 = vmatpush1.msra.mxu0 %v221
    %644 = vmatprep.subr.mxu0 0.0
    %645 = vmatpush1.msra.mxu0 %v220
    %646 = vmatprep.subr.mxu0 0.0
    %647 = vmatpush1.msra.mxu0 %v219
    %648 = vmatprep.subr.mxu0 0.0
    %649 = vmatpush1.msra.mxu0 %v218
    %650 = vmatprep.subr.mxu0 0.0
    %651 = vmatpush1.msra.mxu0 %v217
    %652 = vmatprep.subr.mxu0 0.0
    %653 = vmatpush1.msra.mxu0 %v216
    %654 = vmatprep.subr.mxu0 0.0
    %655 = vmatpush1.msra.mxu0 %v215
    %656 = vmatprep.subr.mxu0 0.0
    %657 = vmatpush1.msra.mxu0 %v214
    %658 = vmatprep.subr.mxu0 0.0
    %659 = vmatpush1.msra.mxu0 %v213
    %660 = vmatprep.subr.mxu0 0.0
    %661 = vmatpush2.msra.mxu0 %v244
    %662 = vmatprep.subr.mxu0 0.0
    %663 = vmatpush2.msra.mxu0 %v243
    %664 = vmatprep.subr.mxu0 0.0
    %665 = vmatpush2.msra.mxu0 %v242
    %666 = vmatprep.subr.mxu0 0.0
    %667 = vmatpush2.msra.mxu0 %v241
    %668 = vmatprep.subr.mxu0 0.0
    %669 = vmatpush2.msra.mxu0 %v240
    %670 = vmatprep.subr.mxu0 0.0
    %671 = vmatpush2.msra.mxu0 %v239
    %672 = vmatprep.subr.mxu0 0.0
    %673 = vmatpush2.msra.mxu0 %v238
    %674 = vmatprep.subr.mxu0 0.0
    %675 = vmatpush2.msra.mxu0 %v237
    %676 = vmatprep.subr.mxu0 0.0
    %677 = vmatpush2.msra.mxu0 %v236
    %678 = vmatprep.subr.mxu0 0.0
    %679 = vmatpush2.msra.mxu0 %v235
    %680 = vmatprep.subr.mxu0 0.0
    %681 = vmatpush2.msra.mxu0 %v234
    %682 = vmatprep.subr.mxu0 0.0
    %683 = vmatpush2.msra.mxu0 %v233
    %684 = vmatprep.subr.mxu0 0.0
    %685 = vmatpush2.msra.mxu0 %v232
    %686 = vmatprep.subr.mxu0 0.0
    %687 = vmatpush2.msra.mxu0 %v231
    %688 = vmatprep.subr.mxu0 0.0
    %689 = vmatpush2.msra.mxu0 %v230
    %690 = vmatprep.subr.mxu0 0.0
    %691 = vmatpush2.msra.mxu0 %v229
    %692 = vmatprep.mubr.f32.mxu0 %v78
    %693 = vmatmul.mubr.f32.gmra.mxu0 %v77
    %v694 = vpop.f32.mrf.mxu0
    %v695 = vadd.f32 %v625, %v694
    %v696 = vpop.f32.mrf.mxu0
    %697 = vdwg.mxu0
    %698 = vmatprep.subr.mxu0 0.0
    %699 = vmatpush1.msra.mxu0 %v260
    %700 = vmatprep.subr.mxu0 0.0
    %701 = vmatpush1.msra.mxu0 %v259
    %702 = vmatprep.subr.mxu0 0.0
    %703 = vmatpush1.msra.mxu0 %v258
    %704 = vmatprep.subr.mxu0 0.0
    %705 = vmatpush1.msra.mxu0 %v257
    %706 = vmatprep.subr.mxu0 0.0
    %707 = vmatpush1.msra.mxu0 %v256
    %708 = vmatprep.subr.mxu0 0.0
    %709 = vmatpush1.msra.mxu0 %v255
    %710 = vmatprep.subr.mxu0 0.0
    %711 = vmatpush1.msra.mxu0 %v254
    %712 = vmatprep.subr.mxu0 0.0
    %713 = vmatpush1.msra.mxu0 %v253
    %714 = vmatprep.subr.mxu0 0.0
    %715 = vmatpush1.msra.mxu0 %v252
    %716 = vmatprep.subr.mxu0 0.0
    %717 = vmatpush1.msra.mxu0 %v251
    %718 = vmatprep.subr.mxu0 0.0
    %719 = vmatpush1.msra.mxu0 %v250
    %720 = vmatprep.subr.mxu0 0.0
    %721 = vmatpush1.msra.mxu0 %v249
    %722 = vmatprep.subr.mxu0 0.0
    %723 = vmatpush1.msra.mxu0 %v248
    %724 = vmatprep.subr.mxu0 0.0
    %725 = vmatpush1.msra.mxu0 %v247
    %726 = vmatprep.subr.mxu0 0.0
    %727 = vmatpush1.msra.mxu0 %v246
    %728 = vmatprep.subr.mxu0 0.0
    %729 = vmatpush1.msra.mxu0 %v245
    %730 = vmatprep.subr.mxu0 0.0
    %731 = vmatpush2.msra.mxu0 %v276
    %732 = vmatprep.subr.mxu0 0.0
    %733 = vmatpush2.msra.mxu0 %v275
    %734 = vmatprep.subr.mxu0 0.0
    %735 = vmatpush2.msra.mxu0 %v274
    %736 = vmatprep.subr.mxu0 0.0
    %737 = vmatpush2.msra.mxu0 %v273
    %738 = vmatprep.subr.mxu0 0.0
    %739 = vmatpush2.msra.mxu0 %v272
    %740 = vmatprep.subr.mxu0 0.0
    %741 = vmatpush2.msra.mxu0 %v271
    %742 = vmatprep.subr.mxu0 0.0
    %743 = vmatpush2.msra.mxu0 %v270
    %744 = vmatprep.subr.mxu0 0.0
    %745 = vmatpush2.msra.mxu0 %v269
    %746 = vmatprep.subr.mxu0 0.0
    %747 = vmatpush2.msra.mxu0 %v268
    %748 = vmatprep.subr.mxu0 0.0
    %749 = vmatpush2.msra.mxu0 %v267
    %750 = vmatprep.subr.mxu0 0.0
    %751 = vmatpush2.msra.mxu0 %v266
    %752 = vmatprep.subr.mxu0 0.0
    %753 = vmatpush2.msra.mxu0 %v265
    %754 = vmatprep.subr.mxu0 0.0
    %755 = vmatpush2.msra.mxu0 %v264
    %756 = vmatprep.subr.mxu0 0.0
    %757 = vmatpush2.msra.mxu0 %v263
    %758 = vmatprep.subr.mxu0 0.0
    %759 = vmatpush2.msra.mxu0 %v262
    %760 = vmatprep.subr.mxu0 0.0
    %761 = vmatpush2.msra.mxu0 %v261
    %762 = vmatprep.mubr.f32.mxu0 %v80
    %763 = vmatmul.mubr.f32.gmra.mxu0 %v79
    %v764 = vpop.f32.mrf.mxu0
    %v765 = vadd.f32 %v695, %v764
    %v766 = vpop.f32.mrf.mxu0
    %767 = vdwg.mxu0
    %768 = vmatprep.subr.mxu0 0.0
    %769 = vmatpush1.msra.mxu0 %v292
    %770 = vmatprep.subr.mxu0 0.0
    %771 = vmatpush1.msra.mxu0 %v291
    %772 = vmatprep.subr.mxu0 0.0
    %773 = vmatpush1.msra.mxu0 %v290
    %774 = vmatprep.subr.mxu0 0.0
    %775 = vmatpush1.msra.mxu0 %v289
    %776 = vmatprep.subr.mxu0 0.0
    %777 = vmatpush1.msra.mxu0 %v288
    %778 = vmatprep.subr.mxu0 0.0
    %779 = vmatpush1.msra.mxu0 %v287
    %780 = vmatprep.subr.mxu0 0.0
    %781 = vmatpush1.msra.mxu0 %v286
    %782 = vmatprep.subr.mxu0 0.0
    %783 = vmatpush1.msra.mxu0 %v285
    %784 = vmatprep.subr.mxu0 0.0
    %785 = vmatpush1.msra.mxu0 %v284
    %786 = vmatprep.subr.mxu0 0.0
    %787 = vmatpush1.msra.mxu0 %v283
    %788 = vmatprep.subr.mxu0 0.0
    %789 = vmatpush1.msra.mxu0 %v282
    %790 = vmatprep.subr.mxu0 0.0
    %791 = vmatpush1.msra.mxu0 %v281
    %792 = vmatprep.subr.mxu0 0.0
    %793 = vmatpush1.msra.mxu0 %v280
    %794 = vmatprep.subr.mxu0 0.0
    %795 = vmatpush1.msra.mxu0 %v279
    %796 = vmatprep.subr.mxu0 0.0
    %797 = vmatpush1.msra.mxu0 %v278
    %798 = vmatprep.subr.mxu0 0.0
    %799 = vmatpush1.msra.mxu0 %v277
    %800 = vmatprep.subr.mxu0 0.0
    %801 = vmatpush2.msra.mxu0 %v308
    %802 = vmatprep.subr.mxu0 0.0
    %803 = vmatpush2.msra.mxu0 %v307
    %804 = vmatprep.subr.mxu0 0.0
    %805 = vmatpush2.msra.mxu0 %v306
    %806 = vmatprep.subr.mxu0 0.0
    %807 = vmatpush2.msra.mxu0 %v305
    %808 = vmatprep.subr.mxu0 0.0
    %809 = vmatpush2.msra.mxu0 %v304
    %810 = vmatprep.subr.mxu0 0.0
    %811 = vmatpush2.msra.mxu0 %v303
    %812 = vmatprep.subr.mxu0 0.0
    %813 = vmatpush2.msra.mxu0 %v302
    %814 = vmatprep.subr.mxu0 0.0
    %815 = vmatpush2.msra.mxu0 %v301
    %816 = vmatprep.subr.mxu0 0.0
    %817 = vmatpush2.msra.mxu0 %v300
    %818 = vmatprep.subr.mxu0 0.0
    %819 = vmatpush2.msra.mxu0 %v299
    %820 = vmatprep.subr.mxu0 0.0
    %821 = vmatpush2.msra.mxu0 %v298
    %822 = vmatprep.subr.mxu0 0.0
    %823 = vmatpush2.msra.mxu0 %v297
    %824 = vmatprep.subr.mxu0 0.0
    %825 = vmatpush2.msra.mxu0 %v296
    %826 = vmatprep.subr.mxu0 0.0
    %827 = vmatpush2.msra.mxu0 %v295
    %828 = vmatprep.subr.mxu0 0.0
    %829 = vmatpush2.msra.mxu0 %v294
    %830 = vmatprep.subr.mxu0 0.0
    %831 = vmatpush2.msra.mxu0 %v293
    %832 = vmatprep.mubr.f32.mxu0 %v82
    %833 = vmatmul.mubr.f32.gmra.mxu0 %v81
    %v834 = vpop.f32.mrf.mxu0
    %v835 = vadd.f32 %v765, %v834
    %v836 = vpop.f32.mrf.mxu0
    %837 = vdwg.mxu0
    %838 = vmatprep.subr.mxu0 0.0
    %839 = vmatpush1.msra.mxu0 %v324
    %840 = vmatprep.subr.mxu0 0.0
    %841 = vmatpush1.msra.mxu0 %v323
    %842 = vmatprep.subr.mxu0 0.0
    %843 = vmatpush1.msra.mxu0 %v322
    %844 = vmatprep.subr.mxu0 0.0
    %845 = vmatpush1.msra.mxu0 %v321
    %846 = vmatprep.subr.mxu0 0.0
    %847 = vmatpush1.msra.mxu0 %v320
    %848 = vmatprep.subr.mxu0 0.0
    %849 = vmatpush1.msra.mxu0 %v319
    %850 = vmatprep.subr.mxu0 0.0
    %851 = vmatpush1.msra.mxu0 %v318
    %852 = vmatprep.subr.mxu0 0.0
    %853 = vmatpush1.msra.mxu0 %v317
    %854 = vmatprep.subr.mxu0 0.0
    %855 = vmatpush1.msra.mxu0 %v316
    %856 = vmatprep.subr.mxu0 0.0
    %857 = vmatpush1.msra.mxu0 %v315
    %858 = vmatprep.subr.mxu0 0.0
    %859 = vmatpush1.msra.mxu0 %v314
    %860 = vmatprep.subr.mxu0 0.0
    %861 = vmatpush1.msra.mxu0 %v313
    %862 = vmatprep.subr.mxu0 0.0
    %863 = vmatpush1.msra.mxu0 %v312
    %864 = vmatprep.subr.mxu0 0.0
    %865 = vmatpush1.msra.mxu0 %v311
    %866 = vmatprep.subr.mxu0 0.0
    %867 = vmatpush1.msra.mxu0 %v310
    %868 = vmatprep.subr.mxu0 0.0
    %869 = vmatpush1.msra.mxu0 %v309
    %870 = vmatprep.subr.mxu0 0.0
    %871 = vmatpush2.msra.mxu0 %v340
    %872 = vmatprep.subr.mxu0 0.0
    %873 = vmatpush2.msra.mxu0 %v339
    %874 = vmatprep.subr.mxu0 0.0
    %875 = vmatpush2.msra.mxu0 %v338
    %876 = vmatprep.subr.mxu0 0.0
    %877 = vmatpush2.msra.mxu0 %v337
    %878 = vmatprep.subr.mxu0 0.0
    %879 = vmatpush2.msra.mxu0 %v336
    %880 = vmatprep.subr.mxu0 0.0
    %881 = vmatpush2.msra.mxu0 %v335
    %882 = vmatprep.subr.mxu0 0.0
    %883 = vmatpush2.msra.mxu0 %v334
    %884 = vmatprep.subr.mxu0 0.0
    %885 = vmatpush2.msra.mxu0 %v333
    %886 = vmatprep.subr.mxu0 0.0
    %887 = vmatpush2.msra.mxu0 %v332
    %888 = vmatprep.subr.mxu0 0.0
    %889 = vmatpush2.msra.mxu0 %v331
    %890 = vmatprep.subr.mxu0 0.0
    %891 = vmatpush2.msra.mxu0 %v330
    %892 = vmatprep.subr.mxu0 0.0
    %893 = vmatpush2.msra.mxu0 %v329
    %894 = vmatprep.subr.mxu0 0.0
    %895 = vmatpush2.msra.mxu0 %v328
    %896 = vmatprep.subr.mxu0 0.0
    %897 = vmatpush2.msra.mxu0 %v327
    %898 = vmatprep.subr.mxu0 0.0
    %899 = vmatpush2.msra.mxu0 %v326
    %900 = vmatprep.subr.mxu0 0.0
    %901 = vmatpush2.msra.mxu0 %v325
    %902 = vmatprep.mubr.f32.mxu0 %v84
    %903 = vmatmul.mubr.f32.gmra.mxu0 %v83
    %v904 = vpop.f32.mrf.mxu0
    %v905 = vadd.f32 %v835, %v904
    %v906 = vpop.f32.mrf.mxu0
    %907 = vdwg.mxu0
    %v908 = vrot.slane %v905, 4
    %v909 = vadd.f32 %v905, %v908
    %v910 = vrot.slane %v909, 2
    %v911 = vadd.f32 %v909, %v910
    %v912 = vrot.slane %v911, 1
    %v913 = vadd.f32 %v911, %v912
    %v914 = vmul.f32 %v905, %v905
    %v915 = vrot.slane %v914, 4
    %v916 = vadd.f32 %v914, %v915
    %v917 = vrot.slane %v916, 2
    %v918 = vadd.f32 %v916, %v917
    %v919 = vrot.slane %v918, 1
    %v920 = vadd.f32 %v918, %v919
    %v921 = vmul.f32 %v913, 0.125
    %v922 = vmul.f32 %v920, 0.125
    %v923 = vmul.f32 %v921, %v921
    %v924 = vsub.f32 %v922, %v923
    %v925 = vmax.f32 %v924, 0.0
    %v926 = vadd.f32 %v925, 1e-05
    %v927 = vrsqrt.pop %v926
    %v928 = vsub.f32 %v905, %v921
    %v929 = vld [vmem:[#allocation6] sm:$0x1]
    %v930 = vmul.f32 %v927, %v929
    %v931 = vlaneseq
    %v932 = vshrl.u32 %v931, 7
    %v933 = vsub.s32 0, %v932
    %v934 = vrot.slane %v930, %v933
    %v935 = vmul.f32 %v928, %v934
    %v936 = vld [vmem:[#allocation7] sm:$0x1]
    %v938 = vlaneseq
    %v939 = vshrl.u32 %v938, 7
    %v940 = vsub.s32 0, %v939
    %v941 = vrot.slane %v936, %v940
    %v943 = vadd.f32 %v935, %v941
    %v944 = vmax.f32 %v943, 0.0
    %945 = vst [vmem:[%s5] sm:$0xff] %v944
    // Predicated region
    $region38: #{generator_forward.6} parent=1 // pred_check
      _
    $region39: #{generator_forward.6} parent=1 // pred_check_branch
      %947 = sbr.rel (0) target = $region41
    $region40: #{generator_forward.6} parent=1 // pred_region
      _
    $region41: #{generator_forward.6} parent=1 // pred_fallthru
      _
    // Predicated region
    $region42: #{generator_forward.6} parent=1 // pred_check
      _
    $region43: #{generator_forward.6} parent=1 // pred_check_branch
      %949 = sbr.rel (0) target = $region45
    $region44: #{generator_forward.6} parent=1 // pred_region
      _
    $region45: #{generator_forward.6} parent=1 // pred_fallthru
      _
    %950 = vsyncpa [#allocation3], 1
    %951 = vsyncpa [#allocation5], 1
    %952 = vsyncpa [#allocation8], 1

// kernel: generator_forward.7
$region0: #{generator_forward.7}
  #allocation0 [shape = 'u32[]', space=smem, size = 0x4, offset = 0x4, fixed_abs, tag = 'smem constant byte address 0x4 - core index']
  #allocation1 [shape = 'u32[144,128]{1,0:T(1,128)}', space=vmem, size = 0x12000, scoped, tag = 'internal scratch']
  %s0 = inlined_call_operand.vmem [shape: f32[32,2048], index: 0, kind: input, shape index: {}]
  %s1 = inlined_call_operand.hbm [shape: f32[2048,128], index: 1, kind: input, shape index: {}]
  %s2 = inlined_call_operand.hbm [shape: f32[1,128], index: 2, kind: input, shape index: {}]
  %s3 = inlined_call_operand.hbm [shape: f32[1,128], index: 3, kind: input, shape index: {}]
  %s4 = inlined_call_operand.hbm [shape: f32[1,128], index: 4, kind: input, shape index: {}]
  %s5 = inlined_call_operand.vmem [shape: f32[32,128], index: 5, kind: output, shape index: {}]
  %s6 = sld [smem:[#allocation0]]
  $region46: #{generator_forward.7} parent=0
    _
  %s8 = ssub.s32 1, %s6
  %s9 = scalar_select 0, %s8, %s6
  $region1: #{generator_forward.7} parent=0
    #allocation2 [shape = 'u8[1048576]{0}', space=vmem, size = 0x100000, scoped, tag = 'input window, operand 1, single buffered']
    #allocation3 [shape = 's32[1]{0}', space=sflag, size = 0x4, scoped, tag = 'scoped memory for generator_forward.7']
    #allocation4 [shape = 'u8[512]{0}', space=vmem, size = 0x400, scoped, tag = 'input window, operand 2, single buffered']
    #allocation5 [shape = 's32[1]{0}', space=sflag, size = 0x4, scoped, tag = 'scoped memory for generator_forward.7']
    #allocation6 [shape = 'u8[512]{0}', space=vmem, size = 0x400, scoped, tag = 'input window, operand 3, single buffered']
    #allocation7 [shape = 'u8[512]{0}', space=vmem, size = 0x400, scoped, tag = 'input window, operand 4, single buffered']
    #allocation8 [shape = 's32[1]{0}', space=sflag, size = 0x4, scoped, tag = 'scoped memory for generator_forward.7']
    %10 = vsyncpa [#allocation3], 0
    %11 = vsyncpa [#allocation5], 0
    %12 = vsyncpa [#allocation8], 0
    // Predicated region
    $region2: #{generator_forward.7} parent=1 // pred_check
      _
    $region3: #{generator_forward.7} parent=1 // pred_check_branch
      %14 = sbr.rel (0) target = $region5
    $region4: #{generator_forward.7} parent=1 // pred_region
      _
    $region5: #{generator_forward.7} parent=1 // pred_fallthru
      _
    // Predicated region
    $region6: #{generator_forward.7} parent=1 // pred_check
      _
    $region7: #{generator_forward.7} parent=1 // pred_check_branch
      %16 = sbr.rel (0) target = $region9
    $region8: #{generator_forward.7} parent=1 // pred_region
      %s18 = ssub.s32 32768, 32768
      %19 = vsyncadd [#allocation3], %s18
      %s20 = sshll.u32 [#allocation2], 4
      %s21 = int_to_ptr.vmem [resolvable:$true] %s20
      %26 = dma.hbm_to_vmem [thread:$0]  %s1, 32768, %s21, [#allocation3], 128, 128, 8
    $region9: #{generator_forward.7} parent=1 // pred_fallthru
      _
    // Predicated region
    $region10: #{generator_forward.7} parent=1 // pred_check
      _
    $region11: #{generator_forward.7} parent=1 // pred_check_branch
      %28 = sbr.rel (0) target = $region13
    $region12: #{generator_forward.7} parent=1 // pred_region
      %s30 = ssub.s32 16, 16
      %31 = vsyncadd [#allocation5], %s30
      %s33 = sshll.u32 [#allocation4], 4
      %s34 = int_to_ptr.vmem [resolvable:$true] %s33
      %36 = dma.hbm_to_vmem [thread:$0]  %s2, 16, %s34, [#allocation5]
    $region13: #{generator_forward.7} parent=1 // pred_fallthru
      _
    // Predicated region
    $region14: #{generator_forward.7} parent=1 // pred_check
      _
    $region15: #{generator_forward.7} parent=1 // pred_check_branch
      %38 = sbr.rel (0) target = $region17
    $region16: #{generator_forward.7} parent=1 // pred_region
      %s40 = ssub.s32 16, 16
      %41 = vsyncadd [#allocation5], %s40
      %s43 = sshll.u32 [#allocation6], 4
      %s44 = int_to_ptr.vmem [resolvable:$true] %s43
      %46 = dma.hbm_to_vmem [thread:$0]  %s3, 16, %s44, [#allocation5]
    $region17: #{generator_forward.7} parent=1 // pred_fallthru
      _
    // Predicated region
    $region18: #{generator_forward.7} parent=1 // pred_check
      _
    $region19: #{generator_forward.7} parent=1 // pred_check_branch
      %48 = sbr.rel (0) target = $region21
    $region20: #{generator_forward.7} parent=1 // pred_region
      %s50 = ssub.s32 16, 16
      %51 = vsyncadd [#allocation8], %s50
      %s53 = sshll.u32 [#allocation7], 4
      %s54 = int_to_ptr.vmem [resolvable:$true] %s53
      %56 = dma.hbm_to_vmem [thread:$0]  %s4, 16, %s54, [#allocation8]
    $region21: #{generator_forward.7} parent=1 // pred_fallthru
      _
    // Predicated region
    $region22: #{generator_forward.7} parent=1 // pred_check
      _
    $region23: #{generator_forward.7} parent=1 // pred_check_branch
      %58 = sbr.rel (0) target = $region25
    $region24: #{generator_forward.7} parent=1 // pred_region
      %59 = dma.done [#allocation3], 32768
    $region25: #{generator_forward.7} parent=1 // pred_fallthru
      _
    // Predicated region
    $region26: #{generator_forward.7} parent=1 // pred_check
      _
    $region27: #{generator_forward.7} parent=1 // pred_check_branch
      %61 = sbr.rel (0) target = $region29
    $region28: #{generator_forward.7} parent=1 // pred_region
      %62 = dma.done [#allocation5], 16
    $region29: #{generator_forward.7} parent=1 // pred_fallthru
      _
    // Predicated region
    $region30: #{generator_forward.7} parent=1 // pred_check
      _
    $region31: #{generator_forward.7} parent=1 // pred_check_branch
      %64 = sbr.rel (0) target = $region33
    $region32: #{generator_forward.7} parent=1 // pred_region
      %65 = dma.done [#allocation5], 16
    $region33: #{generator_forward.7} parent=1 // pred_fallthru
      _
    // Predicated region
    $region34: #{generator_forward.7} parent=1 // pred_check
      _
    $region35: #{generator_forward.7} parent=1 // pred_check_branch
      %67 = sbr.rel (0) target = $region37
    $region36: #{generator_forward.7} parent=1 // pred_region
      %68 = dma.done [#allocation8], 16
    $region37: #{generator_forward.7} parent=1 // pred_fallthru
      _
    %v69 = vld [vmem:[%s0] sm:$0xff]
    %v70 = vld [vmem:[%s0 + $0x8] sm:$0xff]
    %v71 = vld [vmem:[%s0 + $0x10] sm:$0xff]
    %v72 = vld [vmem:[%s0 + $0x18] sm:$0xff]
    %v73 = vld [vmem:[%s0 + $0x20] sm:$0xff]
    %v74 = vld [vmem:[%s0 + $0x28] sm:$0xff]
    %v75 = vld [vmem:[%s0 + $0x30] sm:$0xff]
    %v76 = vld [vmem:[%s0 + $0x38] sm:$0xff]
    %v77 = vld [vmem:[%s0 + $0x40] sm:$0xff]
    %v78 = vld [vmem:[%s0 + $0x48] sm:$0xff]
    %v79 = vld [vmem:[%s0 + $0x50] sm:$0xff]
    %v80 = vld [vmem:[%s0 + $0x58] sm:$0xff]
    %v81 = vld [vmem:[%s0 + $0x60] sm:$0xff]
    %v82 = vld [vmem:[%s0 + $0x68] sm:$0xff]
    %v83 = vld [vmem:[%s0 + $0x70] sm:$0xff]
    %v84 = vld [vmem:[%s0 + $0x78] sm:$0xff]
    %v85 = vld [vmem:[%s0 + $0x80] sm:$0xff]
    %v86 = vld [vmem:[%s0 + $0x88] sm:$0xff]
    %v87 = vld [vmem:[%s0 + $0x90] sm:$0xff]
    %v88 = vld [vmem:[%s0 + $0x98] sm:$0xff]
    %v89 = vld [vmem:[%s0 + $0xa0] sm:$0xff]
    %v90 = vld [vmem:[%s0 + $0xa8] sm:$0xff]
    %v91 = vld [vmem:[%s0 + $0xb0] sm:$0xff]
    %v92 = vld [vmem:[%s0 + $0xb8] sm:$0xff]
    %v93 = vld [vmem:[%s0 + $0xc0] sm:$0xff]
    %v94 = vld [vmem:[%s0 + $0xc8] sm:$0xff]
    %v95 = vld [vmem:[%s0 + $0xd0] sm:$0xff]
    %v96 = vld [vmem:[%s0 + $0xd8] sm:$0xff]
    %v97 = vld [vmem:[%s0 + $0xe0] sm:$0xff]
    %v98 = vld [vmem:[%s0 + $0xe8] sm:$0xff]
    %v99 = vld [vmem:[%s0 + $0xf0] sm:$0xff]
    %v100 = vld [vmem:[%s0 + $0xf8] sm:$0xff]
    %v101 = vld [vmem:[%s0 + $0x100] sm:$0xff]
    %v102 = vld [vmem:[%s0 + $0x108] sm:$0xff]
    %v103 = vld [vmem:[%s0 + $0x110] sm:$0xff]
    %v104 = vld [vmem:[%s0 + $0x118] sm:$0xff]
    %v105 = vld [vmem:[%s0 + $0x120] sm:$0xff]
    %v106 = vld [vmem:[%s0 + $0x128] sm:$0xff]
    %v107 = vld [vmem:[%s0 + $0x130] sm:$0xff]
    %v108 = vld [vmem:[%s0 + $0x138] sm:$0xff]
    %v109 = vld [vmem:[%s0 + $0x140] sm:$0xff]
    %v110 = vld [vmem:[%s0 + $0x148] sm:$0xff]
    %v111 = vld [vmem:[%s0 + $0x150] sm:$0xff]
    %v112 = vld [vmem:[%s0 + $0x158] sm:$0xff]
    %v113 = vld [vmem:[%s0 + $0x160] sm:$0xff]
    %v114 = vld [vmem:[%s0 + $0x168] sm:$0xff]
    %v115 = vld [vmem:[%s0 + $0x170] sm:$0xff]
    %v116 = vld [vmem:[%s0 + $0x178] sm:$0xff]
    %v117 = vld [vmem:[%s0 + $0x180] sm:$0xff]
    %v118 = vld [vmem:[%s0 + $0x188] sm:$0xff]
    %v119 = vld [vmem:[%s0 + $0x190] sm:$0xff]
    %v120 = vld [vmem:[%s0 + $0x198] sm:$0xff]
    %v121 = vld [vmem:[%s0 + $0x1a0] sm:$0xff]
    %v122 = vld [vmem:[%s0 + $0x1a8] sm:$0xff]
    %v123 = vld [vmem:[%s0 + $0x1b0] sm:$0xff]
    %v124 = vld [vmem:[%s0 + $0x1b8] sm:$0xff]
    %v125 = vld [vmem:[%s0 + $0x1c0] sm:$0xff]
    %v126 = vld [vmem:[%s0 + $0x1c8] sm:$0xff]
    %v127 = vld [vmem:[%s0 + $0x1d0] sm:$0xff]
    %v128 = vld [vmem:[%s0 + $0x1d8] sm:$0xff]
    %v129 = vld [vmem:[%s0 + $0x1e0] sm:$0xff]
    %v130 = vld [vmem:[%s0 + $0x1e8] sm:$0xff]
    %v131 = vld [vmem:[%s0 + $0x1f0] sm:$0xff]
    %v132 = vld [vmem:[%s0 + $0x1f8] sm:$0xff]
    %v133 = vld [vmem:[#allocation2] sm:$0xff]
    %v134 = vld [vmem:[#allocation2 + $0x8] sm:$0xff]
    %v135 = vld [vmem:[#allocation2 + $0x10] sm:$0xff]
    %v136 = vld [vmem:[#allocation2 + $0x18] sm:$0xff]
    %v137 = vld [vmem:[#allocation2 + $0x20] sm:$0xff]
    %v138 = vld [vmem:[#allocation2 + $0x28] sm:$0xff]
    %v139 = vld [vmem:[#allocation2 + $0x30] sm:$0xff]
    %v140 = vld [vmem:[#allocation2 + $0x38] sm:$0xff]
    %v141 = vld [vmem:[#allocation2 + $0x40] sm:$0xff]
    %v142 = vld [vmem:[#allocation2 + $0x48] sm:$0xff]
    %v143 = vld [vmem:[#allocation2 + $0x50] sm:$0xff]
    %v144 = vld [vmem:[#allocation2 + $0x58] sm:$0xff]
    %v145 = vld [vmem:[#allocation2 + $0x60] sm:$0xff]
    %v146 = vld [vmem:[#allocation2 + $0x68] sm:$0xff]
    %v147 = vld [vmem:[#allocation2 + $0x70] sm:$0xff]
    %v148 = vld [vmem:[#allocation2 + $0x78] sm:$0xff]
    %v149 = vld [vmem:[#allocation2 + $0x80] sm:$0xff]
    %v150 = vld [vmem:[#allocation2 + $0x88] sm:$0xff]
    %v151 = vld [vmem:[#allocation2 + $0x90] sm:$0xff]
    %v152 = vld [vmem:[#allocation2 + $0x98] sm:$0xff]
    %v153 = vld [vmem:[#allocation2 + $0xa0] sm:$0xff]
    %v154 = vld [vmem:[#allocation2 + $0xa8] sm:$0xff]
    %v155 = vld [vmem:[#allocation2 + $0xb0] sm:$0xff]
    %v156 = vld [vmem:[#allocation2 + $0xb8] sm:$0xff]
    %v157 = vld [vmem:[#allocation2 + $0xc0] sm:$0xff]
    %v158 = vld [vmem:[#allocation2 + $0xc8] sm:$0xff]
    %v159 = vld [vmem:[#allocation2 + $0xd0] sm:$0xff]
    %v160 = vld [vmem:[#allocation2 + $0xd8] sm:$0xff]
    %v161 = vld [vmem:[#allocation2 + $0xe0] sm:$0xff]
    %v162 = vld [vmem:[#allocation2 + $0xe8] sm:$0xff]
    %v163 = vld [vmem:[#allocation2 + $0xf0] sm:$0xff]
    %v164 = vld [vmem:[#allocation2 + $0xf8] sm:$0xff]
    %v165 = vld [vmem:[#allocation2 + $0x100] sm:$0xff]
    %v166 = vld [vmem:[#allocation2 + $0x108] sm:$0xff]
    %v167 = vld [vmem:[#allocation2 + $0x110] sm:$0xff]
    %v168 = vld [vmem:[#allocation2 + $0x118] sm:$0xff]
    %v169 = vld [vmem:[#allocation2 + $0x120] sm:$0xff]
    %v170 = vld [vmem:[#allocation2 + $0x128] sm:$0xff]
    %v171 = vld [vmem:[#allocation2 + $0x130] sm:$0xff]
    %v172 = vld [vmem:[#allocation2 + $0x138] sm:$0xff]
    %v173 = vld [vmem:[#allocation2 + $0x140] sm:$0xff]
    %v174 = vld [vmem:[#allocation2 + $0x148] sm:$0xff]
    %v175 = vld [vmem:[#allocation2 + $0x150] sm:$0xff]
    %v176 = vld [vmem:[#allocation2 + $0x158] sm:$0xff]
    %v177 = vld [vmem:[#allocation2 + $0x160] sm:$0xff]
    %v178 = vld [vmem:[#allocation2 + $0x168] sm:$0xff]
    %v179 = vld [vmem:[#allocation2 + $0x170] sm:$0xff]
    %v180 = vld [vmem:[#allocation2 + $0x178] sm:$0xff]
    %v181 = vld [vmem:[#allocation2 + $0x180] sm:$0xff]
    %v182 = vld [vmem:[#allocation2 + $0x188] sm:$0xff]
    %v183 = vld [vmem:[#allocation2 + $0x190] sm:$0xff]
    %v184 = vld [vmem:[#allocation2 + $0x198] sm:$0xff]
    %v185 = vld [vmem:[#allocation2 + $0x1a0] sm:$0xff]
    %v186 = vld [vmem:[#allocation2 + $0x1a8] sm:$0xff]
    %v187 = vld [vmem:[#allocation2 + $0x1b0] sm:$0xff]
    %v188 = vld [vmem:[#allocation2 + $0x1b8] sm:$0xff]
    %v189 = vld [vmem:[#allocation2 + $0x1c0] sm:$0xff]
    %v190 = vld [vmem:[#allocation2 + $0x1c8] sm:$0xff]
    %v191 = vld [vmem:[#allocation2 + $0x1d0] sm:$0xff]
    %v192 = vld [vmem:[#allocation2 + $0x1d8] sm:$0xff]
    %v193 = vld [vmem:[#allocation2 + $0x1e0] sm:$0xff]
    %v194 = vld [vmem:[#allocation2 + $0x1e8] sm:$0xff]
    %v195 = vld [vmem:[#allocation2 + $0x1f0] sm:$0xff]
    %v196 = vld [vmem:[#allocation2 + $0x1f8] sm:$0xff]
    %v197 = vld [vmem:[#allocation2 + $0x200] sm:$0xff]
    %v198 = vld [vmem:[#allocation2 + $0x208] sm:$0xff]
    %v199 = vld [vmem:[#allocation2 + $0x210] sm:$0xff]
    %v200 = vld [vmem:[#allocation2 + $0x218] sm:$0xff]
    %v201 = vld [vmem:[#allocation2 + $0x220] sm:$0xff]
    %v202 = vld [vmem:[#allocation2 + $0x228] sm:$0xff]
    %v203 = vld [vmem:[#allocation2 + $0x230] sm:$0xff]
    %v204 = vld [vmem:[#allocation2 + $0x238] sm:$0xff]
    %v205 = vld [vmem:[#allocation2 + $0x240] sm:$0xff]
    %v206 = vld [vmem:[#allocation2 + $0x248] sm:$0xff]
    %v207 = vld [vmem:[#allocation2 + $0x250] sm:$0xff]
    %v208 = vld [vmem:[#allocation2 + $0x258] sm:$0xff]
    %v209 = vld [vmem:[#allocation2 + $0x260] sm:$0xff]
    %v210 = vld [vmem:[#allocation2 + $0x268] sm:$0xff]
    %v211 = vld [vmem:[#allocation2 + $0x270] sm:$0xff]
    %v212 = vld [vmem:[#allocation2 + $0x278] sm:$0xff]
    %v213 = vld [vmem:[#allocation2 + $0x280] sm:$0xff]
    %v214 = vld [vmem:[#allocation2 + $0x288] sm:$0xff]
    %v215 = vld [vmem:[#allocation2 + $0x290] sm:$0xff]
    %v216 = vld [vmem:[#allocation2 + $0x298] sm:$0xff]
    %v217 = vld [vmem:[#allocation2 + $0x2a0] sm:$0xff]
    %v218 = vld [vmem:[#allocation2 + $0x2a8] sm:$0xff]
    %v219 = vld [vmem:[#allocation2 + $0x2b0] sm:$0xff]
    %v220 = vld [vmem:[#allocation2 + $0x2b8] sm:$0xff]
    %v221 = vld [vmem:[#allocation2 + $0x2c0] sm:$0xff]
    %v222 = vld [vmem:[#allocation2 + $0x2c8] sm:$0xff]
    %v223 = vld [vmem:[#allocation2 + $0x2d0] sm:$0xff]
    %v224 = vld [vmem:[#allocation2 + $0x2d8] sm:$0xff]
    %v225 = vld [vmem:[#allocation2 + $0x2e0] sm:$0xff]
    %v226 = vld [vmem:[#allocation2 + $0x2e8] sm:$0xff]
    %v227 = vld [vmem:[#allocation2 + $0x2f0] sm:$0xff]
    %v228 = vld [vmem:[#allocation2 + $0x2f8] sm:$0xff]
    %v229 = vld [vmem:[#allocation2 + $0x300] sm:$0xff]
    %v230 = vld [vmem:[#allocation2 + $0x308] sm:$0xff]
    %v231 = vld [vmem:[#allocation2 + $0x310] sm:$0xff]
    %v232 = vld [vmem:[#allocation2 + $0x318] sm:$0xff]
    %v233 = vld [vmem:[#allocation2 + $0x320] sm:$0xff]
    %v234 = vld [vmem:[#allocation2 + $0x328] sm:$0xff]
    %v235 = vld [vmem:[#allocation2 + $0x330] sm:$0xff]
    %v236 = vld [vmem:[#allocation2 + $0x338] sm:$0xff]
    %v237 = vld [vmem:[#allocation2 + $0x340] sm:$0xff]
    %v238 = vld [vmem:[#allocation2 + $0x348] sm:$0xff]
    %v239 = vld [vmem:[#allocation2 + $0x350] sm:$0xff]
    %v240 = vld [vmem:[#allocation2 + $0x358] sm:$0xff]
    %v241 = vld [vmem:[#allocation2 + $0x360] sm:$0xff]
    %v242 = vld [vmem:[#allocation2 + $0x368] sm:$0xff]
    %v243 = vld [vmem:[#allocation2 + $0x370] sm:$0xff]
    %v244 = vld [vmem:[#allocation2 + $0x378] sm:$0xff]
    %v245 = vld [vmem:[#allocation2 + $0x380] sm:$0xff]
    %v246 = vld [vmem:[#allocation2 + $0x388] sm:$0xff]
    %v247 = vld [vmem:[#allocation2 + $0x390] sm:$0xff]
    %v248 = vld [vmem:[#allocation2 + $0x398] sm:$0xff]
    %v249 = vld [vmem:[#allocation2 + $0x3a0] sm:$0xff]
    %v250 = vld [vmem:[#allocation2 + $0x3a8] sm:$0xff]
    %v251 = vld [vmem:[#allocation2 + $0x3b0] sm:$0xff]
    %v252 = vld [vmem:[#allocation2 + $0x3b8] sm:$0xff]
    %v253 = vld [vmem:[#allocation2 + $0x3c0] sm:$0xff]
    %v254 = vld [vmem:[#allocation2 + $0x3c8] sm:$0xff]
    %v255 = vld [vmem:[#allocation2 + $0x3d0] sm:$0xff]
    %v256 = vld [vmem:[#allocation2 + $0x3d8] sm:$0xff]
    %v257 = vld [vmem:[#allocation2 + $0x3e0] sm:$0xff]
    %v258 = vld [vmem:[#allocation2 + $0x3e8] sm:$0xff]
    %v259 = vld [vmem:[#allocation2 + $0x3f0] sm:$0xff]
    %v260 = vld [vmem:[#allocation2 + $0x3f8] sm:$0xff]
    %v261 = vld [vmem:[#allocation2 + $0x400] sm:$0xff]
    %v262 = vld [vmem:[#allocation2 + $0x408] sm:$0xff]
    %v263 = vld [vmem:[#allocation2 + $0x410] sm:$0xff]
    %v264 = vld [vmem:[#allocation2 + $0x418] sm:$0xff]
    %v265 = vld [vmem:[#allocation2 + $0x420] sm:$0xff]
    %v266 = vld [vmem:[#allocation2 + $0x428] sm:$0xff]
    %v267 = vld [vmem:[#allocation2 + $0x430] sm:$0xff]
    %v268 = vld [vmem:[#allocation2 + $0x438] sm:$0xff]
    %v269 = vld [vmem:[#allocation2 + $0x440] sm:$0xff]
    %v270 = vld [vmem:[#allocation2 + $0x448] sm:$0xff]
    %v271 = vld [vmem:[#allocation2 + $0x450] sm:$0xff]
    %v272 = vld [vmem:[#allocation2 + $0x458] sm:$0xff]
    %v273 = vld [vmem:[#allocation2 + $0x460] sm:$0xff]
    %v274 = vld [vmem:[#allocation2 + $0x468] sm:$0xff]
    %v275 = vld [vmem:[#allocation2 + $0x470] sm:$0xff]
    %v276 = vld [vmem:[#allocation2 + $0x478] sm:$0xff]
    %v277 = vld [vmem:[#allocation2 + $0x480] sm:$0xff]
    %v278 = vld [vmem:[#allocation2 + $0x488] sm:$0xff]
    %v279 = vld [vmem:[#allocation2 + $0x490] sm:$0xff]
    %v280 = vld [vmem:[#allocation2 + $0x498] sm:$0xff]
    %v281 = vld [vmem:[#allocation2 + $0x4a0] sm:$0xff]
    %v282 = vld [vmem:[#allocation2 + $0x4a8] sm:$0xff]
    %v283 = vld [vmem:[#allocation2 + $0x4b0] sm:$0xff]
    %v284 = vld [vmem:[#allocation2 + $0x4b8] sm:$0xff]
    %v285 = vld [vmem:[#allocation2 + $0x4c0] sm:$0xff]
    %v286 = vld [vmem:[#allocation2 + $0x4c8] sm:$0xff]
    %v287 = vld [vmem:[#allocation2 + $0x4d0] sm:$0xff]
    %v288 = vld [vmem:[#allocation2 + $0x4d8] sm:$0xff]
    %v289 = vld [vmem:[#allocation2 + $0x4e0] sm:$0xff]
    %v290 = vld [vmem:[#allocation2 + $0x4e8] sm:$0xff]
    %v291 = vld [vmem:[#allocation2 + $0x4f0] sm:$0xff]
    %v292 = vld [vmem:[#allocation2 + $0x4f8] sm:$0xff]
    %v293 = vld [vmem:[#allocation2 + $0x500] sm:$0xff]
    %v294 = vld [vmem:[#allocation2 + $0x508] sm:$0xff]
    %v295 = vld [vmem:[#allocation2 + $0x510] sm:$0xff]
    %v296 = vld [vmem:[#allocation2 + $0x518] sm:$0xff]
    %v297 = vld [vmem:[#allocation2 + $0x520] sm:$0xff]
    %v298 = vld [vmem:[#allocation2 + $0x528] sm:$0xff]
    %v299 = vld [vmem:[#allocation2 + $0x530] sm:$0xff]
    %v300 = vld [vmem:[#allocation2 + $0x538] sm:$0xff]
    %v301 = vld [vmem:[#allocation2 + $0x540] sm:$0xff]
    %v302 = vld [vmem:[#allocation2 + $0x548] sm:$0xff]
    %v303 = vld [vmem:[#allocation2 + $0x550] sm:$0xff]
    %v304 = vld [vmem:[#allocation2 + $0x558] sm:$0xff]
    %v305 = vld [vmem:[#allocation2 + $0x560] sm:$0xff]
    %v306 = vld [vmem:[#allocation2 + $0x568] sm:$0xff]
    %v307 = vld [vmem:[#allocation2 + $0x570] sm:$0xff]
    %v308 = vld [vmem:[#allocation2 + $0x578] sm:$0xff]
    %v309 = vld [vmem:[#allocation2 + $0x580] sm:$0xff]
    %v310 = vld [vmem:[#allocation2 + $0x588] sm:$0xff]
    %v311 = vld [vmem:[#allocation2 + $0x590] sm:$0xff]
    %v312 = vld [vmem:[#allocation2 + $0x598] sm:$0xff]
    %v313 = vld [vmem:[#allocation2 + $0x5a0] sm:$0xff]
    %v314 = vld [vmem:[#allocation2 + $0x5a8] sm:$0xff]
    %v315 = vld [vmem:[#allocation2 + $0x5b0] sm:$0xff]
    %v316 = vld [vmem:[#allocation2 + $0x5b8] sm:$0xff]
    %v317 = vld [vmem:[#allocation2 + $0x5c0] sm:$0xff]
    %v318 = vld [vmem:[#allocation2 + $0x5c8] sm:$0xff]
    %v319 = vld [vmem:[#allocation2 + $0x5d0] sm:$0xff]
    %v320 = vld [vmem:[#allocation2 + $0x5d8] sm:$0xff]
    %v321 = vld [vmem:[#allocation2 + $0x5e0] sm:$0xff]
    %v322 = vld [vmem:[#allocation2 + $0x5e8] sm:$0xff]
    %v323 = vld [vmem:[#allocation2 + $0x5f0] sm:$0xff]
    %v324 = vld [vmem:[#allocation2 + $0x5f8] sm:$0xff]
    %v325 = vld [vmem:[#allocation2 + $0x600] sm:$0xff]
    %v326 = vld [vmem:[#allocation2 + $0x608] sm:$0xff]
    %v327 = vld [vmem:[#allocation2 + $0x610] sm:$0xff]
    %v328 = vld [vmem:[#allocation2 + $0x618] sm:$0xff]
    %v329 = vld [vmem:[#allocation2 + $0x620] sm:$0xff]
    %v330 = vld [vmem:[#allocation2 + $0x628] sm:$0xff]
    %v331 = vld [vmem:[#allocation2 + $0x630] sm:$0xff]
    %v332 = vld [vmem:[#allocation2 + $0x638] sm:$0xff]
    %v333 = vld [vmem:[#allocation2 + $0x640] sm:$0xff]
    %v334 = vld [vmem:[#allocation2 + $0x648] sm:$0xff]
    %v335 = vld [vmem:[#allocation2 + $0x650] sm:$0xff]
    %v336 = vld [vmem:[#allocation2 + $0x658] sm:$0xff]
    %v337 = vld [vmem:[#allocation2 + $0x660] sm:$0xff]
    %v338 = vld [vmem:[#allocation2 + $0x668] sm:$0xff]
    %v339 = vld [vmem:[#allocation2 + $0x670] sm:$0xff]
    %v340 = vld [vmem:[#allocation2 + $0x678] sm:$0xff]
    %v341 = vld [vmem:[#allocation2 + $0x680] sm:$0xff]
    %v342 = vld [vmem:[#allocation2 + $0x688] sm:$0xff]
    %v343 = vld [vmem:[#allocation2 + $0x690] sm:$0xff]
    %v344 = vld [vmem:[#allocation2 + $0x698] sm:$0xff]
    %v345 = vld [vmem:[#allocation2 + $0x6a0] sm:$0xff]
    %v346 = vld [vmem:[#allocation2 + $0x6a8] sm:$0xff]
    %v347 = vld [vmem:[#allocation2 + $0x6b0] sm:$0xff]
    %v348 = vld [vmem:[#allocation2 + $0x6b8] sm:$0xff]
    %v349 = vld [vmem:[#allocation2 + $0x6c0] sm:$0xff]
    %v350 = vld [vmem:[#allocation2 + $0x6c8] sm:$0xff]
    %v351 = vld [vmem:[#allocation2 + $0x6d0] sm:$0xff]
    %v352 = vld [vmem:[#allocation2 + $0x6d8] sm:$0xff]
    %v353 = vld [vmem:[#allocation2 + $0x6e0] sm:$0xff]
    %v354 = vld [vmem:[#allocation2 + $0x6e8] sm:$0xff]
    %v355 = vld [vmem:[#allocation2 + $0x6f0] sm:$0xff]
    %v356 = vld [vmem:[#allocation2 + $0x6f8] sm:$0xff]
    %v357 = vld [vmem:[#allocation2 + $0x700] sm:$0xff]
    %v358 = vld [vmem:[#allocation2 + $0x708] sm:$0xff]
    %v359 = vld [vmem:[#allocation2 + $0x710] sm:$0xff]
    %v360 = vld [vmem:[#allocation2 + $0x718] sm:$0xff]
    %v361 = vld [vmem:[#allocation2 + $0x720] sm:$0xff]
    %v362 = vld [vmem:[#allocation2 + $0x728] sm:$0xff]
    %v363 = vld [vmem:[#allocation2 + $0x730] sm:$0xff]
    %v364 = vld [vmem:[#allocation2 + $0x738] sm:$0xff]
    %v365 = vld [vmem:[#allocation2 + $0x740] sm:$0xff]
    %v366 = vld [vmem:[#allocation2 + $0x748] sm:$0xff]
    %v367 = vld [vmem:[#allocation2 + $0x750] sm:$0xff]
    %v368 = vld [vmem:[#allocation2 + $0x758] sm:$0xff]
    %v369 = vld [vmem:[#allocation2 + $0x760] sm:$0xff]
    %v370 = vld [vmem:[#allocation2 + $0x768] sm:$0xff]
    %v371 = vld [vmem:[#allocation2 + $0x770] sm:$0xff]
    %v372 = vld [vmem:[#allocation2 + $0x778] sm:$0xff]
    %v373 = vld [vmem:[#allocation2 + $0x780] sm:$0xff]
    %v374 = vld [vmem:[#allocation2 + $0x788] sm:$0xff]
    %v375 = vld [vmem:[#allocation2 + $0x790] sm:$0xff]
    %v376 = vld [vmem:[#allocation2 + $0x798] sm:$0xff]
    %v377 = vld [vmem:[#allocation2 + $0x7a0] sm:$0xff]
    %v378 = vld [vmem:[#allocation2 + $0x7a8] sm:$0xff]
    %v379 = vld [vmem:[#allocation2 + $0x7b0] sm:$0xff]
    %v380 = vld [vmem:[#allocation2 + $0x7b8] sm:$0xff]
    %v381 = vld [vmem:[#allocation2 + $0x7c0] sm:$0xff]
    %v382 = vld [vmem:[#allocation2 + $0x7c8] sm:$0xff]
    %v383 = vld [vmem:[#allocation2 + $0x7d0] sm:$0xff]
    %v384 = vld [vmem:[#allocation2 + $0x7d8] sm:$0xff]
    %v385 = vld [vmem:[#allocation2 + $0x7e0] sm:$0xff]
    %v386 = vld [vmem:[#allocation2 + $0x7e8] sm:$0xff]
    %v387 = vld [vmem:[#allocation2 + $0x7f0] sm:$0xff]
    %v388 = vld [vmem:[#allocation2 + $0x7f8] sm:$0xff]
    %v389 = vld [vmem:[#allocation4] sm:$0x1]
    %v391 = vlaneseq
    %v392 = vshrl.u32 %v391, 7
    %v393 = vsub.s32 0, %v392
    %v394 = vrot.slane %v389, %v393
    %396 = vmatprep.subr.mxu0 0.0
    %397 = vmatpush1.msra.mxu0 %v148
    %398 = vmatprep.subr.mxu0 0.0
    %399 = vmatpush1.msra.mxu0 %v147
    %400 = vmatprep.subr.mxu0 0.0
    %401 = vmatpush1.msra.mxu0 %v146
    %402 = vmatprep.subr.mxu0 0.0
    %403 = vmatpush1.msra.mxu0 %v145
    %404 = vmatprep.subr.mxu0 0.0
    %405 = vmatpush1.msra.mxu0 %v144
    %406 = vmatprep.subr.mxu0 0.0
    %407 = vmatpush1.msra.mxu0 %v143
    %408 = vmatprep.subr.mxu0 0.0
    %409 = vmatpush1.msra.mxu0 %v142
    %410 = vmatprep.subr.mxu0 0.0
    %411 = vmatpush1.msra.mxu0 %v141
    %412 = vmatprep.subr.mxu0 0.0
    %413 = vmatpush1.msra.mxu0 %v140
    %414 = vmatprep.subr.mxu0 0.0
    %415 = vmatpush1.msra.mxu0 %v139
    %416 = vmatprep.subr.mxu0 0.0
    %417 = vmatpush1.msra.mxu0 %v138
    %418 = vmatprep.subr.mxu0 0.0
    %419 = vmatpush1.msra.mxu0 %v137
    %420 = vmatprep.subr.mxu0 0.0
    %421 = vmatpush1.msra.mxu0 %v136
    %422 = vmatprep.subr.mxu0 0.0
    %423 = vmatpush1.msra.mxu0 %v135
    %424 = vmatprep.subr.mxu0 0.0
    %425 = vmatpush1.msra.mxu0 %v134
    %426 = vmatprep.subr.mxu0 0.0
    %427 = vmatpush1.msra.mxu0 %v133
    %428 = vmatprep.subr.mxu0 0.0
    %429 = vmatpush2.msra.mxu0 %v164
    %430 = vmatprep.subr.mxu0 0.0
    %431 = vmatpush2.msra.mxu0 %v163
    %432 = vmatprep.subr.mxu0 0.0
    %433 = vmatpush2.msra.mxu0 %v162
    %434 = vmatprep.subr.mxu0 0.0
    %435 = vmatpush2.msra.mxu0 %v161
    %436 = vmatprep.subr.mxu0 0.0
    %437 = vmatpush2.msra.mxu0 %v160
    %438 = vmatprep.subr.mxu0 0.0
    %439 = vmatpush2.msra.mxu0 %v159
    %440 = vmatprep.subr.mxu0 0.0
    %441 = vmatpush2.msra.mxu0 %v158
    %442 = vmatprep.subr.mxu0 0.0
    %443 = vmatpush2.msra.mxu0 %v157
    %444 = vmatprep.subr.mxu0 0.0
    %445 = vmatpush2.msra.mxu0 %v156
    %446 = vmatprep.subr.mxu0 0.0
    %447 = vmatpush2.msra.mxu0 %v155
    %448 = vmatprep.subr.mxu0 0.0
    %449 = vmatpush2.msra.mxu0 %v154
    %450 = vmatprep.subr.mxu0 0.0
    %451 = vmatpush2.msra.mxu0 %v153
    %452 = vmatprep.subr.mxu0 0.0
    %453 = vmatpush2.msra.mxu0 %v152
    %454 = vmatprep.subr.mxu0 0.0
    %455 = vmatpush2.msra.mxu0 %v151
    %456 = vmatprep.subr.mxu0 0.0
    %457 = vmatpush2.msra.mxu0 %v150
    %458 = vmatprep.subr.mxu0 0.0
    %459 = vmatpush2.msra.mxu0 %v149
    %460 = vmatprep.mubr.f32.mxu0 %v70
    %461 = vmatmul.mubr.f32.gmra.mxu0 %v69
    %v462 = vpop.f32.mrf.mxu0
    %v463 = vadd.f32 %v394, %v462
    %v464 = vpop.f32.mrf.mxu0
    %465 = vmatprep.mubr.f32.mxu0 %v86
    %466 = vmatmul.mubr.f32.gmra.mxu0 %v85
    %v467 = vpop.f32.mrf.mxu0
    %v468 = vadd.f32 %v394, %v467
    %v469 = vpop.f32.mrf.mxu0
    %470 = vmatprep.mubr.f32.mxu0 %v102
    %471 = vmatmul.mubr.f32.gmra.mxu0 %v101
    %v472 = vpop.f32.mrf.mxu0
    %v473 = vadd.f32 %v394, %v472
    %v474 = vpop.f32.mrf.mxu0
    %475 = vmatprep.mubr.f32.mxu0 %v118
    %476 = vmatmul.mubr.f32.gmra.mxu0 %v117
    %v477 = vpop.f32.mrf.mxu0
    %v478 = vadd.f32 %v394, %v477
    %v479 = vpop.f32.mrf.mxu0
    %480 = vdwg.mxu0
    %481 = vmatprep.subr.mxu0 0.0
    %482 = vmatpush1.msra.mxu0 %v180
    %483 = vmatprep.subr.mxu0 0.0
    %484 = vmatpush1.msra.mxu0 %v179
    %485 = vmatprep.subr.mxu0 0.0
    %486 = vmatpush1.msra.mxu0 %v178
    %487 = vmatprep.subr.mxu0 0.0
    %488 = vmatpush1.msra.mxu0 %v177
    %489 = vmatprep.subr.mxu0 0.0
    %490 = vmatpush1.msra.mxu0 %v176
    %491 = vmatprep.subr.mxu0 0.0
    %492 = vmatpush1.msra.mxu0 %v175
    %493 = vmatprep.subr.mxu0 0.0
    %494 = vmatpush1.msra.mxu0 %v174
    %495 = vmatprep.subr.mxu0 0.0
    %496 = vmatpush1.msra.mxu0 %v173
    %497 = vmatprep.subr.mxu0 0.0
    %498 = vmatpush1.msra.mxu0 %v172
    %499 = vmatprep.subr.mxu0 0.0
    %500 = vmatpush1.msra.mxu0 %v171
    %501 = vmatprep.subr.mxu0 0.0
    %502 = vmatpush1.msra.mxu0 %v170
    %503 = vmatprep.subr.mxu0 0.0
    %504 = vmatpush1.msra.mxu0 %v169
    %505 = vmatprep.subr.mxu0 0.0
    %506 = vmatpush1.msra.mxu0 %v168
    %507 = vmatprep.subr.mxu0 0.0
    %508 = vmatpush1.msra.mxu0 %v167
    %509 = vmatprep.subr.mxu0 0.0
    %510 = vmatpush1.msra.mxu0 %v166
    %511 = vmatprep.subr.mxu0 0.0
    %512 = vmatpush1.msra.mxu0 %v165
    %513 = vmatprep.subr.mxu0 0.0
    %514 = vmatpush2.msra.mxu0 %v196
    %515 = vmatprep.subr.mxu0 0.0
    %516 = vmatpush2.msra.mxu0 %v195
    %517 = vmatprep.subr.mxu0 0.0
    %518 = vmatpush2.msra.mxu0 %v194
    %519 = vmatprep.subr.mxu0 0.0
    %520 = vmatpush2.msra.mxu0 %v193
    %521 = vmatprep.subr.mxu0 0.0
    %522 = vmatpush2.msra.mxu0 %v192
    %523 = vmatprep.subr.mxu0 0.0
    %524 = vmatpush2.msra.mxu0 %v191
    %525 = vmatprep.subr.mxu0 0.0
    %526 = vmatpush2.msra.mxu0 %v190
    %527 = vmatprep.subr.mxu0 0.0
    %528 = vmatpush2.msra.mxu0 %v189
    %529 = vmatprep.subr.mxu0 0.0
    %530 = vmatpush2.msra.mxu0 %v188
    %531 = vmatprep.subr.mxu0 0.0
    %532 = vmatpush2.msra.mxu0 %v187
    %533 = vmatprep.subr.mxu0 0.0
    %534 = vmatpush2.msra.mxu0 %v186
    %535 = vmatprep.subr.mxu0 0.0
    %536 = vmatpush2.msra.mxu0 %v185
    %537 = vmatprep.subr.mxu0 0.0
    %538 = vmatpush2.msra.mxu0 %v184
    %539 = vmatprep.subr.mxu0 0.0
    %540 = vmatpush2.msra.mxu0 %v183
    %541 = vmatprep.subr.mxu0 0.0
    %542 = vmatpush2.msra.mxu0 %v182
    %543 = vmatprep.subr.mxu0 0.0
    %544 = vmatpush2.msra.mxu0 %v181
    %545 = vmatprep.mubr.f32.mxu0 %v72
    %546 = vmatmul.mubr.f32.gmra.mxu0 %v71
    %v547 = vpop.f32.mrf.mxu0
    %v548 = vadd.f32 %v463, %v547
    %v549 = vpop.f32.mrf.mxu0
    %550 = vmatprep.mubr.f32.mxu0 %v88
    %551 = vmatmul.mubr.f32.gmra.mxu0 %v87
    %v552 = vpop.f32.mrf.mxu0
    %v553 = vadd.f32 %v468, %v552
    %v554 = vpop.f32.mrf.mxu0
    %555 = vmatprep.mubr.f32.mxu0 %v104
    %556 = vmatmul.mubr.f32.gmra.mxu0 %v103
    %v557 = vpop.f32.mrf.mxu0
    %v558 = vadd.f32 %v473, %v557
    %v559 = vpop.f32.mrf.mxu0
    %560 = vmatprep.mubr.f32.mxu0 %v120
    %561 = vmatmul.mubr.f32.gmra.mxu0 %v119
    %v562 = vpop.f32.mrf.mxu0
    %v563 = vadd.f32 %v478, %v562
    %v564 = vpop.f32.mrf.mxu0
    %565 = vdwg.mxu0
    %566 = vmatprep.subr.mxu0 0.0
    %567 = vmatpush1.msra.mxu0 %v212
    %568 = vmatprep.subr.mxu0 0.0
    %569 = vmatpush1.msra.mxu0 %v211
    %570 = vmatprep.subr.mxu0 0.0
    %571 = vmatpush1.msra.mxu0 %v210
    %572 = vmatprep.subr.mxu0 0.0
    %573 = vmatpush1.msra.mxu0 %v209
    %574 = vmatprep.subr.mxu0 0.0
    %575 = vmatpush1.msra.mxu0 %v208
    %576 = vmatprep.subr.mxu0 0.0
    %577 = vmatpush1.msra.mxu0 %v207
    %578 = vmatprep.subr.mxu0 0.0
    %579 = vmatpush1.msra.mxu0 %v206
    %580 = vmatprep.subr.mxu0 0.0
    %581 = vmatpush1.msra.mxu0 %v205
    %582 = vmatprep.subr.mxu0 0.0
    %583 = vmatpush1.msra.mxu0 %v204
    %584 = vmatprep.subr.mxu0 0.0
    %585 = vmatpush1.msra.mxu0 %v203
    %586 = vmatprep.subr.mxu0 0.0
    %587 = vmatpush1.msra.mxu0 %v202
    %588 = vmatprep.subr.mxu0 0.0
    %589 = vmatpush1.msra.mxu0 %v201
    %590 = vmatprep.subr.mxu0 0.0
    %591 = vmatpush1.msra.mxu0 %v200
    %592 = vmatprep.subr.mxu0 0.0
    %593 = vmatpush1.msra.mxu0 %v199
    %594 = vmatprep.subr.mxu0 0.0
    %595 = vmatpush1.msra.mxu0 %v198
    %596 = vmatprep.subr.mxu0 0.0
    %597 = vmatpush1.msra.mxu0 %v197
    %598 = vmatprep.subr.mxu0 0.0
    %599 = vmatpush2.msra.mxu0 %v228
    %600 = vmatprep.subr.mxu0 0.0
    %601 = vmatpush2.msra.mxu0 %v227
    %602 = vmatprep.subr.mxu0 0.0
    %603 = vmatpush2.msra.mxu0 %v226
    %604 = vmatprep.subr.mxu0 0.0
    %605 = vmatpush2.msra.mxu0 %v225
    %606 = vmatprep.subr.mxu0 0.0
    %607 = vmatpush2.msra.mxu0 %v224
    %608 = vmatprep.subr.mxu0 0.0
    %609 = vmatpush2.msra.mxu0 %v223
    %610 = vmatprep.subr.mxu0 0.0
    %611 = vmatpush2.msra.mxu0 %v222
    %612 = vmatprep.subr.mxu0 0.0
    %613 = vmatpush2.msra.mxu0 %v221
    %614 = vmatprep.subr.mxu0 0.0
    %615 = vmatpush2.msra.mxu0 %v220
    %616 = vmatprep.subr.mxu0 0.0
    %617 = vmatpush2.msra.mxu0 %v219
    %618 = vmatprep.subr.mxu0 0.0
    %619 = vmatpush2.msra.mxu0 %v218
    %620 = vmatprep.subr.mxu0 0.0
    %621 = vmatpush2.msra.mxu0 %v217
    %622 = vmatprep.subr.mxu0 0.0
    %623 = vmatpush2.msra.mxu0 %v216
    %624 = vmatprep.subr.mxu0 0.0
    %625 = vmatpush2.msra.mxu0 %v215
    %626 = vmatprep.subr.mxu0 0.0
    %627 = vmatpush2.msra.mxu0 %v214
    %628 = vmatprep.subr.mxu0 0.0
    %629 = vmatpush2.msra.mxu0 %v213
    %630 = vmatprep.mubr.f32.mxu0 %v74
    %631 = vmatmul.mubr.f32.gmra.mxu0 %v73
    %v632 = vpop.f32.mrf.mxu0
    %v633 = vadd.f32 %v548, %v632
    %v634 = vpop.f32.mrf.mxu0
    %635 = vmatprep.mubr.f32.mxu0 %v90
    %636 = vmatmul.mubr.f32.gmra.mxu0 %v89
    %v637 = vpop.f32.mrf.mxu0
    %v638 = vadd.f32 %v553, %v637
    %v639 = vpop.f32.mrf.mxu0
    %640 = vmatprep.mubr.f32.mxu0 %v106
    %641 = vmatmul.mubr.f32.gmra.mxu0 %v105
    %v642 = vpop.f32.mrf.mxu0
    %v643 = vadd.f32 %v558, %v642
    %v644 = vpop.f32.mrf.mxu0
    %645 = vmatprep.mubr.f32.mxu0 %v122
    %646 = vmatmul.mubr.f32.gmra.mxu0 %v121
    %v647 = vpop.f32.mrf.mxu0
    %v648 = vadd.f32 %v563, %v647
    %v649 = vpop.f32.mrf.mxu0
    %650 = vdwg.mxu0
    %651 = vmatprep.subr.mxu0 0.0
    %652 = vmatpush1.msra.mxu0 %v244
    %653 = vmatprep.subr.mxu0 0.0
    %654 = vmatpush1.msra.mxu0 %v243
    %655 = vmatprep.subr.mxu0 0.0
    %656 = vmatpush1.msra.mxu0 %v242
    %657 = vmatprep.subr.mxu0 0.0
    %658 = vmatpush1.msra.mxu0 %v241
    %659 = vmatprep.subr.mxu0 0.0
    %660 = vmatpush1.msra.mxu0 %v240
    %661 = vmatprep.subr.mxu0 0.0
    %662 = vmatpush1.msra.mxu0 %v239
    %663 = vmatprep.subr.mxu0 0.0
    %664 = vmatpush1.msra.mxu0 %v238
    %665 = vmatprep.subr.mxu0 0.0
    %666 = vmatpush1.msra.mxu0 %v237
    %667 = vmatprep.subr.mxu0 0.0
    %668 = vmatpush1.msra.mxu0 %v236
    %669 = vmatprep.subr.mxu0 0.0
    %670 = vmatpush1.msra.mxu0 %v235
    %671 = vmatprep.subr.mxu0 0.0
    %672 = vmatpush1.msra.mxu0 %v234
    %673 = vmatprep.subr.mxu0 0.0
    %674 = vmatpush1.msra.mxu0 %v233
    %675 = vmatprep.subr.mxu0 0.0
    %676 = vmatpush1.msra.mxu0 %v232
    %677 = vmatprep.subr.mxu0 0.0
    %678 = vmatpush1.msra.mxu0 %v231
    %679 = vmatprep.subr.mxu0 0.0
    %680 = vmatpush1.msra.mxu0 %v230
    %681 = vmatprep.subr.mxu0 0.0
    %682 = vmatpush1.msra.mxu0 %v229
    %683 = vmatprep.subr.mxu0 0.0
    %684 = vmatpush2.msra.mxu0 %v260
    %685 = vmatprep.subr.mxu0 0.0
    %686 = vmatpush2.msra.mxu0 %v259
    %687 = vmatprep.subr.mxu0 0.0
    %688 = vmatpush2.msra.mxu0 %v258
    %689 = vmatprep.subr.mxu0 0.0
    %690 = vmatpush2.msra.mxu0 %v257
    %691 = vmatprep.subr.mxu0 0.0
    %692 = vmatpush2.msra.mxu0 %v256
    %693 = vmatprep.subr.mxu0 0.0
    %694 = vmatpush2.msra.mxu0 %v255
    %695 = vmatprep.subr.mxu0 0.0
    %696 = vmatpush2.msra.mxu0 %v254
    %697 = vmatprep.subr.mxu0 0.0
    %698 = vmatpush2.msra.mxu0 %v253
    %699 = vmatprep.subr.mxu0 0.0
    %700 = vmatpush2.msra.mxu0 %v252
    %701 = vmatprep.subr.mxu0 0.0
    %702 = vmatpush2.msra.mxu0 %v251
    %703 = vmatprep.subr.mxu0 0.0
    %704 = vmatpush2.msra.mxu0 %v250
    %705 = vmatprep.subr.mxu0 0.0
    %706 = vmatpush2.msra.mxu0 %v249
    %707 = vmatprep.subr.mxu0 0.0
    %708 = vmatpush2.msra.mxu0 %v248
    %709 = vmatprep.subr.mxu0 0.0
    %710 = vmatpush2.msra.mxu0 %v247
    %711 = vmatprep.subr.mxu0 0.0
    %712 = vmatpush2.msra.mxu0 %v246
    %713 = vmatprep.subr.mxu0 0.0
    %714 = vmatpush2.msra.mxu0 %v245
    %715 = vmatprep.mubr.f32.mxu0 %v76
    %716 = vmatmul.mubr.f32.gmra.mxu0 %v75
    %v717 = vpop.f32.mrf.mxu0
    %v718 = vadd.f32 %v633, %v717
    %v719 = vpop.f32.mrf.mxu0
    %720 = vmatprep.mubr.f32.mxu0 %v92
    %721 = vmatmul.mubr.f32.gmra.mxu0 %v91
    %v722 = vpop.f32.mrf.mxu0
    %v723 = vadd.f32 %v638, %v722
    %v724 = vpop.f32.mrf.mxu0
    %725 = vmatprep.mubr.f32.mxu0 %v108
    %726 = vmatmul.mubr.f32.gmra.mxu0 %v107
    %v727 = vpop.f32.mrf.mxu0
    %v728 = vadd.f32 %v643, %v727
    %v729 = vpop.f32.mrf.mxu0
    %730 = vmatprep.mubr.f32.mxu0 %v124
    %731 = vmatmul.mubr.f32.gmra.mxu0 %v123
    %v732 = vpop.f32.mrf.mxu0
    %v733 = vadd.f32 %v648, %v732
    %v734 = vpop.f32.mrf.mxu0
    %735 = vdwg.mxu0
    %736 = vmatprep.subr.mxu0 0.0
    %737 = vmatpush1.msra.mxu0 %v276
    %738 = vmatprep.subr.mxu0 0.0
    %739 = vmatpush1.msra.mxu0 %v275
    %740 = vmatprep.subr.mxu0 0.0
    %741 = vmatpush1.msra.mxu0 %v274
    %742 = vmatprep.subr.mxu0 0.0
    %743 = vmatpush1.msra.mxu0 %v273
    %744 = vmatprep.subr.mxu0 0.0
    %745 = vmatpush1.msra.mxu0 %v272
    %746 = vmatprep.subr.mxu0 0.0
    %747 = vmatpush1.msra.mxu0 %v271
    %748 = vmatprep.subr.mxu0 0.0
    %749 = vmatpush1.msra.mxu0 %v270
    %750 = vmatprep.subr.mxu0 0.0
    %751 = vmatpush1.msra.mxu0 %v269
    %752 = vmatprep.subr.mxu0 0.0
    %753 = vmatpush1.msra.mxu0 %v268
    %754 = vmatprep.subr.mxu0 0.0
    %755 = vmatpush1.msra.mxu0 %v267
    %756 = vmatprep.subr.mxu0 0.0
    %757 = vmatpush1.msra.mxu0 %v266
    %758 = vmatprep.subr.mxu0 0.0
    %759 = vmatpush1.msra.mxu0 %v265
    %760 = vmatprep.subr.mxu0 0.0
    %761 = vmatpush1.msra.mxu0 %v264
    %762 = vmatprep.subr.mxu0 0.0
    %763 = vmatpush1.msra.mxu0 %v263
    %764 = vmatprep.subr.mxu0 0.0
    %765 = vmatpush1.msra.mxu0 %v262
    %766 = vmatprep.subr.mxu0 0.0
    %767 = vmatpush1.msra.mxu0 %v261
    %768 = vmatprep.subr.mxu0 0.0
    %769 = vmatpush2.msra.mxu0 %v292
    %770 = vmatprep.subr.mxu0 0.0
    %771 = vmatpush2.msra.mxu0 %v291
    %772 = vmatprep.subr.mxu0 0.0
    %773 = vmatpush2.msra.mxu0 %v290
    %774 = vmatprep.subr.mxu0 0.0
    %775 = vmatpush2.msra.mxu0 %v289
    %776 = vmatprep.subr.mxu0 0.0
    %777 = vmatpush2.msra.mxu0 %v288
    %778 = vmatprep.subr.mxu0 0.0
    %779 = vmatpush2.msra.mxu0 %v287
    %780 = vmatprep.subr.mxu0 0.0
    %781 = vmatpush2.msra.mxu0 %v286
    %782 = vmatprep.subr.mxu0 0.0
    %783 = vmatpush2.msra.mxu0 %v285
    %784 = vmatprep.subr.mxu0 0.0
    %785 = vmatpush2.msra.mxu0 %v284
    %786 = vmatprep.subr.mxu0 0.0
    %787 = vmatpush2.msra.mxu0 %v283
    %788 = vmatprep.subr.mxu0 0.0
    %789 = vmatpush2.msra.mxu0 %v282
    %790 = vmatprep.subr.mxu0 0.0
    %791 = vmatpush2.msra.mxu0 %v281
    %792 = vmatprep.subr.mxu0 0.0
    %793 = vmatpush2.msra.mxu0 %v280
    %794 = vmatprep.subr.mxu0 0.0
    %795 = vmatpush2.msra.mxu0 %v279
    %796 = vmatprep.subr.mxu0 0.0
    %797 = vmatpush2.msra.mxu0 %v278
    %798 = vmatprep.subr.mxu0 0.0
    %799 = vmatpush2.msra.mxu0 %v277
    %800 = vmatprep.mubr.f32.mxu0 %v78
    %801 = vmatmul.mubr.f32.gmra.mxu0 %v77
    %v802 = vpop.f32.mrf.mxu0
    %v803 = vadd.f32 %v718, %v802
    %v804 = vpop.f32.mrf.mxu0
    %805 = vmatprep.mubr.f32.mxu0 %v94
    %806 = vmatmul.mubr.f32.gmra.mxu0 %v93
    %v807 = vpop.f32.mrf.mxu0
    %v808 = vadd.f32 %v723, %v807
    %v809 = vpop.f32.mrf.mxu0
    %810 = vmatprep.mubr.f32.mxu0 %v110
    %811 = vmatmul.mubr.f32.gmra.mxu0 %v109
    %v812 = vpop.f32.mrf.mxu0
    %v813 = vadd.f32 %v728, %v812
    %v814 = vpop.f32.mrf.mxu0
    %815 = vmatprep.mubr.f32.mxu0 %v126
    %816 = vmatmul.mubr.f32.gmra.mxu0 %v125
    %v817 = vpop.f32.mrf.mxu0
    %v818 = vadd.f32 %v733, %v817
    %v819 = vpop.f32.mrf.mxu0
    %820 = vdwg.mxu0
    %821 = vmatprep.subr.mxu0 0.0
    %822 = vmatpush1.msra.mxu0 %v308
    %823 = vmatprep.subr.mxu0 0.0
    %824 = vmatpush1.msra.mxu0 %v307
    %825 = vmatprep.subr.mxu0 0.0
    %826 = vmatpush1.msra.mxu0 %v306
    %827 = vmatprep.subr.mxu0 0.0
    %828 = vmatpush1.msra.mxu0 %v305
    %829 = vmatprep.subr.mxu0 0.0
    %830 = vmatpush1.msra.mxu0 %v304
    %831 = vmatprep.subr.mxu0 0.0
    %832 = vmatpush1.msra.mxu0 %v303
    %833 = vmatprep.subr.mxu0 0.0
    %834 = vmatpush1.msra.mxu0 %v302
    %835 = vmatprep.subr.mxu0 0.0
    %836 = vmatpush1.msra.mxu0 %v301
    %837 = vmatprep.subr.mxu0 0.0
    %838 = vmatpush1.msra.mxu0 %v300
    %839 = vmatprep.subr.mxu0 0.0
    %840 = vmatpush1.msra.mxu0 %v299
    %841 = vmatprep.subr.mxu0 0.0
    %842 = vmatpush1.msra.mxu0 %v298
    %843 = vmatprep.subr.mxu0 0.0
    %844 = vmatpush1.msra.mxu0 %v297
    %845 = vmatprep.subr.mxu0 0.0
    %846 = vmatpush1.msra.mxu0 %v296
    %847 = vmatprep.subr.mxu0 0.0
    %848 = vmatpush1.msra.mxu0 %v295
    %849 = vmatprep.subr.mxu0 0.0
    %850 = vmatpush1.msra.mxu0 %v294
    %851 = vmatprep.subr.mxu0 0.0
    %852 = vmatpush1.msra.mxu0 %v293
    %853 = vmatprep.subr.mxu0 0.0
    %854 = vmatpush2.msra.mxu0 %v324
    %855 = vmatprep.subr.mxu0 0.0
    %856 = vmatpush2.msra.mxu0 %v323
    %857 = vmatprep.subr.mxu0 0.0
    %858 = vmatpush2.msra.mxu0 %v322
    %859 = vmatprep.subr.mxu0 0.0
    %860 = vmatpush2.msra.mxu0 %v321
    %861 = vmatprep.subr.mxu0 0.0
    %862 = vmatpush2.msra.mxu0 %v320
    %863 = vmatprep.subr.mxu0 0.0
    %864 = vmatpush2.msra.mxu0 %v319
    %865 = vmatprep.subr.mxu0 0.0
    %866 = vmatpush2.msra.mxu0 %v318
    %867 = vmatprep.subr.mxu0 0.0
    %868 = vmatpush2.msra.mxu0 %v317
    %869 = vmatprep.subr.mxu0 0.0
    %870 = vmatpush2.msra.mxu0 %v316
    %871 = vmatprep.subr.mxu0 0.0
    %872 = vmatpush2.msra.mxu0 %v315
    %873 = vmatprep.subr.mxu0 0.0
    %874 = vmatpush2.msra.mxu0 %v314
    %875 = vmatprep.subr.mxu0 0.0
    %876 = vmatpush2.msra.mxu0 %v313
    %877 = vmatprep.subr.mxu0 0.0
    %878 = vmatpush2.msra.mxu0 %v312
    %879 = vmatprep.subr.mxu0 0.0
    %880 = vmatpush2.msra.mxu0 %v311
    %881 = vmatprep.subr.mxu0 0.0
    %882 = vmatpush2.msra.mxu0 %v310
    %883 = vmatprep.subr.mxu0 0.0
    %884 = vmatpush2.msra.mxu0 %v309
    %885 = vmatprep.mubr.f32.mxu0 %v80
    %886 = vmatmul.mubr.f32.gmra.mxu0 %v79
    %v887 = vpop.f32.mrf.mxu0
    %v888 = vadd.f32 %v803, %v887
    %v889 = vpop.f32.mrf.mxu0
    %890 = vmatprep.mubr.f32.mxu0 %v96
    %891 = vmatmul.mubr.f32.gmra.mxu0 %v95
    %v892 = vpop.f32.mrf.mxu0
    %v893 = vadd.f32 %v808, %v892
    %v894 = vpop.f32.mrf.mxu0
    %895 = vmatprep.mubr.f32.mxu0 %v112
    %896 = vmatmul.mubr.f32.gmra.mxu0 %v111
    %v897 = vpop.f32.mrf.mxu0
    %v898 = vadd.f32 %v813, %v897
    %v899 = vpop.f32.mrf.mxu0
    %900 = vmatprep.mubr.f32.mxu0 %v128
    %901 = vmatmul.mubr.f32.gmra.mxu0 %v127
    %v902 = vpop.f32.mrf.mxu0
    %v903 = vadd.f32 %v818, %v902
    %v904 = vpop.f32.mrf.mxu0
    %905 = vdwg.mxu0
    %906 = vmatprep.subr.mxu0 0.0
    %907 = vmatpush1.msra.mxu0 %v340
    %908 = vmatprep.subr.mxu0 0.0
    %909 = vmatpush1.msra.mxu0 %v339
    %910 = vmatprep.subr.mxu0 0.0
    %911 = vmatpush1.msra.mxu0 %v338
    %912 = vmatprep.subr.mxu0 0.0
    %913 = vmatpush1.msra.mxu0 %v337
    %914 = vmatprep.subr.mxu0 0.0
    %915 = vmatpush1.msra.mxu0 %v336
    %916 = vmatprep.subr.mxu0 0.0
    %917 = vmatpush1.msra.mxu0 %v335
    %918 = vmatprep.subr.mxu0 0.0
    %919 = vmatpush1.msra.mxu0 %v334
    %920 = vmatprep.subr.mxu0 0.0
    %921 = vmatpush1.msra.mxu0 %v333
    %922 = vmatprep.subr.mxu0 0.0
    %923 = vmatpush1.msra.mxu0 %v332
    %924 = vmatprep.subr.mxu0 0.0
    %925 = vmatpush1.msra.mxu0 %v331
    %926 = vmatprep.subr.mxu0 0.0
    %927 = vmatpush1.msra.mxu0 %v330
    %928 = vmatprep.subr.mxu0 0.0
    %929 = vmatpush1.msra.mxu0 %v329
    %930 = vmatprep.subr.mxu0 0.0
    %931 = vmatpush1.msra.mxu0 %v328
    %932 = vmatprep.subr.mxu0 0.0
    %933 = vmatpush1.msra.mxu0 %v327
    %934 = vmatprep.subr.mxu0 0.0
    %935 = vmatpush1.msra.mxu0 %v326
    %936 = vmatprep.subr.mxu0 0.0
    %937 = vmatpush1.msra.mxu0 %v325
    %938 = vmatprep.subr.mxu0 0.0
    %939 = vmatpush2.msra.mxu0 %v356
    %940 = vmatprep.subr.mxu0 0.0
    %941 = vmatpush2.msra.mxu0 %v355
    %942 = vmatprep.subr.mxu0 0.0
    %943 = vmatpush2.msra.mxu0 %v354
    %944 = vmatprep.subr.mxu0 0.0
    %945 = vmatpush2.msra.mxu0 %v353
    %946 = vmatprep.subr.mxu0 0.0
    %947 = vmatpush2.msra.mxu0 %v352
    %948 = vmatprep.subr.mxu0 0.0
    %949 = vmatpush2.msra.mxu0 %v351
    %950 = vmatprep.subr.mxu0 0.0
    %951 = vmatpush2.msra.mxu0 %v350
    %952 = vmatprep.subr.mxu0 0.0
    %953 = vmatpush2.msra.mxu0 %v349
    %954 = vmatprep.subr.mxu0 0.0
    %955 = vmatpush2.msra.mxu0 %v348
    %956 = vmatprep.subr.mxu0 0.0
    %957 = vmatpush2.msra.mxu0 %v347
    %958 = vmatprep.subr.mxu0 0.0
    %959 = vmatpush2.msra.mxu0 %v346
    %960 = vmatprep.subr.mxu0 0.0
    %961 = vmatpush2.msra.mxu0 %v345
    %962 = vmatprep.subr.mxu0 0.0
    %963 = vmatpush2.msra.mxu0 %v344
    %964 = vmatprep.subr.mxu0 0.0
    %965 = vmatpush2.msra.mxu0 %v343
    %966 = vmatprep.subr.mxu0 0.0
    %967 = vmatpush2.msra.mxu0 %v342
    %968 = vmatprep.subr.mxu0 0.0
    %969 = vmatpush2.msra.mxu0 %v341
    %970 = vmatprep.mubr.f32.mxu0 %v82
    %971 = vmatmul.mubr.f32.gmra.mxu0 %v81
    %v972 = vpop.f32.mrf.mxu0
    %v973 = vadd.f32 %v888, %v972
    %v974 = vpop.f32.mrf.mxu0
    %975 = vmatprep.mubr.f32.mxu0 %v98
    %976 = vmatmul.mubr.f32.gmra.mxu0 %v97
    %v977 = vpop.f32.mrf.mxu0
    %v978 = vadd.f32 %v893, %v977
    %v979 = vpop.f32.mrf.mxu0
    %980 = vmatprep.mubr.f32.mxu0 %v114
    %981 = vmatmul.mubr.f32.gmra.mxu0 %v113
    %v982 = vpop.f32.mrf.mxu0
    %v983 = vadd.f32 %v898, %v982
    %v984 = vpop.f32.mrf.mxu0
    %985 = vmatprep.mubr.f32.mxu0 %v130
    %986 = vmatmul.mubr.f32.gmra.mxu0 %v129
    %v987 = vpop.f32.mrf.mxu0
    %v988 = vadd.f32 %v903, %v987
    %v989 = vpop.f32.mrf.mxu0
    %990 = vdwg.mxu0
    %991 = vmatprep.subr.mxu0 0.0
    %992 = vmatpush1.msra.mxu0 %v372
    %993 = vmatprep.subr.mxu0 0.0
    %994 = vmatpush1.msra.mxu0 %v371
    %995 = vmatprep.subr.mxu0 0.0
    %996 = vmatpush1.msra.mxu0 %v370
    %997 = vmatprep.subr.mxu0 0.0
    %998 = vmatpush1.msra.mxu0 %v369
    %999 = vmatprep.subr.mxu0 0.0
    %1000 = vmatpush1.msra.mxu0 %v368
    %1001 = vmatprep.subr.mxu0 0.0
    %1002 = vmatpush1.msra.mxu0 %v367
    %1003 = vmatprep.subr.mxu0 0.0
    %1004 = vmatpush1.msra.mxu0 %v366
    %1005 = vmatprep.subr.mxu0 0.0
    %1006 = vmatpush1.msra.mxu0 %v365
    %1007 = vmatprep.subr.mxu0 0.0
    %1008 = vmatpush1.msra.mxu0 %v364
    %1009 = vmatprep.subr.mxu0 0.0
    %1010 = vmatpush1.msra.mxu0 %v363
    %1011 = vmatprep.subr.mxu0 0.0
    %1012 = vmatpush1.msra.mxu0 %v362
    %1013 = vmatprep.subr.mxu0 0.0
    %1014 = vmatpush1.msra.mxu0 %v361
    %1015 = vmatprep.subr.mxu0 0.0
    %1016 = vmatpush1.msra.mxu0 %v360
    %1017 = vmatprep.subr.mxu0 0.0
    %1018 = vmatpush1.msra.mxu0 %v359
    %1019 = vmatprep.subr.mxu0 0.0
    %1020 = vmatpush1.msra.mxu0 %v358
    %1021 = vmatprep.subr.mxu0 0.0
    %1022 = vmatpush1.msra.mxu0 %v357
    %1023 = vmatprep.subr.mxu0 0.0
    %1024 = vmatpush2.msra.mxu0 %v388
    %1025 = vmatprep.subr.mxu0 0.0
    %1026 = vmatpush2.msra.mxu0 %v387
    %1027 = vmatprep.subr.mxu0 0.0
    %1028 = vmatpush2.msra.mxu0 %v386
    %1029 = vmatprep.subr.mxu0 0.0
    %1030 = vmatpush2.msra.mxu0 %v385
    %1031 = vmatprep.subr.mxu0 0.0
    %1032 = vmatpush2.msra.mxu0 %v384
    %1033 = vmatprep.subr.mxu0 0.0
    %1034 = vmatpush2.msra.mxu0 %v383
    %1035 = vmatprep.subr.mxu0 0.0
    %1036 = vmatpush2.msra.mxu0 %v382
    %1037 = vmatprep.subr.mxu0 0.0
    %1038 = vmatpush2.msra.mxu0 %v381
    %1039 = vmatprep.subr.mxu0 0.0
    %1040 = vmatpush2.msra.mxu0 %v380
    %1041 = vmatprep.subr.mxu0 0.0
    %1042 = vmatpush2.msra.mxu0 %v379
    %1043 = vmatprep.subr.mxu0 0.0
    %1044 = vmatpush2.msra.mxu0 %v378
    %1045 = vmatprep.subr.mxu0 0.0
    %1046 = vmatpush2.msra.mxu0 %v377
    %1047 = vmatprep.subr.mxu0 0.0
    %1048 = vmatpush2.msra.mxu0 %v376
    %1049 = vmatprep.subr.mxu0 0.0
    %1050 = vmatpush2.msra.mxu0 %v375
    %1051 = vmatprep.subr.mxu0 0.0
    %1052 = vmatpush2.msra.mxu0 %v374
    %1053 = vmatprep.subr.mxu0 0.0
    %1054 = vmatpush2.msra.mxu0 %v373
    %1055 = vmatprep.mubr.f32.mxu0 %v84
    %1056 = vmatmul.mubr.f32.gmra.mxu0 %v83
    %v1057 = vpop.f32.mrf.mxu0
    %v1058 = vadd.f32 %v973, %v1057
    %v1059 = vpop.f32.mrf.mxu0
    %1060 = vmatprep.mubr.f32.mxu0 %v100
    %1061 = vmatmul.mubr.f32.gmra.mxu0 %v99
    %v1062 = vpop.f32.mrf.mxu0
    %v1063 = vadd.f32 %v978, %v1062
    %v1064 = vpop.f32.mrf.mxu0
    %1065 = vmatprep.mubr.f32.mxu0 %v116
    %1066 = vmatmul.mubr.f32.gmra.mxu0 %v115
    %v1067 = vpop.f32.mrf.mxu0
    %v1068 = vadd.f32 %v983, %v1067
    %v1069 = vpop.f32.mrf.mxu0
    %1070 = vmatprep.mubr.f32.mxu0 %v132
    %1071 = vmatmul.mubr.f32.gmra.mxu0 %v131
    %v1072 = vpop.f32.mrf.mxu0
    %v1073 = vadd.f32 %v988, %v1072
    %v1074 = vpop.f32.mrf.mxu0
    %1075 = vdwg.mxu0
    %v1076 = vadd.f32 %v1058, %v1063
    %v1077 = vadd.f32 %v1076, %v1068
    %v1078 = vadd.f32 %v1077, %v1073
    %v1079 = vrot.slane %v1078, 4
    %v1080 = vadd.f32 %v1078, %v1079
    %v1081 = vrot.slane %v1080, 2
    %v1082 = vadd.f32 %v1080, %v1081
    %v1083 = vrot.slane %v1082, 1
    %v1084 = vadd.f32 %v1082, %v1083
    %v1085 = vmul.f32 %v1058, %v1058
    %v1086 = vmul.f32 %v1063, %v1063
    %v1087 = vmul.f32 %v1068, %v1068
    %v1088 = vmul.f32 %v1073, %v1073
    %v1089 = vadd.f32 %v1085, %v1086
    %v1090 = vadd.f32 %v1089, %v1087
    %v1091 = vadd.f32 %v1090, %v1088
    %v1092 = vrot.slane %v1091, 4
    %v1093 = vadd.f32 %v1091, %v1092
    %v1094 = vrot.slane %v1093, 2
    %v1095 = vadd.f32 %v1093, %v1094
    %v1096 = vrot.slane %v1095, 1
    %v1097 = vadd.f32 %v1095, %v1096
    %v1098 = vmul.f32 %v1084, 0.03125
    %v1099 = vmul.f32 %v1097, 0.03125
    %v1100 = vmul.f32 %v1098, %v1098
    %v1101 = vsub.f32 %v1099, %v1100
    %v1102 = vmax.f32 %v1101, 0.0
    %v1103 = vadd.f32 %v1102, 1e-05
    %v1104 = vrsqrt.pop %v1103
    %v1105 = vsub.f32 %v1058, %v1098
    %v1106 = vsub.f32 %v1063, %v1098
    %v1107 = vsub.f32 %v1068, %v1098
    %v1108 = vsub.f32 %v1073, %v1098
    %v1109 = vld [vmem:[#allocation6] sm:$0x1]
    %v1110 = vmul.f32 %v1104, %v1109
    %v1111 = vlaneseq
    %v1112 = vshrl.u32 %v1111, 7
    %v1113 = vsub.s32 0, %v1112
    %v1114 = vrot.slane %v1110, %v1113
    %v1115 = vmul.f32 %v1105, %v1114
    %v1116 = vmul.f32 %v1106, %v1114
    %v1117 = vmul.f32 %v1107, %v1114
    %v1118 = vmul.f32 %v1108, %v1114
    %v1119 = vld [vmem:[#allocation7] sm:$0x1]
    %v1121 = vlaneseq
    %v1122 = vshrl.u32 %v1121, 7
    %v1123 = vsub.s32 0, %v1122
    %v1124 = vrot.slane %v1119, %v1123
    %v1126 = vadd.f32 %v1115, %v1124
    %v1127 = vadd.f32 %v1116, %v1124
    %v1128 = vadd.f32 %v1117, %v1124
    %v1129 = vadd.f32 %v1118, %v1124
    %v1130 = vmax.f32 %v1126, 0.0
    %v1131 = vmax.f32 %v1127, 0.0
    %v1132 = vmax.f32 %v1128, 0.0
    %v1133 = vmax.f32 %v1129, 0.0
    %1134 = vst [vmem:[%s5] sm:$0xff] %v1130
    %1135 = vst [vmem:[%s5 + $0x8] sm:$0xff] %v1131
    %1136 = vst [vmem:[%s5 + $0x10] sm:$0xff] %v1132
    %1137 = vst [vmem:[%s5 + $0x18] sm:$0xff] %v1133
    // Predicated region
    $region38: #{generator_forward.7} parent=1 // pred_check
      _
    $region39: #{generator_forward.7} parent=1 // pred_check_branch
      %1139 = sbr.rel (0) target = $region41
    $region40: #{generator_forward.7} parent=1 // pred_region
      _
    $region41: #{generator_forward.7} parent=1 // pred_fallthru
      _
    // Predicated region
    $region42: #{generator_forward.7} parent=1 // pred_check
      _
    $region43: #{generator_forward.7} parent=1 // pred_check_branch
      %1141 = sbr.rel (0) target = $region45
    $region44: #{generator_forward.7} parent=1 // pred_region
      _
    $region45: #{generator_forward.7} parent=1 // pred_fallthru
      _
    %1142 = vsyncpa [#allocation3], 1
    %1143 = vsyncpa [#allocation5], 1
    %1144 = vsyncpa [#allocation8], 1

// kernel: generator_forward.8
$region0: #{generator_forward.8}
  #allocation0 [shape = 'u32[]', space=smem, size = 0x4, offset = 0x4, fixed_abs, tag = 'smem constant byte address 0x4 - core index']
  #allocation1 [shape = 'u32[144,128]{1,0:T(1,128)}', space=vmem, size = 0x12000, scoped, tag = 'internal scratch']
  %s0 = inlined_call_operand.vmem [shape: f32[128,2048], index: 0, kind: input, shape index: {}]
  %s1 = inlined_call_operand.vmem [shape: f32[2048,128], index: 1, kind: input, shape index: {}]
  %s2 = inlined_call_operand.vmem [shape: f32[1,128], index: 2, kind: input, shape index: {}]
  %s3 = inlined_call_operand.vmem [shape: f32[1,128], index: 3, kind: input, shape index: {}]
  %s4 = inlined_call_operand.vmem [shape: f32[1,128], index: 4, kind: input, shape index: {}]
  %s5 = inlined_call_operand.vmem [shape: f32[128,128], index: 5, kind: output, shape index: {}]
  %s6 = sld [smem:[#allocation0]]
  $region30: #{generator_forward.8} parent=0
    _
  %s8 = ssub.s32 1, %s6
  %s9 = scalar_select 0, %s8, %s6
  // Predicated region
  $region2: #{generator_forward.8} parent=0 // pred_check
    _
  $region3: #{generator_forward.8} parent=0 // pred_check_branch
    %11 = sbr.rel (0) target = $region5
  $region4: #{generator_forward.8} parent=0 // pred_region
    _
  $region5: #{generator_forward.8} parent=0 // pred_fallthru
    _
  // Predicated region
  $region6: #{generator_forward.8} parent=0 // pred_check
    _
  $region7: #{generator_forward.8} parent=0 // pred_check_branch
    %13 = sbr.rel (0) target = $region9
  $region8: #{generator_forward.8} parent=0 // pred_region
    _
  $region9: #{generator_forward.8} parent=0 // pred_fallthru
    _
  // Predicated region
  $region10: #{generator_forward.8} parent=0 // pred_check
    _
  $region11: #{generator_forward.8} parent=0 // pred_check_branch
    %15 = sbr.rel (0) target = $region13
  $region12: #{generator_forward.8} parent=0 // pred_region
    _
  $region13: #{generator_forward.8} parent=0 // pred_fallthru
    _
  // Predicated region
  $region14: #{generator_forward.8} parent=0 // pred_check
    _
  $region15: #{generator_forward.8} parent=0 // pred_check_branch
    %17 = sbr.rel (0) target = $region17
  $region16: #{generator_forward.8} parent=0 // pred_region
    _
  $region17: #{generator_forward.8} parent=0 // pred_fallthru
    _
  // Predicated region
  $region18: #{generator_forward.8} parent=0 // pred_check
    _
  $region19: #{generator_forward.8} parent=0 // pred_check_branch
    %19 = sbr.rel (0) target = $region21
  $region20: #{generator_forward.8} parent=0 // pred_region
    _
  $region21: #{generator_forward.8} parent=0 // pred_fallthru
    _
  %v20 = vld [vmem:[%s0] sm:$0xff]
  %v21 = vld [vmem:[%s0 + $0x8] sm:$0xff]
  %v22 = vld [vmem:[%s0 + $0x10] sm:$0xff]
  %v23 = vld [vmem:[%s0 + $0x18] sm:$0xff]
  %v24 = vld [vmem:[%s0 + $0x20] sm:$0xff]
  %v25 = vld [vmem:[%s0 + $0x28] sm:$0xff]
  %v26 = vld [vmem:[%s0 + $0x30] sm:$0xff]
  %v27 = vld [vmem:[%s0 + $0x38] sm:$0xff]
  %v28 = vld [vmem:[%s0 + $0x40] sm:$0xff]
  %v29 = vld [vmem:[%s0 + $0x48] sm:$0xff]
  %v30 = vld [vmem:[%s0 + $0x50] sm:$0xff]
  %v31 = vld [vmem:[%s0 + $0x58] sm:$0xff]
  %v32 = vld [vmem:[%s0 + $0x60] sm:$0xff]
  %v33 = vld [vmem:[%s0 + $0x68] sm:$0xff]
  %v34 = vld [vmem:[%s0 + $0x70] sm:$0xff]
  %v35 = vld [vmem:[%s0 + $0x78] sm:$0xff]
  %v36 = vld [vmem:[%s0 + $0x80] sm:$0xff]
  %v37 = vld [vmem:[%s0 + $0x88] sm:$0xff]
  %v38 = vld [vmem:[%s0 + $0x90] sm:$0xff]
  %v39 = vld [vmem:[%s0 + $0x98] sm:$0xff]
  %v40 = vld [vmem:[%s0 + $0xa0] sm:$0xff]
  %v41 = vld [vmem:[%s0 + $0xa8] sm:$0xff]
  %v42 = vld [vmem:[%s0 + $0xb0] sm:$0xff]
  %v43 = vld [vmem:[%s0 + $0xb8] sm:$0xff]
  %v44 = vld [vmem:[%s0 + $0xc0] sm:$0xff]
  %v45 = vld [vmem:[%s0 + $0xc8] sm:$0xff]
  %v46 = vld [vmem:[%s0 + $0xd0] sm:$0xff]
  %v47 = vld [vmem:[%s0 + $0xd8] sm:$0xff]
  %v48 = vld [vmem:[%s0 + $0xe0] sm:$0xff]
  %v49 = vld [vmem:[%s0 + $0xe8] sm:$0xff]
  %v50 = vld [vmem:[%s0 + $0xf0] sm:$0xff]
  %v51 = vld [vmem:[%s0 + $0xf8] sm:$0xff]
  %v52 = vld [vmem:[%s0 + $0x100] sm:$0xff]
  %v53 = vld [vmem:[%s0 + $0x108] sm:$0xff]
  %v54 = vld [vmem:[%s0 + $0x110] sm:$0xff]
  %v55 = vld [vmem:[%s0 + $0x118] sm:$0xff]
  %v56 = vld [vmem:[%s0 + $0x120] sm:$0xff]
  %v57 = vld [vmem:[%s0 + $0x128] sm:$0xff]
  %v58 = vld [vmem:[%s0 + $0x130] sm:$0xff]
  %v59 = vld [vmem:[%s0 + $0x138] sm:$0xff]
  %v60 = vld [vmem:[%s0 + $0x140] sm:$0xff]
  %v61 = vld [vmem:[%s0 + $0x148] sm:$0xff]
  %v62 = vld [vmem:[%s0 + $0x150] sm:$0xff]
  %v63 = vld [vmem:[%s0 + $0x158] sm:$0xff]
  %v64 = vld [vmem:[%s0 + $0x160] sm:$0xff]
  %v65 = vld [vmem:[%s0 + $0x168] sm:$0xff]
  %v66 = vld [vmem:[%s0 + $0x170] sm:$0xff]
  %v67 = vld [vmem:[%s0 + $0x178] sm:$0xff]
  %v68 = vld [vmem:[%s0 + $0x180] sm:$0xff]
  %v69 = vld [vmem:[%s0 + $0x188] sm:$0xff]
  %v70 = vld [vmem:[%s0 + $0x190] sm:$0xff]
  %v71 = vld [vmem:[%s0 + $0x198] sm:$0xff]
  %v72 = vld [vmem:[%s0 + $0x1a0] sm:$0xff]
  %v73 = vld [vmem:[%s0 + $0x1a8] sm:$0xff]
  %v74 = vld [vmem:[%s0 + $0x1b0] sm:$0xff]
  %v75 = vld [vmem:[%s0 + $0x1b8] sm:$0xff]
  %v76 = vld [vmem:[%s0 + $0x1c0] sm:$0xff]
  %v77 = vld [vmem:[%s0 + $0x1c8] sm:$0xff]
  %v78 = vld [vmem:[%s0 + $0x1d0] sm:$0xff]
  %v79 = vld [vmem:[%s0 + $0x1d8] sm:$0xff]
  %v80 = vld [vmem:[%s0 + $0x1e0] sm:$0xff]
  %v81 = vld [vmem:[%s0 + $0x1e8] sm:$0xff]
  %v82 = vld [vmem:[%s0 + $0x1f0] sm:$0xff]
  %v83 = vld [vmem:[%s0 + $0x1f8] sm:$0xff]
  %v84 = vld [vmem:[%s0 + $0x200] sm:$0xff]
  %v85 = vld [vmem:[%s0 + $0x208] sm:$0xff]
  %v86 = vld [vmem:[%s0 + $0x210] sm:$0xff]
  %v87 = vld [vmem:[%s0 + $0x218] sm:$0xff]
  %v88 = vld [vmem:[%s0 + $0x220] sm:$0xff]
  %v89 = vld [vmem:[%s0 + $0x228] sm:$0xff]
  %v90 = vld [vmem:[%s0 + $0x230] sm:$0xff]
  %v91 = vld [vmem:[%s0 + $0x238] sm:$0xff]
  %v92 = vld [vmem:[%s0 + $0x240] sm:$0xff]
  %v93 = vld [vmem:[%s0 + $0x248] sm:$0xff]
  %v94 = vld [vmem:[%s0 + $0x250] sm:$0xff]
  %v95 = vld [vmem:[%s0 + $0x258] sm:$0xff]
  %v96 = vld [vmem:[%s0 + $0x260] sm:$0xff]
  %v97 = vld [vmem:[%s0 + $0x268] sm:$0xff]
  %v98 = vld [vmem:[%s0 + $0x270] sm:$0xff]
  %v99 = vld [vmem:[%s0 + $0x278] sm:$0xff]
  %v100 = vld [vmem:[%s0 + $0x280] sm:$0xff]
  %v101 = vld [vmem:[%s0 + $0x288] sm:$0xff]
  %v102 = vld [vmem:[%s0 + $0x290] sm:$0xff]
  %v103 = vld [vmem:[%s0 + $0x298] sm:$0xff]
  %v104 = vld [vmem:[%s0 + $0x2a0] sm:$0xff]
  %v105 = vld [vmem:[%s0 + $0x2a8] sm:$0xff]
  %v106 = vld [vmem:[%s0 + $0x2b0] sm:$0xff]
  %v107 = vld [vmem:[%s0 + $0x2b8] sm:$0xff]
  %v108 = vld [vmem:[%s0 + $0x2c0] sm:$0xff]
  %v109 = vld [vmem:[%s0 + $0x2c8] sm:$0xff]
  %v110 = vld [vmem:[%s0 + $0x2d0] sm:$0xff]
  %v111 = vld [vmem:[%s0 + $0x2d8] sm:$0xff]
  %v112 = vld [vmem:[%s0 + $0x2e0] sm:$0xff]
  %v113 = vld [vmem:[%s0 + $0x2e8] sm:$0xff]
  %v114 = vld [vmem:[%s0 + $0x2f0] sm:$0xff]
  %v115 = vld [vmem:[%s0 + $0x2f8] sm:$0xff]
  %v116 = vld [vmem:[%s0 + $0x300] sm:$0xff]
  %v117 = vld [vmem:[%s0 + $0x308] sm:$0xff]
  %v118 = vld [vmem:[%s0 + $0x310] sm:$0xff]
  %v119 = vld [vmem:[%s0 + $0x318] sm:$0xff]
  %v120 = vld [vmem:[%s0 + $0x320] sm:$0xff]
  %v121 = vld [vmem:[%s0 + $0x328] sm:$0xff]
  %v122 = vld [vmem:[%s0 + $0x330] sm:$0xff]
  %v123 = vld [vmem:[%s0 + $0x338] sm:$0xff]
  %v124 = vld [vmem:[%s0 + $0x340] sm:$0xff]
  %v125 = vld [vmem:[%s0 + $0x348] sm:$0xff]
  %v126 = vld [vmem:[%s0 + $0x350] sm:$0xff]
  %v127 = vld [vmem:[%s0 + $0x358] sm:$0xff]
  %v128 = vld [vmem:[%s0 + $0x360] sm:$0xff]
  %v129 = vld [vmem:[%s0 + $0x368] sm:$0xff]
  %v130 = vld [vmem:[%s0 + $0x370] sm:$0xff]
  %v131 = vld [vmem:[%s0 + $0x378] sm:$0xff]
  %v132 = vld [vmem:[%s0 + $0x380] sm:$0xff]
  %v133 = vld [vmem:[%s0 + $0x388] sm:$0xff]
  %v134 = vld [vmem:[%s0 + $0x390] sm:$0xff]
  %v135 = vld [vmem:[%s0 + $0x398] sm:$0xff]
  %v136 = vld [vmem:[%s0 + $0x3a0] sm:$0xff]
  %v137 = vld [vmem:[%s0 + $0x3a8] sm:$0xff]
  %v138 = vld [vmem:[%s0 + $0x3b0] sm:$0xff]
  %v139 = vld [vmem:[%s0 + $0x3b8] sm:$0xff]
  %v140 = vld [vmem:[%s0 + $0x3c0] sm:$0xff]
  %v141 = vld [vmem:[%s0 + $0x3c8] sm:$0xff]
  %v142 = vld [vmem:[%s0 + $0x3d0] sm:$0xff]
  %v143 = vld [vmem:[%s0 + $0x3d8] sm:$0xff]
  %v144 = vld [vmem:[%s0 + $0x3e0] sm:$0xff]
  %v145 = vld [vmem:[%s0 + $0x3e8] sm:$0xff]
  %v146 = vld [vmem:[%s0 + $0x3f0] sm:$0xff]
  %v147 = vld [vmem:[%s0 + $0x3f8] sm:$0xff]
  %v148 = vld [vmem:[%s0 + $0x400] sm:$0xff]
  %v149 = vld [vmem:[%s0 + $0x408] sm:$0xff]
  %v150 = vld [vmem:[%s0 + $0x410] sm:$0xff]
  %v151 = vld [vmem:[%s0 + $0x418] sm:$0xff]
  %v152 = vld [vmem:[%s0 + $0x420] sm:$0xff]
  %v153 = vld [vmem:[%s0 + $0x428] sm:$0xff]
  %v154 = vld [vmem:[%s0 + $0x430] sm:$0xff]
  %v155 = vld [vmem:[%s0 + $0x438] sm:$0xff]
  %v156 = vld [vmem:[%s0 + $0x440] sm:$0xff]
  %v157 = vld [vmem:[%s0 + $0x448] sm:$0xff]
  %v158 = vld [vmem:[%s0 + $0x450] sm:$0xff]
  %v159 = vld [vmem:[%s0 + $0x458] sm:$0xff]
  %v160 = vld [vmem:[%s0 + $0x460] sm:$0xff]
  %v161 = vld [vmem:[%s0 + $0x468] sm:$0xff]
  %v162 = vld [vmem:[%s0 + $0x470] sm:$0xff]
  %v163 = vld [vmem:[%s0 + $0x478] sm:$0xff]
  %v164 = vld [vmem:[%s0 + $0x480] sm:$0xff]
  %v165 = vld [vmem:[%s0 + $0x488] sm:$0xff]
  %v166 = vld [vmem:[%s0 + $0x490] sm:$0xff]
  %v167 = vld [vmem:[%s0 + $0x498] sm:$0xff]
  %v168 = vld [vmem:[%s0 + $0x4a0] sm:$0xff]
  %v169 = vld [vmem:[%s0 + $0x4a8] sm:$0xff]
  %v170 = vld [vmem:[%s0 + $0x4b0] sm:$0xff]
  %v171 = vld [vmem:[%s0 + $0x4b8] sm:$0xff]
  %v172 = vld [vmem:[%s0 + $0x4c0] sm:$0xff]
  %v173 = vld [vmem:[%s0 + $0x4c8] sm:$0xff]
  %v174 = vld [vmem:[%s0 + $0x4d0] sm:$0xff]
  %v175 = vld [vmem:[%s0 + $0x4d8] sm:$0xff]
  %v176 = vld [vmem:[%s0 + $0x4e0] sm:$0xff]
  %v177 = vld [vmem:[%s0 + $0x4e8] sm:$0xff]
  %v178 = vld [vmem:[%s0 + $0x4f0] sm:$0xff]
  %v179 = vld [vmem:[%s0 + $0x4f8] sm:$0xff]
  %v180 = vld [vmem:[%s0 + $0x500] sm:$0xff]
  %v181 = vld [vmem:[%s0 + $0x508] sm:$0xff]
  %v182 = vld [vmem:[%s0 + $0x510] sm:$0xff]
  %v183 = vld [vmem:[%s0 + $0x518] sm:$0xff]
  %v184 = vld [vmem:[%s0 + $0x520] sm:$0xff]
  %v185 = vld [vmem:[%s0 + $0x528] sm:$0xff]
  %v186 = vld [vmem:[%s0 + $0x530] sm:$0xff]
  %v187 = vld [vmem:[%s0 + $0x538] sm:$0xff]
  %v188 = vld [vmem:[%s0 + $0x540] sm:$0xff]
  %v189 = vld [vmem:[%s0 + $0x548] sm:$0xff]
  %v190 = vld [vmem:[%s0 + $0x550] sm:$0xff]
  %v191 = vld [vmem:[%s0 + $0x558] sm:$0xff]
  %v192 = vld [vmem:[%s0 + $0x560] sm:$0xff]
  %v193 = vld [vmem:[%s0 + $0x568] sm:$0xff]
  %v194 = vld [vmem:[%s0 + $0x570] sm:$0xff]
  %v195 = vld [vmem:[%s0 + $0x578] sm:$0xff]
  %v196 = vld [vmem:[%s0 + $0x580] sm:$0xff]
  %v197 = vld [vmem:[%s0 + $0x588] sm:$0xff]
  %v198 = vld [vmem:[%s0 + $0x590] sm:$0xff]
  %v199 = vld [vmem:[%s0 + $0x598] sm:$0xff]
  %v200 = vld [vmem:[%s0 + $0x5a0] sm:$0xff]
  %v201 = vld [vmem:[%s0 + $0x5a8] sm:$0xff]
  %v202 = vld [vmem:[%s0 + $0x5b0] sm:$0xff]
  %v203 = vld [vmem:[%s0 + $0x5b8] sm:$0xff]
  %v204 = vld [vmem:[%s0 + $0x5c0] sm:$0xff]
  %v205 = vld [vmem:[%s0 + $0x5c8] sm:$0xff]
  %v206 = vld [vmem:[%s0 + $0x5d0] sm:$0xff]
  %v207 = vld [vmem:[%s0 + $0x5d8] sm:$0xff]
  %v208 = vld [vmem:[%s0 + $0x5e0] sm:$0xff]
  %v209 = vld [vmem:[%s0 + $0x5e8] sm:$0xff]
  %v210 = vld [vmem:[%s0 + $0x5f0] sm:$0xff]
  %v211 = vld [vmem:[%s0 + $0x5f8] sm:$0xff]
  %v212 = vld [vmem:[%s0 + $0x600] sm:$0xff]
  %v213 = vld [vmem:[%s0 + $0x608] sm:$0xff]
  %v214 = vld [vmem:[%s0 + $0x610] sm:$0xff]
  %v215 = vld [vmem:[%s0 + $0x618] sm:$0xff]
  %v216 = vld [vmem:[%s0 + $0x620] sm:$0xff]
  %v217 = vld [vmem:[%s0 + $0x628] sm:$0xff]
  %v218 = vld [vmem:[%s0 + $0x630] sm:$0xff]
  %v219 = vld [vmem:[%s0 + $0x638] sm:$0xff]
  %v220 = vld [vmem:[%s0 + $0x640] sm:$0xff]
  %v221 = vld [vmem:[%s0 + $0x648] sm:$0xff]
  %v222 = vld [vmem:[%s0 + $0x650] sm:$0xff]
  %v223 = vld [vmem:[%s0 + $0x658] sm:$0xff]
  %v224 = vld [vmem:[%s0 + $0x660] sm:$0xff]
  %v225 = vld [vmem:[%s0 + $0x668] sm:$0xff]
  %v226 = vld [vmem:[%s0 + $0x670] sm:$0xff]
  %v227 = vld [vmem:[%s0 + $0x678] sm:$0xff]
  %v228 = vld [vmem:[%s0 + $0x680] sm:$0xff]
  %v229 = vld [vmem:[%s0 + $0x688] sm:$0xff]
  %v230 = vld [vmem:[%s0 + $0x690] sm:$0xff]
  %v231 = vld [vmem:[%s0 + $0x698] sm:$0xff]
  %v232 = vld [vmem:[%s0 + $0x6a0] sm:$0xff]
  %v233 = vld [vmem:[%s0 + $0x6a8] sm:$0xff]
  %v234 = vld [vmem:[%s0 + $0x6b0] sm:$0xff]
  %v235 = vld [vmem:[%s0 + $0x6b8] sm:$0xff]
  %v236 = vld [vmem:[%s0 + $0x6c0] sm:$0xff]
  %v237 = vld [vmem:[%s0 + $0x6c8] sm:$0xff]
  %v238 = vld [vmem:[%s0 + $0x6d0] sm:$0xff]
  %v239 = vld [vmem:[%s0 + $0x6d8] sm:$0xff]
  %v240 = vld [vmem:[%s0 + $0x6e0] sm:$0xff]
  %v241 = vld [vmem:[%s0 + $0x6e8] sm:$0xff]
  %v242 = vld [vmem:[%s0 + $0x6f0] sm:$0xff]
  %v243 = vld [vmem:[%s0 + $0x6f8] sm:$0xff]
  %v244 = vld [vmem:[%s0 + $0x700] sm:$0xff]
  %v245 = vld [vmem:[%s0 + $0x708] sm:$0xff]
  %v246 = vld [vmem:[%s0 + $0x710] sm:$0xff]
  %v247 = vld [vmem:[%s0 + $0x718] sm:$0xff]
  %v248 = vld [vmem:[%s0 + $0x720] sm:$0xff]
  %v249 = vld [vmem:[%s0 + $0x728] sm:$0xff]
  %v250 = vld [vmem:[%s0 + $0x730] sm:$0xff]
  %v251 = vld [vmem:[%s0 + $0x738] sm:$0xff]
  %v252 = vld [vmem:[%s0 + $0x740] sm:$0xff]
  %v253 = vld [vmem:[%s0 + $0x748] sm:$0xff]
  %v254 = vld [vmem:[%s0 + $0x750] sm:$0xff]
  %v255 = vld [vmem:[%s0 + $0x758] sm:$0xff]
  %v256 = vld [vmem:[%s0 + $0x760] sm:$0xff]
  %v257 = vld [vmem:[%s0 + $0x768] sm:$0xff]
  %v258 = vld [vmem:[%s0 + $0x770] sm:$0xff]
  %v259 = vld [vmem:[%s0 + $0x778] sm:$0xff]
  %v260 = vld [vmem:[%s0 + $0x780] sm:$0xff]
  %v261 = vld [vmem:[%s0 + $0x788] sm:$0xff]
  %v262 = vld [vmem:[%s0 + $0x790] sm:$0xff]
  %v263 = vld [vmem:[%s0 + $0x798] sm:$0xff]
  %v264 = vld [vmem:[%s0 + $0x7a0] sm:$0xff]
  %v265 = vld [vmem:[%s0 + $0x7a8] sm:$0xff]
  %v266 = vld [vmem:[%s0 + $0x7b0] sm:$0xff]
  %v267 = vld [vmem:[%s0 + $0x7b8] sm:$0xff]
  %v268 = vld [vmem:[%s0 + $0x7c0] sm:$0xff]
  %v269 = vld [vmem:[%s0 + $0x7c8] sm:$0xff]
  %v270 = vld [vmem:[%s0 + $0x7d0] sm:$0xff]
  %v271 = vld [vmem:[%s0 + $0x7d8] sm:$0xff]
  %v272 = vld [vmem:[%s0 + $0x7e0] sm:$0xff]
  %v273 = vld [vmem:[%s0 + $0x7e8] sm:$0xff]
  %v274 = vld [vmem:[%s0 + $0x7f0] sm:$0xff]
  %v275 = vld [vmem:[%s0 + $0x7f8] sm:$0xff]
  %v276 = vld [vmem:[%s1] sm:$0xff]
  %v277 = vld [vmem:[%s1 + $0x8] sm:$0xff]
  %v278 = vld [vmem:[%s1 + $0x10] sm:$0xff]
  %v279 = vld [vmem:[%s1 + $0x18] sm:$0xff]
  %v280 = vld [vmem:[%s1 + $0x20] sm:$0xff]
  %v281 = vld [vmem:[%s1 + $0x28] sm:$0xff]
  %v282 = vld [vmem:[%s1 + $0x30] sm:$0xff]
  %v283 = vld [vmem:[%s1 + $0x38] sm:$0xff]
  %v284 = vld [vmem:[%s1 + $0x40] sm:$0xff]
  %v285 = vld [vmem:[%s1 + $0x48] sm:$0xff]
  %v286 = vld [vmem:[%s1 + $0x50] sm:$0xff]
  %v287 = vld [vmem:[%s1 + $0x58] sm:$0xff]
  %v288 = vld [vmem:[%s1 + $0x60] sm:$0xff]
  %v289 = vld [vmem:[%s1 + $0x68] sm:$0xff]
  %v290 = vld [vmem:[%s1 + $0x70] sm:$0xff]
  %v291 = vld [vmem:[%s1 + $0x78] sm:$0xff]
  %v292 = vld [vmem:[%s1 + $0x80] sm:$0xff]
  %v293 = vld [vmem:[%s1 + $0x88] sm:$0xff]
  %v294 = vld [vmem:[%s1 + $0x90] sm:$0xff]
  %v295 = vld [vmem:[%s1 + $0x98] sm:$0xff]
  %v296 = vld [vmem:[%s1 + $0xa0] sm:$0xff]
  %v297 = vld [vmem:[%s1 + $0xa8] sm:$0xff]
  %v298 = vld [vmem:[%s1 + $0xb0] sm:$0xff]
  %v299 = vld [vmem:[%s1 + $0xb8] sm:$0xff]
  %v300 = vld [vmem:[%s1 + $0xc0] sm:$0xff]
  %v301 = vld [vmem:[%s1 + $0xc8] sm:$0xff]
  %v302 = vld [vmem:[%s1 + $0xd0] sm:$0xff]
  %v303 = vld [vmem:[%s1 + $0xd8] sm:$0xff]
  %v304 = vld [vmem:[%s1 + $0xe0] sm:$0xff]
  %v305 = vld [vmem:[%s1 + $0xe8] sm:$0xff]
  %v306 = vld [vmem:[%s1 + $0xf0] sm:$0xff]
  %v307 = vld [vmem:[%s1 + $0xf8] sm:$0xff]
  %v308 = vld [vmem:[%s1 + $0x100] sm:$0xff]
  %v309 = vld [vmem:[%s1 + $0x108] sm:$0xff]
  %v310 = vld [vmem:[%s1 + $0x110] sm:$0xff]
  %v311 = vld [vmem:[%s1 + $0x118] sm:$0xff]
  %v312 = vld [vmem:[%s1 + $0x120] sm:$0xff]
  %v313 = vld [vmem:[%s1 + $0x128] sm:$0xff]
  %v314 = vld [vmem:[%s1 + $0x130] sm:$0xff]
  %v315 = vld [vmem:[%s1 + $0x138] sm:$0xff]
  %v316 = vld [vmem:[%s1 + $0x140] sm:$0xff]
  %v317 = vld [vmem:[%s1 + $0x148] sm:$0xff]
  %v318 = vld [vmem:[%s1 + $0x150] sm:$0xff]
  %v319 = vld [vmem:[%s1 + $0x158] sm:$0xff]
  %v320 = vld [vmem:[%s1 + $0x160] sm:$0xff]
  %v321 = vld [vmem:[%s1 + $0x168] sm:$0xff]
  %v322 = vld [vmem:[%s1 + $0x170] sm:$0xff]
  %v323 = vld [vmem:[%s1 + $0x178] sm:$0xff]
  %v324 = vld [vmem:[%s1 + $0x180] sm:$0xff]
  %v325 = vld [vmem:[%s1 + $0x188] sm:$0xff]
  %v326 = vld [vmem:[%s1 + $0x190] sm:$0xff]
  %v327 = vld [vmem:[%s1 + $0x198] sm:$0xff]
  %v328 = vld [vmem:[%s1 + $0x1a0] sm:$0xff]
  %v329 = vld [vmem:[%s1 + $0x1a8] sm:$0xff]
  %v330 = vld [vmem:[%s1 + $0x1b0] sm:$0xff]
  %v331 = vld [vmem:[%s1 + $0x1b8] sm:$0xff]
  %v332 = vld [vmem:[%s1 + $0x1c0] sm:$0xff]
  %v333 = vld [vmem:[%s1 + $0x1c8] sm:$0xff]
  %v334 = vld [vmem:[%s1 + $0x1d0] sm:$0xff]
  %v335 = vld [vmem:[%s1 + $0x1d8] sm:$0xff]
  %v336 = vld [vmem:[%s1 + $0x1e0] sm:$0xff]
  %v337 = vld [vmem:[%s1 + $0x1e8] sm:$0xff]
  %v338 = vld [vmem:[%s1 + $0x1f0] sm:$0xff]
  %v339 = vld [vmem:[%s1 + $0x1f8] sm:$0xff]
  %v340 = vld [vmem:[%s1 + $0x200] sm:$0xff]
  %v341 = vld [vmem:[%s1 + $0x208] sm:$0xff]
  %v342 = vld [vmem:[%s1 + $0x210] sm:$0xff]
  %v343 = vld [vmem:[%s1 + $0x218] sm:$0xff]
  %v344 = vld [vmem:[%s1 + $0x220] sm:$0xff]
  %v345 = vld [vmem:[%s1 + $0x228] sm:$0xff]
  %v346 = vld [vmem:[%s1 + $0x230] sm:$0xff]
  %v347 = vld [vmem:[%s1 + $0x238] sm:$0xff]
  %v348 = vld [vmem:[%s1 + $0x240] sm:$0xff]
  %v349 = vld [vmem:[%s1 + $0x248] sm:$0xff]
  %v350 = vld [vmem:[%s1 + $0x250] sm:$0xff]
  %v351 = vld [vmem:[%s1 + $0x258] sm:$0xff]
  %v352 = vld [vmem:[%s1 + $0x260] sm:$0xff]
  %v353 = vld [vmem:[%s1 + $0x268] sm:$0xff]
  %v354 = vld [vmem:[%s1 + $0x270] sm:$0xff]
  %v355 = vld [vmem:[%s1 + $0x278] sm:$0xff]
  %v356 = vld [vmem:[%s1 + $0x280] sm:$0xff]
  %v357 = vld [vmem:[%s1 + $0x288] sm:$0xff]
  %v358 = vld [vmem:[%s1 + $0x290] sm:$0xff]
  %v359 = vld [vmem:[%s1 + $0x298] sm:$0xff]
  %v360 = vld [vmem:[%s1 + $0x2a0] sm:$0xff]
  %v361 = vld [vmem:[%s1 + $0x2a8] sm:$0xff]
  %v362 = vld [vmem:[%s1 + $0x2b0] sm:$0xff]
  %v363 = vld [vmem:[%s1 + $0x2b8] sm:$0xff]
  %v364 = vld [vmem:[%s1 + $0x2c0] sm:$0xff]
  %v365 = vld [vmem:[%s1 + $0x2c8] sm:$0xff]
  %v366 = vld [vmem:[%s1 + $0x2d0] sm:$0xff]
  %v367 = vld [vmem:[%s1 + $0x2d8] sm:$0xff]
  %v368 = vld [vmem:[%s1 + $0x2e0] sm:$0xff]
  %v369 = vld [vmem:[%s1 + $0x2e8] sm:$0xff]
  %v370 = vld [vmem:[%s1 + $0x2f0] sm:$0xff]
  %v371 = vld [vmem:[%s1 + $0x2f8] sm:$0xff]
  %v372 = vld [vmem:[%s1 + $0x300] sm:$0xff]
  %v373 = vld [vmem:[%s1 + $0x308] sm:$0xff]
  %v374 = vld [vmem:[%s1 + $0x310] sm:$0xff]
  %v375 = vld [vmem:[%s1 + $0x318] sm:$0xff]
  %v376 = vld [vmem:[%s1 + $0x320] sm:$0xff]
  %v377 = vld [vmem:[%s1 + $0x328] sm:$0xff]
  %v378 = vld [vmem:[%s1 + $0x330] sm:$0xff]
  %v379 = vld [vmem:[%s1 + $0x338] sm:$0xff]
  %v380 = vld [vmem:[%s1 + $0x340] sm:$0xff]
  %v381 = vld [vmem:[%s1 + $0x348] sm:$0xff]
  %v382 = vld [vmem:[%s1 + $0x350] sm:$0xff]
  %v383 = vld [vmem:[%s1 + $0x358] sm:$0xff]
  %v384 = vld [vmem:[%s1 + $0x360] sm:$0xff]
  %v385 = vld [vmem:[%s1 + $0x368] sm:$0xff]
  %v386 = vld [vmem:[%s1 + $0x370] sm:$0xff]
  %v387 = vld [vmem:[%s1 + $0x378] sm:$0xff]
  %v388 = vld [vmem:[%s1 + $0x380] sm:$0xff]
  %v389 = vld [vmem:[%s1 + $0x388] sm:$0xff]
  %v390 = vld [vmem:[%s1 + $0x390] sm:$0xff]
  %v391 = vld [vmem:[%s1 + $0x398] sm:$0xff]
  %v392 = vld [vmem:[%s1 + $0x3a0] sm:$0xff]
  %v393 = vld [vmem:[%s1 + $0x3a8] sm:$0xff]
  %v394 = vld [vmem:[%s1 + $0x3b0] sm:$0xff]
  %v395 = vld [vmem:[%s1 + $0x3b8] sm:$0xff]
  %v396 = vld [vmem:[%s1 + $0x3c0] sm:$0xff]
  %v397 = vld [vmem:[%s1 + $0x3c8] sm:$0xff]
  %v398 = vld [vmem:[%s1 + $0x3d0] sm:$0xff]
  %v399 = vld [vmem:[%s1 + $0x3d8] sm:$0xff]
  %v400 = vld [vmem:[%s1 + $0x3e0] sm:$0xff]
  %v401 = vld [vmem:[%s1 + $0x3e8] sm:$0xff]
  %v402 = vld [vmem:[%s1 + $0x3f0] sm:$0xff]
  %v403 = vld [vmem:[%s1 + $0x3f8] sm:$0xff]
  %v404 = vld [vmem:[%s1 + $0x400] sm:$0xff]
  %v405 = vld [vmem:[%s1 + $0x408] sm:$0xff]
  %v406 = vld [vmem:[%s1 + $0x410] sm:$0xff]
  %v407 = vld [vmem:[%s1 + $0x418] sm:$0xff]
  %v408 = vld [vmem:[%s1 + $0x420] sm:$0xff]
  %v409 = vld [vmem:[%s1 + $0x428] sm:$0xff]
  %v410 = vld [vmem:[%s1 + $0x430] sm:$0xff]
  %v411 = vld [vmem:[%s1 + $0x438] sm:$0xff]
  %v412 = vld [vmem:[%s1 + $0x440] sm:$0xff]
  %v413 = vld [vmem:[%s1 + $0x448] sm:$0xff]
  %v414 = vld [vmem:[%s1 + $0x450] sm:$0xff]
  %v415 = vld [vmem:[%s1 + $0x458] sm:$0xff]
  %v416 = vld [vmem:[%s1 + $0x460] sm:$0xff]
  %v417 = vld [vmem:[%s1 + $0x468] sm:$0xff]
  %v418 = vld [vmem:[%s1 + $0x470] sm:$0xff]
  %v419 = vld [vmem:[%s1 + $0x478] sm:$0xff]
  %v420 = vld [vmem:[%s1 + $0x480] sm:$0xff]
  %v421 = vld [vmem:[%s1 + $0x488] sm:$0xff]
  %v422 = vld [vmem:[%s1 + $0x490] sm:$0xff]
  %v423 = vld [vmem:[%s1 + $0x498] sm:$0xff]
  %v424 = vld [vmem:[%s1 + $0x4a0] sm:$0xff]
  %v425 = vld [vmem:[%s1 + $0x4a8] sm:$0xff]
  %v426 = vld [vmem:[%s1 + $0x4b0] sm:$0xff]
  %v427 = vld [vmem:[%s1 + $0x4b8] sm:$0xff]
  %v428 = vld [vmem:[%s1 + $0x4c0] sm:$0xff]
  %v429 = vld [vmem:[%s1 + $0x4c8] sm:$0xff]
  %v430 = vld [vmem:[%s1 + $0x4d0] sm:$0xff]
  %v431 = vld [vmem:[%s1 + $0x4d8] sm:$0xff]
  %v432 = vld [vmem:[%s1 + $0x4e0] sm:$0xff]
  %v433 = vld [vmem:[%s1 + $0x4e8] sm:$0xff]
  %v434 = vld [vmem:[%s1 + $0x4f0] sm:$0xff]
  %v435 = vld [vmem:[%s1 + $0x4f8] sm:$0xff]
  %v436 = vld [vmem:[%s1 + $0x500] sm:$0xff]
  %v437 = vld [vmem:[%s1 + $0x508] sm:$0xff]
  %v438 = vld [vmem:[%s1 + $0x510] sm:$0xff]
  %v439 = vld [vmem:[%s1 + $0x518] sm:$0xff]
  %v440 = vld [vmem:[%s1 + $0x520] sm:$0xff]
  %v441 = vld [vmem:[%s1 + $0x528] sm:$0xff]
  %v442 = vld [vmem:[%s1 + $0x530] sm:$0xff]
  %v443 = vld [vmem:[%s1 + $0x538] sm:$0xff]
  %v444 = vld [vmem:[%s1 + $0x540] sm:$0xff]
  %v445 = vld [vmem:[%s1 + $0x548] sm:$0xff]
  %v446 = vld [vmem:[%s1 + $0x550] sm:$0xff]
  %v447 = vld [vmem:[%s1 + $0x558] sm:$0xff]
  %v448 = vld [vmem:[%s1 + $0x560] sm:$0xff]
  %v449 = vld [vmem:[%s1 + $0x568] sm:$0xff]
  %v450 = vld [vmem:[%s1 + $0x570] sm:$0xff]
  %v451 = vld [vmem:[%s1 + $0x578] sm:$0xff]
  %v452 = vld [vmem:[%s1 + $0x580] sm:$0xff]
  %v453 = vld [vmem:[%s1 + $0x588] sm:$0xff]
  %v454 = vld [vmem:[%s1 + $0x590] sm:$0xff]
  %v455 = vld [vmem:[%s1 + $0x598] sm:$0xff]
  %v456 = vld [vmem:[%s1 + $0x5a0] sm:$0xff]
  %v457 = vld [vmem:[%s1 + $0x5a8] sm:$0xff]
  %v458 = vld [vmem:[%s1 + $0x5b0] sm:$0xff]
  %v459 = vld [vmem:[%s1 + $0x5b8] sm:$0xff]
  %v460 = vld [vmem:[%s1 + $0x5c0] sm:$0xff]
  %v461 = vld [vmem:[%s1 + $0x5c8] sm:$0xff]
  %v462 = vld [vmem:[%s1 + $0x5d0] sm:$0xff]
  %v463 = vld [vmem:[%s1 + $0x5d8] sm:$0xff]
  %v464 = vld [vmem:[%s1 + $0x5e0] sm:$0xff]
  %v465 = vld [vmem:[%s1 + $0x5e8] sm:$0xff]
  %v466 = vld [vmem:[%s1 + $0x5f0] sm:$0xff]
  %v467 = vld [vmem:[%s1 + $0x5f8] sm:$0xff]
  %v468 = vld [vmem:[%s1 + $0x600] sm:$0xff]
  %v469 = vld [vmem:[%s1 + $0x608] sm:$0xff]
  %v470 = vld [vmem:[%s1 + $0x610] sm:$0xff]
  %v471 = vld [vmem:[%s1 + $0x618] sm:$0xff]
  %v472 = vld [vmem:[%s1 + $0x620] sm:$0xff]
  %v473 = vld [vmem:[%s1 + $0x628] sm:$0xff]
  %v474 = vld [vmem:[%s1 + $0x630] sm:$0xff]
  %v475 = vld [vmem:[%s1 + $0x638] sm:$0xff]
  %v476 = vld [vmem:[%s1 + $0x640] sm:$0xff]
  %v477 = vld [vmem:[%s1 + $0x648] sm:$0xff]
  %v478 = vld [vmem:[%s1 + $0x650] sm:$0xff]
  %v479 = vld [vmem:[%s1 + $0x658] sm:$0xff]
  %v480 = vld [vmem:[%s1 + $0x660] sm:$0xff]
  %v481 = vld [vmem:[%s1 + $0x668] sm:$0xff]
  %v482 = vld [vmem:[%s1 + $0x670] sm:$0xff]
  %v483 = vld [vmem:[%s1 + $0x678] sm:$0xff]
  %v484 = vld [vmem:[%s1 + $0x680] sm:$0xff]
  %v485 = vld [vmem:[%s1 + $0x688] sm:$0xff]
  %v486 = vld [vmem:[%s1 + $0x690] sm:$0xff]
  %v487 = vld [vmem:[%s1 + $0x698] sm:$0xff]
  %v488 = vld [vmem:[%s1 + $0x6a0] sm:$0xff]
  %v489 = vld [vmem:[%s1 + $0x6a8] sm:$0xff]
  %v490 = vld [vmem:[%s1 + $0x6b0] sm:$0xff]
  %v491 = vld [vmem:[%s1 + $0x6b8] sm:$0xff]
  %v492 = vld [vmem:[%s1 + $0x6c0] sm:$0xff]
  %v493 = vld [vmem:[%s1 + $0x6c8] sm:$0xff]
  %v494 = vld [vmem:[%s1 + $0x6d0] sm:$0xff]
  %v495 = vld [vmem:[%s1 + $0x6d8] sm:$0xff]
  %v496 = vld [vmem:[%s1 + $0x6e0] sm:$0xff]
  %v497 = vld [vmem:[%s1 + $0x6e8] sm:$0xff]
  %v498 = vld [vmem:[%s1 + $0x6f0] sm:$0xff]
  %v499 = vld [vmem:[%s1 + $0x6f8] sm:$0xff]
  %v500 = vld [vmem:[%s1 + $0x700] sm:$0xff]
  %v501 = vld [vmem:[%s1 + $0x708] sm:$0xff]
  %v502 = vld [vmem:[%s1 + $0x710] sm:$0xff]
  %v503 = vld [vmem:[%s1 + $0x718] sm:$0xff]
  %v504 = vld [vmem:[%s1 + $0x720] sm:$0xff]
  %v505 = vld [vmem:[%s1 + $0x728] sm:$0xff]
  %v506 = vld [vmem:[%s1 + $0x730] sm:$0xff]
  %v507 = vld [vmem:[%s1 + $0x738] sm:$0xff]
  %v508 = vld [vmem:[%s1 + $0x740] sm:$0xff]
  %v509 = vld [vmem:[%s1 + $0x748] sm:$0xff]
  %v510 = vld [vmem:[%s1 + $0x750] sm:$0xff]
  %v511 = vld [vmem:[%s1 + $0x758] sm:$0xff]
  %v512 = vld [vmem:[%s1 + $0x760] sm:$0xff]
  %v513 = vld [vmem:[%s1 + $0x768] sm:$0xff]
  %v514 = vld [vmem:[%s1 + $0x770] sm:$0xff]
  %v515 = vld [vmem:[%s1 + $0x778] sm:$0xff]
  %v516 = vld [vmem:[%s1 + $0x780] sm:$0xff]
  %v517 = vld [vmem:[%s1 + $0x788] sm:$0xff]
  %v518 = vld [vmem:[%s1 + $0x790] sm:$0xff]
  %v519 = vld [vmem:[%s1 + $0x798] sm:$0xff]
  %v520 = vld [vmem:[%s1 + $0x7a0] sm:$0xff]
  %v521 = vld [vmem:[%s1 + $0x7a8] sm:$0xff]
  %v522 = vld [vmem:[%s1 + $0x7b0] sm:$0xff]
  %v523 = vld [vmem:[%s1 + $0x7b8] sm:$0xff]
  %v524 = vld [vmem:[%s1 + $0x7c0] sm:$0xff]
  %v525 = vld [vmem:[%s1 + $0x7c8] sm:$0xff]
  %v526 = vld [vmem:[%s1 + $0x7d0] sm:$0xff]
  %v527 = vld [vmem:[%s1 + $0x7d8] sm:$0xff]
  %v528 = vld [vmem:[%s1 + $0x7e0] sm:$0xff]
  %v529 = vld [vmem:[%s1 + $0x7e8] sm:$0xff]
  %v530 = vld [vmem:[%s1 + $0x7f0] sm:$0xff]
  %v531 = vld [vmem:[%s1 + $0x7f8] sm:$0xff]
  %v532 = vld [vmem:[%s2] sm:$0x1]
  %v534 = vlaneseq
  %v535 = vshrl.u32 %v534, 7
  %v536 = vsub.s32 0, %v535
  %v537 = vrot.slane %v532, %v536
  %539 = vmatprep.subr.mxu0 0.0
  %540 = vmatpush1.msra.mxu0 %v291
  %541 = vmatprep.subr.mxu0 0.0
  %542 = vmatpush1.msra.mxu0 %v290
  %543 = vmatprep.subr.mxu0 0.0
  %544 = vmatpush1.msra.mxu0 %v289
  %545 = vmatprep.subr.mxu0 0.0
  %546 = vmatpush1.msra.mxu0 %v288
  %547 = vmatprep.subr.mxu0 0.0
  %548 = vmatpush1.msra.mxu0 %v287
  %549 = vmatprep.subr.mxu0 0.0
  %550 = vmatpush1.msra.mxu0 %v286
  %551 = vmatprep.subr.mxu0 0.0
  %552 = vmatpush1.msra.mxu0 %v285
  %553 = vmatprep.subr.mxu0 0.0
  %554 = vmatpush1.msra.mxu0 %v284
  %555 = vmatprep.subr.mxu0 0.0
  %556 = vmatpush1.msra.mxu0 %v283
  %557 = vmatprep.subr.mxu0 0.0
  %558 = vmatpush1.msra.mxu0 %v282
  %559 = vmatprep.subr.mxu0 0.0
  %560 = vmatpush1.msra.mxu0 %v281
  %561 = vmatprep.subr.mxu0 0.0
  %562 = vmatpush1.msra.mxu0 %v280
  %563 = vmatprep.subr.mxu0 0.0
  %564 = vmatpush1.msra.mxu0 %v279
  %565 = vmatprep.subr.mxu0 0.0
  %566 = vmatpush1.msra.mxu0 %v278
  %567 = vmatprep.subr.mxu0 0.0
  %568 = vmatpush1.msra.mxu0 %v277
  %569 = vmatprep.subr.mxu0 0.0
  %570 = vmatpush1.msra.mxu0 %v276
  %571 = vmatprep.subr.mxu0 0.0
  %572 = vmatpush2.msra.mxu0 %v307
  %573 = vmatprep.subr.mxu0 0.0
  %574 = vmatpush2.msra.mxu0 %v306
  %575 = vmatprep.subr.mxu0 0.0
  %576 = vmatpush2.msra.mxu0 %v305
  %577 = vmatprep.subr.mxu0 0.0
  %578 = vmatpush2.msra.mxu0 %v304
  %579 = vmatprep.subr.mxu0 0.0
  %580 = vmatpush2.msra.mxu0 %v303
  %581 = vmatprep.subr.mxu0 0.0
  %582 = vmatpush2.msra.mxu0 %v302
  %583 = vmatprep.subr.mxu0 0.0
  %584 = vmatpush2.msra.mxu0 %v301
  %585 = vmatprep.subr.mxu0 0.0
  %586 = vmatpush2.msra.mxu0 %v300
  %587 = vmatprep.subr.mxu0 0.0
  %588 = vmatpush2.msra.mxu0 %v299
  %589 = vmatprep.subr.mxu0 0.0
  %590 = vmatpush2.msra.mxu0 %v298
  %591 = vmatprep.subr.mxu0 0.0
  %592 = vmatpush2.msra.mxu0 %v297
  %593 = vmatprep.subr.mxu0 0.0
  %594 = vmatpush2.msra.mxu0 %v296
  %595 = vmatprep.subr.mxu0 0.0
  %596 = vmatpush2.msra.mxu0 %v295
  %597 = vmatprep.subr.mxu0 0.0
  %598 = vmatpush2.msra.mxu0 %v294
  %599 = vmatprep.subr.mxu0 0.0
  %600 = vmatpush2.msra.mxu0 %v293
  %601 = vmatprep.subr.mxu0 0.0
  %602 = vmatpush2.msra.mxu0 %v292
  %603 = vmatprep.mubr.f32.mxu0 %v21
  %604 = vmatmul.mubr.f32.gmra.mxu0 %v20
  %v605 = vpop.f32.mrf.mxu0
  %v606 = vadd.f32 %v537, %v605
  %v607 = vpop.f32.mrf.mxu0
  %608 = vmatprep.mubr.f32.mxu0 %v37
  %609 = vmatmul.mubr.f32.gmra.mxu0 %v36
  %v610 = vpop.f32.mrf.mxu0
  %v611 = vadd.f32 %v537, %v610
  %v612 = vpop.f32.mrf.mxu0
  %613 = vmatprep.mubr.f32.mxu0 %v53
  %614 = vmatmul.mubr.f32.gmra.mxu0 %v52
  %v615 = vpop.f32.mrf.mxu0
  %v616 = vadd.f32 %v537, %v615
  %v617 = vpop.f32.mrf.mxu0
  %618 = vmatprep.mubr.f32.mxu0 %v69
  %619 = vmatmul.mubr.f32.gmra.mxu0 %v68
  %v620 = vpop.f32.mrf.mxu0
  %v621 = vadd.f32 %v537, %v620
  %v622 = vpop.f32.mrf.mxu0
  %623 = vmatprep.mubr.f32.mxu0 %v85
  %624 = vmatmul.mubr.f32.gmra.mxu0 %v84
  %v625 = vpop.f32.mrf.mxu0
  %v626 = vadd.f32 %v537, %v625
  %v627 = vpop.f32.mrf.mxu0
  %628 = vmatprep.mubr.f32.mxu0 %v101
  %629 = vmatmul.mubr.f32.gmra.mxu0 %v100
  %v630 = vpop.f32.mrf.mxu0
  %v631 = vadd.f32 %v537, %v630
  %v632 = vpop.f32.mrf.mxu0
  %633 = vmatprep.mubr.f32.mxu0 %v117
  %634 = vmatmul.mubr.f32.gmra.mxu0 %v116
  %v635 = vpop.f32.mrf.mxu0
  %v636 = vadd.f32 %v537, %v635
  %v637 = vpop.f32.mrf.mxu0
  %638 = vmatprep.mubr.f32.mxu0 %v133
  %639 = vmatmul.mubr.f32.gmra.mxu0 %v132
  %v640 = vpop.f32.mrf.mxu0
  %v641 = vadd.f32 %v537, %v640
  %v642 = vpop.f32.mrf.mxu0
  %643 = vmatprep.mubr.f32.mxu0 %v149
  %644 = vmatmul.mubr.f32.gmra.mxu0 %v148
  %v645 = vpop.f32.mrf.mxu0
  %v646 = vadd.f32 %v537, %v645
  %v647 = vpop.f32.mrf.mxu0
  %648 = vmatprep.mubr.f32.mxu0 %v165
  %649 = vmatmul.mubr.f32.gmra.mxu0 %v164
  %v650 = vpop.f32.mrf.mxu0
  %v651 = vadd.f32 %v537, %v650
  %v652 = vpop.f32.mrf.mxu0
  %653 = vmatprep.mubr.f32.mxu0 %v181
  %654 = vmatmul.mubr.f32.gmra.mxu0 %v180
  %v655 = vpop.f32.mrf.mxu0
  %v656 = vadd.f32 %v537, %v655
  %v657 = vpop.f32.mrf.mxu0
  %658 = vmatprep.mubr.f32.mxu0 %v197
  %659 = vmatmul.mubr.f32.gmra.mxu0 %v196
  %v660 = vpop.f32.mrf.mxu0
  %v661 = vadd.f32 %v537, %v660
  %v662 = vpop.f32.mrf.mxu0
  %663 = vmatprep.mubr.f32.mxu0 %v213
  %664 = vmatmul.mubr.f32.gmra.mxu0 %v212
  %v665 = vpop.f32.mrf.mxu0
  %v666 = vadd.f32 %v537, %v665
  %v667 = vpop.f32.mrf.mxu0
  %668 = vmatprep.mubr.f32.mxu0 %v229
  %669 = vmatmul.mubr.f32.gmra.mxu0 %v228
  %v670 = vpop.f32.mrf.mxu0
  %v671 = vadd.f32 %v537, %v670
  %v672 = vpop.f32.mrf.mxu0
  %673 = vmatprep.mubr.f32.mxu0 %v245
  %674 = vmatmul.mubr.f32.gmra.mxu0 %v244
  %v675 = vpop.f32.mrf.mxu0
  %v676 = vadd.f32 %v537, %v675
  %v677 = vpop.f32.mrf.mxu0
  %678 = vmatprep.mubr.f32.mxu0 %v261
  %679 = vmatmul.mubr.f32.gmra.mxu0 %v260
  %v680 = vpop.f32.mrf.mxu0
  %v681 = vadd.f32 %v537, %v680
  %v682 = vpop.f32.mrf.mxu0
  %683 = vdwg.mxu0
  %684 = vmatprep.subr.mxu0 0.0
  %685 = vmatpush1.msra.mxu0 %v323
  %686 = vmatprep.subr.mxu0 0.0
  %687 = vmatpush1.msra.mxu0 %v322
  %688 = vmatprep.subr.mxu0 0.0
  %689 = vmatpush1.msra.mxu0 %v321
  %690 = vmatprep.subr.mxu0 0.0
  %691 = vmatpush1.msra.mxu0 %v320
  %692 = vmatprep.subr.mxu0 0.0
  %693 = vmatpush1.msra.mxu0 %v319
  %694 = vmatprep.subr.mxu0 0.0
  %695 = vmatpush1.msra.mxu0 %v318
  %696 = vmatprep.subr.mxu0 0.0
  %697 = vmatpush1.msra.mxu0 %v317
  %698 = vmatprep.subr.mxu0 0.0
  %699 = vmatpush1.msra.mxu0 %v316
  %700 = vmatprep.subr.mxu0 0.0
  %701 = vmatpush1.msra.mxu0 %v315
  %702 = vmatprep.subr.mxu0 0.0
  %703 = vmatpush1.msra.mxu0 %v314
  %704 = vmatprep.subr.mxu0 0.0
  %705 = vmatpush1.msra.mxu0 %v313
  %706 = vmatprep.subr.mxu0 0.0
  %707 = vmatpush1.msra.mxu0 %v312
  %708 = vmatprep.subr.mxu0 0.0
  %709 = vmatpush1.msra.mxu0 %v311
  %710 = vmatprep.subr.mxu0 0.0
  %711 = vmatpush1.msra.mxu0 %v310
  %712 = vmatprep.subr.mxu0 0.0
  %713 = vmatpush1.msra.mxu0 %v309
  %714 = vmatprep.subr.mxu0 0.0
  %715 = vmatpush1.msra.mxu0 %v308
  %716 = vmatprep.subr.mxu0 0.0
  %717 = vmatpush2.msra.mxu0 %v339
  %718 = vmatprep.subr.mxu0 0.0
  %719 = vmatpush2.msra.mxu0 %v338
  %720 = vmatprep.subr.mxu0 0.0
  %721 = vmatpush2.msra.mxu0 %v337
  %722 = vmatprep.subr.mxu0 0.0
  %723 = vmatpush2.msra.mxu0 %v336
  %724 = vmatprep.subr.mxu0 0.0
  %725 = vmatpush2.msra.mxu0 %v335
  %726 = vmatprep.subr.mxu0 0.0
  %727 = vmatpush2.msra.mxu0 %v334
  %728 = vmatprep.subr.mxu0 0.0
  %729 = vmatpush2.msra.mxu0 %v333
  %730 = vmatprep.subr.mxu0 0.0
  %731 = vmatpush2.msra.mxu0 %v332
  %732 = vmatprep.subr.mxu0 0.0
  %733 = vmatpush2.msra.mxu0 %v331
  %734 = vmatprep.subr.mxu0 0.0
  %735 = vmatpush2.msra.mxu0 %v330
  %736 = vmatprep.subr.mxu0 0.0
  %737 = vmatpush2.msra.mxu0 %v329
  %738 = vmatprep.subr.mxu0 0.0
  %739 = vmatpush2.msra.mxu0 %v328
  %740 = vmatprep.subr.mxu0 0.0
  %741 = vmatpush2.msra.mxu0 %v327
  %742 = vmatprep.subr.mxu0 0.0
  %743 = vmatpush2.msra.mxu0 %v326
  %744 = vmatprep.subr.mxu0 0.0
  %745 = vmatpush2.msra.mxu0 %v325
  %746 = vmatprep.subr.mxu0 0.0
  %747 = vmatpush2.msra.mxu0 %v324
  %748 = vmatprep.mubr.f32.mxu0 %v23
  %749 = vmatmul.mubr.f32.gmra.mxu0 %v22
  %v750 = vpop.f32.mrf.mxu0
  %v751 = vadd.f32 %v606, %v750
  %v752 = vpop.f32.mrf.mxu0
  %753 = vmatprep.mubr.f32.mxu0 %v39
  %754 = vmatmul.mubr.f32.gmra.mxu0 %v38
  %v755 = vpop.f32.mrf.mxu0
  %v756 = vadd.f32 %v611, %v755
  %v757 = vpop.f32.mrf.mxu0
  %758 = vmatprep.mubr.f32.mxu0 %v55
  %759 = vmatmul.mubr.f32.gmra.mxu0 %v54
  %v760 = vpop.f32.mrf.mxu0
  %v761 = vadd.f32 %v616, %v760
  %v762 = vpop.f32.mrf.mxu0
  %763 = vmatprep.mubr.f32.mxu0 %v71
  %764 = vmatmul.mubr.f32.gmra.mxu0 %v70
  %v765 = vpop.f32.mrf.mxu0
  %v766 = vadd.f32 %v621, %v765
  %v767 = vpop.f32.mrf.mxu0
  %768 = vmatprep.mubr.f32.mxu0 %v87
  %769 = vmatmul.mubr.f32.gmra.mxu0 %v86
  %v770 = vpop.f32.mrf.mxu0
  %v771 = vadd.f32 %v626, %v770
  %v772 = vpop.f32.mrf.mxu0
  %773 = vmatprep.mubr.f32.mxu0 %v103
  %774 = vmatmul.mubr.f32.gmra.mxu0 %v102
  %v775 = vpop.f32.mrf.mxu0
  %v776 = vadd.f32 %v631, %v775
  %v777 = vpop.f32.mrf.mxu0
  %778 = vmatprep.mubr.f32.mxu0 %v119
  %779 = vmatmul.mubr.f32.gmra.mxu0 %v118
  %v780 = vpop.f32.mrf.mxu0
  %v781 = vadd.f32 %v636, %v780
  %v782 = vpop.f32.mrf.mxu0
  %783 = vmatprep.mubr.f32.mxu0 %v135
  %784 = vmatmul.mubr.f32.gmra.mxu0 %v134
  %v785 = vpop.f32.mrf.mxu0
  %v786 = vadd.f32 %v641, %v785
  %v787 = vpop.f32.mrf.mxu0
  %788 = vmatprep.mubr.f32.mxu0 %v151
  %789 = vmatmul.mubr.f32.gmra.mxu0 %v150
  %v790 = vpop.f32.mrf.mxu0
  %v791 = vadd.f32 %v646, %v790
  %v792 = vpop.f32.mrf.mxu0
  %793 = vmatprep.mubr.f32.mxu0 %v167
  %794 = vmatmul.mubr.f32.gmra.mxu0 %v166
  %v795 = vpop.f32.mrf.mxu0
  %v796 = vadd.f32 %v651, %v795
  %v797 = vpop.f32.mrf.mxu0
  %798 = vmatprep.mubr.f32.mxu0 %v183
  %799 = vmatmul.mubr.f32.gmra.mxu0 %v182
  %v800 = vpop.f32.mrf.mxu0
  %v801 = vadd.f32 %v656, %v800
  %v802 = vpop.f32.mrf.mxu0
  %803 = vmatprep.mubr.f32.mxu0 %v199
  %804 = vmatmul.mubr.f32.gmra.mxu0 %v198
  %v805 = vpop.f32.mrf.mxu0
  %v806 = vadd.f32 %v661, %v805
  %v807 = vpop.f32.mrf.mxu0
  %808 = vmatprep.mubr.f32.mxu0 %v215
  %809 = vmatmul.mubr.f32.gmra.mxu0 %v214
  %v810 = vpop.f32.mrf.mxu0
  %v811 = vadd.f32 %v666, %v810
  %v812 = vpop.f32.mrf.mxu0
  %813 = vmatprep.mubr.f32.mxu0 %v231
  %814 = vmatmul.mubr.f32.gmra.mxu0 %v230
  %v815 = vpop.f32.mrf.mxu0
  %v816 = vadd.f32 %v671, %v815
  %v817 = vpop.f32.mrf.mxu0
  %818 = vmatprep.mubr.f32.mxu0 %v247
  %819 = vmatmul.mubr.f32.gmra.mxu0 %v246
  %v820 = vpop.f32.mrf.mxu0
  %v821 = vadd.f32 %v676, %v820
  %v822 = vpop.f32.mrf.mxu0
  %823 = vmatprep.mubr.f32.mxu0 %v263
  %824 = vmatmul.mubr.f32.gmra.mxu0 %v262
  %v825 = vpop.f32.mrf.mxu0
  %v826 = vadd.f32 %v681, %v825
  %v827 = vpop.f32.mrf.mxu0
  %828 = vdwg.mxu0
  %829 = vmatprep.subr.mxu0 0.0
  %830 = vmatpush1.msra.mxu0 %v355
  %831 = vmatprep.subr.mxu0 0.0
  %832 = vmatpush1.msra.mxu0 %v354
  %833 = vmatprep.subr.mxu0 0.0
  %834 = vmatpush1.msra.mxu0 %v353
  %835 = vmatprep.subr.mxu0 0.0
  %836 = vmatpush1.msra.mxu0 %v352
  %837 = vmatprep.subr.mxu0 0.0
  %838 = vmatpush1.msra.mxu0 %v351
  %839 = vmatprep.subr.mxu0 0.0
  %840 = vmatpush1.msra.mxu0 %v350
  %841 = vmatprep.subr.mxu0 0.0
  %842 = vmatpush1.msra.mxu0 %v349
  %843 = vmatprep.subr.mxu0 0.0
  %844 = vmatpush1.msra.mxu0 %v348
  %845 = vmatprep.subr.mxu0 0.0
  %846 = vmatpush1.msra.mxu0 %v347
  %847 = vmatprep.subr.mxu0 0.0
  %848 = vmatpush1.msra.mxu0 %v346
  %849 = vmatprep.subr.mxu0 0.0
  %850 = vmatpush1.msra.mxu0 %v345
  %851 = vmatprep.subr.mxu0 0.0
  %852 = vmatpush1.msra.mxu0 %v344
  %853 = vmatprep.subr.mxu0 0.0
  %854 = vmatpush1.msra.mxu0 %v343
  %855 = vmatprep.subr.mxu0 0.0
  %856 = vmatpush1.msra.mxu0 %v342
  %857 = vmatprep.subr.mxu0 0.0
  %858 = vmatpush1.msra.mxu0 %v341
  %859 = vmatprep.subr.mxu0 0.0
  %860 = vmatpush1.msra.mxu0 %v340
  %861 = vmatprep.subr.mxu0 0.0
  %862 = vmatpush2.msra.mxu0 %v371
  %863 = vmatprep.subr.mxu0 0.0
  %864 = vmatpush2.msra.mxu0 %v370
  %865 = vmatprep.subr.mxu0 0.0
  %866 = vmatpush2.msra.mxu0 %v369
  %867 = vmatprep.subr.mxu0 0.0
  %868 = vmatpush2.msra.mxu0 %v368
  %869 = vmatprep.subr.mxu0 0.0
  %870 = vmatpush2.msra.mxu0 %v367
  %871 = vmatprep.subr.mxu0 0.0
  %872 = vmatpush2.msra.mxu0 %v366
  %873 = vmatprep.subr.mxu0 0.0
  %874 = vmatpush2.msra.mxu0 %v365
  %875 = vmatprep.subr.mxu0 0.0
  %876 = vmatpush2.msra.mxu0 %v364
  %877 = vmatprep.subr.mxu0 0.0
  %878 = vmatpush2.msra.mxu0 %v363
  %879 = vmatprep.subr.mxu0 0.0
  %880 = vmatpush2.msra.mxu0 %v362
  %881 = vmatprep.subr.mxu0 0.0
  %882 = vmatpush2.msra.mxu0 %v361
  %883 = vmatprep.subr.mxu0 0.0
  %884 = vmatpush2.msra.mxu0 %v360
  %885 = vmatprep.subr.mxu0 0.0
  %886 = vmatpush2.msra.mxu0 %v359
  %887 = vmatprep.subr.mxu0 0.0
  %888 = vmatpush2.msra.mxu0 %v358
  %889 = vmatprep.subr.mxu0 0.0
  %890 = vmatpush2.msra.mxu0 %v357
  %891 = vmatprep.subr.mxu0 0.0
  %892 = vmatpush2.msra.mxu0 %v356
  %893 = vmatprep.mubr.f32.mxu0 %v25
  %894 = vmatmul.mubr.f32.gmra.mxu0 %v24
  %v895 = vpop.f32.mrf.mxu0
  %v896 = vadd.f32 %v751, %v895
  %v897 = vpop.f32.mrf.mxu0
  %898 = vmatprep.mubr.f32.mxu0 %v41
  %899 = vmatmul.mubr.f32.gmra.mxu0 %v40
  %v900 = vpop.f32.mrf.mxu0
  %v901 = vadd.f32 %v756, %v900
  %v902 = vpop.f32.mrf.mxu0
  %903 = vmatprep.mubr.f32.mxu0 %v57
  %904 = vmatmul.mubr.f32.gmra.mxu0 %v56
  %v905 = vpop.f32.mrf.mxu0
  %v906 = vadd.f32 %v761, %v905
  %v907 = vpop.f32.mrf.mxu0
  %908 = vmatprep.mubr.f32.mxu0 %v73
  %909 = vmatmul.mubr.f32.gmra.mxu0 %v72
  %v910 = vpop.f32.mrf.mxu0
  %v911 = vadd.f32 %v766, %v910
  %v912 = vpop.f32.mrf.mxu0
  %913 = vmatprep.mubr.f32.mxu0 %v89
  %914 = vmatmul.mubr.f32.gmra.mxu0 %v88
  %v915 = vpop.f32.mrf.mxu0
  %v916 = vadd.f32 %v771, %v915
  %v917 = vpop.f32.mrf.mxu0
  %918 = vmatprep.mubr.f32.mxu0 %v105
  %919 = vmatmul.mubr.f32.gmra.mxu0 %v104
  %v920 = vpop.f32.mrf.mxu0
  %v921 = vadd.f32 %v776, %v920
  %v922 = vpop.f32.mrf.mxu0
  %923 = vmatprep.mubr.f32.mxu0 %v121
  %924 = vmatmul.mubr.f32.gmra.mxu0 %v120
  %v925 = vpop.f32.mrf.mxu0
  %v926 = vadd.f32 %v781, %v925
  %v927 = vpop.f32.mrf.mxu0
  %928 = vmatprep.mubr.f32.mxu0 %v137
  %929 = vmatmul.mubr.f32.gmra.mxu0 %v136
  %v930 = vpop.f32.mrf.mxu0
  %v931 = vadd.f32 %v786, %v930
  %v932 = vpop.f32.mrf.mxu0
  %933 = vmatprep.mubr.f32.mxu0 %v153
  %934 = vmatmul.mubr.f32.gmra.mxu0 %v152
  %v935 = vpop.f32.mrf.mxu0
  %v936 = vadd.f32 %v791, %v935
  %v937 = vpop.f32.mrf.mxu0
  %938 = vmatprep.mubr.f32.mxu0 %v169
  %939 = vmatmul.mubr.f32.gmra.mxu0 %v168
  %v940 = vpop.f32.mrf.mxu0
  %v941 = vadd.f32 %v796, %v940
  %v942 = vpop.f32.mrf.mxu0
  %943 = vmatprep.mubr.f32.mxu0 %v185
  %944 = vmatmul.mubr.f32.gmra.mxu0 %v184
  %v945 = vpop.f32.mrf.mxu0
  %v946 = vadd.f32 %v801, %v945
  %v947 = vpop.f32.mrf.mxu0
  %948 = vmatprep.mubr.f32.mxu0 %v201
  %949 = vmatmul.mubr.f32.gmra.mxu0 %v200
  %v950 = vpop.f32.mrf.mxu0
  %v951 = vadd.f32 %v806, %v950
  %v952 = vpop.f32.mrf.mxu0
  %953 = vmatprep.mubr.f32.mxu0 %v217
  %954 = vmatmul.mubr.f32.gmra.mxu0 %v216
  %v955 = vpop.f32.mrf.mxu0
  %v956 = vadd.f32 %v811, %v955
  %v957 = vpop.f32.mrf.mxu0
  %958 = vmatprep.mubr.f32.mxu0 %v233
  %959 = vmatmul.mubr.f32.gmra.mxu0 %v232
  %v960 = vpop.f32.mrf.mxu0
  %v961 = vadd.f32 %v816, %v960
  %v962 = vpop.f32.mrf.mxu0
  %963 = vmatprep.mubr.f32.mxu0 %v249
  %964 = vmatmul.mubr.f32.gmra.mxu0 %v248
  %v965 = vpop.f32.mrf.mxu0
  %v966 = vadd.f32 %v821, %v965
  %v967 = vpop.f32.mrf.mxu0
  %968 = vmatprep.mubr.f32.mxu0 %v265
  %969 = vmatmul.mubr.f32.gmra.mxu0 %v264
  %v970 = vpop.f32.mrf.mxu0
  %v971 = vadd.f32 %v826, %v970
  %v972 = vpop.f32.mrf.mxu0
  %973 = vdwg.mxu0
  %974 = vmatprep.subr.mxu0 0.0
  %975 = vmatpush1.msra.mxu0 %v387
  %976 = vmatprep.subr.mxu0 0.0
  %977 = vmatpush1.msra.mxu0 %v386
  %978 = vmatprep.subr.mxu0 0.0
  %979 = vmatpush1.msra.mxu0 %v385
  %980 = vmatprep.subr.mxu0 0.0
  %981 = vmatpush1.msra.mxu0 %v384
  %982 = vmatprep.subr.mxu0 0.0
  %983 = vmatpush1.msra.mxu0 %v383
  %984 = vmatprep.subr.mxu0 0.0
  %985 = vmatpush1.msra.mxu0 %v382
  %986 = vmatprep.subr.mxu0 0.0
  %987 = vmatpush1.msra.mxu0 %v381
  %988 = vmatprep.subr.mxu0 0.0
  %989 = vmatpush1.msra.mxu0 %v380
  %990 = vmatprep.subr.mxu0 0.0
  %991 = vmatpush1.msra.mxu0 %v379
  %992 = vmatprep.subr.mxu0 0.0
  %993 = vmatpush1.msra.mxu0 %v378
  %994 = vmatprep.subr.mxu0 0.0
  %995 = vmatpush1.msra.mxu0 %v377
  %996 = vmatprep.subr.mxu0 0.0
  %997 = vmatpush1.msra.mxu0 %v376
  %998 = vmatprep.subr.mxu0 0.0
  %999 = vmatpush1.msra.mxu0 %v375
  %1000 = vmatprep.subr.mxu0 0.0
  %1001 = vmatpush1.msra.mxu0 %v374
  %1002 = vmatprep.subr.mxu0 0.0
  %1003 = vmatpush1.msra.mxu0 %v373
  %1004 = vmatprep.subr.mxu0 0.0
  %1005 = vmatpush1.msra.mxu0 %v372
  %1006 = vmatprep.subr.mxu0 0.0
  %1007 = vmatpush2.msra.mxu0 %v403
  %1008 = vmatprep.subr.mxu0 0.0
  %1009 = vmatpush2.msra.mxu0 %v402
  %1010 = vmatprep.subr.mxu0 0.0
  %1011 = vmatpush2.msra.mxu0 %v401
  %1012 = vmatprep.subr.mxu0 0.0
  %1013 = vmatpush2.msra.mxu0 %v400
  %1014 = vmatprep.subr.mxu0 0.0
  %1015 = vmatpush2.msra.mxu0 %v399
  %1016 = vmatprep.subr.mxu0 0.0
  %1017 = vmatpush2.msra.mxu0 %v398
  %1018 = vmatprep.subr.mxu0 0.0
  %1019 = vmatpush2.msra.mxu0 %v397
  %1020 = vmatprep.subr.mxu0 0.0
  %1021 = vmatpush2.msra.mxu0 %v396
  %1022 = vmatprep.subr.mxu0 0.0
  %1023 = vmatpush2.msra.mxu0 %v395
  %1024 = vmatprep.subr.mxu0 0.0
  %1025 = vmatpush2.msra.mxu0 %v394
  %1026 = vmatprep.subr.mxu0 0.0
  %1027 = vmatpush2.msra.mxu0 %v393
  %1028 = vmatprep.subr.mxu0 0.0
  %1029 = vmatpush2.msra.mxu0 %v392
  %1030 = vmatprep.subr.mxu0 0.0
  %1031 = vmatpush2.msra.mxu0 %v391
  %1032 = vmatprep.subr.mxu0 0.0
  %1033 = vmatpush2.msra.mxu0 %v390
  %1034 = vmatprep.subr.mxu0 0.0
  %1035 = vmatpush2.msra.mxu0 %v389
  %1036 = vmatprep.subr.mxu0 0.0
  %1037 = vmatpush2.msra.mxu0 %v388
  %1038 = vmatprep.mubr.f32.mxu0 %v27
  %1039 = vmatmul.mubr.f32.gmra.mxu0 %v26
  %v1040 = vpop.f32.mrf.mxu0
  %v1041 = vadd.f32 %v896, %v1040
  %v1042 = vpop.f32.mrf.mxu0
  %1043 = vmatprep.mubr.f32.mxu0 %v43
  %1044 = vmatmul.mubr.f32.gmra.mxu0 %v42
  %v1045 = vpop.f32.mrf.mxu0
  %v1046 = vadd.f32 %v901, %v1045
  %v1047 = vpop.f32.mrf.mxu0
  %1048 = vmatprep.mubr.f32.mxu0 %v59
  %1049 = vmatmul.mubr.f32.gmra.mxu0 %v58
  %v1050 = vpop.f32.mrf.mxu0
  %v1051 = vadd.f32 %v906, %v1050
  %v1052 = vpop.f32.mrf.mxu0
  %1053 = vmatprep.mubr.f32.mxu0 %v75
  %1054 = vmatmul.mubr.f32.gmra.mxu0 %v74
  %v1055 = vpop.f32.mrf.mxu0
  %v1056 = vadd.f32 %v911, %v1055
  %v1057 = vpop.f32.mrf.mxu0
  %1058 = vmatprep.mubr.f32.mxu0 %v91
  %1059 = vmatmul.mubr.f32.gmra.mxu0 %v90
  %v1060 = vpop.f32.mrf.mxu0
  %v1061 = vadd.f32 %v916, %v1060
  %v1062 = vpop.f32.mrf.mxu0
  %1063 = vmatprep.mubr.f32.mxu0 %v107
  %1064 = vmatmul.mubr.f32.gmra.mxu0 %v106
  %v1065 = vpop.f32.mrf.mxu0
  %v1066 = vadd.f32 %v921, %v1065
  %v1067 = vpop.f32.mrf.mxu0
  %1068 = vmatprep.mubr.f32.mxu0 %v123
  %1069 = vmatmul.mubr.f32.gmra.mxu0 %v122
  %v1070 = vpop.f32.mrf.mxu0
  %v1071 = vadd.f32 %v926, %v1070
  %v1072 = vpop.f32.mrf.mxu0
  %1073 = vmatprep.mubr.f32.mxu0 %v139
  %1074 = vmatmul.mubr.f32.gmra.mxu0 %v138
  %v1075 = vpop.f32.mrf.mxu0
  %v1076 = vadd.f32 %v931, %v1075
  %v1077 = vpop.f32.mrf.mxu0
  %1078 = vmatprep.mubr.f32.mxu0 %v155
  %1079 = vmatmul.mubr.f32.gmra.mxu0 %v154
  %v1080 = vpop.f32.mrf.mxu0
  %v1081 = vadd.f32 %v936, %v1080
  %v1082 = vpop.f32.mrf.mxu0
  %1083 = vmatprep.mubr.f32.mxu0 %v171
  %1084 = vmatmul.mubr.f32.gmra.mxu0 %v170
  %v1085 = vpop.f32.mrf.mxu0
  %v1086 = vadd.f32 %v941, %v1085
  %v1087 = vpop.f32.mrf.mxu0
  %1088 = vmatprep.mubr.f32.mxu0 %v187
  %1089 = vmatmul.mubr.f32.gmra.mxu0 %v186
  %v1090 = vpop.f32.mrf.mxu0
  %v1091 = vadd.f32 %v946, %v1090
  %v1092 = vpop.f32.mrf.mxu0
  %1093 = vmatprep.mubr.f32.mxu0 %v203
  %1094 = vmatmul.mubr.f32.gmra.mxu0 %v202
  %v1095 = vpop.f32.mrf.mxu0
  %v1096 = vadd.f32 %v951, %v1095
  %v1097 = vpop.f32.mrf.mxu0
  %1098 = vmatprep.mubr.f32.mxu0 %v219
  %1099 = vmatmul.mubr.f32.gmra.mxu0 %v218
  %v1100 = vpop.f32.mrf.mxu0
  %v1101 = vadd.f32 %v956, %v1100
  %v1102 = vpop.f32.mrf.mxu0
  %1103 = vmatprep.mubr.f32.mxu0 %v235
  %1104 = vmatmul.mubr.f32.gmra.mxu0 %v234
  %v1105 = vpop.f32.mrf.mxu0
  %v1106 = vadd.f32 %v961, %v1105
  %v1107 = vpop.f32.mrf.mxu0
  %1108 = vmatprep.mubr.f32.mxu0 %v251
  %1109 = vmatmul.mubr.f32.gmra.mxu0 %v250
  %v1110 = vpop.f32.mrf.mxu0
  %v1111 = vadd.f32 %v966, %v1110
  %v1112 = vpop.f32.mrf.mxu0
  %1113 = vmatprep.mubr.f32.mxu0 %v267
  %1114 = vmatmul.mubr.f32.gmra.mxu0 %v266
  %v1115 = vpop.f32.mrf.mxu0
  %v1116 = vadd.f32 %v971, %v1115
  %v1117 = vpop.f32.mrf.mxu0
  %1118 = vdwg.mxu0
  %1119 = vmatprep.subr.mxu0 0.0
  %1120 = vmatpush1.msra.mxu0 %v419
  %1121 = vmatprep.subr.mxu0 0.0
  %1122 = vmatpush1.msra.mxu0 %v418
  %1123 = vmatprep.subr.mxu0 0.0
  %1124 = vmatpush1.msra.mxu0 %v417
  %1125 = vmatprep.subr.mxu0 0.0
  %1126 = vmatpush1.msra.mxu0 %v416
  %1127 = vmatprep.subr.mxu0 0.0
  %1128 = vmatpush1.msra.mxu0 %v415
  %1129 = vmatprep.subr.mxu0 0.0
  %1130 = vmatpush1.msra.mxu0 %v414
  %1131 = vmatprep.subr.mxu0 0.0
  %1132 = vmatpush1.msra.mxu0 %v413
  %1133 = vmatprep.subr.mxu0 0.0
  %1134 = vmatpush1.msra.mxu0 %v412
  %1135 = vmatprep.subr.mxu0 0.0
  %1136 = vmatpush1.msra.mxu0 %v411
  %1137 = vmatprep.subr.mxu0 0.0
  %1138 = vmatpush1.msra.mxu0 %v410
  %1139 = vmatprep.subr.mxu0 0.0
  %1140 = vmatpush1.msra.mxu0 %v409
  %1141 = vmatprep.subr.mxu0 0.0
  %1142 = vmatpush1.msra.mxu0 %v408
  %1143 = vmatprep.subr.mxu0 0.0
  %1144 = vmatpush1.msra.mxu0 %v407
  %1145 = vmatprep.subr.mxu0 0.0
  %1146 = vmatpush1.msra.mxu0 %v406
  %1147 = vmatprep.subr.mxu0 0.0
  %1148 = vmatpush1.msra.mxu0 %v405
  %1149 = vmatprep.subr.mxu0 0.0
  %1150 = vmatpush1.msra.mxu0 %v404
  %1151 = vmatprep.subr.mxu0 0.0
  %1152 = vmatpush2.msra.mxu0 %v435
  %1153 = vmatprep.subr.mxu0 0.0
  %1154 = vmatpush2.msra.mxu0 %v434
  %1155 = vmatprep.subr.mxu0 0.0
  %1156 = vmatpush2.msra.mxu0 %v433
  %1157 = vmatprep.subr.mxu0 0.0
  %1158 = vmatpush2.msra.mxu0 %v432
  %1159 = vmatprep.subr.mxu0 0.0
  %1160 = vmatpush2.msra.mxu0 %v431
  %1161 = vmatprep.subr.mxu0 0.0
  %1162 = vmatpush2.msra.mxu0 %v430
  %1163 = vmatprep.subr.mxu0 0.0
  %1164 = vmatpush2.msra.mxu0 %v429
  %1165 = vmatprep.subr.mxu0 0.0
  %1166 = vmatpush2.msra.mxu0 %v428
  %1167 = vmatprep.subr.mxu0 0.0
  %1168 = vmatpush2.msra.mxu0 %v427
  %1169 = vmatprep.subr.mxu0 0.0
  %1170 = vmatpush2.msra.mxu0 %v426
  %1171 = vmatprep.subr.mxu0 0.0
  %1172 = vmatpush2.msra.mxu0 %v425
  %1173 = vmatprep.subr.mxu0 0.0
  %1174 = vmatpush2.msra.mxu0 %v424
  %1175 = vmatprep.subr.mxu0 0.0
  %1176 = vmatpush2.msra.mxu0 %v423
  %1177 = vmatprep.subr.mxu0 0.0
  %1178 = vmatpush2.msra.mxu0 %v422
  %1179 = vmatprep.subr.mxu0 0.0
  %1180 = vmatpush2.msra.mxu0 %v421
  %1181 = vmatprep.subr.mxu0 0.0
  %1182 = vmatpush2.msra.mxu0 %v420
  %1183 = vmatprep.mubr.f32.mxu0 %v29
  %1184 = vmatmul.mubr.f32.gmra.mxu0 %v28
  %v1185 = vpop.f32.mrf.mxu0
  %v1186 = vadd.f32 %v1041, %v1185
  %v1187 = vpop.f32.mrf.mxu0
  %1188 = vmatprep.mubr.f32.mxu0 %v45
  %1189 = vmatmul.mubr.f32.gmra.mxu0 %v44
  %v1190 = vpop.f32.mrf.mxu0
  %v1191 = vadd.f32 %v1046, %v1190
  %v1192 = vpop.f32.mrf.mxu0
  %1193 = vmatprep.mubr.f32.mxu0 %v61
  %1194 = vmatmul.mubr.f32.gmra.mxu0 %v60
  %v1195 = vpop.f32.mrf.mxu0
  %v1196 = vadd.f32 %v1051, %v1195
  %v1197 = vpop.f32.mrf.mxu0
  %1198 = vmatprep.mubr.f32.mxu0 %v77
  %1199 = vmatmul.mubr.f32.gmra.mxu0 %v76
  %v1200 = vpop.f32.mrf.mxu0
  %v1201 = vadd.f32 %v1056, %v1200
  %v1202 = vpop.f32.mrf.mxu0
  %1203 = vmatprep.mubr.f32.mxu0 %v93
  %1204 = vmatmul.mubr.f32.gmra.mxu0 %v92
  %v1205 = vpop.f32.mrf.mxu0
  %v1206 = vadd.f32 %v1061, %v1205
  %v1207 = vpop.f32.mrf.mxu0
  %1208 = vmatprep.mubr.f32.mxu0 %v109
  %1209 = vmatmul.mubr.f32.gmra.mxu0 %v108
  %v1210 = vpop.f32.mrf.mxu0
  %v1211 = vadd.f32 %v1066, %v1210
  %v1212 = vpop.f32.mrf.mxu0
  %1213 = vmatprep.mubr.f32.mxu0 %v125
  %1214 = vmatmul.mubr.f32.gmra.mxu0 %v124
  %v1215 = vpop.f32.mrf.mxu0
  %v1216 = vadd.f32 %v1071, %v1215
  %v1217 = vpop.f32.mrf.mxu0
  %1218 = vmatprep.mubr.f32.mxu0 %v141
  %1219 = vmatmul.mubr.f32.gmra.mxu0 %v140
  %v1220 = vpop.f32.mrf.mxu0
  %v1221 = vadd.f32 %v1076, %v1220
  %v1222 = vpop.f32.mrf.mxu0
  %1223 = vmatprep.mubr.f32.mxu0 %v157
  %1224 = vmatmul.mubr.f32.gmra.mxu0 %v156
  %v1225 = vpop.f32.mrf.mxu0
  %v1226 = vadd.f32 %v1081, %v1225
  %v1227 = vpop.f32.mrf.mxu0
  %1228 = vmatprep.mubr.f32.mxu0 %v173
  %1229 = vmatmul.mubr.f32.gmra.mxu0 %v172
  %v1230 = vpop.f32.mrf.mxu0
  %v1231 = vadd.f32 %v1086, %v1230
  %v1232 = vpop.f32.mrf.mxu0
  %1233 = vmatprep.mubr.f32.mxu0 %v189
  %1234 = vmatmul.mubr.f32.gmra.mxu0 %v188
  %v1235 = vpop.f32.mrf.mxu0
  %v1236 = vadd.f32 %v1091, %v1235
  %v1237 = vpop.f32.mrf.mxu0
  %1238 = vmatprep.mubr.f32.mxu0 %v205
  %1239 = vmatmul.mubr.f32.gmra.mxu0 %v204
  %v1240 = vpop.f32.mrf.mxu0
  %v1241 = vadd.f32 %v1096, %v1240
  %v1242 = vpop.f32.mrf.mxu0
  %1243 = vmatprep.mubr.f32.mxu0 %v221
  %1244 = vmatmul.mubr.f32.gmra.mxu0 %v220
  %v1245 = vpop.f32.mrf.mxu0
  %v1246 = vadd.f32 %v1101, %v1245
  %v1247 = vpop.f32.mrf.mxu0
  %1248 = vmatprep.mubr.f32.mxu0 %v237
  %1249 = vmatmul.mubr.f32.gmra.mxu0 %v236
  %v1250 = vpop.f32.mrf.mxu0
  %v1251 = vadd.f32 %v1106, %v1250
  %v1252 = vpop.f32.mrf.mxu0
  %1253 = vmatprep.mubr.f32.mxu0 %v253
  %1254 = vmatmul.mubr.f32.gmra.mxu0 %v252
  %v1255 = vpop.f32.mrf.mxu0
  %v1256 = vadd.f32 %v1111, %v1255
  %v1257 = vpop.f32.mrf.mxu0
  %1258 = vmatprep.mubr.f32.mxu0 %v269
  %1259 = vmatmul.mubr.f32.gmra.mxu0 %v268
  %v1260 = vpop.f32.mrf.mxu0
  %v1261 = vadd.f32 %v1116, %v1260
  %v1262 = vpop.f32.mrf.mxu0
  %1263 = vdwg.mxu0
  %1264 = vmatprep.subr.mxu0 0.0
  %1265 = vmatpush1.msra.mxu0 %v451
  %1266 = vmatprep.subr.mxu0 0.0
  %1267 = vmatpush1.msra.mxu0 %v450
  %1268 = vmatprep.subr.mxu0 0.0
  %1269 = vmatpush1.msra.mxu0 %v449
  %1270 = vmatprep.subr.mxu0 0.0
  %1271 = vmatpush1.msra.mxu0 %v448
  %1272 = vmatprep.subr.mxu0 0.0
  %1273 = vmatpush1.msra.mxu0 %v447
  %1274 = vmatprep.subr.mxu0 0.0
  %1275 = vmatpush1.msra.mxu0 %v446
  %1276 = vmatprep.subr.mxu0 0.0
  %1277 = vmatpush1.msra.mxu0 %v445
  %1278 = vmatprep.subr.mxu0 0.0
  %1279 = vmatpush1.msra.mxu0 %v444
  %1280 = vmatprep.subr.mxu0 0.0
  %1281 = vmatpush1.msra.mxu0 %v443
  %1282 = vmatprep.subr.mxu0 0.0
  %1283 = vmatpush1.msra.mxu0 %v442
  %1284 = vmatprep.subr.mxu0 0.0
  %1285 = vmatpush1.msra.mxu0 %v441
  %1286 = vmatprep.subr.mxu0 0.0
  %1287 = vmatpush1.msra.mxu0 %v440
  %1288 = vmatprep.subr.mxu0 0.0
  %1289 = vmatpush1.msra.mxu0 %v439
  %1290 = vmatprep.subr.mxu0 0.0
  %1291 = vmatpush1.msra.mxu0 %v438
  %1292 = vmatprep.subr.mxu0 0.0
  %1293 = vmatpush1.msra.mxu0 %v437
  %1294 = vmatprep.subr.mxu0 0.0
  %1295 = vmatpush1.msra.mxu0 %v436
  %1296 = vmatprep.subr.mxu0 0.0
  %1297 = vmatpush2.msra.mxu0 %v467
  %1298 = vmatprep.subr.mxu0 0.0
  %1299 = vmatpush2.msra.mxu0 %v466
  %1300 = vmatprep.subr.mxu0 0.0
  %1301 = vmatpush2.msra.mxu0 %v465
  %1302 = vmatprep.subr.mxu0 0.0
  %1303 = vmatpush2.msra.mxu0 %v464
  %1304 = vmatprep.subr.mxu0 0.0
  %1305 = vmatpush2.msra.mxu0 %v463
  %1306 = vmatprep.subr.mxu0 0.0
  %1307 = vmatpush2.msra.mxu0 %v462
  %1308 = vmatprep.subr.mxu0 0.0
  %1309 = vmatpush2.msra.mxu0 %v461
  %1310 = vmatprep.subr.mxu0 0.0
  %1311 = vmatpush2.msra.mxu0 %v460
  %1312 = vmatprep.subr.mxu0 0.0
  %1313 = vmatpush2.msra.mxu0 %v459
  %1314 = vmatprep.subr.mxu0 0.0
  %1315 = vmatpush2.msra.mxu0 %v458
  %1316 = vmatprep.subr.mxu0 0.0
  %1317 = vmatpush2.msra.mxu0 %v457
  %1318 = vmatprep.subr.mxu0 0.0
  %1319 = vmatpush2.msra.mxu0 %v456
  %1320 = vmatprep.subr.mxu0 0.0
  %1321 = vmatpush2.msra.mxu0 %v455
  %1322 = vmatprep.subr.mxu0 0.0
  %1323 = vmatpush2.msra.mxu0 %v454
  %1324 = vmatprep.subr.mxu0 0.0
  %1325 = vmatpush2.msra.mxu0 %v453
  %1326 = vmatprep.subr.mxu0 0.0
  %1327 = vmatpush2.msra.mxu0 %v452
  %1328 = vmatprep.mubr.f32.mxu0 %v31
  %1329 = vmatmul.mubr.f32.gmra.mxu0 %v30
  %v1330 = vpop.f32.mrf.mxu0
  %v1331 = vadd.f32 %v1186, %v1330
  %v1332 = vpop.f32.mrf.mxu0
  %1333 = vmatprep.mubr.f32.mxu0 %v47
  %1334 = vmatmul.mubr.f32.gmra.mxu0 %v46
  %v1335 = vpop.f32.mrf.mxu0
  %v1336 = vadd.f32 %v1191, %v1335
  %v1337 = vpop.f32.mrf.mxu0
  %1338 = vmatprep.mubr.f32.mxu0 %v63
  %1339 = vmatmul.mubr.f32.gmra.mxu0 %v62
  %v1340 = vpop.f32.mrf.mxu0
  %v1341 = vadd.f32 %v1196, %v1340
  %v1342 = vpop.f32.mrf.mxu0
  %1343 = vmatprep.mubr.f32.mxu0 %v79
  %1344 = vmatmul.mubr.f32.gmra.mxu0 %v78
  %v1345 = vpop.f32.mrf.mxu0
  %v1346 = vadd.f32 %v1201, %v1345
  %v1347 = vpop.f32.mrf.mxu0
  %1348 = vmatprep.mubr.f32.mxu0 %v95
  %1349 = vmatmul.mubr.f32.gmra.mxu0 %v94
  %v1350 = vpop.f32.mrf.mxu0
  %v1351 = vadd.f32 %v1206, %v1350
  %v1352 = vpop.f32.mrf.mxu0
  %1353 = vmatprep.mubr.f32.mxu0 %v111
  %1354 = vmatmul.mubr.f32.gmra.mxu0 %v110
  %v1355 = vpop.f32.mrf.mxu0
  %v1356 = vadd.f32 %v1211, %v1355
  %v1357 = vpop.f32.mrf.mxu0
  %1358 = vmatprep.mubr.f32.mxu0 %v127
  %1359 = vmatmul.mubr.f32.gmra.mxu0 %v126
  %v1360 = vpop.f32.mrf.mxu0
  %v1361 = vadd.f32 %v1216, %v1360
  %v1362 = vpop.f32.mrf.mxu0
  %1363 = vmatprep.mubr.f32.mxu0 %v143
  %1364 = vmatmul.mubr.f32.gmra.mxu0 %v142
  %v1365 = vpop.f32.mrf.mxu0
  %v1366 = vadd.f32 %v1221, %v1365
  %v1367 = vpop.f32.mrf.mxu0
  %1368 = vmatprep.mubr.f32.mxu0 %v159
  %1369 = vmatmul.mubr.f32.gmra.mxu0 %v158
  %v1370 = vpop.f32.mrf.mxu0
  %v1371 = vadd.f32 %v1226, %v1370
  %v1372 = vpop.f32.mrf.mxu0
  %1373 = vmatprep.mubr.f32.mxu0 %v175
  %1374 = vmatmul.mubr.f32.gmra.mxu0 %v174
  %v1375 = vpop.f32.mrf.mxu0
  %v1376 = vadd.f32 %v1231, %v1375
  %v1377 = vpop.f32.mrf.mxu0
  %1378 = vmatprep.mubr.f32.mxu0 %v191
  %1379 = vmatmul.mubr.f32.gmra.mxu0 %v190
  %v1380 = vpop.f32.mrf.mxu0
  %v1381 = vadd.f32 %v1236, %v1380
  %v1382 = vpop.f32.mrf.mxu0
  %1383 = vmatprep.mubr.f32.mxu0 %v207
  %1384 = vmatmul.mubr.f32.gmra.mxu0 %v206
  %v1385 = vpop.f32.mrf.mxu0
  %v1386 = vadd.f32 %v1241, %v1385
  %v1387 = vpop.f32.mrf.mxu0
  %1388 = vmatprep.mubr.f32.mxu0 %v223
  %1389 = vmatmul.mubr.f32.gmra.mxu0 %v222
  %v1390 = vpop.f32.mrf.mxu0
  %v1391 = vadd.f32 %v1246, %v1390
  %v1392 = vpop.f32.mrf.mxu0
  %1393 = vmatprep.mubr.f32.mxu0 %v239
  %1394 = vmatmul.mubr.f32.gmra.mxu0 %v238
  %v1395 = vpop.f32.mrf.mxu0
  %v1396 = vadd.f32 %v1251, %v1395
  %v1397 = vpop.f32.mrf.mxu0
  %1398 = vmatprep.mubr.f32.mxu0 %v255
  %1399 = vmatmul.mubr.f32.gmra.mxu0 %v254
  %v1400 = vpop.f32.mrf.mxu0
  %v1401 = vadd.f32 %v1256, %v1400
  %v1402 = vpop.f32.mrf.mxu0
  %1403 = vmatprep.mubr.f32.mxu0 %v271
  %1404 = vmatmul.mubr.f32.gmra.mxu0 %v270
  %v1405 = vpop.f32.mrf.mxu0
  %v1406 = vadd.f32 %v1261, %v1405
  %v1407 = vpop.f32.mrf.mxu0
  %1408 = vdwg.mxu0
  %1409 = vmatprep.subr.mxu0 0.0
  %1410 = vmatpush1.msra.mxu0 %v483
  %1411 = vmatprep.subr.mxu0 0.0
  %1412 = vmatpush1.msra.mxu0 %v482
  %1413 = vmatprep.subr.mxu0 0.0
  %1414 = vmatpush1.msra.mxu0 %v481
  %1415 = vmatprep.subr.mxu0 0.0
  %1416 = vmatpush1.msra.mxu0 %v480
  %1417 = vmatprep.subr.mxu0 0.0
  %1418 = vmatpush1.msra.mxu0 %v479
  %1419 = vmatprep.subr.mxu0 0.0
  %1420 = vmatpush1.msra.mxu0 %v478
  %1421 = vmatprep.subr.mxu0 0.0
  %1422 = vmatpush1.msra.mxu0 %v477
  %1423 = vmatprep.subr.mxu0 0.0
  %1424 = vmatpush1.msra.mxu0 %v476
  %1425 = vmatprep.subr.mxu0 0.0
  %1426 = vmatpush1.msra.mxu0 %v475
  %1427 = vmatprep.subr.mxu0 0.0
  %1428 = vmatpush1.msra.mxu0 %v474
  %1429 = vmatprep.subr.mxu0 0.0
  %1430 = vmatpush1.msra.mxu0 %v473
  %1431 = vmatprep.subr.mxu0 0.0
  %1432 = vmatpush1.msra.mxu0 %v472
  %1433 = vmatprep.subr.mxu0 0.0
  %1434 = vmatpush1.msra.mxu0 %v471
  %1435 = vmatprep.subr.mxu0 0.0
  %1436 = vmatpush1.msra.mxu0 %v470
  %1437 = vmatprep.subr.mxu0 0.0
  %1438 = vmatpush1.msra.mxu0 %v469
  %1439 = vmatprep.subr.mxu0 0.0
  %1440 = vmatpush1.msra.mxu0 %v468
  %1441 = vmatprep.subr.mxu0 0.0
  %1442 = vmatpush2.msra.mxu0 %v499
  %1443 = vmatprep.subr.mxu0 0.0
  %1444 = vmatpush2.msra.mxu0 %v498
  %1445 = vmatprep.subr.mxu0 0.0
  %1446 = vmatpush2.msra.mxu0 %v497
  %1447 = vmatprep.subr.mxu0 0.0
  %1448 = vmatpush2.msra.mxu0 %v496
  %1449 = vmatprep.subr.mxu0 0.0
  %1450 = vmatpush2.msra.mxu0 %v495
  %1451 = vmatprep.subr.mxu0 0.0
  %1452 = vmatpush2.msra.mxu0 %v494
  %1453 = vmatprep.subr.mxu0 0.0
  %1454 = vmatpush2.msra.mxu0 %v493
  %1455 = vmatprep.subr.mxu0 0.0
  %1456 = vmatpush2.msra.mxu0 %v492
  %1457 = vmatprep.subr.mxu0 0.0
  %1458 = vmatpush2.msra.mxu0 %v491
  %1459 = vmatprep.subr.mxu0 0.0
  %1460 = vmatpush2.msra.mxu0 %v490
  %1461 = vmatprep.subr.mxu0 0.0
  %1462 = vmatpush2.msra.mxu0 %v489
  %1463 = vmatprep.subr.mxu0 0.0
  %1464 = vmatpush2.msra.mxu0 %v488
  %1465 = vmatprep.subr.mxu0 0.0
  %1466 = vmatpush2.msra.mxu0 %v487
  %1467 = vmatprep.subr.mxu0 0.0
  %1468 = vmatpush2.msra.mxu0 %v486
  %1469 = vmatprep.subr.mxu0 0.0
  %1470 = vmatpush2.msra.mxu0 %v485
  %1471 = vmatprep.subr.mxu0 0.0
  %1472 = vmatpush2.msra.mxu0 %v484
  %1473 = vmatprep.mubr.f32.mxu0 %v33
  %1474 = vmatmul.mubr.f32.gmra.mxu0 %v32
  %v1475 = vpop.f32.mrf.mxu0
  %v1476 = vadd.f32 %v1331, %v1475
  %v1477 = vpop.f32.mrf.mxu0
  %1478 = vmatprep.mubr.f32.mxu0 %v49
  %1479 = vmatmul.mubr.f32.gmra.mxu0 %v48
  %v1480 = vpop.f32.mrf.mxu0
  %v1481 = vadd.f32 %v1336, %v1480
  %v1482 = vpop.f32.mrf.mxu0
  %1483 = vmatprep.mubr.f32.mxu0 %v65
  %1484 = vmatmul.mubr.f32.gmra.mxu0 %v64
  %v1485 = vpop.f32.mrf.mxu0
  %v1486 = vadd.f32 %v1341, %v1485
  %v1487 = vpop.f32.mrf.mxu0
  %1488 = vmatprep.mubr.f32.mxu0 %v81
  %1489 = vmatmul.mubr.f32.gmra.mxu0 %v80
  %v1490 = vpop.f32.mrf.mxu0
  %v1491 = vadd.f32 %v1346, %v1490
  %v1492 = vpop.f32.mrf.mxu0
  %1493 = vmatprep.mubr.f32.mxu0 %v97
  %1494 = vmatmul.mubr.f32.gmra.mxu0 %v96
  %v1495 = vpop.f32.mrf.mxu0
  %v1496 = vadd.f32 %v1351, %v1495
  %v1497 = vpop.f32.mrf.mxu0
  %1498 = vmatprep.mubr.f32.mxu0 %v113
  %1499 = vmatmul.mubr.f32.gmra.mxu0 %v112
  %v1500 = vpop.f32.mrf.mxu0
  %v1501 = vadd.f32 %v1356, %v1500
  %v1502 = vpop.f32.mrf.mxu0
  %1503 = vmatprep.mubr.f32.mxu0 %v129
  %1504 = vmatmul.mubr.f32.gmra.mxu0 %v128
  %v1505 = vpop.f32.mrf.mxu0
  %v1506 = vadd.f32 %v1361, %v1505
  %v1507 = vpop.f32.mrf.mxu0
  %1508 = vmatprep.mubr.f32.mxu0 %v145
  %1509 = vmatmul.mubr.f32.gmra.mxu0 %v144
  %v1510 = vpop.f32.mrf.mxu0
  %v1511 = vadd.f32 %v1366, %v1510
  %v1512 = vpop.f32.mrf.mxu0
  %1513 = vmatprep.mubr.f32.mxu0 %v161
  %1514 = vmatmul.mubr.f32.gmra.mxu0 %v160
  %v1515 = vpop.f32.mrf.mxu0
  %v1516 = vadd.f32 %v1371, %v1515
  %v1517 = vpop.f32.mrf.mxu0
  %1518 = vmatprep.mubr.f32.mxu0 %v177
  %1519 = vmatmul.mubr.f32.gmra.mxu0 %v176
  %v1520 = vpop.f32.mrf.mxu0
  %v1521 = vadd.f32 %v1376, %v1520
  %v1522 = vpop.f32.mrf.mxu0
  %1523 = vmatprep.mubr.f32.mxu0 %v193
  %1524 = vmatmul.mubr.f32.gmra.mxu0 %v192
  %v1525 = vpop.f32.mrf.mxu0
  %v1526 = vadd.f32 %v1381, %v1525
  %v1527 = vpop.f32.mrf.mxu0
  %1528 = vmatprep.mubr.f32.mxu0 %v209
  %1529 = vmatmul.mubr.f32.gmra.mxu0 %v208
  %v1530 = vpop.f32.mrf.mxu0
  %v1531 = vadd.f32 %v1386, %v1530
  %v1532 = vpop.f32.mrf.mxu0
  %1533 = vmatprep.mubr.f32.mxu0 %v225
  %1534 = vmatmul.mubr.f32.gmra.mxu0 %v224
  %v1535 = vpop.f32.mrf.mxu0
  %v1536 = vadd.f32 %v1391, %v1535
  %v1537 = vpop.f32.mrf.mxu0
  %1538 = vmatprep.mubr.f32.mxu0 %v241
  %1539 = vmatmul.mubr.f32.gmra.mxu0 %v240
  %v1540 = vpop.f32.mrf.mxu0
  %v1541 = vadd.f32 %v1396, %v1540
  %v1542 = vpop.f32.mrf.mxu0
  %1543 = vmatprep.mubr.f32.mxu0 %v257
  %1544 = vmatmul.mubr.f32.gmra.mxu0 %v256
  %v1545 = vpop.f32.mrf.mxu0
  %v1546 = vadd.f32 %v1401, %v1545
  %v1547 = vpop.f32.mrf.mxu0
  %1548 = vmatprep.mubr.f32.mxu0 %v273
  %1549 = vmatmul.mubr.f32.gmra.mxu0 %v272
  %v1550 = vpop.f32.mrf.mxu0
  %v1551 = vadd.f32 %v1406, %v1550
  %v1552 = vpop.f32.mrf.mxu0
  %1553 = vdwg.mxu0
  %1554 = vmatprep.subr.mxu0 0.0
  %1555 = vmatpush1.msra.mxu0 %v515
  %1556 = vmatprep.subr.mxu0 0.0
  %1557 = vmatpush1.msra.mxu0 %v514
  %1558 = vmatprep.subr.mxu0 0.0
  %1559 = vmatpush1.msra.mxu0 %v513
  %1560 = vmatprep.subr.mxu0 0.0
  %1561 = vmatpush1.msra.mxu0 %v512
  %1562 = vmatprep.subr.mxu0 0.0
  %1563 = vmatpush1.msra.mxu0 %v511
  %1564 = vmatprep.subr.mxu0 0.0
  %1565 = vmatpush1.msra.mxu0 %v510
  %1566 = vmatprep.subr.mxu0 0.0
  %1567 = vmatpush1.msra.mxu0 %v509
  %1568 = vmatprep.subr.mxu0 0.0
  %1569 = vmatpush1.msra.mxu0 %v508
  %1570 = vmatprep.subr.mxu0 0.0
  %1571 = vmatpush1.msra.mxu0 %v507
  %1572 = vmatprep.subr.mxu0 0.0
  %1573 = vmatpush1.msra.mxu0 %v506
  %1574 = vmatprep.subr.mxu0 0.0
  %1575 = vmatpush1.msra.mxu0 %v505
  %1576 = vmatprep.subr.mxu0 0.0
  %1577 = vmatpush1.msra.mxu0 %v504
  %1578 = vmatprep.subr.mxu0 0.0
  %1579 = vmatpush1.msra.mxu0 %v503
  %1580 = vmatprep.subr.mxu0 0.0
  %1581 = vmatpush1.msra.mxu0 %v502
  %1582 = vmatprep.subr.mxu0 0.0
  %1583 = vmatpush1.msra.mxu0 %v501
  %1584 = vmatprep.subr.mxu0 0.0
  %1585 = vmatpush1.msra.mxu0 %v500
  %1586 = vmatprep.subr.mxu0 0.0
  %1587 = vmatpush2.msra.mxu0 %v531
  %1588 = vmatprep.subr.mxu0 0.0
  %1589 = vmatpush2.msra.mxu0 %v530
  %1590 = vmatprep.subr.mxu0 0.0
  %1591 = vmatpush2.msra.mxu0 %v529
  %1592 = vmatprep.subr.mxu0 0.0
  %1593 = vmatpush2.msra.mxu0 %v528
  %1594 = vmatprep.subr.mxu0 0.0
  %1595 = vmatpush2.msra.mxu0 %v527
  %1596 = vmatprep.subr.mxu0 0.0
  %1597 = vmatpush2.msra.mxu0 %v526
  %1598 = vmatprep.subr.mxu0 0.0
  %1599 = vmatpush2.msra.mxu0 %v525
  %1600 = vmatprep.subr.mxu0 0.0
  %1601 = vmatpush2.msra.mxu0 %v524
  %1602 = vmatprep.subr.mxu0 0.0
  %1603 = vmatpush2.msra.mxu0 %v523
  %1604 = vmatprep.subr.mxu0 0.0
  %1605 = vmatpush2.msra.mxu0 %v522
  %1606 = vmatprep.subr.mxu0 0.0
  %1607 = vmatpush2.msra.mxu0 %v521
  %1608 = vmatprep.subr.mxu0 0.0
  %1609 = vmatpush2.msra.mxu0 %v520
  %1610 = vmatprep.subr.mxu0 0.0
  %1611 = vmatpush2.msra.mxu0 %v519
  %1612 = vmatprep.subr.mxu0 0.0
  %1613 = vmatpush2.msra.mxu0 %v518
  %1614 = vmatprep.subr.mxu0 0.0
  %1615 = vmatpush2.msra.mxu0 %v517
  %1616 = vmatprep.subr.mxu0 0.0
  %1617 = vmatpush2.msra.mxu0 %v516
  %1618 = vmatprep.mubr.f32.mxu0 %v35
  %1619 = vmatmul.mubr.f32.gmra.mxu0 %v34
  %v1620 = vpop.f32.mrf.mxu0
  %v1621 = vadd.f32 %v1476, %v1620
  %v1622 = vpop.f32.mrf.mxu0
  %1623 = vmatprep.mubr.f32.mxu0 %v51
  %1624 = vmatmul.mubr.f32.gmra.mxu0 %v50
  %v1625 = vpop.f32.mrf.mxu0
  %v1626 = vadd.f32 %v1481, %v1625
  %v1627 = vpop.f32.mrf.mxu0
  %1628 = vmatprep.mubr.f32.mxu0 %v67
  %1629 = vmatmul.mubr.f32.gmra.mxu0 %v66
  %v1630 = vpop.f32.mrf.mxu0
  %v1631 = vadd.f32 %v1486, %v1630
  %v1632 = vpop.f32.mrf.mxu0
  %1633 = vmatprep.mubr.f32.mxu0 %v83
  %1634 = vmatmul.mubr.f32.gmra.mxu0 %v82
  %v1635 = vpop.f32.mrf.mxu0
  %v1636 = vadd.f32 %v1491, %v1635
  %v1637 = vpop.f32.mrf.mxu0
  %1638 = vmatprep.mubr.f32.mxu0 %v99
  %1639 = vmatmul.mubr.f32.gmra.mxu0 %v98
  %v1640 = vpop.f32.mrf.mxu0
  %v1641 = vadd.f32 %v1496, %v1640
  %v1642 = vpop.f32.mrf.mxu0
  %1643 = vmatprep.mubr.f32.mxu0 %v115
  %1644 = vmatmul.mubr.f32.gmra.mxu0 %v114
  %v1645 = vpop.f32.mrf.mxu0
  %v1646 = vadd.f32 %v1501, %v1645
  %v1647 = vpop.f32.mrf.mxu0
  %1648 = vmatprep.mubr.f32.mxu0 %v131
  %1649 = vmatmul.mubr.f32.gmra.mxu0 %v130
  %v1650 = vpop.f32.mrf.mxu0
  %v1651 = vadd.f32 %v1506, %v1650
  %v1652 = vpop.f32.mrf.mxu0
  %1653 = vmatprep.mubr.f32.mxu0 %v147
  %1654 = vmatmul.mubr.f32.gmra.mxu0 %v146
  %v1655 = vpop.f32.mrf.mxu0
  %v1656 = vadd.f32 %v1511, %v1655
  %v1657 = vpop.f32.mrf.mxu0
  %1658 = vmatprep.mubr.f32.mxu0 %v163
  %1659 = vmatmul.mubr.f32.gmra.mxu0 %v162
  %v1660 = vpop.f32.mrf.mxu0
  %v1661 = vadd.f32 %v1516, %v1660
  %v1662 = vpop.f32.mrf.mxu0
  %1663 = vmatprep.mubr.f32.mxu0 %v179
  %1664 = vmatmul.mubr.f32.gmra.mxu0 %v178
  %v1665 = vpop.f32.mrf.mxu0
  %v1666 = vadd.f32 %v1521, %v1665
  %v1667 = vpop.f32.mrf.mxu0
  %1668 = vmatprep.mubr.f32.mxu0 %v195
  %1669 = vmatmul.mubr.f32.gmra.mxu0 %v194
  %v1670 = vpop.f32.mrf.mxu0
  %v1671 = vadd.f32 %v1526, %v1670
  %v1672 = vpop.f32.mrf.mxu0
  %1673 = vmatprep.mubr.f32.mxu0 %v211
  %1674 = vmatmul.mubr.f32.gmra.mxu0 %v210
  %v1675 = vpop.f32.mrf.mxu0
  %v1676 = vadd.f32 %v1531, %v1675
  %v1677 = vpop.f32.mrf.mxu0
  %1678 = vmatprep.mubr.f32.mxu0 %v227
  %1679 = vmatmul.mubr.f32.gmra.mxu0 %v226
  %v1680 = vpop.f32.mrf.mxu0
  %v1681 = vadd.f32 %v1536, %v1680
  %v1682 = vpop.f32.mrf.mxu0
  %1683 = vmatprep.mubr.f32.mxu0 %v243
  %1684 = vmatmul.mubr.f32.gmra.mxu0 %v242
  %v1685 = vpop.f32.mrf.mxu0
  %v1686 = vadd.f32 %v1541, %v1685
  %v1687 = vpop.f32.mrf.mxu0
  %1688 = vmatprep.mubr.f32.mxu0 %v259
  %1689 = vmatmul.mubr.f32.gmra.mxu0 %v258
  %v1690 = vpop.f32.mrf.mxu0
  %v1691 = vadd.f32 %v1546, %v1690
  %v1692 = vpop.f32.mrf.mxu0
  %1693 = vmatprep.mubr.f32.mxu0 %v275
  %1694 = vmatmul.mubr.f32.gmra.mxu0 %v274
  %v1695 = vpop.f32.mrf.mxu0
  %v1696 = vadd.f32 %v1551, %v1695
  %v1697 = vpop.f32.mrf.mxu0
  %1698 = vdwg.mxu0
  %v1699 = vadd.f32 %v1621, %v1626
  %v1700 = vadd.f32 %v1699, %v1631
  %v1701 = vadd.f32 %v1700, %v1636
  %v1702 = vadd.f32 %v1701, %v1641
  %v1703 = vadd.f32 %v1702, %v1646
  %v1704 = vadd.f32 %v1703, %v1651
  %v1705 = vadd.f32 %v1704, %v1656
  %v1706 = vadd.f32 %v1705, %v1661
  %v1707 = vadd.f32 %v1706, %v1666
  %v1708 = vadd.f32 %v1707, %v1671
  %v1709 = vadd.f32 %v1708, %v1676
  %v1710 = vadd.f32 %v1709, %v1681
  %v1711 = vadd.f32 %v1710, %v1686
  %v1712 = vadd.f32 %v1711, %v1691
  %v1713 = vadd.f32 %v1712, %v1696
  %v1714 = vrot.slane %v1713, 4
  %v1715 = vadd.f32 %v1713, %v1714
  %v1716 = vrot.slane %v1715, 2
  %v1717 = vadd.f32 %v1715, %v1716
  %v1718 = vrot.slane %v1717, 1
  %v1719 = vadd.f32 %v1717, %v1718
  %v1720 = vmul.f32 %v1621, %v1621
  %v1721 = vmul.f32 %v1626, %v1626
  %v1722 = vmul.f32 %v1631, %v1631
  %v1723 = vmul.f32 %v1636, %v1636
  %v1724 = vmul.f32 %v1641, %v1641
  %v1725 = vmul.f32 %v1646, %v1646
  %v1726 = vmul.f32 %v1651, %v1651
  %v1727 = vmul.f32 %v1656, %v1656
  %v1728 = vmul.f32 %v1661, %v1661
  %v1729 = vmul.f32 %v1666, %v1666
  %v1730 = vmul.f32 %v1671, %v1671
  %v1731 = vmul.f32 %v1676, %v1676
  %v1732 = vmul.f32 %v1681, %v1681
  %v1733 = vmul.f32 %v1686, %v1686
  %v1734 = vmul.f32 %v1691, %v1691
  %v1735 = vmul.f32 %v1696, %v1696
  %v1736 = vadd.f32 %v1720, %v1721
  %v1737 = vadd.f32 %v1736, %v1722
  %v1738 = vadd.f32 %v1737, %v1723
  %v1739 = vadd.f32 %v1738, %v1724
  %v1740 = vadd.f32 %v1739, %v1725
  %v1741 = vadd.f32 %v1740, %v1726
  %v1742 = vadd.f32 %v1741, %v1727
  %v1743 = vadd.f32 %v1742, %v1728
  %v1744 = vadd.f32 %v1743, %v1729
  %v1745 = vadd.f32 %v1744, %v1730
  %v1746 = vadd.f32 %v1745, %v1731
  %v1747 = vadd.f32 %v1746, %v1732
  %v1748 = vadd.f32 %v1747, %v1733
  %v1749 = vadd.f32 %v1748, %v1734
  %v1750 = vadd.f32 %v1749, %v1735
  %v1751 = vrot.slane %v1750, 4
  %v1752 = vadd.f32 %v1750, %v1751
  %v1753 = vrot.slane %v1752, 2
  %v1754 = vadd.f32 %v1752, %v1753
  %v1755 = vrot.slane %v1754, 1
  %v1756 = vadd.f32 %v1754, %v1755
  %v1757 = vmul.f32 %v1719, 0.0078125
  %v1758 = vmul.f32 %v1756, 0.0078125
  %v1759 = vmul.f32 %v1757, %v1757
  %v1760 = vsub.f32 %v1758, %v1759
  %v1761 = vmax.f32 %v1760, 0.0
  %v1762 = vadd.f32 %v1761, 1e-05
  %v1763 = vrsqrt.pop %v1762
  %v1764 = vsub.f32 %v1621, %v1757
  %v1765 = vsub.f32 %v1626, %v1757
  %v1766 = vsub.f32 %v1631, %v1757
  %v1767 = vsub.f32 %v1636, %v1757
  %v1768 = vsub.f32 %v1641, %v1757
  %v1769 = vsub.f32 %v1646, %v1757
  %v1770 = vsub.f32 %v1651, %v1757
  %v1771 = vsub.f32 %v1656, %v1757
  %v1772 = vsub.f32 %v1661, %v1757
  %v1773 = vsub.f32 %v1666, %v1757
  %v1774 = vsub.f32 %v1671, %v1757
  %v1775 = vsub.f32 %v1676, %v1757
  %v1776 = vsub.f32 %v1681, %v1757
  %v1777 = vsub.f32 %v1686, %v1757
  %v1778 = vsub.f32 %v1691, %v1757
  %v1779 = vsub.f32 %v1696, %v1757
  %v1780 = vld [vmem:[%s3] sm:$0x1]
  %v1781 = vmul.f32 %v1763, %v1780
  %v1782 = vlaneseq
  %v1783 = vshrl.u32 %v1782, 7
  %v1784 = vsub.s32 0, %v1783
  %v1785 = vrot.slane %v1781, %v1784
  %v1786 = vmul.f32 %v1764, %v1785
  %v1787 = vmul.f32 %v1765, %v1785
  %v1788 = vmul.f32 %v1766, %v1785
  %v1789 = vmul.f32 %v1767, %v1785
  %v1790 = vmul.f32 %v1768, %v1785
  %v1791 = vmul.f32 %v1769, %v1785
  %v1792 = vmul.f32 %v1770, %v1785
  %v1793 = vmul.f32 %v1771, %v1785
  %v1794 = vmul.f32 %v1772, %v1785
  %v1795 = vmul.f32 %v1773, %v1785
  %v1796 = vmul.f32 %v1774, %v1785
  %v1797 = vmul.f32 %v1775, %v1785
  %v1798 = vmul.f32 %v1776, %v1785
  %v1799 = vmul.f32 %v1777, %v1785
  %v1800 = vmul.f32 %v1778, %v1785
  %v1801 = vmul.f32 %v1779, %v1785
  %v1802 = vld [vmem:[%s4] sm:$0x1]
  %v1804 = vlaneseq
  %v1805 = vshrl.u32 %v1804, 7
  %v1806 = vsub.s32 0, %v1805
  %v1807 = vrot.slane %v1802, %v1806
  %v1809 = vadd.f32 %v1786, %v1807
  %v1810 = vadd.f32 %v1787, %v1807
  %v1811 = vadd.f32 %v1788, %v1807
  %v1812 = vadd.f32 %v1789, %v1807
  %v1813 = vadd.f32 %v1790, %v1807
  %v1814 = vadd.f32 %v1791, %v1807
  %v1815 = vadd.f32 %v1792, %v1807
  %v1816 = vadd.f32 %v1793, %v1807
  %v1817 = vadd.f32 %v1794, %v1807
  %v1818 = vadd.f32 %v1795, %v1807
  %v1819 = vadd.f32 %v1796, %v1807
  %v1820 = vadd.f32 %v1797, %v1807
  %v1821 = vadd.f32 %v1798, %v1807
  %v1822 = vadd.f32 %v1799, %v1807
  %v1823 = vadd.f32 %v1800, %v1807
  %v1824 = vadd.f32 %v1801, %v1807
  %v1825 = vmax.f32 %v1809, 0.0
  %v1826 = vmax.f32 %v1810, 0.0
  %v1827 = vmax.f32 %v1811, 0.0
  %v1828 = vmax.f32 %v1812, 0.0
  %v1829 = vmax.f32 %v1813, 0.0
  %v1830 = vmax.f32 %v1814, 0.0
  %v1831 = vmax.f32 %v1815, 0.0
  %v1832 = vmax.f32 %v1816, 0.0
  %v1833 = vmax.f32 %v1817, 0.0
  %v1834 = vmax.f32 %v1818, 0.0
  %v1835 = vmax.f32 %v1819, 0.0
  %v1836 = vmax.f32 %v1820, 0.0
  %v1837 = vmax.f32 %v1821, 0.0
  %v1838 = vmax.f32 %v1822, 0.0
  %v1839 = vmax.f32 %v1823, 0.0
  %v1840 = vmax.f32 %v1824, 0.0
  %1841 = vst [vmem:[%s5] sm:$0xff] %v1825
  %1842 = vst [vmem:[%s5 + $0x8] sm:$0xff] %v1826
  %1843 = vst [vmem:[%s5 + $0x10] sm:$0xff] %v1827
  %1844 = vst [vmem:[%s5 + $0x18] sm:$0xff] %v1828
  %1845 = vst [vmem:[%s5 + $0x20] sm:$0xff] %v1829
  %1846 = vst [vmem:[%s5 + $0x28] sm:$0xff] %v1830
  %1847 = vst [vmem:[%s5 + $0x30] sm:$0xff] %v1831
  %1848 = vst [vmem:[%s5 + $0x38] sm:$0xff] %v1832
  %1849 = vst [vmem:[%s5 + $0x40] sm:$0xff] %v1833
  %1850 = vst [vmem:[%s5 + $0x48] sm:$0xff] %v1834
  %1851 = vst [vmem:[%s5 + $0x50] sm:$0xff] %v1835
  %1852 = vst [vmem:[%s5 + $0x58] sm:$0xff] %v1836
  %1853 = vst [vmem:[%s5 + $0x60] sm:$0xff] %v1837
  %1854 = vst [vmem:[%s5 + $0x68] sm:$0xff] %v1838
  %1855 = vst [vmem:[%s5 + $0x70] sm:$0xff] %v1839
  %1856 = vst [vmem:[%s5 + $0x78] sm:$0xff] %v1840
  // Predicated region
  $region22: #{generator_forward.8} parent=0 // pred_check
    _
  $region23: #{generator_forward.8} parent=0 // pred_check_branch
    %1858 = sbr.rel (0) target = $region25
  $region24: #{generator_forward.8} parent=0 // pred_region
    _
  $region25: #{generator_forward.8} parent=0 // pred_fallthru
    _
  // Predicated region
  $region26: #{generator_forward.8} parent=0 // pred_check
    _
  $region27: #{generator_forward.8} parent=0 // pred_check_branch
    %1860 = sbr.rel (0) target = $region29
  $region28: #{generator_forward.8} parent=0 // pred_region
    _
  $region29: #{generator_forward.8} parent=0 // pred_fallthru
    _

// kernel: generator_forward.9
$region0: #{generator_forward.9}
  #allocation0 [shape = 'u32[]', space=smem, size = 0x4, offset = 0x4, fixed_abs, tag = 'smem constant byte address 0x4 - core index']
  #allocation1 [shape = 'u32[144,128]{1,0:T(1,128)}', space=vmem, size = 0x12000, scoped, tag = 'internal scratch']
  %s0 = inlined_call_operand.vmem [shape: f32[512,2048], index: 0, kind: input, shape index: {}]
  %s1 = inlined_call_operand.vmem [shape: f32[2048,128], index: 1, kind: input, shape index: {}]
  %s2 = inlined_call_operand.vmem [shape: f32[1,128], index: 2, kind: input, shape index: {}]
  %s3 = inlined_call_operand.vmem [shape: f32[512,128], index: 3, kind: output, shape index: {}]
  %s4 = sld [smem:[#allocation0]]
  $region45: #{generator_forward.9} parent=0
    _
  %s6 = ssub.s32 1, %s4
  %s7 = scalar_select 0, %s6, %s4
  loop: start=0, step=1, limit=4
  $region2: #{generator_forward.9} parent=0 // loop_pre_header
    _
  $region3: #{generator_forward.9} parent=0 // loop_header
    %s9 = sphi 0, %s13
    %p10 = scmp.ge.s32.totalorder %s9, 4
    %s19 = sphi 0, %s21
    %s22 = sphi 0, %s19
    %s23 = sphi 0, %s22
    %s39 = sphi 0, %s23
    %s43 = sphi 0, %s43
    %s45 = sphi 0, %s43
    %s46 = sphi 0, %s45
    %s60 = sphi 0, %s46
    %s64 = sphi 0, %s64
    %s66 = sphi 0, %s64
    %s67 = sphi 0, %s66
    %s81 = sphi 0, %s67
    %s87 = sphi 0, %s89
    %s90 = sphi 0, %s87
    %s91 = sphi 0, %s90
    %s107 = sphi 0, %s91
  $region4: #{generator_forward.9} parent=0 // loop_header_branch
    %12 = sbr.rel (%p10) target = $region8
  $region5: #{generator_forward.9} parent=0 // loop_body
    %s14 = ssub.s32 %s9, 1
    %s15 = ssub.s32 %s9, 2
    %s16 = sadd.s32 %s9, 1
    %s17 = ssub.s32 %s9, %s16
    %p18 = scmp.eq.s32.totalorder %s17, 0
    %s20 = sadd.s32 %s19, 1
    %s21 = scalar_select %p18, %s19, %s20
    %p24 = pneg %p18
    %p25 = scmp.eq.s32.totalorder %s9, 1
    %p26 = por %p24, %p25
    %p27 = scmp.ne.s32.totalorder %s19, %s22
    %p28 = scmp.eq.s32.totalorder %s9, 0
    %p29 = por %p27, %p28
    %p30 = scmp.ne.s32.totalorder %s19, %s22
    %p31 = scmp.eq.s32.totalorder %s14, 1
    %p32 = por %p30, %p31
    %p33 = scmp.ne.s32.totalorder %s22, %s23
    %p34 = scmp.eq.s32.totalorder %s14, 0
    %p35 = por %p33, %p34
    %p36 = scmp.ne.s32.totalorder %s22, %s23
    %p37 = scmp.eq.s32.totalorder %s15, 1
    %p38 = por %p36, %p37
    %p40 = scmp.ne.s32.totalorder %s23, %s39
    %p41 = scmp.eq.s32.totalorder %s15, 0
    %p42 = por %p40, %p41
    %s44 = sadd.s32 %s43, 1
    %p47 = scmp.eq.s32.totalorder %s9, 1
    %p48 = scmp.ne.s32.totalorder %s43, %s45
    %p49 = scmp.eq.s32.totalorder %s9, 0
    %p50 = por %p48, %p49
    %p51 = scmp.ne.s32.totalorder %s43, %s45
    %p52 = scmp.eq.s32.totalorder %s14, 1
    %p53 = por %p51, %p52
    %p54 = scmp.ne.s32.totalorder %s45, %s46
    %p55 = scmp.eq.s32.totalorder %s14, 0
    %p56 = por %p54, %p55
    %p57 = scmp.ne.s32.totalorder %s45, %s46
    %p58 = scmp.eq.s32.totalorder %s15, 1
    %p59 = por %p57, %p58
    %p61 = scmp.ne.s32.totalorder %s46, %s60
    %p62 = scmp.eq.s32.totalorder %s15, 0
    %p63 = por %p61, %p62
    %s65 = sadd.s32 %s64, 1
    %p68 = scmp.eq.s32.totalorder %s9, 1
    %p69 = scmp.ne.s32.totalorder %s64, %s66
    %p70 = scmp.eq.s32.totalorder %s9, 0
    %p71 = por %p69, %p70
    %p72 = scmp.ne.s32.totalorder %s64, %s66
    %p73 = scmp.eq.s32.totalorder %s14, 1
    %p74 = por %p72, %p73
    %p75 = scmp.ne.s32.totalorder %s66, %s67
    %p76 = scmp.eq.s32.totalorder %s14, 0
    %p77 = por %p75, %p76
    %p78 = scmp.ne.s32.totalorder %s66, %s67
    %p79 = scmp.eq.s32.totalorder %s15, 1
    %p80 = por %p78, %p79
    %p82 = scmp.ne.s32.totalorder %s67, %s81
    %p83 = scmp.eq.s32.totalorder %s15, 0
    %p84 = por %p82, %p83
    %s85 = ssub.s32 %s9, %s16
    %p86 = scmp.eq.s32.totalorder %s85, 0
    %s88 = sadd.s32 %s87, 1
    %s89 = scalar_select %p86, %s87, %s88
    %p92 = pneg %p86
    %p93 = scmp.eq.s32.totalorder %s9, 1
    %p94 = por %p92, %p93
    %p95 = scmp.ne.s32.totalorder %s87, %s90
    %p96 = scmp.eq.s32.totalorder %s9, 0
    %p97 = por %p95, %p96
    %p98 = scmp.ne.s32.totalorder %s87, %s90
    %p99 = scmp.eq.s32.totalorder %s14, 1
    %p100 = por %p98, %p99
    %p101 = scmp.ne.s32.totalorder %s90, %s91
    %p102 = scmp.eq.s32.totalorder %s14, 0
    %p103 = por %p101, %p102
    %p104 = scmp.ne.s32.totalorder %s90, %s91
    %p105 = scmp.eq.s32.totalorder %s15, 1
    %p106 = por %p104, %p105
    %p108 = scmp.ne.s32.totalorder %s91, %s107
    %p109 = scmp.eq.s32.totalorder %s15, 0
    %p110 = por %p108, %p109
    %p111 = scmp.le.s32.totalorder 1, %s9
    %p112 = scmp.lt.s32.totalorder %s9, 3
    %p113 = pnand %p111, %p112
    %p114 = pneg %p113
    // Predicated region
    $region9: #{generator_forward.9} parent=5 // pred_check
      _
    $region10: #{generator_forward.9} parent=5 // pred_check_branch
      %116 = sbr.rel (%p113) target = $region12
    $region11: #{generator_forward.9} parent=5 // pred_region
      %s117 = ssub.s32 %s9, 1
      // Predicated region
      $region13: #{generator_forward.9} parent=11 // pred_check
        %p118 = pneg %p56
      $region14: #{generator_forward.9} parent=11 // pred_check_branch
        %120 = sbr.rel (%p118) target = $region16
      $region15: #{generator_forward.9} parent=11 // pred_region
        _
      $region16: #{generator_forward.9} parent=11 // pred_fallthru
        _
      // Predicated region
      $region17: #{generator_forward.9} parent=11 // pred_check
        %p121 = pneg %p77
      $region18: #{generator_forward.9} parent=11 // pred_check_branch
        %123 = sbr.rel (%p121) target = $region20
      $region19: #{generator_forward.9} parent=11 // pred_region
        _
      $region20: #{generator_forward.9} parent=11 // pred_fallthru
        _
    $region12: #{generator_forward.9} parent=5 // pred_fallthru
      _
    %p124 = scmp.lt.s32.totalorder %s9, 2
    // Predicated region
    $region21: #{generator_forward.9} parent=5 // pred_check
      %p125 = pneg %p124
    $region22: #{generator_forward.9} parent=5 // pred_check_branch
      %127 = sbr.rel (%p125) target = $region24
    $region23: #{generator_forward.9} parent=5 // pred_region
      // Predicated region
      $region25: #{generator_forward.9} parent=23 // pred_check
        %p128 = pneg %p29
      $region26: #{generator_forward.9} parent=23 // pred_check_branch
        %130 = sbr.rel (%p128) target = $region28
      $region27: #{generator_forward.9} parent=23 // pred_region
        %s131 = smul.u32 32, %s9
        %p132 = scmp.lt.s32.totalorder %s131, 63
        %s133 = scalar_select %p132, %s131, 63
        %s134 = smul.addr %s133, 16
        %s135 = smul.addr %s134, 8
        %s136 = scalar_lea.vmem %s0, %s135
        %s137 = smul.u32 32, %s9
      $region28: #{generator_forward.9} parent=23 // pred_fallthru
        _
    $region24: #{generator_forward.9} parent=5 // pred_fallthru
      _
    %p138 = scmp.le.s32.totalorder 1, %s9
    %p139 = scmp.lt.s32.totalorder %s9, 3
    %p140 = pnand %p138, %p139
    %p141 = pneg %p140
    // Predicated region
    $region29: #{generator_forward.9} parent=5 // pred_check
      _
    $region30: #{generator_forward.9} parent=5 // pred_check_branch
      %143 = sbr.rel (%p140) target = $region32
    $region31: #{generator_forward.9} parent=5 // pred_region
      %s144 = ssub.s32 %s9, 1
      %s145 = smul.u32 32, %s14
      %p146 = scmp.lt.s32.totalorder %s145, 63
      %s147 = scalar_select %p146, %s145, 63
      %s148 = smul.addr %s147, 16
      %s149 = smul.addr %s148, 8
      %s150 = scalar_lea.vmem %s0, %s149
      %p151 = pneg %p35
      %p152 = pneg %p32
      %p153 = pneg %p56
      %p154 = pneg %p53
      %p155 = pneg %p77
      %p156 = pneg %p74
      %p157 = pneg %p103
      %p158 = pneg %p100
      %s159 = smul.u32 32, %s14
      %p160 = scmp.lt.s32.totalorder %s159, 63
      %s161 = scalar_select %p160, %s159, 63
      %s162 = smul.addr %s161, 8
      %s163 = scalar_lea.vmem %s3, %s162
      %s164 = smul.u32 32, %s14
      %p165 = scmp.lt.s32.totalorder %s164, 63
      %s166 = scalar_select %p165, %s164, 63
      %s167 = smul.addr %s166, 16
      %s168 = smul.addr %s167, 8
      %s169 = scalar_lea.vmem %s0, %s168
      %s170 = smul.u32 32, %s14
      %s171 = smul.u32 32, %s14
      %p172 = scmp.lt.s32.totalorder %s171, 63
      %s173 = scalar_select %p172, %s171, 63
      %s174 = smul.addr %s173, 8
      %s175 = scalar_lea.vmem %s3, %s174
      %s176 = smul.u32 32, %s14
      %v177 = vld [vmem:[%s169] sm:$0xff]
      %v178 = vld [vmem:[%s169 + $0x8] sm:$0xff]
      %v179 = vld [vmem:[%s169 + $0x10] sm:$0xff]
      %v180 = vld [vmem:[%s169 + $0x18] sm:$0xff]
      %v181 = vld [vmem:[%s169 + $0x20] sm:$0xff]
      %v182 = vld [vmem:[%s169 + $0x28] sm:$0xff]
      %v183 = vld [vmem:[%s169 + $0x30] sm:$0xff]
      %v184 = vld [vmem:[%s169 + $0x38] sm:$0xff]
      %v185 = vld [vmem:[%s169 + $0x40] sm:$0xff]
      %v186 = vld [vmem:[%s169 + $0x48] sm:$0xff]
      %v187 = vld [vmem:[%s169 + $0x50] sm:$0xff]
      %v188 = vld [vmem:[%s169 + $0x58] sm:$0xff]
      %v189 = vld [vmem:[%s169 + $0x60] sm:$0xff]
      %v190 = vld [vmem:[%s169 + $0x68] sm:$0xff]
      %v191 = vld [vmem:[%s169 + $0x70] sm:$0xff]
      %v192 = vld [vmem:[%s169 + $0x78] sm:$0xff]
      %v193 = vld [vmem:[%s169 + $0x80] sm:$0xff]
      %v194 = vld [vmem:[%s169 + $0x88] sm:$0xff]
      %v195 = vld [vmem:[%s169 + $0x90] sm:$0xff]
      %v196 = vld [vmem:[%s169 + $0x98] sm:$0xff]
      %v197 = vld [vmem:[%s169 + $0xa0] sm:$0xff]
      %v198 = vld [vmem:[%s169 + $0xa8] sm:$0xff]
      %v199 = vld [vmem:[%s169 + $0xb0] sm:$0xff]
      %v200 = vld [vmem:[%s169 + $0xb8] sm:$0xff]
      %v201 = vld [vmem:[%s169 + $0xc0] sm:$0xff]
      %v202 = vld [vmem:[%s169 + $0xc8] sm:$0xff]
      %v203 = vld [vmem:[%s169 + $0xd0] sm:$0xff]
      %v204 = vld [vmem:[%s169 + $0xd8] sm:$0xff]
      %v205 = vld [vmem:[%s169 + $0xe0] sm:$0xff]
      %v206 = vld [vmem:[%s169 + $0xe8] sm:$0xff]
      %v207 = vld [vmem:[%s169 + $0xf0] sm:$0xff]
      %v208 = vld [vmem:[%s169 + $0xf8] sm:$0xff]
      %v209 = vld [vmem:[%s169 + $0x100] sm:$0xff]
      %v210 = vld [vmem:[%s169 + $0x108] sm:$0xff]
      %v211 = vld [vmem:[%s169 + $0x110] sm:$0xff]
      %v212 = vld [vmem:[%s169 + $0x118] sm:$0xff]
      %v213 = vld [vmem:[%s169 + $0x120] sm:$0xff]
      %v214 = vld [vmem:[%s169 + $0x128] sm:$0xff]
      %v215 = vld [vmem:[%s169 + $0x130] sm:$0xff]
      %v216 = vld [vmem:[%s169 + $0x138] sm:$0xff]
      %v217 = vld [vmem:[%s169 + $0x140] sm:$0xff]
      %v218 = vld [vmem:[%s169 + $0x148] sm:$0xff]
      %v219 = vld [vmem:[%s169 + $0x150] sm:$0xff]
      %v220 = vld [vmem:[%s169 + $0x158] sm:$0xff]
      %v221 = vld [vmem:[%s169 + $0x160] sm:$0xff]
      %v222 = vld [vmem:[%s169 + $0x168] sm:$0xff]
      %v223 = vld [vmem:[%s169 + $0x170] sm:$0xff]
      %v224 = vld [vmem:[%s169 + $0x178] sm:$0xff]
      %v225 = vld [vmem:[%s169 + $0x180] sm:$0xff]
      %v226 = vld [vmem:[%s169 + $0x188] sm:$0xff]
      %v227 = vld [vmem:[%s169 + $0x190] sm:$0xff]
      %v228 = vld [vmem:[%s169 + $0x198] sm:$0xff]
      %v229 = vld [vmem:[%s169 + $0x1a0] sm:$0xff]
      %v230 = vld [vmem:[%s169 + $0x1a8] sm:$0xff]
      %v231 = vld [vmem:[%s169 + $0x1b0] sm:$0xff]
      %v232 = vld [vmem:[%s169 + $0x1b8] sm:$0xff]
      %v233 = vld [vmem:[%s169 + $0x1c0] sm:$0xff]
      %v234 = vld [vmem:[%s169 + $0x1c8] sm:$0xff]
      %v235 = vld [vmem:[%s169 + $0x1d0] sm:$0xff]
      %v236 = vld [vmem:[%s169 + $0x1d8] sm:$0xff]
      %v237 = vld [vmem:[%s169 + $0x1e0] sm:$0xff]
      %v238 = vld [vmem:[%s169 + $0x1e8] sm:$0xff]
      %v239 = vld [vmem:[%s169 + $0x1f0] sm:$0xff]
      %v240 = vld [vmem:[%s169 + $0x1f8] sm:$0xff]
      %v241 = vld [vmem:[%s169 + $0x200] sm:$0xff]
      %v242 = vld [vmem:[%s169 + $0x208] sm:$0xff]
      %v243 = vld [vmem:[%s169 + $0x210] sm:$0xff]
      %v244 = vld [vmem:[%s169 + $0x218] sm:$0xff]
      %v245 = vld [vmem:[%s169 + $0x220] sm:$0xff]
      %v246 = vld [vmem:[%s169 + $0x228] sm:$0xff]
      %v247 = vld [vmem:[%s169 + $0x230] sm:$0xff]
      %v248 = vld [vmem:[%s169 + $0x238] sm:$0xff]
      %v249 = vld [vmem:[%s169 + $0x240] sm:$0xff]
      %v250 = vld [vmem:[%s169 + $0x248] sm:$0xff]
      %v251 = vld [vmem:[%s169 + $0x250] sm:$0xff]
      %v252 = vld [vmem:[%s169 + $0x258] sm:$0xff]
      %v253 = vld [vmem:[%s169 + $0x260] sm:$0xff]
      %v254 = vld [vmem:[%s169 + $0x268] sm:$0xff]
      %v255 = vld [vmem:[%s169 + $0x270] sm:$0xff]
      %v256 = vld [vmem:[%s169 + $0x278] sm:$0xff]
      %v257 = vld [vmem:[%s169 + $0x280] sm:$0xff]
      %v258 = vld [vmem:[%s169 + $0x288] sm:$0xff]
      %v259 = vld [vmem:[%s169 + $0x290] sm:$0xff]
      %v260 = vld [vmem:[%s169 + $0x298] sm:$0xff]
      %v261 = vld [vmem:[%s169 + $0x2a0] sm:$0xff]
      %v262 = vld [vmem:[%s169 + $0x2a8] sm:$0xff]
      %v263 = vld [vmem:[%s169 + $0x2b0] sm:$0xff]
      %v264 = vld [vmem:[%s169 + $0x2b8] sm:$0xff]
      %v265 = vld [vmem:[%s169 + $0x2c0] sm:$0xff]
      %v266 = vld [vmem:[%s169 + $0x2c8] sm:$0xff]
      %v267 = vld [vmem:[%s169 + $0x2d0] sm:$0xff]
      %v268 = vld [vmem:[%s169 + $0x2d8] sm:$0xff]
      %v269 = vld [vmem:[%s169 + $0x2e0] sm:$0xff]
      %v270 = vld [vmem:[%s169 + $0x2e8] sm:$0xff]
      %v271 = vld [vmem:[%s169 + $0x2f0] sm:$0xff]
      %v272 = vld [vmem:[%s169 + $0x2f8] sm:$0xff]
      %v273 = vld [vmem:[%s169 + $0x300] sm:$0xff]
      %v274 = vld [vmem:[%s169 + $0x308] sm:$0xff]
      %v275 = vld [vmem:[%s169 + $0x310] sm:$0xff]
      %v276 = vld [vmem:[%s169 + $0x318] sm:$0xff]
      %v277 = vld [vmem:[%s169 + $0x320] sm:$0xff]
      %v278 = vld [vmem:[%s169 + $0x328] sm:$0xff]
      %v279 = vld [vmem:[%s169 + $0x330] sm:$0xff]
      %v280 = vld [vmem:[%s169 + $0x338] sm:$0xff]
      %v281 = vld [vmem:[%s169 + $0x340] sm:$0xff]
      %v282 = vld [vmem:[%s169 + $0x348] sm:$0xff]
      %v283 = vld [vmem:[%s169 + $0x350] sm:$0xff]
      %v284 = vld [vmem:[%s169 + $0x358] sm:$0xff]
      %v285 = vld [vmem:[%s169 + $0x360] sm:$0xff]
      %v286 = vld [vmem:[%s169 + $0x368] sm:$0xff]
      %v287 = vld [vmem:[%s169 + $0x370] sm:$0xff]
      %v288 = vld [vmem:[%s169 + $0x378] sm:$0xff]
      %v289 = vld [vmem:[%s169 + $0x380] sm:$0xff]
      %v290 = vld [vmem:[%s169 + $0x388] sm:$0xff]
      %v291 = vld [vmem:[%s169 + $0x390] sm:$0xff]
      %v292 = vld [vmem:[%s169 + $0x398] sm:$0xff]
      %v293 = vld [vmem:[%s169 + $0x3a0] sm:$0xff]
      %v294 = vld [vmem:[%s169 + $0x3a8] sm:$0xff]
      %v295 = vld [vmem:[%s169 + $0x3b0] sm:$0xff]
      %v296 = vld [vmem:[%s169 + $0x3b8] sm:$0xff]
      %v297 = vld [vmem:[%s169 + $0x3c0] sm:$0xff]
      %v298 = vld [vmem:[%s169 + $0x3c8] sm:$0xff]
      %v299 = vld [vmem:[%s169 + $0x3d0] sm:$0xff]
      %v300 = vld [vmem:[%s169 + $0x3d8] sm:$0xff]
      %v301 = vld [vmem:[%s169 + $0x3e0] sm:$0xff]
      %v302 = vld [vmem:[%s169 + $0x3e8] sm:$0xff]
      %v303 = vld [vmem:[%s169 + $0x3f0] sm:$0xff]
      %v304 = vld [vmem:[%s169 + $0x3f8] sm:$0xff]
      %v305 = vld [vmem:[%s169 + $0x400] sm:$0xff]
      %v306 = vld [vmem:[%s169 + $0x408] sm:$0xff]
      %v307 = vld [vmem:[%s169 + $0x410] sm:$0xff]
      %v308 = vld [vmem:[%s169 + $0x418] sm:$0xff]
      %v309 = vld [vmem:[%s169 + $0x420] sm:$0xff]
      %v310 = vld [vmem:[%s169 + $0x428] sm:$0xff]
      %v311 = vld [vmem:[%s169 + $0x430] sm:$0xff]
      %v312 = vld [vmem:[%s169 + $0x438] sm:$0xff]
      %v313 = vld [vmem:[%s169 + $0x440] sm:$0xff]
      %v314 = vld [vmem:[%s169 + $0x448] sm:$0xff]
      %v315 = vld [vmem:[%s169 + $0x450] sm:$0xff]
      %v316 = vld [vmem:[%s169 + $0x458] sm:$0xff]
      %v317 = vld [vmem:[%s169 + $0x460] sm:$0xff]
      %v318 = vld [vmem:[%s169 + $0x468] sm:$0xff]
      %v319 = vld [vmem:[%s169 + $0x470] sm:$0xff]
      %v320 = vld [vmem:[%s169 + $0x478] sm:$0xff]
      %v321 = vld [vmem:[%s169 + $0x480] sm:$0xff]
      %v322 = vld [vmem:[%s169 + $0x488] sm:$0xff]
      %v323 = vld [vmem:[%s169 + $0x490] sm:$0xff]
      %v324 = vld [vmem:[%s169 + $0x498] sm:$0xff]
      %v325 = vld [vmem:[%s169 + $0x4a0] sm:$0xff]
      %v326 = vld [vmem:[%s169 + $0x4a8] sm:$0xff]
      %v327 = vld [vmem:[%s169 + $0x4b0] sm:$0xff]
      %v328 = vld [vmem:[%s169 + $0x4b8] sm:$0xff]
      %v329 = vld [vmem:[%s169 + $0x4c0] sm:$0xff]
      %v330 = vld [vmem:[%s169 + $0x4c8] sm:$0xff]
      %v331 = vld [vmem:[%s169 + $0x4d0] sm:$0xff]
      %v332 = vld [vmem:[%s169 + $0x4d8] sm:$0xff]
      %v333 = vld [vmem:[%s169 + $0x4e0] sm:$0xff]
      %v334 = vld [vmem:[%s169 + $0x4e8] sm:$0xff]
      %v335 = vld [vmem:[%s169 + $0x4f0] sm:$0xff]
      %v336 = vld [vmem:[%s169 + $0x4f8] sm:$0xff]
      %v337 = vld [vmem:[%s169 + $0x500] sm:$0xff]
      %v338 = vld [vmem:[%s169 + $0x508] sm:$0xff]
      %v339 = vld [vmem:[%s169 + $0x510] sm:$0xff]
      %v340 = vld [vmem:[%s169 + $0x518] sm:$0xff]
      %v341 = vld [vmem:[%s169 + $0x520] sm:$0xff]
      %v342 = vld [vmem:[%s169 + $0x528] sm:$0xff]
      %v343 = vld [vmem:[%s169 + $0x530] sm:$0xff]
      %v344 = vld [vmem:[%s169 + $0x538] sm:$0xff]
      %v345 = vld [vmem:[%s169 + $0x540] sm:$0xff]
      %v346 = vld [vmem:[%s169 + $0x548] sm:$0xff]
      %v347 = vld [vmem:[%s169 + $0x550] sm:$0xff]
      %v348 = vld [vmem:[%s169 + $0x558] sm:$0xff]
      %v349 = vld [vmem:[%s169 + $0x560] sm:$0xff]
      %v350 = vld [vmem:[%s169 + $0x568] sm:$0xff]
      %v351 = vld [vmem:[%s169 + $0x570] sm:$0xff]
      %v352 = vld [vmem:[%s169 + $0x578] sm:$0xff]
      %v353 = vld [vmem:[%s169 + $0x580] sm:$0xff]
      %v354 = vld [vmem:[%s169 + $0x588] sm:$0xff]
      %v355 = vld [vmem:[%s169 + $0x590] sm:$0xff]
      %v356 = vld [vmem:[%s169 + $0x598] sm:$0xff]
      %v357 = vld [vmem:[%s169 + $0x5a0] sm:$0xff]
      %v358 = vld [vmem:[%s169 + $0x5a8] sm:$0xff]
      %v359 = vld [vmem:[%s169 + $0x5b0] sm:$0xff]
      %v360 = vld [vmem:[%s169 + $0x5b8] sm:$0xff]
      %v361 = vld [vmem:[%s169 + $0x5c0] sm:$0xff]
      %v362 = vld [vmem:[%s169 + $0x5c8] sm:$0xff]
      %v363 = vld [vmem:[%s169 + $0x5d0] sm:$0xff]
      %v364 = vld [vmem:[%s169 + $0x5d8] sm:$0xff]
      %v365 = vld [vmem:[%s169 + $0x5e0] sm:$0xff]
      %v366 = vld [vmem:[%s169 + $0x5e8] sm:$0xff]
      %v367 = vld [vmem:[%s169 + $0x5f0] sm:$0xff]
      %v368 = vld [vmem:[%s169 + $0x5f8] sm:$0xff]
      %v369 = vld [vmem:[%s169 + $0x600] sm:$0xff]
      %v370 = vld [vmem:[%s169 + $0x608] sm:$0xff]
      %v371 = vld [vmem:[%s169 + $0x610] sm:$0xff]
      %v372 = vld [vmem:[%s169 + $0x618] sm:$0xff]
      %v373 = vld [vmem:[%s169 + $0x620] sm:$0xff]
      %v374 = vld [vmem:[%s169 + $0x628] sm:$0xff]
      %v375 = vld [vmem:[%s169 + $0x630] sm:$0xff]
      %v376 = vld [vmem:[%s169 + $0x638] sm:$0xff]
      %v377 = vld [vmem:[%s169 + $0x640] sm:$0xff]
      %v378 = vld [vmem:[%s169 + $0x648] sm:$0xff]
      %v379 = vld [vmem:[%s169 + $0x650] sm:$0xff]
      %v380 = vld [vmem:[%s169 + $0x658] sm:$0xff]
      %v381 = vld [vmem:[%s169 + $0x660] sm:$0xff]
      %v382 = vld [vmem:[%s169 + $0x668] sm:$0xff]
      %v383 = vld [vmem:[%s169 + $0x670] sm:$0xff]
      %v384 = vld [vmem:[%s169 + $0x678] sm:$0xff]
      %v385 = vld [vmem:[%s169 + $0x680] sm:$0xff]
      %v386 = vld [vmem:[%s169 + $0x688] sm:$0xff]
      %v387 = vld [vmem:[%s169 + $0x690] sm:$0xff]
      %v388 = vld [vmem:[%s169 + $0x698] sm:$0xff]
      %v389 = vld [vmem:[%s169 + $0x6a0] sm:$0xff]
      %v390 = vld [vmem:[%s169 + $0x6a8] sm:$0xff]
      %v391 = vld [vmem:[%s169 + $0x6b0] sm:$0xff]
      %v392 = vld [vmem:[%s169 + $0x6b8] sm:$0xff]
      %v393 = vld [vmem:[%s169 + $0x6c0] sm:$0xff]
      %v394 = vld [vmem:[%s169 + $0x6c8] sm:$0xff]
      %v395 = vld [vmem:[%s169 + $0x6d0] sm:$0xff]
      %v396 = vld [vmem:[%s169 + $0x6d8] sm:$0xff]
      %v397 = vld [vmem:[%s169 + $0x6e0] sm:$0xff]
      %v398 = vld [vmem:[%s169 + $0x6e8] sm:$0xff]
      %v399 = vld [vmem:[%s169 + $0x6f0] sm:$0xff]
      %v400 = vld [vmem:[%s169 + $0x6f8] sm:$0xff]
      %v401 = vld [vmem:[%s169 + $0x700] sm:$0xff]
      %v402 = vld [vmem:[%s169 + $0x708] sm:$0xff]
      %v403 = vld [vmem:[%s169 + $0x710] sm:$0xff]
      %v404 = vld [vmem:[%s169 + $0x718] sm:$0xff]
      %v405 = vld [vmem:[%s169 + $0x720] sm:$0xff]
      %v406 = vld [vmem:[%s169 + $0x728] sm:$0xff]
      %v407 = vld [vmem:[%s169 + $0x730] sm:$0xff]
      %v408 = vld [vmem:[%s169 + $0x738] sm:$0xff]
      %v409 = vld [vmem:[%s169 + $0x740] sm:$0xff]
      %v410 = vld [vmem:[%s169 + $0x748] sm:$0xff]
      %v411 = vld [vmem:[%s169 + $0x750] sm:$0xff]
      %v412 = vld [vmem:[%s169 + $0x758] sm:$0xff]
      %v413 = vld [vmem:[%s169 + $0x760] sm:$0xff]
      %v414 = vld [vmem:[%s169 + $0x768] sm:$0xff]
      %v415 = vld [vmem:[%s169 + $0x770] sm:$0xff]
      %v416 = vld [vmem:[%s169 + $0x778] sm:$0xff]
      %v417 = vld [vmem:[%s169 + $0x780] sm:$0xff]
      %v418 = vld [vmem:[%s169 + $0x788] sm:$0xff]
      %v419 = vld [vmem:[%s169 + $0x790] sm:$0xff]
      %v420 = vld [vmem:[%s169 + $0x798] sm:$0xff]
      %v421 = vld [vmem:[%s169 + $0x7a0] sm:$0xff]
      %v422 = vld [vmem:[%s169 + $0x7a8] sm:$0xff]
      %v423 = vld [vmem:[%s169 + $0x7b0] sm:$0xff]
      %v424 = vld [vmem:[%s169 + $0x7b8] sm:$0xff]
      %v425 = vld [vmem:[%s169 + $0x7c0] sm:$0xff]
      %v426 = vld [vmem:[%s169 + $0x7c8] sm:$0xff]
      %v427 = vld [vmem:[%s169 + $0x7d0] sm:$0xff]
      %v428 = vld [vmem:[%s169 + $0x7d8] sm:$0xff]
      %v429 = vld [vmem:[%s169 + $0x7e0] sm:$0xff]
      %v430 = vld [vmem:[%s169 + $0x7e8] sm:$0xff]
      %v431 = vld [vmem:[%s169 + $0x7f0] sm:$0xff]
      %v432 = vld [vmem:[%s169 + $0x7f8] sm:$0xff]
      %v433 = vld [vmem:[%s169 + $0x800] sm:$0xff]
      %v434 = vld [vmem:[%s169 + $0x808] sm:$0xff]
      %v435 = vld [vmem:[%s169 + $0x810] sm:$0xff]
      %v436 = vld [vmem:[%s169 + $0x818] sm:$0xff]
      %v437 = vld [vmem:[%s169 + $0x820] sm:$0xff]
      %v438 = vld [vmem:[%s169 + $0x828] sm:$0xff]
      %v439 = vld [vmem:[%s169 + $0x830] sm:$0xff]
      %v440 = vld [vmem:[%s169 + $0x838] sm:$0xff]
      %v441 = vld [vmem:[%s169 + $0x840] sm:$0xff]
      %v442 = vld [vmem:[%s169 + $0x848] sm:$0xff]
      %v443 = vld [vmem:[%s169 + $0x850] sm:$0xff]
      %v444 = vld [vmem:[%s169 + $0x858] sm:$0xff]
      %v445 = vld [vmem:[%s169 + $0x860] sm:$0xff]
      %v446 = vld [vmem:[%s169 + $0x868] sm:$0xff]
      %v447 = vld [vmem:[%s169 + $0x870] sm:$0xff]
      %v448 = vld [vmem:[%s169 + $0x878] sm:$0xff]
      %v449 = vld [vmem:[%s169 + $0x880] sm:$0xff]
      %v450 = vld [vmem:[%s169 + $0x888] sm:$0xff]
      %v451 = vld [vmem:[%s169 + $0x890] sm:$0xff]
      %v452 = vld [vmem:[%s169 + $0x898] sm:$0xff]
      %v453 = vld [vmem:[%s169 + $0x8a0] sm:$0xff]
      %v454 = vld [vmem:[%s169 + $0x8a8] sm:$0xff]
      %v455 = vld [vmem:[%s169 + $0x8b0] sm:$0xff]
      %v456 = vld [vmem:[%s169 + $0x8b8] sm:$0xff]
      %v457 = vld [vmem:[%s169 + $0x8c0] sm:$0xff]
      %v458 = vld [vmem:[%s169 + $0x8c8] sm:$0xff]
      %v459 = vld [vmem:[%s169 + $0x8d0] sm:$0xff]
      %v460 = vld [vmem:[%s169 + $0x8d8] sm:$0xff]
      %v461 = vld [vmem:[%s169 + $0x8e0] sm:$0xff]
      %v462 = vld [vmem:[%s169 + $0x8e8] sm:$0xff]
      %v463 = vld [vmem:[%s169 + $0x8f0] sm:$0xff]
      %v464 = vld [vmem:[%s169 + $0x8f8] sm:$0xff]
      %v465 = vld [vmem:[%s169 + $0x900] sm:$0xff]
      %v466 = vld [vmem:[%s169 + $0x908] sm:$0xff]
      %v467 = vld [vmem:[%s169 + $0x910] sm:$0xff]
      %v468 = vld [vmem:[%s169 + $0x918] sm:$0xff]
      %v469 = vld [vmem:[%s169 + $0x920] sm:$0xff]
      %v470 = vld [vmem:[%s169 + $0x928] sm:$0xff]
      %v471 = vld [vmem:[%s169 + $0x930] sm:$0xff]
      %v472 = vld [vmem:[%s169 + $0x938] sm:$0xff]
      %v473 = vld [vmem:[%s169 + $0x940] sm:$0xff]
      %v474 = vld [vmem:[%s169 + $0x948] sm:$0xff]
      %v475 = vld [vmem:[%s169 + $0x950] sm:$0xff]
      %v476 = vld [vmem:[%s169 + $0x958] sm:$0xff]
      %v477 = vld [vmem:[%s169 + $0x960] sm:$0xff]
      %v478 = vld [vmem:[%s169 + $0x968] sm:$0xff]
      %v479 = vld [vmem:[%s169 + $0x970] sm:$0xff]
      %v480 = vld [vmem:[%s169 + $0x978] sm:$0xff]
      %v481 = vld [vmem:[%s169 + $0x980] sm:$0xff]
      %v482 = vld [vmem:[%s169 + $0x988] sm:$0xff]
      %v483 = vld [vmem:[%s169 + $0x990] sm:$0xff]
      %v484 = vld [vmem:[%s169 + $0x998] sm:$0xff]
      %v485 = vld [vmem:[%s169 + $0x9a0] sm:$0xff]
      %v486 = vld [vmem:[%s169 + $0x9a8] sm:$0xff]
      %v487 = vld [vmem:[%s169 + $0x9b0] sm:$0xff]
      %v488 = vld [vmem:[%s169 + $0x9b8] sm:$0xff]
      %v489 = vld [vmem:[%s169 + $0x9c0] sm:$0xff]
      %v490 = vld [vmem:[%s169 + $0x9c8] sm:$0xff]
      %v491 = vld [vmem:[%s169 + $0x9d0] sm:$0xff]
      %v492 = vld [vmem:[%s169 + $0x9d8] sm:$0xff]
      %v493 = vld [vmem:[%s169 + $0x9e0] sm:$0xff]
      %v494 = vld [vmem:[%s169 + $0x9e8] sm:$0xff]
      %v495 = vld [vmem:[%s169 + $0x9f0] sm:$0xff]
      %v496 = vld [vmem:[%s169 + $0x9f8] sm:$0xff]
      %v497 = vld [vmem:[%s169 + $0xa00] sm:$0xff]
      %v498 = vld [vmem:[%s169 + $0xa08] sm:$0xff]
      %v499 = vld [vmem:[%s169 + $0xa10] sm:$0xff]
      %v500 = vld [vmem:[%s169 + $0xa18] sm:$0xff]
      %v501 = vld [vmem:[%s169 + $0xa20] sm:$0xff]
      %v502 = vld [vmem:[%s169 + $0xa28] sm:$0xff]
      %v503 = vld [vmem:[%s169 + $0xa30] sm:$0xff]
      %v504 = vld [vmem:[%s169 + $0xa38] sm:$0xff]
      %v505 = vld [vmem:[%s169 + $0xa40] sm:$0xff]
      %v506 = vld [vmem:[%s169 + $0xa48] sm:$0xff]
      %v507 = vld [vmem:[%s169 + $0xa50] sm:$0xff]
      %v508 = vld [vmem:[%s169 + $0xa58] sm:$0xff]
      %v509 = vld [vmem:[%s169 + $0xa60] sm:$0xff]
      %v510 = vld [vmem:[%s169 + $0xa68] sm:$0xff]
      %v511 = vld [vmem:[%s169 + $0xa70] sm:$0xff]
      %v512 = vld [vmem:[%s169 + $0xa78] sm:$0xff]
      %v513 = vld [vmem:[%s169 + $0xa80] sm:$0xff]
      %v514 = vld [vmem:[%s169 + $0xa88] sm:$0xff]
      %v515 = vld [vmem:[%s169 + $0xa90] sm:$0xff]
      %v516 = vld [vmem:[%s169 + $0xa98] sm:$0xff]
      %v517 = vld [vmem:[%s169 + $0xaa0] sm:$0xff]
      %v518 = vld [vmem:[%s169 + $0xaa8] sm:$0xff]
      %v519 = vld [vmem:[%s169 + $0xab0] sm:$0xff]
      %v520 = vld [vmem:[%s169 + $0xab8] sm:$0xff]
      %v521 = vld [vmem:[%s169 + $0xac0] sm:$0xff]
      %v522 = vld [vmem:[%s169 + $0xac8] sm:$0xff]
      %v523 = vld [vmem:[%s169 + $0xad0] sm:$0xff]
      %v524 = vld [vmem:[%s169 + $0xad8] sm:$0xff]
      %v525 = vld [vmem:[%s169 + $0xae0] sm:$0xff]
      %v526 = vld [vmem:[%s169 + $0xae8] sm:$0xff]
      %v527 = vld [vmem:[%s169 + $0xaf0] sm:$0xff]
      %v528 = vld [vmem:[%s169 + $0xaf8] sm:$0xff]
      %v529 = vld [vmem:[%s169 + $0xb00] sm:$0xff]
      %v530 = vld [vmem:[%s169 + $0xb08] sm:$0xff]
      %v531 = vld [vmem:[%s169 + $0xb10] sm:$0xff]
      %v532 = vld [vmem:[%s169 + $0xb18] sm:$0xff]
      %v533 = vld [vmem:[%s169 + $0xb20] sm:$0xff]
      %v534 = vld [vmem:[%s169 + $0xb28] sm:$0xff]
      %v535 = vld [vmem:[%s169 + $0xb30] sm:$0xff]
      %v536 = vld [vmem:[%s169 + $0xb38] sm:$0xff]
      %v537 = vld [vmem:[%s169 + $0xb40] sm:$0xff]
      %v538 = vld [vmem:[%s169 + $0xb48] sm:$0xff]
      %v539 = vld [vmem:[%s169 + $0xb50] sm:$0xff]
      %v540 = vld [vmem:[%s169 + $0xb58] sm:$0xff]
      %v541 = vld [vmem:[%s169 + $0xb60] sm:$0xff]
      %v542 = vld [vmem:[%s169 + $0xb68] sm:$0xff]
      %v543 = vld [vmem:[%s169 + $0xb70] sm:$0xff]
      %v544 = vld [vmem:[%s169 + $0xb78] sm:$0xff]
      %v545 = vld [vmem:[%s169 + $0xb80] sm:$0xff]
      %v546 = vld [vmem:[%s169 + $0xb88] sm:$0xff]
      %v547 = vld [vmem:[%s169 + $0xb90] sm:$0xff]
      %v548 = vld [vmem:[%s169 + $0xb98] sm:$0xff]
      %v549 = vld [vmem:[%s169 + $0xba0] sm:$0xff]
      %v550 = vld [vmem:[%s169 + $0xba8] sm:$0xff]
      %v551 = vld [vmem:[%s169 + $0xbb0] sm:$0xff]
      %v552 = vld [vmem:[%s169 + $0xbb8] sm:$0xff]
      %v553 = vld [vmem:[%s169 + $0xbc0] sm:$0xff]
      %v554 = vld [vmem:[%s169 + $0xbc8] sm:$0xff]
      %v555 = vld [vmem:[%s169 + $0xbd0] sm:$0xff]
      %v556 = vld [vmem:[%s169 + $0xbd8] sm:$0xff]
      %v557 = vld [vmem:[%s169 + $0xbe0] sm:$0xff]
      %v558 = vld [vmem:[%s169 + $0xbe8] sm:$0xff]
      %v559 = vld [vmem:[%s169 + $0xbf0] sm:$0xff]
      %v560 = vld [vmem:[%s169 + $0xbf8] sm:$0xff]
      %v561 = vld [vmem:[%s169 + $0xc00] sm:$0xff]
      %v562 = vld [vmem:[%s169 + $0xc08] sm:$0xff]
      %v563 = vld [vmem:[%s169 + $0xc10] sm:$0xff]
      %v564 = vld [vmem:[%s169 + $0xc18] sm:$0xff]
      %v565 = vld [vmem:[%s169 + $0xc20] sm:$0xff]
      %v566 = vld [vmem:[%s169 + $0xc28] sm:$0xff]
      %v567 = vld [vmem:[%s169 + $0xc30] sm:$0xff]
      %v568 = vld [vmem:[%s169 + $0xc38] sm:$0xff]
      %v569 = vld [vmem:[%s169 + $0xc40] sm:$0xff]
      %v570 = vld [vmem:[%s169 + $0xc48] sm:$0xff]
      %v571 = vld [vmem:[%s169 + $0xc50] sm:$0xff]
      %v572 = vld [vmem:[%s169 + $0xc58] sm:$0xff]
      %v573 = vld [vmem:[%s169 + $0xc60] sm:$0xff]
      %v574 = vld [vmem:[%s169 + $0xc68] sm:$0xff]
      %v575 = vld [vmem:[%s169 + $0xc70] sm:$0xff]
      %v576 = vld [vmem:[%s169 + $0xc78] sm:$0xff]
      %v577 = vld [vmem:[%s169 + $0xc80] sm:$0xff]
      %v578 = vld [vmem:[%s169 + $0xc88] sm:$0xff]
      %v579 = vld [vmem:[%s169 + $0xc90] sm:$0xff]
      %v580 = vld [vmem:[%s169 + $0xc98] sm:$0xff]
      %v581 = vld [vmem:[%s169 + $0xca0] sm:$0xff]
      %v582 = vld [vmem:[%s169 + $0xca8] sm:$0xff]
      %v583 = vld [vmem:[%s169 + $0xcb0] sm:$0xff]
      %v584 = vld [vmem:[%s169 + $0xcb8] sm:$0xff]
      %v585 = vld [vmem:[%s169 + $0xcc0] sm:$0xff]
      %v586 = vld [vmem:[%s169 + $0xcc8] sm:$0xff]
      %v587 = vld [vmem:[%s169 + $0xcd0] sm:$0xff]
      %v588 = vld [vmem:[%s169 + $0xcd8] sm:$0xff]
      %v589 = vld [vmem:[%s169 + $0xce0] sm:$0xff]
      %v590 = vld [vmem:[%s169 + $0xce8] sm:$0xff]
      %v591 = vld [vmem:[%s169 + $0xcf0] sm:$0xff]
      %v592 = vld [vmem:[%s169 + $0xcf8] sm:$0xff]
      %v593 = vld [vmem:[%s169 + $0xd00] sm:$0xff]
      %v594 = vld [vmem:[%s169 + $0xd08] sm:$0xff]
      %v595 = vld [vmem:[%s169 + $0xd10] sm:$0xff]
      %v596 = vld [vmem:[%s169 + $0xd18] sm:$0xff]
      %v597 = vld [vmem:[%s169 + $0xd20] sm:$0xff]
      %v598 = vld [vmem:[%s169 + $0xd28] sm:$0xff]
      %v599 = vld [vmem:[%s169 + $0xd30] sm:$0xff]
      %v600 = vld [vmem:[%s169 + $0xd38] sm:$0xff]
      %v601 = vld [vmem:[%s169 + $0xd40] sm:$0xff]
      %v602 = vld [vmem:[%s169 + $0xd48] sm:$0xff]
      %v603 = vld [vmem:[%s169 + $0xd50] sm:$0xff]
      %v604 = vld [vmem:[%s169 + $0xd58] sm:$0xff]
      %v605 = vld [vmem:[%s169 + $0xd60] sm:$0xff]
      %v606 = vld [vmem:[%s169 + $0xd68] sm:$0xff]
      %v607 = vld [vmem:[%s169 + $0xd70] sm:$0xff]
      %v608 = vld [vmem:[%s169 + $0xd78] sm:$0xff]
      %v609 = vld [vmem:[%s169 + $0xd80] sm:$0xff]
      %v610 = vld [vmem:[%s169 + $0xd88] sm:$0xff]
      %v611 = vld [vmem:[%s169 + $0xd90] sm:$0xff]
      %v612 = vld [vmem:[%s169 + $0xd98] sm:$0xff]
      %v613 = vld [vmem:[%s169 + $0xda0] sm:$0xff]
      %v614 = vld [vmem:[%s169 + $0xda8] sm:$0xff]
      %v615 = vld [vmem:[%s169 + $0xdb0] sm:$0xff]
      %v616 = vld [vmem:[%s169 + $0xdb8] sm:$0xff]
      %v617 = vld [vmem:[%s169 + $0xdc0] sm:$0xff]
      %v618 = vld [vmem:[%s169 + $0xdc8] sm:$0xff]
      %v619 = vld [vmem:[%s169 + $0xdd0] sm:$0xff]
      %v620 = vld [vmem:[%s169 + $0xdd8] sm:$0xff]
      %v621 = vld [vmem:[%s169 + $0xde0] sm:$0xff]
      %v622 = vld [vmem:[%s169 + $0xde8] sm:$0xff]
      %v623 = vld [vmem:[%s169 + $0xdf0] sm:$0xff]
      %v624 = vld [vmem:[%s169 + $0xdf8] sm:$0xff]
      %v625 = vld [vmem:[%s169 + $0xe00] sm:$0xff]
      %v626 = vld [vmem:[%s169 + $0xe08] sm:$0xff]
      %v627 = vld [vmem:[%s169 + $0xe10] sm:$0xff]
      %v628 = vld [vmem:[%s169 + $0xe18] sm:$0xff]
      %v629 = vld [vmem:[%s169 + $0xe20] sm:$0xff]
      %v630 = vld [vmem:[%s169 + $0xe28] sm:$0xff]
      %v631 = vld [vmem:[%s169 + $0xe30] sm:$0xff]
      %v632 = vld [vmem:[%s169 + $0xe38] sm:$0xff]
      %v633 = vld [vmem:[%s169 + $0xe40] sm:$0xff]
      %v634 = vld [vmem:[%s169 + $0xe48] sm:$0xff]
      %v635 = vld [vmem:[%s169 + $0xe50] sm:$0xff]
      %v636 = vld [vmem:[%s169 + $0xe58] sm:$0xff]
      %v637 = vld [vmem:[%s169 + $0xe60] sm:$0xff]
      %v638 = vld [vmem:[%s169 + $0xe68] sm:$0xff]
      %v639 = vld [vmem:[%s169 + $0xe70] sm:$0xff]
      %v640 = vld [vmem:[%s169 + $0xe78] sm:$0xff]
      %v641 = vld [vmem:[%s169 + $0xe80] sm:$0xff]
      %v642 = vld [vmem:[%s169 + $0xe88] sm:$0xff]
      %v643 = vld [vmem:[%s169 + $0xe90] sm:$0xff]
      %v644 = vld [vmem:[%s169 + $0xe98] sm:$0xff]
      %v645 = vld [vmem:[%s169 + $0xea0] sm:$0xff]
      %v646 = vld [vmem:[%s169 + $0xea8] sm:$0xff]
      %v647 = vld [vmem:[%s169 + $0xeb0] sm:$0xff]
      %v648 = vld [vmem:[%s169 + $0xeb8] sm:$0xff]
      %v649 = vld [vmem:[%s169 + $0xec0] sm:$0xff]
      %v650 = vld [vmem:[%s169 + $0xec8] sm:$0xff]
      %v651 = vld [vmem:[%s169 + $0xed0] sm:$0xff]
      %v652 = vld [vmem:[%s169 + $0xed8] sm:$0xff]
      %v653 = vld [vmem:[%s169 + $0xee0] sm:$0xff]
      %v654 = vld [vmem:[%s169 + $0xee8] sm:$0xff]
      %v655 = vld [vmem:[%s169 + $0xef0] sm:$0xff]
      %v656 = vld [vmem:[%s169 + $0xef8] sm:$0xff]
      %v657 = vld [vmem:[%s169 + $0xf00] sm:$0xff]
      %v658 = vld [vmem:[%s169 + $0xf08] sm:$0xff]
      %v659 = vld [vmem:[%s169 + $0xf10] sm:$0xff]
      %v660 = vld [vmem:[%s169 + $0xf18] sm:$0xff]
      %v661 = vld [vmem:[%s169 + $0xf20] sm:$0xff]
      %v662 = vld [vmem:[%s169 + $0xf28] sm:$0xff]
      %v663 = vld [vmem:[%s169 + $0xf30] sm:$0xff]
      %v664 = vld [vmem:[%s169 + $0xf38] sm:$0xff]
      %v665 = vld [vmem:[%s169 + $0xf40] sm:$0xff]
      %v666 = vld [vmem:[%s169 + $0xf48] sm:$0xff]
      %v667 = vld [vmem:[%s169 + $0xf50] sm:$0xff]
      %v668 = vld [vmem:[%s169 + $0xf58] sm:$0xff]
      %v669 = vld [vmem:[%s169 + $0xf60] sm:$0xff]
      %v670 = vld [vmem:[%s169 + $0xf68] sm:$0xff]
      %v671 = vld [vmem:[%s169 + $0xf70] sm:$0xff]
      %v672 = vld [vmem:[%s169 + $0xf78] sm:$0xff]
      %v673 = vld [vmem:[%s169 + $0xf80] sm:$0xff]
      %v674 = vld [vmem:[%s169 + $0xf88] sm:$0xff]
      %v675 = vld [vmem:[%s169 + $0xf90] sm:$0xff]
      %v676 = vld [vmem:[%s169 + $0xf98] sm:$0xff]
      %v677 = vld [vmem:[%s169 + $0xfa0] sm:$0xff]
      %v678 = vld [vmem:[%s169 + $0xfa8] sm:$0xff]
      %v679 = vld [vmem:[%s169 + $0xfb0] sm:$0xff]
      %v680 = vld [vmem:[%s169 + $0xfb8] sm:$0xff]
      %v681 = vld [vmem:[%s169 + $0xfc0] sm:$0xff]
      %v682 = vld [vmem:[%s169 + $0xfc8] sm:$0xff]
      %v683 = vld [vmem:[%s169 + $0xfd0] sm:$0xff]
      %v684 = vld [vmem:[%s169 + $0xfd8] sm:$0xff]
      %v685 = vld [vmem:[%s169 + $0xfe0] sm:$0xff]
      %v686 = vld [vmem:[%s169 + $0xfe8] sm:$0xff]
      %v687 = vld [vmem:[%s169 + $0xff0] sm:$0xff]
      %v688 = vld [vmem:[%s169 + $0xff8] sm:$0xff]
      %v689 = vld [vmem:[%s1] sm:$0xff]
      %v690 = vld [vmem:[%s1 + $0x8] sm:$0xff]
      %v691 = vld [vmem:[%s1 + $0x10] sm:$0xff]
      %v692 = vld [vmem:[%s1 + $0x18] sm:$0xff]
      %v693 = vld [vmem:[%s1 + $0x20] sm:$0xff]
      %v694 = vld [vmem:[%s1 + $0x28] sm:$0xff]
      %v695 = vld [vmem:[%s1 + $0x30] sm:$0xff]
      %v696 = vld [vmem:[%s1 + $0x38] sm:$0xff]
      %v697 = vld [vmem:[%s1 + $0x40] sm:$0xff]
      %v698 = vld [vmem:[%s1 + $0x48] sm:$0xff]
      %v699 = vld [vmem:[%s1 + $0x50] sm:$0xff]
      %v700 = vld [vmem:[%s1 + $0x58] sm:$0xff]
      %v701 = vld [vmem:[%s1 + $0x60] sm:$0xff]
      %v702 = vld [vmem:[%s1 + $0x68] sm:$0xff]
      %v703 = vld [vmem:[%s1 + $0x70] sm:$0xff]
      %v704 = vld [vmem:[%s1 + $0x78] sm:$0xff]
      %v705 = vld [vmem:[%s1 + $0x80] sm:$0xff]
      %v706 = vld [vmem:[%s1 + $0x88] sm:$0xff]
      %v707 = vld [vmem:[%s1 + $0x90] sm:$0xff]
      %v708 = vld [vmem:[%s1 + $0x98] sm:$0xff]
      %v709 = vld [vmem:[%s1 + $0xa0] sm:$0xff]
      %v710 = vld [vmem:[%s1 + $0xa8] sm:$0xff]
      %v711 = vld [vmem:[%s1 + $0xb0] sm:$0xff]
      %v712 = vld [vmem:[%s1 + $0xb8] sm:$0xff]
      %v713 = vld [vmem:[%s1 + $0xc0] sm:$0xff]
      %v714 = vld [vmem:[%s1 + $0xc8] sm:$0xff]
      %v715 = vld [vmem:[%s1 + $0xd0] sm:$0xff]
      %v716 = vld [vmem:[%s1 + $0xd8] sm:$0xff]
      %v717 = vld [vmem:[%s1 + $0xe0] sm:$0xff]
      %v718 = vld [vmem:[%s1 + $0xe8] sm:$0xff]
      %v719 = vld [vmem:[%s1 + $0xf0] sm:$0xff]
      %v720 = vld [vmem:[%s1 + $0xf8] sm:$0xff]
      %v721 = vld [vmem:[%s1 + $0x100] sm:$0xff]
      %v722 = vld [vmem:[%s1 + $0x108] sm:$0xff]
      %v723 = vld [vmem:[%s1 + $0x110] sm:$0xff]
      %v724 = vld [vmem:[%s1 + $0x118] sm:$0xff]
      %v725 = vld [vmem:[%s1 + $0x120] sm:$0xff]
      %v726 = vld [vmem:[%s1 + $0x128] sm:$0xff]
      %v727 = vld [vmem:[%s1 + $0x130] sm:$0xff]
      %v728 = vld [vmem:[%s1 + $0x138] sm:$0xff]
      %v729 = vld [vmem:[%s1 + $0x140] sm:$0xff]
      %v730 = vld [vmem:[%s1 + $0x148] sm:$0xff]
      %v731 = vld [vmem:[%s1 + $0x150] sm:$0xff]
      %v732 = vld [vmem:[%s1 + $0x158] sm:$0xff]
      %v733 = vld [vmem:[%s1 + $0x160] sm:$0xff]
      %v734 = vld [vmem:[%s1 + $0x168] sm:$0xff]
      %v735 = vld [vmem:[%s1 + $0x170] sm:$0xff]
      %v736 = vld [vmem:[%s1 + $0x178] sm:$0xff]
      %v737 = vld [vmem:[%s1 + $0x180] sm:$0xff]
      %v738 = vld [vmem:[%s1 + $0x188] sm:$0xff]
      %v739 = vld [vmem:[%s1 + $0x190] sm:$0xff]
      %v740 = vld [vmem:[%s1 + $0x198] sm:$0xff]
      %v741 = vld [vmem:[%s1 + $0x1a0] sm:$0xff]
      %v742 = vld [vmem:[%s1 + $0x1a8] sm:$0xff]
      %v743 = vld [vmem:[%s1 + $0x1b0] sm:$0xff]
      %v744 = vld [vmem:[%s1 + $0x1b8] sm:$0xff]
      %v745 = vld [vmem:[%s1 + $0x1c0] sm:$0xff]
      %v746 = vld [vmem:[%s1 + $0x1c8] sm:$0xff]
      %v747 = vld [vmem:[%s1 + $0x1d0] sm:$0xff]
      %v748 = vld [vmem:[%s1 + $0x1d8] sm:$0xff]
      %v749 = vld [vmem:[%s1 + $0x1e0] sm:$0xff]
      %v750 = vld [vmem:[%s1 + $0x1e8] sm:$0xff]
      %v751 = vld [vmem:[%s1 + $0x1f0] sm:$0xff]
      %v752 = vld [vmem:[%s1 + $0x1f8] sm:$0xff]
      %v753 = vld [vmem:[%s1 + $0x200] sm:$0xff]
      %v754 = vld [vmem:[%s1 + $0x208] sm:$0xff]
      %v755 = vld [vmem:[%s1 + $0x210] sm:$0xff]
      %v756 = vld [vmem:[%s1 + $0x218] sm:$0xff]
      %v757 = vld [vmem:[%s1 + $0x220] sm:$0xff]
      %v758 = vld [vmem:[%s1 + $0x228] sm:$0xff]
      %v759 = vld [vmem:[%s1 + $0x230] sm:$0xff]
      %v760 = vld [vmem:[%s1 + $0x238] sm:$0xff]
      %v761 = vld [vmem:[%s1 + $0x240] sm:$0xff]
      %v762 = vld [vmem:[%s1 + $0x248] sm:$0xff]
      %v763 = vld [vmem:[%s1 + $0x250] sm:$0xff]
      %v764 = vld [vmem:[%s1 + $0x258] sm:$0xff]
      %v765 = vld [vmem:[%s1 + $0x260] sm:$0xff]
      %v766 = vld [vmem:[%s1 + $0x268] sm:$0xff]
      %v767 = vld [vmem:[%s1 + $0x270] sm:$0xff]
      %v768 = vld [vmem:[%s1 + $0x278] sm:$0xff]
      %v769 = vld [vmem:[%s1 + $0x280] sm:$0xff]
      %v770 = vld [vmem:[%s1 + $0x288] sm:$0xff]
      %v771 = vld [vmem:[%s1 + $0x290] sm:$0xff]
      %v772 = vld [vmem:[%s1 + $0x298] sm:$0xff]
      %v773 = vld [vmem:[%s1 + $0x2a0] sm:$0xff]
      %v774 = vld [vmem:[%s1 + $0x2a8] sm:$0xff]
      %v775 = vld [vmem:[%s1 + $0x2b0] sm:$0xff]
      %v776 = vld [vmem:[%s1 + $0x2b8] sm:$0xff]
      %v777 = vld [vmem:[%s1 + $0x2c0] sm:$0xff]
      %v778 = vld [vmem:[%s1 + $0x2c8] sm:$0xff]
      %v779 = vld [vmem:[%s1 + $0x2d0] sm:$0xff]
      %v780 = vld [vmem:[%s1 + $0x2d8] sm:$0xff]
      %v781 = vld [vmem:[%s1 + $0x2e0] sm:$0xff]
      %v782 = vld [vmem:[%s1 + $0x2e8] sm:$0xff]
      %v783 = vld [vmem:[%s1 + $0x2f0] sm:$0xff]
      %v784 = vld [vmem:[%s1 + $0x2f8] sm:$0xff]
      %v785 = vld [vmem:[%s1 + $0x300] sm:$0xff]
      %v786 = vld [vmem:[%s1 + $0x308] sm:$0xff]
      %v787 = vld [vmem:[%s1 + $0x310] sm:$0xff]
      %v788 = vld [vmem:[%s1 + $0x318] sm:$0xff]
      %v789 = vld [vmem:[%s1 + $0x320] sm:$0xff]
      %v790 = vld [vmem:[%s1 + $0x328] sm:$0xff]
      %v791 = vld [vmem:[%s1 + $0x330] sm:$0xff]
      %v792 = vld [vmem:[%s1 + $0x338] sm:$0xff]
      %v793 = vld [vmem:[%s1 + $0x340] sm:$0xff]
      %v794 = vld [vmem:[%s1 + $0x348] sm:$0xff]
      %v795 = vld [vmem:[%s1 + $0x350] sm:$0xff]
      %v796 = vld [vmem:[%s1 + $0x358] sm:$0xff]
      %v797 = vld [vmem:[%s1 + $0x360] sm:$0xff]
      %v798 = vld [vmem:[%s1 + $0x368] sm:$0xff]
      %v799 = vld [vmem:[%s1 + $0x370] sm:$0xff]
      %v800 = vld [vmem:[%s1 + $0x378] sm:$0xff]
      %v801 = vld [vmem:[%s1 + $0x380] sm:$0xff]
      %v802 = vld [vmem:[%s1 + $0x388] sm:$0xff]
      %v803 = vld [vmem:[%s1 + $0x390] sm:$0xff]
      %v804 = vld [vmem:[%s1 + $0x398] sm:$0xff]
      %v805 = vld [vmem:[%s1 + $0x3a0] sm:$0xff]
      %v806 = vld [vmem:[%s1 + $0x3a8] sm:$0xff]
      %v807 = vld [vmem:[%s1 + $0x3b0] sm:$0xff]
      %v808 = vld [vmem:[%s1 + $0x3b8] sm:$0xff]
      %v809 = vld [vmem:[%s1 + $0x3c0] sm:$0xff]
      %v810 = vld [vmem:[%s1 + $0x3c8] sm:$0xff]
      %v811 = vld [vmem:[%s1 + $0x3d0] sm:$0xff]
      %v812 = vld [vmem:[%s1 + $0x3d8] sm:$0xff]
      %v813 = vld [vmem:[%s1 + $0x3e0] sm:$0xff]
      %v814 = vld [vmem:[%s1 + $0x3e8] sm:$0xff]
      %v815 = vld [vmem:[%s1 + $0x3f0] sm:$0xff]
      %v816 = vld [vmem:[%s1 + $0x3f8] sm:$0xff]
      %v817 = vld [vmem:[%s1 + $0x400] sm:$0xff]
      %v818 = vld [vmem:[%s1 + $0x408] sm:$0xff]
      %v819 = vld [vmem:[%s1 + $0x410] sm:$0xff]
      %v820 = vld [vmem:[%s1 + $0x418] sm:$0xff]
      %v821 = vld [vmem:[%s1 + $0x420] sm:$0xff]
      %v822 = vld [vmem:[%s1 + $0x428] sm:$0xff]
      %v823 = vld [vmem:[%s1 + $0x430] sm:$0xff]
      %v824 = vld [vmem:[%s1 + $0x438] sm:$0xff]
      %v825 = vld [vmem:[%s1 + $0x440] sm:$0xff]
      %v826 = vld [vmem:[%s1 + $0x448] sm:$0xff]
      %v827 = vld [vmem:[%s1 + $0x450] sm:$0xff]
      %v828 = vld [vmem:[%s1 + $0x458] sm:$0xff]
      %v829 = vld [vmem:[%s1 + $0x460] sm:$0xff]
      %v830 = vld [vmem:[%s1 + $0x468] sm:$0xff]
      %v831 = vld [vmem:[%s1 + $0x470] sm:$0xff]
      %v832 = vld [vmem:[%s1 + $0x478] sm:$0xff]
      %v833 = vld [vmem:[%s1 + $0x480] sm:$0xff]
      %v834 = vld [vmem:[%s1 + $0x488] sm:$0xff]
      %v835 = vld [vmem:[%s1 + $0x490] sm:$0xff]
      %v836 = vld [vmem:[%s1 + $0x498] sm:$0xff]
      %v837 = vld [vmem:[%s1 + $0x4a0] sm:$0xff]
      %v838 = vld [vmem:[%s1 + $0x4a8] sm:$0xff]
      %v839 = vld [vmem:[%s1 + $0x4b0] sm:$0xff]
      %v840 = vld [vmem:[%s1 + $0x4b8] sm:$0xff]
      %v841 = vld [vmem:[%s1 + $0x4c0] sm:$0xff]
      %v842 = vld [vmem:[%s1 + $0x4c8] sm:$0xff]
      %v843 = vld [vmem:[%s1 + $0x4d0] sm:$0xff]
      %v844 = vld [vmem:[%s1 + $0x4d8] sm:$0xff]
      %v845 = vld [vmem:[%s1 + $0x4e0] sm:$0xff]
      %v846 = vld [vmem:[%s1 + $0x4e8] sm:$0xff]
      %v847 = vld [vmem:[%s1 + $0x4f0] sm:$0xff]
      %v848 = vld [vmem:[%s1 + $0x4f8] sm:$0xff]
      %v849 = vld [vmem:[%s1 + $0x500] sm:$0xff]
      %v850 = vld [vmem:[%s1 + $0x508] sm:$0xff]
      %v851 = vld [vmem:[%s1 + $0x510] sm:$0xff]
      %v852 = vld [vmem:[%s1 + $0x518] sm:$0xff]
      %v853 = vld [vmem:[%s1 + $0x520] sm:$0xff]
      %v854 = vld [vmem:[%s1 + $0x528] sm:$0xff]
      %v855 = vld [vmem:[%s1 + $0x530] sm:$0xff]
      %v856 = vld [vmem:[%s1 + $0x538] sm:$0xff]
      %v857 = vld [vmem:[%s1 + $0x540] sm:$0xff]
      %v858 = vld [vmem:[%s1 + $0x548] sm:$0xff]
      %v859 = vld [vmem:[%s1 + $0x550] sm:$0xff]
      %v860 = vld [vmem:[%s1 + $0x558] sm:$0xff]
      %v861 = vld [vmem:[%s1 + $0x560] sm:$0xff]
      %v862 = vld [vmem:[%s1 + $0x568] sm:$0xff]
      %v863 = vld [vmem:[%s1 + $0x570] sm:$0xff]
      %v864 = vld [vmem:[%s1 + $0x578] sm:$0xff]
      %v865 = vld [vmem:[%s1 + $0x580] sm:$0xff]
      %v866 = vld [vmem:[%s1 + $0x588] sm:$0xff]
      %v867 = vld [vmem:[%s1 + $0x590] sm:$0xff]
      %v868 = vld [vmem:[%s1 + $0x598] sm:$0xff]
      %v869 = vld [vmem:[%s1 + $0x5a0] sm:$0xff]
      %v870 = vld [vmem:[%s1 + $0x5a8] sm:$0xff]
      %v871 = vld [vmem:[%s1 + $0x5b0] sm:$0xff]
      %v872 = vld [vmem:[%s1 + $0x5b8] sm:$0xff]
      %v873 = vld [vmem:[%s1 + $0x5c0] sm:$0xff]
      %v874 = vld [vmem:[%s1 + $0x5c8] sm:$0xff]
      %v875 = vld [vmem:[%s1 + $0x5d0] sm:$0xff]
      %v876 = vld [vmem:[%s1 + $0x5d8] sm:$0xff]
      %v877 = vld [vmem:[%s1 + $0x5e0] sm:$0xff]
      %v878 = vld [vmem:[%s1 + $0x5e8] sm:$0xff]
      %v879 = vld [vmem:[%s1 + $0x5f0] sm:$0xff]
      %v880 = vld [vmem:[%s1 + $0x5f8] sm:$0xff]
      %v881 = vld [vmem:[%s1 + $0x600] sm:$0xff]
      %v882 = vld [vmem:[%s1 + $0x608] sm:$0xff]
      %v883 = vld [vmem:[%s1 + $0x610] sm:$0xff]
      %v884 = vld [vmem:[%s1 + $0x618] sm:$0xff]
      %v885 = vld [vmem:[%s1 + $0x620] sm:$0xff]
      %v886 = vld [vmem:[%s1 + $0x628] sm:$0xff]
      %v887 = vld [vmem:[%s1 + $0x630] sm:$0xff]
      %v888 = vld [vmem:[%s1 + $0x638] sm:$0xff]
      %v889 = vld [vmem:[%s1 + $0x640] sm:$0xff]
      %v890 = vld [vmem:[%s1 + $0x648] sm:$0xff]
      %v891 = vld [vmem:[%s1 + $0x650] sm:$0xff]
      %v892 = vld [vmem:[%s1 + $0x658] sm:$0xff]
      %v893 = vld [vmem:[%s1 + $0x660] sm:$0xff]
      %v894 = vld [vmem:[%s1 + $0x668] sm:$0xff]
      %v895 = vld [vmem:[%s1 + $0x670] sm:$0xff]
      %v896 = vld [vmem:[%s1 + $0x678] sm:$0xff]
      %v897 = vld [vmem:[%s1 + $0x680] sm:$0xff]
      %v898 = vld [vmem:[%s1 + $0x688] sm:$0xff]
      %v899 = vld [vmem:[%s1 + $0x690] sm:$0xff]
      %v900 = vld [vmem:[%s1 + $0x698] sm:$0xff]
      %v901 = vld [vmem:[%s1 + $0x6a0] sm:$0xff]
      %v902 = vld [vmem:[%s1 + $0x6a8] sm:$0xff]
      %v903 = vld [vmem:[%s1 + $0x6b0] sm:$0xff]
      %v904 = vld [vmem:[%s1 + $0x6b8] sm:$0xff]
      %v905 = vld [vmem:[%s1 + $0x6c0] sm:$0xff]
      %v906 = vld [vmem:[%s1 + $0x6c8] sm:$0xff]
      %v907 = vld [vmem:[%s1 + $0x6d0] sm:$0xff]
      %v908 = vld [vmem:[%s1 + $0x6d8] sm:$0xff]
      %v909 = vld [vmem:[%s1 + $0x6e0] sm:$0xff]
      %v910 = vld [vmem:[%s1 + $0x6e8] sm:$0xff]
      %v911 = vld [vmem:[%s1 + $0x6f0] sm:$0xff]
      %v912 = vld [vmem:[%s1 + $0x6f8] sm:$0xff]
      %v913 = vld [vmem:[%s1 + $0x700] sm:$0xff]
      %v914 = vld [vmem:[%s1 + $0x708] sm:$0xff]
      %v915 = vld [vmem:[%s1 + $0x710] sm:$0xff]
      %v916 = vld [vmem:[%s1 + $0x718] sm:$0xff]
      %v917 = vld [vmem:[%s1 + $0x720] sm:$0xff]
      %v918 = vld [vmem:[%s1 + $0x728] sm:$0xff]
      %v919 = vld [vmem:[%s1 + $0x730] sm:$0xff]
      %v920 = vld [vmem:[%s1 + $0x738] sm:$0xff]
      %v921 = vld [vmem:[%s1 + $0x740] sm:$0xff]
      %v922 = vld [vmem:[%s1 + $0x748] sm:$0xff]
      %v923 = vld [vmem:[%s1 + $0x750] sm:$0xff]
      %v924 = vld [vmem:[%s1 + $0x758] sm:$0xff]
      %v925 = vld [vmem:[%s1 + $0x760] sm:$0xff]
      %v926 = vld [vmem:[%s1 + $0x768] sm:$0xff]
      %v927 = vld [vmem:[%s1 + $0x770] sm:$0xff]
      %v928 = vld [vmem:[%s1 + $0x778] sm:$0xff]
      %v929 = vld [vmem:[%s1 + $0x780] sm:$0xff]
      %v930 = vld [vmem:[%s1 + $0x788] sm:$0xff]
      %v931 = vld [vmem:[%s1 + $0x790] sm:$0xff]
      %v932 = vld [vmem:[%s1 + $0x798] sm:$0xff]
      %v933 = vld [vmem:[%s1 + $0x7a0] sm:$0xff]
      %v934 = vld [vmem:[%s1 + $0x7a8] sm:$0xff]
      %v935 = vld [vmem:[%s1 + $0x7b0] sm:$0xff]
      %v936 = vld [vmem:[%s1 + $0x7b8] sm:$0xff]
      %v937 = vld [vmem:[%s1 + $0x7c0] sm:$0xff]
      %v938 = vld [vmem:[%s1 + $0x7c8] sm:$0xff]
      %v939 = vld [vmem:[%s1 + $0x7d0] sm:$0xff]
      %v940 = vld [vmem:[%s1 + $0x7d8] sm:$0xff]
      %v941 = vld [vmem:[%s1 + $0x7e0] sm:$0xff]
      %v942 = vld [vmem:[%s1 + $0x7e8] sm:$0xff]
      %v943 = vld [vmem:[%s1 + $0x7f0] sm:$0xff]
      %v944 = vld [vmem:[%s1 + $0x7f8] sm:$0xff]
      %v945 = vld [vmem:[%s2] sm:$0x1]
      %v947 = vlaneseq
      %v948 = vshrl.u32 %v947, 7
      %v949 = vsub.s32 0, %v948
      %v950 = vrot.slane %v945, %v949
      %952 = vmatprep.subr.mxu0 0.0
      %953 = vmatpush1.msra.mxu0 %v704
      %954 = vmatprep.subr.mxu0 0.0
      %955 = vmatpush1.msra.mxu0 %v703
      %956 = vmatprep.subr.mxu0 0.0
      %957 = vmatpush1.msra.mxu0 %v702
      %958 = vmatprep.subr.mxu0 0.0
      %959 = vmatpush1.msra.mxu0 %v701
      %960 = vmatprep.subr.mxu0 0.0
      %961 = vmatpush1.msra.mxu0 %v700
      %962 = vmatprep.subr.mxu0 0.0
      %963 = vmatpush1.msra.mxu0 %v699
      %964 = vmatprep.subr.mxu0 0.0
      %965 = vmatpush1.msra.mxu0 %v698
      %966 = vmatprep.subr.mxu0 0.0
      %967 = vmatpush1.msra.mxu0 %v697
      %968 = vmatprep.subr.mxu0 0.0
      %969 = vmatpush1.msra.mxu0 %v696
      %970 = vmatprep.subr.mxu0 0.0
      %971 = vmatpush1.msra.mxu0 %v695
      %972 = vmatprep.subr.mxu0 0.0
      %973 = vmatpush1.msra.mxu0 %v694
      %974 = vmatprep.subr.mxu0 0.0
      %975 = vmatpush1.msra.mxu0 %v693
      %976 = vmatprep.subr.mxu0 0.0
      %977 = vmatpush1.msra.mxu0 %v692
      %978 = vmatprep.subr.mxu0 0.0
      %979 = vmatpush1.msra.mxu0 %v691
      %980 = vmatprep.subr.mxu0 0.0
      %981 = vmatpush1.msra.mxu0 %v690
      %982 = vmatprep.subr.mxu0 0.0
      %983 = vmatpush1.msra.mxu0 %v689
      %984 = vmatprep.subr.mxu0 0.0
      %985 = vmatpush2.msra.mxu0 %v720
      %986 = vmatprep.subr.mxu0 0.0
      %987 = vmatpush2.msra.mxu0 %v719
      %988 = vmatprep.subr.mxu0 0.0
      %989 = vmatpush2.msra.mxu0 %v718
      %990 = vmatprep.subr.mxu0 0.0
      %991 = vmatpush2.msra.mxu0 %v717
      %992 = vmatprep.subr.mxu0 0.0
      %993 = vmatpush2.msra.mxu0 %v716
      %994 = vmatprep.subr.mxu0 0.0
      %995 = vmatpush2.msra.mxu0 %v715
      %996 = vmatprep.subr.mxu0 0.0
      %997 = vmatpush2.msra.mxu0 %v714
      %998 = vmatprep.subr.mxu0 0.0
      %999 = vmatpush2.msra.mxu0 %v713
      %1000 = vmatprep.subr.mxu0 0.0
      %1001 = vmatpush2.msra.mxu0 %v712
      %1002 = vmatprep.subr.mxu0 0.0
      %1003 = vmatpush2.msra.mxu0 %v711
      %1004 = vmatprep.subr.mxu0 0.0
      %1005 = vmatpush2.msra.mxu0 %v710
      %1006 = vmatprep.subr.mxu0 0.0
      %1007 = vmatpush2.msra.mxu0 %v709
      %1008 = vmatprep.subr.mxu0 0.0
      %1009 = vmatpush2.msra.mxu0 %v708
      %1010 = vmatprep.subr.mxu0 0.0
      %1011 = vmatpush2.msra.mxu0 %v707
      %1012 = vmatprep.subr.mxu0 0.0
      %1013 = vmatpush2.msra.mxu0 %v706
      %1014 = vmatprep.subr.mxu0 0.0
      %1015 = vmatpush2.msra.mxu0 %v705
      %1016 = vmatprep.mubr.f32.mxu0 %v178
      %1017 = vmatmul.mubr.f32.gmra.mxu0 %v177
      %v1018 = vpop.f32.mrf.mxu0
      %v1019 = vadd.f32 %v950, %v1018
      %v1020 = vpop.f32.mrf.mxu0
      %1021 = vmatprep.mubr.f32.mxu0 %v194
      %1022 = vmatmul.mubr.f32.gmra.mxu0 %v193
      %v1023 = vpop.f32.mrf.mxu0
      %v1024 = vadd.f32 %v950, %v1023
      %v1025 = vpop.f32.mrf.mxu0
      %1026 = vmatprep.mubr.f32.mxu0 %v210
      %1027 = vmatmul.mubr.f32.gmra.mxu0 %v209
      %v1028 = vpop.f32.mrf.mxu0
      %v1029 = vadd.f32 %v950, %v1028
      %v1030 = vpop.f32.mrf.mxu0
      %1031 = vmatprep.mubr.f32.mxu0 %v226
      %1032 = vmatmul.mubr.f32.gmra.mxu0 %v225
      %v1033 = vpop.f32.mrf.mxu0
      %v1034 = vadd.f32 %v950, %v1033
      %v1035 = vpop.f32.mrf.mxu0
      %1036 = vmatprep.mubr.f32.mxu0 %v242
      %1037 = vmatmul.mubr.f32.gmra.mxu0 %v241
      %v1038 = vpop.f32.mrf.mxu0
      %v1039 = vadd.f32 %v950, %v1038
      %v1040 = vpop.f32.mrf.mxu0
      %1041 = vmatprep.mubr.f32.mxu0 %v258
      %1042 = vmatmul.mubr.f32.gmra.mxu0 %v257
      %v1043 = vpop.f32.mrf.mxu0
      %v1044 = vadd.f32 %v950, %v1043
      %v1045 = vpop.f32.mrf.mxu0
      %1046 = vmatprep.mubr.f32.mxu0 %v274
      %1047 = vmatmul.mubr.f32.gmra.mxu0 %v273
      %v1048 = vpop.f32.mrf.mxu0
      %v1049 = vadd.f32 %v950, %v1048
      %v1050 = vpop.f32.mrf.mxu0
      %1051 = vmatprep.mubr.f32.mxu0 %v290
      %1052 = vmatmul.mubr.f32.gmra.mxu0 %v289
      %v1053 = vpop.f32.mrf.mxu0
      %v1054 = vadd.f32 %v950, %v1053
      %v1055 = vpop.f32.mrf.mxu0
      %1056 = vmatprep.mubr.f32.mxu0 %v306
      %1057 = vmatmul.mubr.f32.gmra.mxu0 %v305
      %v1058 = vpop.f32.mrf.mxu0
      %v1059 = vadd.f32 %v950, %v1058
      %v1060 = vpop.f32.mrf.mxu0
      %1061 = vmatprep.mubr.f32.mxu0 %v322
      %1062 = vmatmul.mubr.f32.gmra.mxu0 %v321
      %v1063 = vpop.f32.mrf.mxu0
      %v1064 = vadd.f32 %v950, %v1063
      %v1065 = vpop.f32.mrf.mxu0
      %1066 = vmatprep.mubr.f32.mxu0 %v338
      %1067 = vmatmul.mubr.f32.gmra.mxu0 %v337
      %v1068 = vpop.f32.mrf.mxu0
      %v1069 = vadd.f32 %v950, %v1068
      %v1070 = vpop.f32.mrf.mxu0
      %1071 = vmatprep.mubr.f32.mxu0 %v354
      %1072 = vmatmul.mubr.f32.gmra.mxu0 %v353
      %v1073 = vpop.f32.mrf.mxu0
      %v1074 = vadd.f32 %v950, %v1073
      %v1075 = vpop.f32.mrf.mxu0
      %1076 = vmatprep.mubr.f32.mxu0 %v370
      %1077 = vmatmul.mubr.f32.gmra.mxu0 %v369
      %v1078 = vpop.f32.mrf.mxu0
      %v1079 = vadd.f32 %v950, %v1078
      %v1080 = vpop.f32.mrf.mxu0
      %1081 = vmatprep.mubr.f32.mxu0 %v386
      %1082 = vmatmul.mubr.f32.gmra.mxu0 %v385
      %v1083 = vpop.f32.mrf.mxu0
      %v1084 = vadd.f32 %v950, %v1083
      %v1085 = vpop.f32.mrf.mxu0
      %1086 = vmatprep.mubr.f32.mxu0 %v402
      %1087 = vmatmul.mubr.f32.gmra.mxu0 %v401
      %v1088 = vpop.f32.mrf.mxu0
      %v1089 = vadd.f32 %v950, %v1088
      %v1090 = vpop.f32.mrf.mxu0
      %1091 = vmatprep.mubr.f32.mxu0 %v418
      %1092 = vmatmul.mubr.f32.gmra.mxu0 %v417
      %v1093 = vpop.f32.mrf.mxu0
      %v1094 = vadd.f32 %v950, %v1093
      %v1095 = vpop.f32.mrf.mxu0
      %1096 = vmatprep.mubr.f32.mxu0 %v434
      %1097 = vmatmul.mubr.f32.gmra.mxu0 %v433
      %v1098 = vpop.f32.mrf.mxu0
      %v1099 = vadd.f32 %v950, %v1098
      %v1100 = vpop.f32.mrf.mxu0
      %1101 = vmatprep.mubr.f32.mxu0 %v450
      %1102 = vmatmul.mubr.f32.gmra.mxu0 %v449
      %v1103 = vpop.f32.mrf.mxu0
      %v1104 = vadd.f32 %v950, %v1103
      %v1105 = vpop.f32.mrf.mxu0
      %1106 = vmatprep.mubr.f32.mxu0 %v466
      %1107 = vmatmul.mubr.f32.gmra.mxu0 %v465
      %v1108 = vpop.f32.mrf.mxu0
      %v1109 = vadd.f32 %v950, %v1108
      %v1110 = vpop.f32.mrf.mxu0
      %1111 = vmatprep.mubr.f32.mxu0 %v482
      %1112 = vmatmul.mubr.f32.gmra.mxu0 %v481
      %v1113 = vpop.f32.mrf.mxu0
      %v1114 = vadd.f32 %v950, %v1113
      %v1115 = vpop.f32.mrf.mxu0
      %1116 = vmatprep.mubr.f32.mxu0 %v498
      %1117 = vmatmul.mubr.f32.gmra.mxu0 %v497
      %v1118 = vpop.f32.mrf.mxu0
      %v1119 = vadd.f32 %v950, %v1118
      %v1120 = vpop.f32.mrf.mxu0
      %1121 = vmatprep.mubr.f32.mxu0 %v514
      %1122 = vmatmul.mubr.f32.gmra.mxu0 %v513
      %v1123 = vpop.f32.mrf.mxu0
      %v1124 = vadd.f32 %v950, %v1123
      %v1125 = vpop.f32.mrf.mxu0
      %1126 = vmatprep.mubr.f32.mxu0 %v530
      %1127 = vmatmul.mubr.f32.gmra.mxu0 %v529
      %v1128 = vpop.f32.mrf.mxu0
      %v1129 = vadd.f32 %v950, %v1128
      %v1130 = vpop.f32.mrf.mxu0
      %1131 = vmatprep.mubr.f32.mxu0 %v546
      %1132 = vmatmul.mubr.f32.gmra.mxu0 %v545
      %v1133 = vpop.f32.mrf.mxu0
      %v1134 = vadd.f32 %v950, %v1133
      %v1135 = vpop.f32.mrf.mxu0
      %1136 = vmatprep.mubr.f32.mxu0 %v562
      %1137 = vmatmul.mubr.f32.gmra.mxu0 %v561
      %v1138 = vpop.f32.mrf.mxu0
      %v1139 = vadd.f32 %v950, %v1138
      %v1140 = vpop.f32.mrf.mxu0
      %1141 = vmatprep.mubr.f32.mxu0 %v578
      %1142 = vmatmul.mubr.f32.gmra.mxu0 %v577
      %v1143 = vpop.f32.mrf.mxu0
      %v1144 = vadd.f32 %v950, %v1143
      %v1145 = vpop.f32.mrf.mxu0
      %1146 = vmatprep.mubr.f32.mxu0 %v594
      %1147 = vmatmul.mubr.f32.gmra.mxu0 %v593
      %v1148 = vpop.f32.mrf.mxu0
      %v1149 = vadd.f32 %v950, %v1148
      %v1150 = vpop.f32.mrf.mxu0
      %1151 = vmatprep.mubr.f32.mxu0 %v610
      %1152 = vmatmul.mubr.f32.gmra.mxu0 %v609
      %v1153 = vpop.f32.mrf.mxu0
      %v1154 = vadd.f32 %v950, %v1153
      %v1155 = vpop.f32.mrf.mxu0
      %1156 = vmatprep.mubr.f32.mxu0 %v626
      %1157 = vmatmul.mubr.f32.gmra.mxu0 %v625
      %v1158 = vpop.f32.mrf.mxu0
      %v1159 = vadd.f32 %v950, %v1158
      %v1160 = vpop.f32.mrf.mxu0
      %1161 = vmatprep.mubr.f32.mxu0 %v642
      %1162 = vmatmul.mubr.f32.gmra.mxu0 %v641
      %v1163 = vpop.f32.mrf.mxu0
      %v1164 = vadd.f32 %v950, %v1163
      %v1165 = vpop.f32.mrf.mxu0
      %1166 = vmatprep.mubr.f32.mxu0 %v658
      %1167 = vmatmul.mubr.f32.gmra.mxu0 %v657
      %v1168 = vpop.f32.mrf.mxu0
      %v1169 = vadd.f32 %v950, %v1168
      %v1170 = vpop.f32.mrf.mxu0
      %1171 = vmatprep.mubr.f32.mxu0 %v674
      %1172 = vmatmul.mubr.f32.gmra.mxu0 %v673
      %v1173 = vpop.f32.mrf.mxu0
      %v1174 = vadd.f32 %v950, %v1173
      %v1175 = vpop.f32.mrf.mxu0
      %1176 = vdwg.mxu0
      %1177 = vmatprep.subr.mxu0 0.0
      %1178 = vmatpush1.msra.mxu0 %v736
      %1179 = vmatprep.subr.mxu0 0.0
      %1180 = vmatpush1.msra.mxu0 %v735
      %1181 = vmatprep.subr.mxu0 0.0
      %1182 = vmatpush1.msra.mxu0 %v734
      %1183 = vmatprep.subr.mxu0 0.0
      %1184 = vmatpush1.msra.mxu0 %v733
      %1185 = vmatprep.subr.mxu0 0.0
      %1186 = vmatpush1.msra.mxu0 %v732
      %1187 = vmatprep.subr.mxu0 0.0
      %1188 = vmatpush1.msra.mxu0 %v731
      %1189 = vmatprep.subr.mxu0 0.0
      %1190 = vmatpush1.msra.mxu0 %v730
      %1191 = vmatprep.subr.mxu0 0.0
      %1192 = vmatpush1.msra.mxu0 %v729
      %1193 = vmatprep.subr.mxu0 0.0
      %1194 = vmatpush1.msra.mxu0 %v728
      %1195 = vmatprep.subr.mxu0 0.0
      %1196 = vmatpush1.msra.mxu0 %v727
      %1197 = vmatprep.subr.mxu0 0.0
      %1198 = vmatpush1.msra.mxu0 %v726
      %1199 = vmatprep.subr.mxu0 0.0
      %1200 = vmatpush1.msra.mxu0 %v725
      %1201 = vmatprep.subr.mxu0 0.0
      %1202 = vmatpush1.msra.mxu0 %v724
      %1203 = vmatprep.subr.mxu0 0.0
      %1204 = vmatpush1.msra.mxu0 %v723
      %1205 = vmatprep.subr.mxu0 0.0
      %1206 = vmatpush1.msra.mxu0 %v722
      %1207 = vmatprep.subr.mxu0 0.0
      %1208 = vmatpush1.msra.mxu0 %v721
      %1209 = vmatprep.subr.mxu0 0.0
      %1210 = vmatpush2.msra.mxu0 %v752
      %1211 = vmatprep.subr.mxu0 0.0
      %1212 = vmatpush2.msra.mxu0 %v751
      %1213 = vmatprep.subr.mxu0 0.0
      %1214 = vmatpush2.msra.mxu0 %v750
      %1215 = vmatprep.subr.mxu0 0.0
      %1216 = vmatpush2.msra.mxu0 %v749
      %1217 = vmatprep.subr.mxu0 0.0
      %1218 = vmatpush2.msra.mxu0 %v748
      %1219 = vmatprep.subr.mxu0 0.0
      %1220 = vmatpush2.msra.mxu0 %v747
      %1221 = vmatprep.subr.mxu0 0.0
      %1222 = vmatpush2.msra.mxu0 %v746
      %1223 = vmatprep.subr.mxu0 0.0
      %1224 = vmatpush2.msra.mxu0 %v745
      %1225 = vmatprep.subr.mxu0 0.0
      %1226 = vmatpush2.msra.mxu0 %v744
      %1227 = vmatprep.subr.mxu0 0.0
      %1228 = vmatpush2.msra.mxu0 %v743
      %1229 = vmatprep.subr.mxu0 0.0
      %1230 = vmatpush2.msra.mxu0 %v742
      %1231 = vmatprep.subr.mxu0 0.0
      %1232 = vmatpush2.msra.mxu0 %v741
      %1233 = vmatprep.subr.mxu0 0.0
      %1234 = vmatpush2.msra.mxu0 %v740
      %1235 = vmatprep.subr.mxu0 0.0
      %1236 = vmatpush2.msra.mxu0 %v739
      %1237 = vmatprep.subr.mxu0 0.0
      %1238 = vmatpush2.msra.mxu0 %v738
      %1239 = vmatprep.subr.mxu0 0.0
      %1240 = vmatpush2.msra.mxu0 %v737
      %1241 = vmatprep.mubr.f32.mxu0 %v180
      %1242 = vmatmul.mubr.f32.gmra.mxu0 %v179
      %v1243 = vpop.f32.mrf.mxu0
      %v1244 = vadd.f32 %v1019, %v1243
      %v1245 = vpop.f32.mrf.mxu0
      %1246 = vmatprep.mubr.f32.mxu0 %v196
      %1247 = vmatmul.mubr.f32.gmra.mxu0 %v195
      %v1248 = vpop.f32.mrf.mxu0
      %v1249 = vadd.f32 %v1024, %v1248
      %v1250 = vpop.f32.mrf.mxu0
      %1251 = vmatprep.mubr.f32.mxu0 %v212
      %1252 = vmatmul.mubr.f32.gmra.mxu0 %v211
      %v1253 = vpop.f32.mrf.mxu0
      %v1254 = vadd.f32 %v1029, %v1253
      %v1255 = vpop.f32.mrf.mxu0
      %1256 = vmatprep.mubr.f32.mxu0 %v228
      %1257 = vmatmul.mubr.f32.gmra.mxu0 %v227
      %v1258 = vpop.f32.mrf.mxu0
      %v1259 = vadd.f32 %v1034, %v1258
      %v1260 = vpop.f32.mrf.mxu0
      %1261 = vmatprep.mubr.f32.mxu0 %v244
      %1262 = vmatmul.mubr.f32.gmra.mxu0 %v243
      %v1263 = vpop.f32.mrf.mxu0
      %v1264 = vadd.f32 %v1039, %v1263
      %v1265 = vpop.f32.mrf.mxu0
      %1266 = vmatprep.mubr.f32.mxu0 %v260
      %1267 = vmatmul.mubr.f32.gmra.mxu0 %v259
      %v1268 = vpop.f32.mrf.mxu0
      %v1269 = vadd.f32 %v1044, %v1268
      %v1270 = vpop.f32.mrf.mxu0
      %1271 = vmatprep.mubr.f32.mxu0 %v276
      %1272 = vmatmul.mubr.f32.gmra.mxu0 %v275
      %v1273 = vpop.f32.mrf.mxu0
      %v1274 = vadd.f32 %v1049, %v1273
      %v1275 = vpop.f32.mrf.mxu0
      %1276 = vmatprep.mubr.f32.mxu0 %v292
      %1277 = vmatmul.mubr.f32.gmra.mxu0 %v291
      %v1278 = vpop.f32.mrf.mxu0
      %v1279 = vadd.f32 %v1054, %v1278
      %v1280 = vpop.f32.mrf.mxu0
      %1281 = vmatprep.mubr.f32.mxu0 %v308
      %1282 = vmatmul.mubr.f32.gmra.mxu0 %v307
      %v1283 = vpop.f32.mrf.mxu0
      %v1284 = vadd.f32 %v1059, %v1283
      %v1285 = vpop.f32.mrf.mxu0
      %1286 = vmatprep.mubr.f32.mxu0 %v324
      %1287 = vmatmul.mubr.f32.gmra.mxu0 %v323
      %v1288 = vpop.f32.mrf.mxu0
      %v1289 = vadd.f32 %v1064, %v1288
      %v1290 = vpop.f32.mrf.mxu0
      %1291 = vmatprep.mubr.f32.mxu0 %v340
      %1292 = vmatmul.mubr.f32.gmra.mxu0 %v339
      %v1293 = vpop.f32.mrf.mxu0
      %v1294 = vadd.f32 %v1069, %v1293
      %v1295 = vpop.f32.mrf.mxu0
      %1296 = vmatprep.mubr.f32.mxu0 %v356
      %1297 = vmatmul.mubr.f32.gmra.mxu0 %v355
      %v1298 = vpop.f32.mrf.mxu0
      %v1299 = vadd.f32 %v1074, %v1298
      %v1300 = vpop.f32.mrf.mxu0
      %1301 = vmatprep.mubr.f32.mxu0 %v372
      %1302 = vmatmul.mubr.f32.gmra.mxu0 %v371
      %v1303 = vpop.f32.mrf.mxu0
      %v1304 = vadd.f32 %v1079, %v1303
      %v1305 = vpop.f32.mrf.mxu0
      %1306 = vmatprep.mubr.f32.mxu0 %v388
      %1307 = vmatmul.mubr.f32.gmra.mxu0 %v387
      %v1308 = vpop.f32.mrf.mxu0
      %v1309 = vadd.f32 %v1084, %v1308
      %v1310 = vpop.f32.mrf.mxu0
      %1311 = vmatprep.mubr.f32.mxu0 %v404
      %1312 = vmatmul.mubr.f32.gmra.mxu0 %v403
      %v1313 = vpop.f32.mrf.mxu0
      %v1314 = vadd.f32 %v1089, %v1313
      %v1315 = vpop.f32.mrf.mxu0
      %1316 = vmatprep.mubr.f32.mxu0 %v420
      %1317 = vmatmul.mubr.f32.gmra.mxu0 %v419
      %v1318 = vpop.f32.mrf.mxu0
      %v1319 = vadd.f32 %v1094, %v1318
      %v1320 = vpop.f32.mrf.mxu0
      %1321 = vmatprep.mubr.f32.mxu0 %v436
      %1322 = vmatmul.mubr.f32.gmra.mxu0 %v435
      %v1323 = vpop.f32.mrf.mxu0
      %v1324 = vadd.f32 %v1099, %v1323
      %v1325 = vpop.f32.mrf.mxu0
      %1326 = vmatprep.mubr.f32.mxu0 %v452
      %1327 = vmatmul.mubr.f32.gmra.mxu0 %v451
      %v1328 = vpop.f32.mrf.mxu0
      %v1329 = vadd.f32 %v1104, %v1328
      %v1330 = vpop.f32.mrf.mxu0
      %1331 = vmatprep.mubr.f32.mxu0 %v468
      %1332 = vmatmul.mubr.f32.gmra.mxu0 %v467
      %v1333 = vpop.f32.mrf.mxu0
      %v1334 = vadd.f32 %v1109, %v1333
      %v1335 = vpop.f32.mrf.mxu0
      %1336 = vmatprep.mubr.f32.mxu0 %v484
      %1337 = vmatmul.mubr.f32.gmra.mxu0 %v483
      %v1338 = vpop.f32.mrf.mxu0
      %v1339 = vadd.f32 %v1114, %v1338
      %v1340 = vpop.f32.mrf.mxu0
      %1341 = vmatprep.mubr.f32.mxu0 %v500
      %1342 = vmatmul.mubr.f32.gmra.mxu0 %v499
      %v1343 = vpop.f32.mrf.mxu0
      %v1344 = vadd.f32 %v1119, %v1343
      %v1345 = vpop.f32.mrf.mxu0
      %1346 = vmatprep.mubr.f32.mxu0 %v516
      %1347 = vmatmul.mubr.f32.gmra.mxu0 %v515
      %v1348 = vpop.f32.mrf.mxu0
      %v1349 = vadd.f32 %v1124, %v1348
      %v1350 = vpop.f32.mrf.mxu0
      %1351 = vmatprep.mubr.f32.mxu0 %v532
      %1352 = vmatmul.mubr.f32.gmra.mxu0 %v531
      %v1353 = vpop.f32.mrf.mxu0
      %v1354 = vadd.f32 %v1129, %v1353
      %v1355 = vpop.f32.mrf.mxu0
      %1356 = vmatprep.mubr.f32.mxu0 %v548
      %1357 = vmatmul.mubr.f32.gmra.mxu0 %v547
      %v1358 = vpop.f32.mrf.mxu0
      %v1359 = vadd.f32 %v1134, %v1358
      %v1360 = vpop.f32.mrf.mxu0
      %1361 = vmatprep.mubr.f32.mxu0 %v564
      %1362 = vmatmul.mubr.f32.gmra.mxu0 %v563
      %v1363 = vpop.f32.mrf.mxu0
      %v1364 = vadd.f32 %v1139, %v1363
      %v1365 = vpop.f32.mrf.mxu0
      %1366 = vmatprep.mubr.f32.mxu0 %v580
      %1367 = vmatmul.mubr.f32.gmra.mxu0 %v579
      %v1368 = vpop.f32.mrf.mxu0
      %v1369 = vadd.f32 %v1144, %v1368
      %v1370 = vpop.f32.mrf.mxu0
      %1371 = vmatprep.mubr.f32.mxu0 %v596
      %1372 = vmatmul.mubr.f32.gmra.mxu0 %v595
      %v1373 = vpop.f32.mrf.mxu0
      %v1374 = vadd.f32 %v1149, %v1373
      %v1375 = vpop.f32.mrf.mxu0
      %1376 = vmatprep.mubr.f32.mxu0 %v612
      %1377 = vmatmul.mubr.f32.gmra.mxu0 %v611
      %v1378 = vpop.f32.mrf.mxu0
      %v1379 = vadd.f32 %v1154, %v1378
      %v1380 = vpop.f32.mrf.mxu0
      %1381 = vmatprep.mubr.f32.mxu0 %v628
      %1382 = vmatmul.mubr.f32.gmra.mxu0 %v627
      %v1383 = vpop.f32.mrf.mxu0
      %v1384 = vadd.f32 %v1159, %v1383
      %v1385 = vpop.f32.mrf.mxu0
      %1386 = vmatprep.mubr.f32.mxu0 %v644
      %1387 = vmatmul.mubr.f32.gmra.mxu0 %v643
      %v1388 = vpop.f32.mrf.mxu0
      %v1389 = vadd.f32 %v1164, %v1388
      %v1390 = vpop.f32.mrf.mxu0
      %1391 = vmatprep.mubr.f32.mxu0 %v660
      %1392 = vmatmul.mubr.f32.gmra.mxu0 %v659
      %v1393 = vpop.f32.mrf.mxu0
      %v1394 = vadd.f32 %v1169, %v1393
      %v1395 = vpop.f32.mrf.mxu0
      %1396 = vmatprep.mubr.f32.mxu0 %v676
      %1397 = vmatmul.mubr.f32.gmra.mxu0 %v675
      %v1398 = vpop.f32.mrf.mxu0
      %v1399 = vadd.f32 %v1174, %v1398
      %v1400 = vpop.f32.mrf.mxu0
      %1401 = vdwg.mxu0
      %1402 = vmatprep.subr.mxu0 0.0
      %1403 = vmatpush1.msra.mxu0 %v768
      %1404 = vmatprep.subr.mxu0 0.0
      %1405 = vmatpush1.msra.mxu0 %v767
      %1406 = vmatprep.subr.mxu0 0.0
      %1407 = vmatpush1.msra.mxu0 %v766
      %1408 = vmatprep.subr.mxu0 0.0
      %1409 = vmatpush1.msra.mxu0 %v765
      %1410 = vmatprep.subr.mxu0 0.0
      %1411 = vmatpush1.msra.mxu0 %v764
      %1412 = vmatprep.subr.mxu0 0.0
      %1413 = vmatpush1.msra.mxu0 %v763
      %1414 = vmatprep.subr.mxu0 0.0
      %1415 = vmatpush1.msra.mxu0 %v762
      %1416 = vmatprep.subr.mxu0 0.0
      %1417 = vmatpush1.msra.mxu0 %v761
      %1418 = vmatprep.subr.mxu0 0.0
      %1419 = vmatpush1.msra.mxu0 %v760
      %1420 = vmatprep.subr.mxu0 0.0
      %1421 = vmatpush1.msra.mxu0 %v759
      %1422 = vmatprep.subr.mxu0 0.0
      %1423 = vmatpush1.msra.mxu0 %v758
      %1424 = vmatprep.subr.mxu0 0.0
      %1425 = vmatpush1.msra.mxu0 %v757
      %1426 = vmatprep.subr.mxu0 0.0
      %1427 = vmatpush1.msra.mxu0 %v756
      %1428 = vmatprep.subr.mxu0 0.0
      %1429 = vmatpush1.msra.mxu0 %v755
      %1430 = vmatprep.subr.mxu0 0.0
      %1431 = vmatpush1.msra.mxu0 %v754
      %1432 = vmatprep.subr.mxu0 0.0
      %1433 = vmatpush1.msra.mxu0 %v753
      %1434 = vmatprep.subr.mxu0 0.0
      %1435 = vmatpush2.msra.mxu0 %v784
      %1436 = vmatprep.subr.mxu0 0.0
      %1437 = vmatpush2.msra.mxu0 %v783
      %1438 = vmatprep.subr.mxu0 0.0
      %1439 = vmatpush2.msra.mxu0 %v782
      %1440 = vmatprep.subr.mxu0 0.0
      %1441 = vmatpush2.msra.mxu0 %v781
      %1442 = vmatprep.subr.mxu0 0.0
      %1443 = vmatpush2.msra.mxu0 %v780
      %1444 = vmatprep.subr.mxu0 0.0
      %1445 = vmatpush2.msra.mxu0 %v779
      %1446 = vmatprep.subr.mxu0 0.0
      %1447 = vmatpush2.msra.mxu0 %v778
      %1448 = vmatprep.subr.mxu0 0.0
      %1449 = vmatpush2.msra.mxu0 %v777
      %1450 = vmatprep.subr.mxu0 0.0
      %1451 = vmatpush2.msra.mxu0 %v776
      %1452 = vmatprep.subr.mxu0 0.0
      %1453 = vmatpush2.msra.mxu0 %v775
      %1454 = vmatprep.subr.mxu0 0.0
      %1455 = vmatpush2.msra.mxu0 %v774
      %1456 = vmatprep.subr.mxu0 0.0
      %1457 = vmatpush2.msra.mxu0 %v773
      %1458 = vmatprep.subr.mxu0 0.0
      %1459 = vmatpush2.msra.mxu0 %v772
      %1460 = vmatprep.subr.mxu0 0.0
      %1461 = vmatpush2.msra.mxu0 %v771
      %1462 = vmatprep.subr.mxu0 0.0
      %1463 = vmatpush2.msra.mxu0 %v770
      %1464 = vmatprep.subr.mxu0 0.0
      %1465 = vmatpush2.msra.mxu0 %v769
      %1466 = vmatprep.mubr.f32.mxu0 %v182
      %1467 = vmatmul.mubr.f32.gmra.mxu0 %v181
      %v1468 = vpop.f32.mrf.mxu0
      %v1469 = vadd.f32 %v1244, %v1468
      %v1470 = vpop.f32.mrf.mxu0
      %1471 = vmatprep.mubr.f32.mxu0 %v198
      %1472 = vmatmul.mubr.f32.gmra.mxu0 %v197
      %v1473 = vpop.f32.mrf.mxu0
      %v1474 = vadd.f32 %v1249, %v1473
      %v1475 = vpop.f32.mrf.mxu0
      %1476 = vmatprep.mubr.f32.mxu0 %v214
      %1477 = vmatmul.mubr.f32.gmra.mxu0 %v213
      %v1478 = vpop.f32.mrf.mxu0
      %v1479 = vadd.f32 %v1254, %v1478
      %v1480 = vpop.f32.mrf.mxu0
      %1481 = vmatprep.mubr.f32.mxu0 %v230
      %1482 = vmatmul.mubr.f32.gmra.mxu0 %v229
      %v1483 = vpop.f32.mrf.mxu0
      %v1484 = vadd.f32 %v1259, %v1483
      %v1485 = vpop.f32.mrf.mxu0
      %1486 = vmatprep.mubr.f32.mxu0 %v246
      %1487 = vmatmul.mubr.f32.gmra.mxu0 %v245
      %v1488 = vpop.f32.mrf.mxu0
      %v1489 = vadd.f32 %v1264, %v1488
      %v1490 = vpop.f32.mrf.mxu0
      %1491 = vmatprep.mubr.f32.mxu0 %v262
      %1492 = vmatmul.mubr.f32.gmra.mxu0 %v261
      %v1493 = vpop.f32.mrf.mxu0
      %v1494 = vadd.f32 %v1269, %v1493
      %v1495 = vpop.f32.mrf.mxu0
      %1496 = vmatprep.mubr.f32.mxu0 %v278
      %1497 = vmatmul.mubr.f32.gmra.mxu0 %v277
      %v1498 = vpop.f32.mrf.mxu0
      %v1499 = vadd.f32 %v1274, %v1498
      %v1500 = vpop.f32.mrf.mxu0
      %1501 = vmatprep.mubr.f32.mxu0 %v294
      %1502 = vmatmul.mubr.f32.gmra.mxu0 %v293
      %v1503 = vpop.f32.mrf.mxu0
      %v1504 = vadd.f32 %v1279, %v1503
      %v1505 = vpop.f32.mrf.mxu0
      %1506 = vmatprep.mubr.f32.mxu0 %v310
      %1507 = vmatmul.mubr.f32.gmra.mxu0 %v309
      %v1508 = vpop.f32.mrf.mxu0
      %v1509 = vadd.f32 %v1284, %v1508
      %v1510 = vpop.f32.mrf.mxu0
      %1511 = vmatprep.mubr.f32.mxu0 %v326
      %1512 = vmatmul.mubr.f32.gmra.mxu0 %v325
      %v1513 = vpop.f32.mrf.mxu0
      %v1514 = vadd.f32 %v1289, %v1513
      %v1515 = vpop.f32.mrf.mxu0
      %1516 = vmatprep.mubr.f32.mxu0 %v342
      %1517 = vmatmul.mubr.f32.gmra.mxu0 %v341
      %v1518 = vpop.f32.mrf.mxu0
      %v1519 = vadd.f32 %v1294, %v1518
      %v1520 = vpop.f32.mrf.mxu0
      %1521 = vmatprep.mubr.f32.mxu0 %v358
      %1522 = vmatmul.mubr.f32.gmra.mxu0 %v357
      %v1523 = vpop.f32.mrf.mxu0
      %v1524 = vadd.f32 %v1299, %v1523
      %v1525 = vpop.f32.mrf.mxu0
      %1526 = vmatprep.mubr.f32.mxu0 %v374
      %1527 = vmatmul.mubr.f32.gmra.mxu0 %v373
      %v1528 = vpop.f32.mrf.mxu0
      %v1529 = vadd.f32 %v1304, %v1528
      %v1530 = vpop.f32.mrf.mxu0
      %1531 = vmatprep.mubr.f32.mxu0 %v390
      %1532 = vmatmul.mubr.f32.gmra.mxu0 %v389
      %v1533 = vpop.f32.mrf.mxu0
      %v1534 = vadd.f32 %v1309, %v1533
      %v1535 = vpop.f32.mrf.mxu0
      %1536 = vmatprep.mubr.f32.mxu0 %v406
      %1537 = vmatmul.mubr.f32.gmra.mxu0 %v405
      %v1538 = vpop.f32.mrf.mxu0
      %v1539 = vadd.f32 %v1314, %v1538
      %v1540 = vpop.f32.mrf.mxu0
      %1541 = vmatprep.mubr.f32.mxu0 %v422
      %1542 = vmatmul.mubr.f32.gmra.mxu0 %v421
      %v1543 = vpop.f32.mrf.mxu0
      %v1544 = vadd.f32 %v1319, %v1543
      %v1545 = vpop.f32.mrf.mxu0
      %1546 = vmatprep.mubr.f32.mxu0 %v438
      %1547 = vmatmul.mubr.f32.gmra.mxu0 %v437
      %v1548 = vpop.f32.mrf.mxu0
      %v1549 = vadd.f32 %v1324, %v1548
      %v1550 = vpop.f32.mrf.mxu0
      %1551 = vmatprep.mubr.f32.mxu0 %v454
      %1552 = vmatmul.mubr.f32.gmra.mxu0 %v453
      %v1553 = vpop.f32.mrf.mxu0
      %v1554 = vadd.f32 %v1329, %v1553
      %v1555 = vpop.f32.mrf.mxu0
      %1556 = vmatprep.mubr.f32.mxu0 %v470
      %1557 = vmatmul.mubr.f32.gmra.mxu0 %v469
      %v1558 = vpop.f32.mrf.mxu0
      %v1559 = vadd.f32 %v1334, %v1558
      %v1560 = vpop.f32.mrf.mxu0
      %1561 = vmatprep.mubr.f32.mxu0 %v486
      %1562 = vmatmul.mubr.f32.gmra.mxu0 %v485
      %v1563 = vpop.f32.mrf.mxu0
      %v1564 = vadd.f32 %v1339, %v1563
      %v1565 = vpop.f32.mrf.mxu0
      %1566 = vmatprep.mubr.f32.mxu0 %v502
      %1567 = vmatmul.mubr.f32.gmra.mxu0 %v501
      %v1568 = vpop.f32.mrf.mxu0
      %v1569 = vadd.f32 %v1344, %v1568
      %v1570 = vpop.f32.mrf.mxu0
      %1571 = vmatprep.mubr.f32.mxu0 %v518
      %1572 = vmatmul.mubr.f32.gmra.mxu0 %v517
      %v1573 = vpop.f32.mrf.mxu0
      %v1574 = vadd.f32 %v1349, %v1573
      %v1575 = vpop.f32.mrf.mxu0
      %1576 = vmatprep.mubr.f32.mxu0 %v534
      %1577 = vmatmul.mubr.f32.gmra.mxu0 %v533
      %v1578 = vpop.f32.mrf.mxu0
      %v1579 = vadd.f32 %v1354, %v1578
      %v1580 = vpop.f32.mrf.mxu0
      %1581 = vmatprep.mubr.f32.mxu0 %v550
      %1582 = vmatmul.mubr.f32.gmra.mxu0 %v549
      %v1583 = vpop.f32.mrf.mxu0
      %v1584 = vadd.f32 %v1359, %v1583
      %v1585 = vpop.f32.mrf.mxu0
      %1586 = vmatprep.mubr.f32.mxu0 %v566
      %1587 = vmatmul.mubr.f32.gmra.mxu0 %v565
      %v1588 = vpop.f32.mrf.mxu0
      %v1589 = vadd.f32 %v1364, %v1588
      %v1590 = vpop.f32.mrf.mxu0
      %1591 = vmatprep.mubr.f32.mxu0 %v582
      %1592 = vmatmul.mubr.f32.gmra.mxu0 %v581
      %v1593 = vpop.f32.mrf.mxu0
      %v1594 = vadd.f32 %v1369, %v1593
      %v1595 = vpop.f32.mrf.mxu0
      %1596 = vmatprep.mubr.f32.mxu0 %v598
      %1597 = vmatmul.mubr.f32.gmra.mxu0 %v597
      %v1598 = vpop.f32.mrf.mxu0
      %v1599 = vadd.f32 %v1374, %v1598
      %v1600 = vpop.f32.mrf.mxu0
      %1601 = vmatprep.mubr.f32.mxu0 %v614
      %1602 = vmatmul.mubr.f32.gmra.mxu0 %v613
      %v1603 = vpop.f32.mrf.mxu0
      %v1604 = vadd.f32 %v1379, %v1603
      %v1605 = vpop.f32.mrf.mxu0
      %1606 = vmatprep.mubr.f32.mxu0 %v630
      %1607 = vmatmul.mubr.f32.gmra.mxu0 %v629
      %v1608 = vpop.f32.mrf.mxu0
      %v1609 = vadd.f32 %v1384, %v1608
      %v1610 = vpop.f32.mrf.mxu0
      %1611 = vmatprep.mubr.f32.mxu0 %v646
      %1612 = vmatmul.mubr.f32.gmra.mxu0 %v645
      %v1613 = vpop.f32.mrf.mxu0
      %v1614 = vadd.f32 %v1389, %v1613
      %v1615 = vpop.f32.mrf.mxu0
      %1616 = vmatprep.mubr.f32.mxu0 %v662
      %1617 = vmatmul.mubr.f32.gmra.mxu0 %v661
      %v1618 = vpop.f32.mrf.mxu0
      %v1619 = vadd.f32 %v1394, %v1618
      %v1620 = vpop.f32.mrf.mxu0
      %1621 = vmatprep.mubr.f32.mxu0 %v678
      %1622 = vmatmul.mubr.f32.gmra.mxu0 %v677
      %v1623 = vpop.f32.mrf.mxu0
      %v1624 = vadd.f32 %v1399, %v1623
      %v1625 = vpop.f32.mrf.mxu0
      %1626 = vdwg.mxu0
      %1627 = vmatprep.subr.mxu0 0.0
      %1628 = vmatpush1.msra.mxu0 %v800
      %1629 = vmatprep.subr.mxu0 0.0
      %1630 = vmatpush1.msra.mxu0 %v799
      %1631 = vmatprep.subr.mxu0 0.0
      %1632 = vmatpush1.msra.mxu0 %v798
      %1633 = vmatprep.subr.mxu0 0.0
      %1634 = vmatpush1.msra.mxu0 %v797
      %1635 = vmatprep.subr.mxu0 0.0
      %1636 = vmatpush1.msra.mxu0 %v796
      %1637 = vmatprep.subr.mxu0 0.0
      %1638 = vmatpush1.msra.mxu0 %v795
      %1639 = vmatprep.subr.mxu0 0.0
      %1640 = vmatpush1.msra.mxu0 %v794
      %1641 = vmatprep.subr.mxu0 0.0
      %1642 = vmatpush1.msra.mxu0 %v793
      %1643 = vmatprep.subr.mxu0 0.0
      %1644 = vmatpush1.msra.mxu0 %v792
      %1645 = vmatprep.subr.mxu0 0.0
      %1646 = vmatpush1.msra.mxu0 %v791
      %1647 = vmatprep.subr.mxu0 0.0
      %1648 = vmatpush1.msra.mxu0 %v790
      %1649 = vmatprep.subr.mxu0 0.0
      %1650 = vmatpush1.msra.mxu0 %v789
      %1651 = vmatprep.subr.mxu0 0.0
      %1652 = vmatpush1.msra.mxu0 %v788
      %1653 = vmatprep.subr.mxu0 0.0
      %1654 = vmatpush1.msra.mxu0 %v787
      %1655 = vmatprep.subr.mxu0 0.0
      %1656 = vmatpush1.msra.mxu0 %v786
      %1657 = vmatprep.subr.mxu0 0.0
      %1658 = vmatpush1.msra.mxu0 %v785
      %1659 = vmatprep.subr.mxu0 0.0
      %1660 = vmatpush2.msra.mxu0 %v816
      %1661 = vmatprep.subr.mxu0 0.0
      %1662 = vmatpush2.msra.mxu0 %v815
      %1663 = vmatprep.subr.mxu0 0.0
      %1664 = vmatpush2.msra.mxu0 %v814
      %1665 = vmatprep.subr.mxu0 0.0
      %1666 = vmatpush2.msra.mxu0 %v813
      %1667 = vmatprep.subr.mxu0 0.0
      %1668 = vmatpush2.msra.mxu0 %v812
      %1669 = vmatprep.subr.mxu0 0.0
      %1670 = vmatpush2.msra.mxu0 %v811
      %1671 = vmatprep.subr.mxu0 0.0
      %1672 = vmatpush2.msra.mxu0 %v810
      %1673 = vmatprep.subr.mxu0 0.0
      %1674 = vmatpush2.msra.mxu0 %v809
      %1675 = vmatprep.subr.mxu0 0.0
      %1676 = vmatpush2.msra.mxu0 %v808
      %1677 = vmatprep.subr.mxu0 0.0
      %1678 = vmatpush2.msra.mxu0 %v807
      %1679 = vmatprep.subr.mxu0 0.0
      %1680 = vmatpush2.msra.mxu0 %v806
      %1681 = vmatprep.subr.mxu0 0.0
      %1682 = vmatpush2.msra.mxu0 %v805
      %1683 = vmatprep.subr.mxu0 0.0
      %1684 = vmatpush2.msra.mxu0 %v804
      %1685 = vmatprep.subr.mxu0 0.0
      %1686 = vmatpush2.msra.mxu0 %v803
      %1687 = vmatprep.subr.mxu0 0.0
      %1688 = vmatpush2.msra.mxu0 %v802
      %1689 = vmatprep.subr.mxu0 0.0
      %1690 = vmatpush2.msra.mxu0 %v801
      %1691 = vmatprep.mubr.f32.mxu0 %v184
      %1692 = vmatmul.mubr.f32.gmra.mxu0 %v183
      %v1693 = vpop.f32.mrf.mxu0
      %v1694 = vadd.f32 %v1469, %v1693
      %v1695 = vpop.f32.mrf.mxu0
      %1696 = vmatprep.mubr.f32.mxu0 %v200
      %1697 = vmatmul.mubr.f32.gmra.mxu0 %v199
      %v1698 = vpop.f32.mrf.mxu0
      %v1699 = vadd.f32 %v1474, %v1698
      %v1700 = vpop.f32.mrf.mxu0
      %1701 = vmatprep.mubr.f32.mxu0 %v216
      %1702 = vmatmul.mubr.f32.gmra.mxu0 %v215
      %v1703 = vpop.f32.mrf.mxu0
      %v1704 = vadd.f32 %v1479, %v1703
      %v1705 = vpop.f32.mrf.mxu0
      %1706 = vmatprep.mubr.f32.mxu0 %v232
      %1707 = vmatmul.mubr.f32.gmra.mxu0 %v231
      %v1708 = vpop.f32.mrf.mxu0
      %v1709 = vadd.f32 %v1484, %v1708
      %v1710 = vpop.f32.mrf.mxu0
      %1711 = vmatprep.mubr.f32.mxu0 %v248
      %1712 = vmatmul.mubr.f32.gmra.mxu0 %v247
      %v1713 = vpop.f32.mrf.mxu0
      %v1714 = vadd.f32 %v1489, %v1713
      %v1715 = vpop.f32.mrf.mxu0
      %1716 = vmatprep.mubr.f32.mxu0 %v264
      %1717 = vmatmul.mubr.f32.gmra.mxu0 %v263
      %v1718 = vpop.f32.mrf.mxu0
      %v1719 = vadd.f32 %v1494, %v1718
      %v1720 = vpop.f32.mrf.mxu0
      %1721 = vmatprep.mubr.f32.mxu0 %v280
      %1722 = vmatmul.mubr.f32.gmra.mxu0 %v279
      %v1723 = vpop.f32.mrf.mxu0
      %v1724 = vadd.f32 %v1499, %v1723
      %v1725 = vpop.f32.mrf.mxu0
      %1726 = vmatprep.mubr.f32.mxu0 %v296
      %1727 = vmatmul.mubr.f32.gmra.mxu0 %v295
      %v1728 = vpop.f32.mrf.mxu0
      %v1729 = vadd.f32 %v1504, %v1728
      %v1730 = vpop.f32.mrf.mxu0
      %1731 = vmatprep.mubr.f32.mxu0 %v312
      %1732 = vmatmul.mubr.f32.gmra.mxu0 %v311
      %v1733 = vpop.f32.mrf.mxu0
      %v1734 = vadd.f32 %v1509, %v1733
      %v1735 = vpop.f32.mrf.mxu0
      %1736 = vmatprep.mubr.f32.mxu0 %v328
      %1737 = vmatmul.mubr.f32.gmra.mxu0 %v327
      %v1738 = vpop.f32.mrf.mxu0
      %v1739 = vadd.f32 %v1514, %v1738
      %v1740 = vpop.f32.mrf.mxu0
      %1741 = vmatprep.mubr.f32.mxu0 %v344
      %1742 = vmatmul.mubr.f32.gmra.mxu0 %v343
      %v1743 = vpop.f32.mrf.mxu0
      %v1744 = vadd.f32 %v1519, %v1743
      %v1745 = vpop.f32.mrf.mxu0
      %1746 = vmatprep.mubr.f32.mxu0 %v360
      %1747 = vmatmul.mubr.f32.gmra.mxu0 %v359
      %v1748 = vpop.f32.mrf.mxu0
      %v1749 = vadd.f32 %v1524, %v1748
      %v1750 = vpop.f32.mrf.mxu0
      %1751 = vmatprep.mubr.f32.mxu0 %v376
      %1752 = vmatmul.mubr.f32.gmra.mxu0 %v375
      %v1753 = vpop.f32.mrf.mxu0
      %v1754 = vadd.f32 %v1529, %v1753
      %v1755 = vpop.f32.mrf.mxu0
      %1756 = vmatprep.mubr.f32.mxu0 %v392
      %1757 = vmatmul.mubr.f32.gmra.mxu0 %v391
      %v1758 = vpop.f32.mrf.mxu0
      %v1759 = vadd.f32 %v1534, %v1758
      %v1760 = vpop.f32.mrf.mxu0
      %1761 = vmatprep.mubr.f32.mxu0 %v408
      %1762 = vmatmul.mubr.f32.gmra.mxu0 %v407
      %v1763 = vpop.f32.mrf.mxu0
      %v1764 = vadd.f32 %v1539, %v1763
      %v1765 = vpop.f32.mrf.mxu0
      %1766 = vmatprep.mubr.f32.mxu0 %v424
      %1767 = vmatmul.mubr.f32.gmra.mxu0 %v423
      %v1768 = vpop.f32.mrf.mxu0
      %v1769 = vadd.f32 %v1544, %v1768
      %v1770 = vpop.f32.mrf.mxu0
      %1771 = vmatprep.mubr.f32.mxu0 %v440
      %1772 = vmatmul.mubr.f32.gmra.mxu0 %v439
      %v1773 = vpop.f32.mrf.mxu0
      %v1774 = vadd.f32 %v1549, %v1773
      %v1775 = vpop.f32.mrf.mxu0
      %1776 = vmatprep.mubr.f32.mxu0 %v456
      %1777 = vmatmul.mubr.f32.gmra.mxu0 %v455
      %v1778 = vpop.f32.mrf.mxu0
      %v1779 = vadd.f32 %v1554, %v1778
      %v1780 = vpop.f32.mrf.mxu0
      %1781 = vmatprep.mubr.f32.mxu0 %v472
      %1782 = vmatmul.mubr.f32.gmra.mxu0 %v471
      %v1783 = vpop.f32.mrf.mxu0
      %v1784 = vadd.f32 %v1559, %v1783
      %v1785 = vpop.f32.mrf.mxu0
      %1786 = vmatprep.mubr.f32.mxu0 %v488
      %1787 = vmatmul.mubr.f32.gmra.mxu0 %v487
      %v1788 = vpop.f32.mrf.mxu0
      %v1789 = vadd.f32 %v1564, %v1788
      %v1790 = vpop.f32.mrf.mxu0
      %1791 = vmatprep.mubr.f32.mxu0 %v504
      %1792 = vmatmul.mubr.f32.gmra.mxu0 %v503
      %v1793 = vpop.f32.mrf.mxu0
      %v1794 = vadd.f32 %v1569, %v1793
      %v1795 = vpop.f32.mrf.mxu0
      %1796 = vmatprep.mubr.f32.mxu0 %v520
      %1797 = vmatmul.mubr.f32.gmra.mxu0 %v519
      %v1798 = vpop.f32.mrf.mxu0
      %v1799 = vadd.f32 %v1574, %v1798
      %v1800 = vpop.f32.mrf.mxu0
      %1801 = vmatprep.mubr.f32.mxu0 %v536
      %1802 = vmatmul.mubr.f32.gmra.mxu0 %v535
      %v1803 = vpop.f32.mrf.mxu0
      %v1804 = vadd.f32 %v1579, %v1803
      %v1805 = vpop.f32.mrf.mxu0
      %1806 = vmatprep.mubr.f32.mxu0 %v552
      %1807 = vmatmul.mubr.f32.gmra.mxu0 %v551
      %v1808 = vpop.f32.mrf.mxu0
      %v1809 = vadd.f32 %v1584, %v1808
      %v1810 = vpop.f32.mrf.mxu0
      %1811 = vmatprep.mubr.f32.mxu0 %v568
      %1812 = vmatmul.mubr.f32.gmra.mxu0 %v567
      %v1813 = vpop.f32.mrf.mxu0
      %v1814 = vadd.f32 %v1589, %v1813
      %v1815 = vpop.f32.mrf.mxu0
      %1816 = vmatprep.mubr.f32.mxu0 %v584
      %1817 = vmatmul.mubr.f32.gmra.mxu0 %v583
      %v1818 = vpop.f32.mrf.mxu0
      %v1819 = vadd.f32 %v1594, %v1818
      %v1820 = vpop.f32.mrf.mxu0
      %1821 = vmatprep.mubr.f32.mxu0 %v600
      %1822 = vmatmul.mubr.f32.gmra.mxu0 %v599
      %v1823 = vpop.f32.mrf.mxu0
      %v1824 = vadd.f32 %v1599, %v1823
      %v1825 = vpop.f32.mrf.mxu0
      %1826 = vmatprep.mubr.f32.mxu0 %v616
      %1827 = vmatmul.mubr.f32.gmra.mxu0 %v615
      %v1828 = vpop.f32.mrf.mxu0
      %v1829 = vadd.f32 %v1604, %v1828
      %v1830 = vpop.f32.mrf.mxu0
      %1831 = vmatprep.mubr.f32.mxu0 %v632
      %1832 = vmatmul.mubr.f32.gmra.mxu0 %v631
      %v1833 = vpop.f32.mrf.mxu0
      %v1834 = vadd.f32 %v1609, %v1833
      %v1835 = vpop.f32.mrf.mxu0
      %1836 = vmatprep.mubr.f32.mxu0 %v648
      %1837 = vmatmul.mubr.f32.gmra.mxu0 %v647
      %v1838 = vpop.f32.mrf.mxu0
      %v1839 = vadd.f32 %v1614, %v1838
      %v1840 = vpop.f32.mrf.mxu0
      %1841 = vmatprep.mubr.f32.mxu0 %v664
      %1842 = vmatmul.mubr.f32.gmra.mxu0 %v663
      %v1843 = vpop.f32.mrf.mxu0
      %v1844 = vadd.f32 %v1619, %v1843
      %v1845 = vpop.f32.mrf.mxu0
      %1846 = vmatprep.mubr.f32.mxu0 %v680
      %1847 = vmatmul.mubr.f32.gmra.mxu0 %v679
      %v1848 = vpop.f32.mrf.mxu0
      %v1849 = vadd.f32 %v1624, %v1848
      %v1850 = vpop.f32.mrf.mxu0
      %1851 = vdwg.mxu0
      %1852 = vmatprep.subr.mxu0 0.0
      %1853 = vmatpush1.msra.mxu0 %v832
      %1854 = vmatprep.subr.mxu0 0.0
      %1855 = vmatpush1.msra.mxu0 %v831
      %1856 = vmatprep.subr.mxu0 0.0
      %1857 = vmatpush1.msra.mxu0 %v830
      %1858 = vmatprep.subr.mxu0 0.0
      %1859 = vmatpush1.msra.mxu0 %v829
      %1860 = vmatprep.subr.mxu0 0.0
      %1861 = vmatpush1.msra.mxu0 %v828
      %1862 = vmatprep.subr.mxu0 0.0
      %1863 = vmatpush1.msra.mxu0 %v827
      %1864 = vmatprep.subr.mxu0 0.0
      %1865 = vmatpush1.msra.mxu0 %v826
      %1866 = vmatprep.subr.mxu0 0.0
      %1867 = vmatpush1.msra.mxu0 %v825
      %1868 = vmatprep.subr.mxu0 0.0
      %1869 = vmatpush1.msra.mxu0 %v824
      %1870 = vmatprep.subr.mxu0 0.0
      %1871 = vmatpush1.msra.mxu0 %v823
      %1872 = vmatprep.subr.mxu0 0.0
      %1873 = vmatpush1.msra.mxu0 %v822
      %1874 = vmatprep.subr.mxu0 0.0
      %1875 = vmatpush1.msra.mxu0 %v821
      %1876 = vmatprep.subr.mxu0 0.0
      %1877 = vmatpush1.msra.mxu0 %v820
      %1878 = vmatprep.subr.mxu0 0.0
      %1879 = vmatpush1.msra.mxu0 %v819
      %1880 = vmatprep.subr.mxu0 0.0
      %1881 = vmatpush1.msra.mxu0 %v818
      %1882 = vmatprep.subr.mxu0 0.0
      %1883 = vmatpush1.msra.mxu0 %v817
      %1884 = vmatprep.subr.mxu0 0.0
      %1885 = vmatpush2.msra.mxu0 %v848
      %1886 = vmatprep.subr.mxu0 0.0
      %1887 = vmatpush2.msra.mxu0 %v847
      %1888 = vmatprep.subr.mxu0 0.0
      %1889 = vmatpush2.msra.mxu0 %v846
      %1890 = vmatprep.subr.mxu0 0.0
      %1891 = vmatpush2.msra.mxu0 %v845
      %1892 = vmatprep.subr.mxu0 0.0
      %1893 = vmatpush2.msra.mxu0 %v844
      %1894 = vmatprep.subr.mxu0 0.0
      %1895 = vmatpush2.msra.mxu0 %v843
      %1896 = vmatprep.subr.mxu0 0.0
      %1897 = vmatpush2.msra.mxu0 %v842
      %1898 = vmatprep.subr.mxu0 0.0
      %1899 = vmatpush2.msra.mxu0 %v841
      %1900 = vmatprep.subr.mxu0 0.0
      %1901 = vmatpush2.msra.mxu0 %v840
      %1902 = vmatprep.subr.mxu0 0.0
      %1903 = vmatpush2.msra.mxu0 %v839
      %1904 = vmatprep.subr.mxu0 0.0
      %1905 = vmatpush2.msra.mxu0 %v838
      %1906 = vmatprep.subr.mxu0 0.0
      %1907 = vmatpush2.msra.mxu0 %v837
      %1908 = vmatprep.subr.mxu0 0.0
      %1909 = vmatpush2.msra.mxu0 %v836
      %1910 = vmatprep.subr.mxu0 0.0
      %1911 = vmatpush2.msra.mxu0 %v835
      %1912 = vmatprep.subr.mxu0 0.0
      %1913 = vmatpush2.msra.mxu0 %v834
      %1914 = vmatprep.subr.mxu0 0.0
      %1915 = vmatpush2.msra.mxu0 %v833
      %1916 = vmatprep.mubr.f32.mxu0 %v186
      %1917 = vmatmul.mubr.f32.gmra.mxu0 %v185
      %v1918 = vpop.f32.mrf.mxu0
      %v1919 = vadd.f32 %v1694, %v1918
      %v1920 = vpop.f32.mrf.mxu0
      %1921 = vmatprep.mubr.f32.mxu0 %v202
      %1922 = vmatmul.mubr.f32.gmra.mxu0 %v201
      %v1923 = vpop.f32.mrf.mxu0
      %v1924 = vadd.f32 %v1699, %v1923
      %v1925 = vpop.f32.mrf.mxu0
      %1926 = vmatprep.mubr.f32.mxu0 %v218
      %1927 = vmatmul.mubr.f32.gmra.mxu0 %v217
      %v1928 = vpop.f32.mrf.mxu0
      %v1929 = vadd.f32 %v1704, %v1928
      %v1930 = vpop.f32.mrf.mxu0
      %1931 = vmatprep.mubr.f32.mxu0 %v234
      %1932 = vmatmul.mubr.f32.gmra.mxu0 %v233
      %v1933 = vpop.f32.mrf.mxu0
      %v1934 = vadd.f32 %v1709, %v1933
      %v1935 = vpop.f32.mrf.mxu0
      %1936 = vmatprep.mubr.f32.mxu0 %v250
      %1937 = vmatmul.mubr.f32.gmra.mxu0 %v249
      %v1938 = vpop.f32.mrf.mxu0
      %v1939 = vadd.f32 %v1714, %v1938
      %v1940 = vpop.f32.mrf.mxu0
      %1941 = vmatprep.mubr.f32.mxu0 %v266
      %1942 = vmatmul.mubr.f32.gmra.mxu0 %v265
      %v1943 = vpop.f32.mrf.mxu0
      %v1944 = vadd.f32 %v1719, %v1943
      %v1945 = vpop.f32.mrf.mxu0
      %1946 = vmatprep.mubr.f32.mxu0 %v282
      %1947 = vmatmul.mubr.f32.gmra.mxu0 %v281
      %v1948 = vpop.f32.mrf.mxu0
      %v1949 = vadd.f32 %v1724, %v1948
      %v1950 = vpop.f32.mrf.mxu0
      %1951 = vmatprep.mubr.f32.mxu0 %v298
      %1952 = vmatmul.mubr.f32.gmra.mxu0 %v297
      %v1953 = vpop.f32.mrf.mxu0
      %v1954 = vadd.f32 %v1729, %v1953
      %v1955 = vpop.f32.mrf.mxu0
      %1956 = vmatprep.mubr.f32.mxu0 %v314
      %1957 = vmatmul.mubr.f32.gmra.mxu0 %v313
      %v1958 = vpop.f32.mrf.mxu0
      %v1959 = vadd.f32 %v1734, %v1958
      %v1960 = vpop.f32.mrf.mxu0
      %1961 = vmatprep.mubr.f32.mxu0 %v330
      %1962 = vmatmul.mubr.f32.gmra.mxu0 %v329
      %v1963 = vpop.f32.mrf.mxu0
      %v1964 = vadd.f32 %v1739, %v1963
      %v1965 = vpop.f32.mrf.mxu0
      %1966 = vmatprep.mubr.f32.mxu0 %v346
      %1967 = vmatmul.mubr.f32.gmra.mxu0 %v345
      %v1968 = vpop.f32.mrf.mxu0
      %v1969 = vadd.f32 %v1744, %v1968
      %v1970 = vpop.f32.mrf.mxu0
      %1971 = vmatprep.mubr.f32.mxu0 %v362
      %1972 = vmatmul.mubr.f32.gmra.mxu0 %v361
      %v1973 = vpop.f32.mrf.mxu0
      %v1974 = vadd.f32 %v1749, %v1973
      %v1975 = vpop.f32.mrf.mxu0
      %1976 = vmatprep.mubr.f32.mxu0 %v378
      %1977 = vmatmul.mubr.f32.gmra.mxu0 %v377
      %v1978 = vpop.f32.mrf.mxu0
      %v1979 = vadd.f32 %v1754, %v1978
      %v1980 = vpop.f32.mrf.mxu0
      %1981 = vmatprep.mubr.f32.mxu0 %v394
      %1982 = vmatmul.mubr.f32.gmra.mxu0 %v393
      %v1983 = vpop.f32.mrf.mxu0
      %v1984 = vadd.f32 %v1759, %v1983
      %v1985 = vpop.f32.mrf.mxu0
      %1986 = vmatprep.mubr.f32.mxu0 %v410
      %1987 = vmatmul.mubr.f32.gmra.mxu0 %v409
      %v1988 = vpop.f32.mrf.mxu0
      %v1989 = vadd.f32 %v1764, %v1988
      %v1990 = vpop.f32.mrf.mxu0
      %1991 = vmatprep.mubr.f32.mxu0 %v426
      %1992 = vmatmul.mubr.f32.gmra.mxu0 %v425
      %v1993 = vpop.f32.mrf.mxu0
      %v1994 = vadd.f32 %v1769, %v1993
      %v1995 = vpop.f32.mrf.mxu0
      %1996 = vmatprep.mubr.f32.mxu0 %v442
      %1997 = vmatmul.mubr.f32.gmra.mxu0 %v441
      %v1998 = vpop.f32.mrf.mxu0
      %v1999 = vadd.f32 %v1774, %v1998
      %v2000 = vpop.f32.mrf.mxu0
      %2001 = vmatprep.mubr.f32.mxu0 %v458
      %2002 = vmatmul.mubr.f32.gmra.mxu0 %v457
      %v2003 = vpop.f32.mrf.mxu0
      %v2004 = vadd.f32 %v1779, %v2003
      %v2005 = vpop.f32.mrf.mxu0
      %2006 = vmatprep.mubr.f32.mxu0 %v474
      %2007 = vmatmul.mubr.f32.gmra.mxu0 %v473
      %v2008 = vpop.f32.mrf.mxu0
      %v2009 = vadd.f32 %v1784, %v2008
      %v2010 = vpop.f32.mrf.mxu0
      %2011 = vmatprep.mubr.f32.mxu0 %v490
      %2012 = vmatmul.mubr.f32.gmra.mxu0 %v489
      %v2013 = vpop.f32.mrf.mxu0
      %v2014 = vadd.f32 %v1789, %v2013
      %v2015 = vpop.f32.mrf.mxu0
      %2016 = vmatprep.mubr.f32.mxu0 %v506
      %2017 = vmatmul.mubr.f32.gmra.mxu0 %v505
      %v2018 = vpop.f32.mrf.mxu0
      %v2019 = vadd.f32 %v1794, %v2018
      %v2020 = vpop.f32.mrf.mxu0
      %2021 = vmatprep.mubr.f32.mxu0 %v522
      %2022 = vmatmul.mubr.f32.gmra.mxu0 %v521
      %v2023 = vpop.f32.mrf.mxu0
      %v2024 = vadd.f32 %v1799, %v2023
      %v2025 = vpop.f32.mrf.mxu0
      %2026 = vmatprep.mubr.f32.mxu0 %v538
      %2027 = vmatmul.mubr.f32.gmra.mxu0 %v537
      %v2028 = vpop.f32.mrf.mxu0
      %v2029 = vadd.f32 %v1804, %v2028
      %v2030 = vpop.f32.mrf.mxu0
      %2031 = vmatprep.mubr.f32.mxu0 %v554
      %2032 = vmatmul.mubr.f32.gmra.mxu0 %v553
      %v2033 = vpop.f32.mrf.mxu0
      %v2034 = vadd.f32 %v1809, %v2033
      %v2035 = vpop.f32.mrf.mxu0
      %2036 = vmatprep.mubr.f32.mxu0 %v570
      %2037 = vmatmul.mubr.f32.gmra.mxu0 %v569
      %v2038 = vpop.f32.mrf.mxu0
      %v2039 = vadd.f32 %v1814, %v2038
      %v2040 = vpop.f32.mrf.mxu0
      %2041 = vmatprep.mubr.f32.mxu0 %v586
      %2042 = vmatmul.mubr.f32.gmra.mxu0 %v585
      %v2043 = vpop.f32.mrf.mxu0
      %v2044 = vadd.f32 %v1819, %v2043
      %v2045 = vpop.f32.mrf.mxu0
      %2046 = vmatprep.mubr.f32.mxu0 %v602
      %2047 = vmatmul.mubr.f32.gmra.mxu0 %v601
      %v2048 = vpop.f32.mrf.mxu0
      %v2049 = vadd.f32 %v1824, %v2048
      %v2050 = vpop.f32.mrf.mxu0
      %2051 = vmatprep.mubr.f32.mxu0 %v618
      %2052 = vmatmul.mubr.f32.gmra.mxu0 %v617
      %v2053 = vpop.f32.mrf.mxu0
      %v2054 = vadd.f32 %v1829, %v2053
      %v2055 = vpop.f32.mrf.mxu0
      %2056 = vmatprep.mubr.f32.mxu0 %v634
      %2057 = vmatmul.mubr.f32.gmra.mxu0 %v633
      %v2058 = vpop.f32.mrf.mxu0
      %v2059 = vadd.f32 %v1834, %v2058
      %v2060 = vpop.f32.mrf.mxu0
      %2061 = vmatprep.mubr.f32.mxu0 %v650
      %2062 = vmatmul.mubr.f32.gmra.mxu0 %v649
      %v2063 = vpop.f32.mrf.mxu0
      %v2064 = vadd.f32 %v1839, %v2063
      %v2065 = vpop.f32.mrf.mxu0
      %2066 = vmatprep.mubr.f32.mxu0 %v666
      %2067 = vmatmul.mubr.f32.gmra.mxu0 %v665
      %v2068 = vpop.f32.mrf.mxu0
      %v2069 = vadd.f32 %v1844, %v2068
      %v2070 = vpop.f32.mrf.mxu0
      %2071 = vmatprep.mubr.f32.mxu0 %v682
      %2072 = vmatmul.mubr.f32.gmra.mxu0 %v681
      %v2073 = vpop.f32.mrf.mxu0
      %v2074 = vadd.f32 %v1849, %v2073
      %v2075 = vpop.f32.mrf.mxu0
      %2076 = vdwg.mxu0
      %2077 = vmatprep.subr.mxu0 0.0
      %2078 = vmatpush1.msra.mxu0 %v864
      %2079 = vmatprep.subr.mxu0 0.0
      %2080 = vmatpush1.msra.mxu0 %v863
      %2081 = vmatprep.subr.mxu0 0.0
      %2082 = vmatpush1.msra.mxu0 %v862
      %2083 = vmatprep.subr.mxu0 0.0
      %2084 = vmatpush1.msra.mxu0 %v861
      %2085 = vmatprep.subr.mxu0 0.0
      %2086 = vmatpush1.msra.mxu0 %v860
      %2087 = vmatprep.subr.mxu0 0.0
      %2088 = vmatpush1.msra.mxu0 %v859
      %2089 = vmatprep.subr.mxu0 0.0
      %2090 = vmatpush1.msra.mxu0 %v858
      %2091 = vmatprep.subr.mxu0 0.0
      %2092 = vmatpush1.msra.mxu0 %v857
      %2093 = vmatprep.subr.mxu0 0.0
      %2094 = vmatpush1.msra.mxu0 %v856
      %2095 = vmatprep.subr.mxu0 0.0
      %2096 = vmatpush1.msra.mxu0 %v855
      %2097 = vmatprep.subr.mxu0 0.0
      %2098 = vmatpush1.msra.mxu0 %v854
      %2099 = vmatprep.subr.mxu0 0.0
      %2100 = vmatpush1.msra.mxu0 %v853
      %2101 = vmatprep.subr.mxu0 0.0
      %2102 = vmatpush1.msra.mxu0 %v852
      %2103 = vmatprep.subr.mxu0 0.0
      %2104 = vmatpush1.msra.mxu0 %v851
      %2105 = vmatprep.subr.mxu0 0.0
      %2106 = vmatpush1.msra.mxu0 %v850
      %2107 = vmatprep.subr.mxu0 0.0
      %2108 = vmatpush1.msra.mxu0 %v849
      %2109 = vmatprep.subr.mxu0 0.0
      %2110 = vmatpush2.msra.mxu0 %v880
      %2111 = vmatprep.subr.mxu0 0.0
      %2112 = vmatpush2.msra.mxu0 %v879
      %2113 = vmatprep.subr.mxu0 0.0
      %2114 = vmatpush2.msra.mxu0 %v878
      %2115 = vmatprep.subr.mxu0 0.0
      %2116 = vmatpush2.msra.mxu0 %v877
      %2117 = vmatprep.subr.mxu0 0.0
      %2118 = vmatpush2.msra.mxu0 %v876
      %2119 = vmatprep.subr.mxu0 0.0
      %2120 = vmatpush2.msra.mxu0 %v875
      %2121 = vmatprep.subr.mxu0 0.0
      %2122 = vmatpush2.msra.mxu0 %v874
      %2123 = vmatprep.subr.mxu0 0.0
      %2124 = vmatpush2.msra.mxu0 %v873
      %2125 = vmatprep.subr.mxu0 0.0
      %2126 = vmatpush2.msra.mxu0 %v872
      %2127 = vmatprep.subr.mxu0 0.0
      %2128 = vmatpush2.msra.mxu0 %v871
      %2129 = vmatprep.subr.mxu0 0.0
      %2130 = vmatpush2.msra.mxu0 %v870
      %2131 = vmatprep.subr.mxu0 0.0
      %2132 = vmatpush2.msra.mxu0 %v869
      %2133 = vmatprep.subr.mxu0 0.0
      %2134 = vmatpush2.msra.mxu0 %v868
      %2135 = vmatprep.subr.mxu0 0.0
      %2136 = vmatpush2.msra.mxu0 %v867
      %2137 = vmatprep.subr.mxu0 0.0
      %2138 = vmatpush2.msra.mxu0 %v866
      %2139 = vmatprep.subr.mxu0 0.0
      %2140 = vmatpush2.msra.mxu0 %v865
      %2141 = vmatprep.mubr.f32.mxu0 %v188
      %2142 = vmatmul.mubr.f32.gmra.mxu0 %v187
      %v2143 = vpop.f32.mrf.mxu0
      %v2144 = vadd.f32 %v1919, %v2143
      %v2145 = vpop.f32.mrf.mxu0
      %2146 = vmatprep.mubr.f32.mxu0 %v204
      %2147 = vmatmul.mubr.f32.gmra.mxu0 %v203
      %v2148 = vpop.f32.mrf.mxu0
      %v2149 = vadd.f32 %v1924, %v2148
      %v2150 = vpop.f32.mrf.mxu0
      %2151 = vmatprep.mubr.f32.mxu0 %v220
      %2152 = vmatmul.mubr.f32.gmra.mxu0 %v219
      %v2153 = vpop.f32.mrf.mxu0
      %v2154 = vadd.f32 %v1929, %v2153
      %v2155 = vpop.f32.mrf.mxu0
      %2156 = vmatprep.mubr.f32.mxu0 %v236
      %2157 = vmatmul.mubr.f32.gmra.mxu0 %v235
      %v2158 = vpop.f32.mrf.mxu0
      %v2159 = vadd.f32 %v1934, %v2158
      %v2160 = vpop.f32.mrf.mxu0
      %2161 = vmatprep.mubr.f32.mxu0 %v252
      %2162 = vmatmul.mubr.f32.gmra.mxu0 %v251
      %v2163 = vpop.f32.mrf.mxu0
      %v2164 = vadd.f32 %v1939, %v2163
      %v2165 = vpop.f32.mrf.mxu0
      %2166 = vmatprep.mubr.f32.mxu0 %v268
      %2167 = vmatmul.mubr.f32.gmra.mxu0 %v267
      %v2168 = vpop.f32.mrf.mxu0
      %v2169 = vadd.f32 %v1944, %v2168
      %v2170 = vpop.f32.mrf.mxu0
      %2171 = vmatprep.mubr.f32.mxu0 %v284
      %2172 = vmatmul.mubr.f32.gmra.mxu0 %v283
      %v2173 = vpop.f32.mrf.mxu0
      %v2174 = vadd.f32 %v1949, %v2173
      %v2175 = vpop.f32.mrf.mxu0
      %2176 = vmatprep.mubr.f32.mxu0 %v300
      %2177 = vmatmul.mubr.f32.gmra.mxu0 %v299
      %v2178 = vpop.f32.mrf.mxu0
      %v2179 = vadd.f32 %v1954, %v2178
      %v2180 = vpop.f32.mrf.mxu0
      %2181 = vmatprep.mubr.f32.mxu0 %v316
      %2182 = vmatmul.mubr.f32.gmra.mxu0 %v315
      %v2183 = vpop.f32.mrf.mxu0
      %v2184 = vadd.f32 %v1959, %v2183
      %v2185 = vpop.f32.mrf.mxu0
      %2186 = vmatprep.mubr.f32.mxu0 %v332
      %2187 = vmatmul.mubr.f32.gmra.mxu0 %v331
      %v2188 = vpop.f32.mrf.mxu0
      %v2189 = vadd.f32 %v1964, %v2188
      %v2190 = vpop.f32.mrf.mxu0
      %2191 = vmatprep.mubr.f32.mxu0 %v348
      %2192 = vmatmul.mubr.f32.gmra.mxu0 %v347
      %v2193 = vpop.f32.mrf.mxu0
      %v2194 = vadd.f32 %v1969, %v2193
      %v2195 = vpop.f32.mrf.mxu0
      %2196 = vmatprep.mubr.f32.mxu0 %v364
      %2197 = vmatmul.mubr.f32.gmra.mxu0 %v363
      %v2198 = vpop.f32.mrf.mxu0
      %v2199 = vadd.f32 %v1974, %v2198
      %v2200 = vpop.f32.mrf.mxu0
      %2201 = vmatprep.mubr.f32.mxu0 %v380
      %2202 = vmatmul.mubr.f32.gmra.mxu0 %v379
      %v2203 = vpop.f32.mrf.mxu0
      %v2204 = vadd.f32 %v1979, %v2203
      %v2205 = vpop.f32.mrf.mxu0
      %2206 = vmatprep.mubr.f32.mxu0 %v396
      %2207 = vmatmul.mubr.f32.gmra.mxu0 %v395
      %v2208 = vpop.f32.mrf.mxu0
      %v2209 = vadd.f32 %v1984, %v2208
      %v2210 = vpop.f32.mrf.mxu0
      %2211 = vmatprep.mubr.f32.mxu0 %v412
      %2212 = vmatmul.mubr.f32.gmra.mxu0 %v411
      %v2213 = vpop.f32.mrf.mxu0
      %v2214 = vadd.f32 %v1989, %v2213
      %v2215 = vpop.f32.mrf.mxu0
      %2216 = vmatprep.mubr.f32.mxu0 %v428
      %2217 = vmatmul.mubr.f32.gmra.mxu0 %v427
      %v2218 = vpop.f32.mrf.mxu0
      %v2219 = vadd.f32 %v1994, %v2218
      %v2220 = vpop.f32.mrf.mxu0
      %2221 = vmatprep.mubr.f32.mxu0 %v444
      %2222 = vmatmul.mubr.f32.gmra.mxu0 %v443
      %v2223 = vpop.f32.mrf.mxu0
      %v2224 = vadd.f32 %v1999, %v2223
      %v2225 = vpop.f32.mrf.mxu0
      %2226 = vmatprep.mubr.f32.mxu0 %v460
      %2227 = vmatmul.mubr.f32.gmra.mxu0 %v459
      %v2228 = vpop.f32.mrf.mxu0
      %v2229 = vadd.f32 %v2004, %v2228
      %v2230 = vpop.f32.mrf.mxu0
      %2231 = vmatprep.mubr.f32.mxu0 %v476
      %2232 = vmatmul.mubr.f32.gmra.mxu0 %v475
      %v2233 = vpop.f32.mrf.mxu0
      %v2234 = vadd.f32 %v2009, %v2233
      %v2235 = vpop.f32.mrf.mxu0
      %2236 = vmatprep.mubr.f32.mxu0 %v492
      %2237 = vmatmul.mubr.f32.gmra.mxu0 %v491
      %v2238 = vpop.f32.mrf.mxu0
      %v2239 = vadd.f32 %v2014, %v2238
      %v2240 = vpop.f32.mrf.mxu0
      %2241 = vmatprep.mubr.f32.mxu0 %v508
      %2242 = vmatmul.mubr.f32.gmra.mxu0 %v507
      %v2243 = vpop.f32.mrf.mxu0
      %v2244 = vadd.f32 %v2019, %v2243
      %v2245 = vpop.f32.mrf.mxu0
      %2246 = vmatprep.mubr.f32.mxu0 %v524
      %2247 = vmatmul.mubr.f32.gmra.mxu0 %v523
      %v2248 = vpop.f32.mrf.mxu0
      %v2249 = vadd.f32 %v2024, %v2248
      %v2250 = vpop.f32.mrf.mxu0
      %2251 = vmatprep.mubr.f32.mxu0 %v540
      %2252 = vmatmul.mubr.f32.gmra.mxu0 %v539
      %v2253 = vpop.f32.mrf.mxu0
      %v2254 = vadd.f32 %v2029, %v2253
      %v2255 = vpop.f32.mrf.mxu0
      %2256 = vmatprep.mubr.f32.mxu0 %v556
      %2257 = vmatmul.mubr.f32.gmra.mxu0 %v555
      %v2258 = vpop.f32.mrf.mxu0
      %v2259 = vadd.f32 %v2034, %v2258
      %v2260 = vpop.f32.mrf.mxu0
      %2261 = vmatprep.mubr.f32.mxu0 %v572
      %2262 = vmatmul.mubr.f32.gmra.mxu0 %v571
      %v2263 = vpop.f32.mrf.mxu0
      %v2264 = vadd.f32 %v2039, %v2263
      %v2265 = vpop.f32.mrf.mxu0
      %2266 = vmatprep.mubr.f32.mxu0 %v588
      %2267 = vmatmul.mubr.f32.gmra.mxu0 %v587
      %v2268 = vpop.f32.mrf.mxu0
      %v2269 = vadd.f32 %v2044, %v2268
      %v2270 = vpop.f32.mrf.mxu0
      %2271 = vmatprep.mubr.f32.mxu0 %v604
      %2272 = vmatmul.mubr.f32.gmra.mxu0 %v603
      %v2273 = vpop.f32.mrf.mxu0
      %v2274 = vadd.f32 %v2049, %v2273
      %v2275 = vpop.f32.mrf.mxu0
      %2276 = vmatprep.mubr.f32.mxu0 %v620
      %2277 = vmatmul.mubr.f32.gmra.mxu0 %v619
      %v2278 = vpop.f32.mrf.mxu0
      %v2279 = vadd.f32 %v2054, %v2278
      %v2280 = vpop.f32.mrf.mxu0
      %2281 = vmatprep.mubr.f32.mxu0 %v636
      %2282 = vmatmul.mubr.f32.gmra.mxu0 %v635
      %v2283 = vpop.f32.mrf.mxu0
      %v2284 = vadd.f32 %v2059, %v2283
      %v2285 = vpop.f32.mrf.mxu0
      %2286 = vmatprep.mubr.f32.mxu0 %v652
      %2287 = vmatmul.mubr.f32.gmra.mxu0 %v651
      %v2288 = vpop.f32.mrf.mxu0
      %v2289 = vadd.f32 %v2064, %v2288
      %v2290 = vpop.f32.mrf.mxu0
      %2291 = vmatprep.mubr.f32.mxu0 %v668
      %2292 = vmatmul.mubr.f32.gmra.mxu0 %v667
      %v2293 = vpop.f32.mrf.mxu0
      %v2294 = vadd.f32 %v2069, %v2293
      %v2295 = vpop.f32.mrf.mxu0
      %2296 = vmatprep.mubr.f32.mxu0 %v684
      %2297 = vmatmul.mubr.f32.gmra.mxu0 %v683
      %v2298 = vpop.f32.mrf.mxu0
      %v2299 = vadd.f32 %v2074, %v2298
      %v2300 = vpop.f32.mrf.mxu0
      %2301 = vdwg.mxu0
      %2302 = vmatprep.subr.mxu0 0.0
      %2303 = vmatpush1.msra.mxu0 %v896
      %2304 = vmatprep.subr.mxu0 0.0
      %2305 = vmatpush1.msra.mxu0 %v895
      %2306 = vmatprep.subr.mxu0 0.0
      %2307 = vmatpush1.msra.mxu0 %v894
      %2308 = vmatprep.subr.mxu0 0.0
      %2309 = vmatpush1.msra.mxu0 %v893
      %2310 = vmatprep.subr.mxu0 0.0
      %2311 = vmatpush1.msra.mxu0 %v892
      %2312 = vmatprep.subr.mxu0 0.0
      %2313 = vmatpush1.msra.mxu0 %v891
      %2314 = vmatprep.subr.mxu0 0.0
      %2315 = vmatpush1.msra.mxu0 %v890
      %2316 = vmatprep.subr.mxu0 0.0
      %2317 = vmatpush1.msra.mxu0 %v889
      %2318 = vmatprep.subr.mxu0 0.0
      %2319 = vmatpush1.msra.mxu0 %v888
      %2320 = vmatprep.subr.mxu0 0.0
      %2321 = vmatpush1.msra.mxu0 %v887
      %2322 = vmatprep.subr.mxu0 0.0
      %2323 = vmatpush1.msra.mxu0 %v886
      %2324 = vmatprep.subr.mxu0 0.0
      %2325 = vmatpush1.msra.mxu0 %v885
      %2326 = vmatprep.subr.mxu0 0.0
      %2327 = vmatpush1.msra.mxu0 %v884
      %2328 = vmatprep.subr.mxu0 0.0
      %2329 = vmatpush1.msra.mxu0 %v883
      %2330 = vmatprep.subr.mxu0 0.0
      %2331 = vmatpush1.msra.mxu0 %v882
      %2332 = vmatprep.subr.mxu0 0.0
      %2333 = vmatpush1.msra.mxu0 %v881
      %2334 = vmatprep.subr.mxu0 0.0
      %2335 = vmatpush2.msra.mxu0 %v912
      %2336 = vmatprep.subr.mxu0 0.0
      %2337 = vmatpush2.msra.mxu0 %v911
      %2338 = vmatprep.subr.mxu0 0.0
      %2339 = vmatpush2.msra.mxu0 %v910
      %2340 = vmatprep.subr.mxu0 0.0
      %2341 = vmatpush2.msra.mxu0 %v909
      %2342 = vmatprep.subr.mxu0 0.0
      %2343 = vmatpush2.msra.mxu0 %v908
      %2344 = vmatprep.subr.mxu0 0.0
      %2345 = vmatpush2.msra.mxu0 %v907
      %2346 = vmatprep.subr.mxu0 0.0
      %2347 = vmatpush2.msra.mxu0 %v906
      %2348 = vmatprep.subr.mxu0 0.0
      %2349 = vmatpush2.msra.mxu0 %v905
      %2350 = vmatprep.subr.mxu0 0.0
      %2351 = vmatpush2.msra.mxu0 %v904
      %2352 = vmatprep.subr.mxu0 0.0
      %2353 = vmatpush2.msra.mxu0 %v903
      %2354 = vmatprep.subr.mxu0 0.0
      %2355 = vmatpush2.msra.mxu0 %v902
      %2356 = vmatprep.subr.mxu0 0.0
      %2357 = vmatpush2.msra.mxu0 %v901
      %2358 = vmatprep.subr.mxu0 0.0
      %2359 = vmatpush2.msra.mxu0 %v900
      %2360 = vmatprep.subr.mxu0 0.0
      %2361 = vmatpush2.msra.mxu0 %v899
      %2362 = vmatprep.subr.mxu0 0.0
      %2363 = vmatpush2.msra.mxu0 %v898
      %2364 = vmatprep.subr.mxu0 0.0
      %2365 = vmatpush2.msra.mxu0 %v897
      %2366 = vmatprep.mubr.f32.mxu0 %v190
      %2367 = vmatmul.mubr.f32.gmra.mxu0 %v189
      %v2368 = vpop.f32.mrf.mxu0
      %v2369 = vadd.f32 %v2144, %v2368
      %v2370 = vpop.f32.mrf.mxu0
      %2371 = vmatprep.mubr.f32.mxu0 %v206
      %2372 = vmatmul.mubr.f32.gmra.mxu0 %v205
      %v2373 = vpop.f32.mrf.mxu0
      %v2374 = vadd.f32 %v2149, %v2373
      %v2375 = vpop.f32.mrf.mxu0
      %2376 = vmatprep.mubr.f32.mxu0 %v222
      %2377 = vmatmul.mubr.f32.gmra.mxu0 %v221
      %v2378 = vpop.f32.mrf.mxu0
      %v2379 = vadd.f32 %v2154, %v2378
      %v2380 = vpop.f32.mrf.mxu0
      %2381 = vmatprep.mubr.f32.mxu0 %v238
      %2382 = vmatmul.mubr.f32.gmra.mxu0 %v237
      %v2383 = vpop.f32.mrf.mxu0
      %v2384 = vadd.f32 %v2159, %v2383
      %v2385 = vpop.f32.mrf.mxu0
      %2386 = vmatprep.mubr.f32.mxu0 %v254
      %2387 = vmatmul.mubr.f32.gmra.mxu0 %v253
      %v2388 = vpop.f32.mrf.mxu0
      %v2389 = vadd.f32 %v2164, %v2388
      %v2390 = vpop.f32.mrf.mxu0
      %2391 = vmatprep.mubr.f32.mxu0 %v270
      %2392 = vmatmul.mubr.f32.gmra.mxu0 %v269
      %v2393 = vpop.f32.mrf.mxu0
      %v2394 = vadd.f32 %v2169, %v2393
      %v2395 = vpop.f32.mrf.mxu0
      %2396 = vmatprep.mubr.f32.mxu0 %v286
      %2397 = vmatmul.mubr.f32.gmra.mxu0 %v285
      %v2398 = vpop.f32.mrf.mxu0
      %v2399 = vadd.f32 %v2174, %v2398
      %v2400 = vpop.f32.mrf.mxu0
      %2401 = vmatprep.mubr.f32.mxu0 %v302
      %2402 = vmatmul.mubr.f32.gmra.mxu0 %v301
      %v2403 = vpop.f32.mrf.mxu0
      %v2404 = vadd.f32 %v2179, %v2403
      %v2405 = vpop.f32.mrf.mxu0
      %2406 = vmatprep.mubr.f32.mxu0 %v318
      %2407 = vmatmul.mubr.f32.gmra.mxu0 %v317
      %v2408 = vpop.f32.mrf.mxu0
      %v2409 = vadd.f32 %v2184, %v2408
      %v2410 = vpop.f32.mrf.mxu0
      %2411 = vmatprep.mubr.f32.mxu0 %v334
      %2412 = vmatmul.mubr.f32.gmra.mxu0 %v333
      %v2413 = vpop.f32.mrf.mxu0
      %v2414 = vadd.f32 %v2189, %v2413
      %v2415 = vpop.f32.mrf.mxu0
      %2416 = vmatprep.mubr.f32.mxu0 %v350
      %2417 = vmatmul.mubr.f32.gmra.mxu0 %v349
      %v2418 = vpop.f32.mrf.mxu0
      %v2419 = vadd.f32 %v2194, %v2418
      %v2420 = vpop.f32.mrf.mxu0
      %2421 = vmatprep.mubr.f32.mxu0 %v366
      %2422 = vmatmul.mubr.f32.gmra.mxu0 %v365
      %v2423 = vpop.f32.mrf.mxu0
      %v2424 = vadd.f32 %v2199, %v2423
      %v2425 = vpop.f32.mrf.mxu0
      %2426 = vmatprep.mubr.f32.mxu0 %v382
      %2427 = vmatmul.mubr.f32.gmra.mxu0 %v381
      %v2428 = vpop.f32.mrf.mxu0
      %v2429 = vadd.f32 %v2204, %v2428
      %v2430 = vpop.f32.mrf.mxu0
      %2431 = vmatprep.mubr.f32.mxu0 %v398
      %2432 = vmatmul.mubr.f32.gmra.mxu0 %v397
      %v2433 = vpop.f32.mrf.mxu0
      %v2434 = vadd.f32 %v2209, %v2433
      %v2435 = vpop.f32.mrf.mxu0
      %2436 = vmatprep.mubr.f32.mxu0 %v414
      %2437 = vmatmul.mubr.f32.gmra.mxu0 %v413
      %v2438 = vpop.f32.mrf.mxu0
      %v2439 = vadd.f32 %v2214, %v2438
      %v2440 = vpop.f32.mrf.mxu0
      %2441 = vmatprep.mubr.f32.mxu0 %v430
      %2442 = vmatmul.mubr.f32.gmra.mxu0 %v429
      %v2443 = vpop.f32.mrf.mxu0
      %v2444 = vadd.f32 %v2219, %v2443
      %v2445 = vpop.f32.mrf.mxu0
      %2446 = vmatprep.mubr.f32.mxu0 %v446
      %2447 = vmatmul.mubr.f32.gmra.mxu0 %v445
      %v2448 = vpop.f32.mrf.mxu0
      %v2449 = vadd.f32 %v2224, %v2448
      %v2450 = vpop.f32.mrf.mxu0
      %2451 = vmatprep.mubr.f32.mxu0 %v462
      %2452 = vmatmul.mubr.f32.gmra.mxu0 %v461
      %v2453 = vpop.f32.mrf.mxu0
      %v2454 = vadd.f32 %v2229, %v2453
      %v2455 = vpop.f32.mrf.mxu0
      %2456 = vmatprep.mubr.f32.mxu0 %v478
      %2457 = vmatmul.mubr.f32.gmra.mxu0 %v477
      %v2458 = vpop.f32.mrf.mxu0
      %v2459 = vadd.f32 %v2234, %v2458
      %v2460 = vpop.f32.mrf.mxu0
      %2461 = vmatprep.mubr.f32.mxu0 %v494
      %2462 = vmatmul.mubr.f32.gmra.mxu0 %v493
      %v2463 = vpop.f32.mrf.mxu0
      %v2464 = vadd.f32 %v2239, %v2463
      %v2465 = vpop.f32.mrf.mxu0
      %2466 = vmatprep.mubr.f32.mxu0 %v510
      %2467 = vmatmul.mubr.f32.gmra.mxu0 %v509
      %v2468 = vpop.f32.mrf.mxu0
      %v2469 = vadd.f32 %v2244, %v2468
      %v2470 = vpop.f32.mrf.mxu0
      %2471 = vmatprep.mubr.f32.mxu0 %v526
      %2472 = vmatmul.mubr.f32.gmra.mxu0 %v525
      %v2473 = vpop.f32.mrf.mxu0
      %v2474 = vadd.f32 %v2249, %v2473
      %v2475 = vpop.f32.mrf.mxu0
      %2476 = vmatprep.mubr.f32.mxu0 %v542
      %2477 = vmatmul.mubr.f32.gmra.mxu0 %v541
      %v2478 = vpop.f32.mrf.mxu0
      %v2479 = vadd.f32 %v2254, %v2478
      %v2480 = vpop.f32.mrf.mxu0
      %2481 = vmatprep.mubr.f32.mxu0 %v558
      %2482 = vmatmul.mubr.f32.gmra.mxu0 %v557
      %v2483 = vpop.f32.mrf.mxu0
      %v2484 = vadd.f32 %v2259, %v2483
      %v2485 = vpop.f32.mrf.mxu0
      %2486 = vmatprep.mubr.f32.mxu0 %v574
      %2487 = vmatmul.mubr.f32.gmra.mxu0 %v573
      %v2488 = vpop.f32.mrf.mxu0
      %v2489 = vadd.f32 %v2264, %v2488
      %v2490 = vpop.f32.mrf.mxu0
      %2491 = vmatprep.mubr.f32.mxu0 %v590
      %2492 = vmatmul.mubr.f32.gmra.mxu0 %v589
      %v2493 = vpop.f32.mrf.mxu0
      %v2494 = vadd.f32 %v2269, %v2493
      %v2495 = vpop.f32.mrf.mxu0
      %2496 = vmatprep.mubr.f32.mxu0 %v606
      %2497 = vmatmul.mubr.f32.gmra.mxu0 %v605
      %v2498 = vpop.f32.mrf.mxu0
      %v2499 = vadd.f32 %v2274, %v2498
      %v2500 = vpop.f32.mrf.mxu0
      %2501 = vmatprep.mubr.f32.mxu0 %v622
      %2502 = vmatmul.mubr.f32.gmra.mxu0 %v621
      %v2503 = vpop.f32.mrf.mxu0
      %v2504 = vadd.f32 %v2279, %v2503
      %v2505 = vpop.f32.mrf.mxu0
      %2506 = vmatprep.mubr.f32.mxu0 %v638
      %2507 = vmatmul.mubr.f32.gmra.mxu0 %v637
      %v2508 = vpop.f32.mrf.mxu0
      %v2509 = vadd.f32 %v2284, %v2508
      %v2510 = vpop.f32.mrf.mxu0
      %2511 = vmatprep.mubr.f32.mxu0 %v654
      %2512 = vmatmul.mubr.f32.gmra.mxu0 %v653
      %v2513 = vpop.f32.mrf.mxu0
      %v2514 = vadd.f32 %v2289, %v2513
      %v2515 = vpop.f32.mrf.mxu0
      %2516 = vmatprep.mubr.f32.mxu0 %v670
      %2517 = vmatmul.mubr.f32.gmra.mxu0 %v669
      %v2518 = vpop.f32.mrf.mxu0
      %v2519 = vadd.f32 %v2294, %v2518
      %v2520 = vpop.f32.mrf.mxu0
      %2521 = vmatprep.mubr.f32.mxu0 %v686
      %2522 = vmatmul.mubr.f32.gmra.mxu0 %v685
      %v2523 = vpop.f32.mrf.mxu0
      %v2524 = vadd.f32 %v2299, %v2523
      %v2525 = vpop.f32.mrf.mxu0
      %2526 = vdwg.mxu0
      %2527 = vmatprep.subr.mxu0 0.0
      %2528 = vmatpush1.msra.mxu0 %v928
      %2529 = vmatprep.subr.mxu0 0.0
      %2530 = vmatpush1.msra.mxu0 %v927
      %2531 = vmatprep.subr.mxu0 0.0
      %2532 = vmatpush1.msra.mxu0 %v926
      %2533 = vmatprep.subr.mxu0 0.0
      %2534 = vmatpush1.msra.mxu0 %v925
      %2535 = vmatprep.subr.mxu0 0.0
      %2536 = vmatpush1.msra.mxu0 %v924
      %2537 = vmatprep.subr.mxu0 0.0
      %2538 = vmatpush1.msra.mxu0 %v923
      %2539 = vmatprep.subr.mxu0 0.0
      %2540 = vmatpush1.msra.mxu0 %v922
      %2541 = vmatprep.subr.mxu0 0.0
      %2542 = vmatpush1.msra.mxu0 %v921
      %2543 = vmatprep.subr.mxu0 0.0
      %2544 = vmatpush1.msra.mxu0 %v920
      %2545 = vmatprep.subr.mxu0 0.0
      %2546 = vmatpush1.msra.mxu0 %v919
      %2547 = vmatprep.subr.mxu0 0.0
      %2548 = vmatpush1.msra.mxu0 %v918
      %2549 = vmatprep.subr.mxu0 0.0
      %2550 = vmatpush1.msra.mxu0 %v917
      %2551 = vmatprep.subr.mxu0 0.0
      %2552 = vmatpush1.msra.mxu0 %v916
      %2553 = vmatprep.subr.mxu0 0.0
      %2554 = vmatpush1.msra.mxu0 %v915
      %2555 = vmatprep.subr.mxu0 0.0
      %2556 = vmatpush1.msra.mxu0 %v914
      %2557 = vmatprep.subr.mxu0 0.0
      %2558 = vmatpush1.msra.mxu0 %v913
      %2559 = vmatprep.subr.mxu0 0.0
      %2560 = vmatpush2.msra.mxu0 %v944
      %2561 = vmatprep.subr.mxu0 0.0
      %2562 = vmatpush2.msra.mxu0 %v943
      %2563 = vmatprep.subr.mxu0 0.0
      %2564 = vmatpush2.msra.mxu0 %v942
      %2565 = vmatprep.subr.mxu0 0.0
      %2566 = vmatpush2.msra.mxu0 %v941
      %2567 = vmatprep.subr.mxu0 0.0
      %2568 = vmatpush2.msra.mxu0 %v940
      %2569 = vmatprep.subr.mxu0 0.0
      %2570 = vmatpush2.msra.mxu0 %v939
      %2571 = vmatprep.subr.mxu0 0.0
      %2572 = vmatpush2.msra.mxu0 %v938
      %2573 = vmatprep.subr.mxu0 0.0
      %2574 = vmatpush2.msra.mxu0 %v937
      %2575 = vmatprep.subr.mxu0 0.0
      %2576 = vmatpush2.msra.mxu0 %v936
      %2577 = vmatprep.subr.mxu0 0.0
      %2578 = vmatpush2.msra.mxu0 %v935
      %2579 = vmatprep.subr.mxu0 0.0
      %2580 = vmatpush2.msra.mxu0 %v934
      %2581 = vmatprep.subr.mxu0 0.0
      %2582 = vmatpush2.msra.mxu0 %v933
      %2583 = vmatprep.subr.mxu0 0.0
      %2584 = vmatpush2.msra.mxu0 %v932
      %2585 = vmatprep.subr.mxu0 0.0
      %2586 = vmatpush2.msra.mxu0 %v931
      %2587 = vmatprep.subr.mxu0 0.0
      %2588 = vmatpush2.msra.mxu0 %v930
      %2589 = vmatprep.subr.mxu0 0.0
      %2590 = vmatpush2.msra.mxu0 %v929
      %2591 = vmatprep.mubr.f32.mxu0 %v192
      %2592 = vmatmul.mubr.f32.gmra.mxu0 %v191
      %v2593 = vpop.f32.mrf.mxu0
      %v2594 = vadd.f32 %v2369, %v2593
      %v2595 = vpop.f32.mrf.mxu0
      %2596 = vmatprep.mubr.f32.mxu0 %v208
      %2597 = vmatmul.mubr.f32.gmra.mxu0 %v207
      %v2598 = vpop.f32.mrf.mxu0
      %v2599 = vadd.f32 %v2374, %v2598
      %v2600 = vpop.f32.mrf.mxu0
      %2601 = vmatprep.mubr.f32.mxu0 %v224
      %2602 = vmatmul.mubr.f32.gmra.mxu0 %v223
      %v2603 = vpop.f32.mrf.mxu0
      %v2604 = vadd.f32 %v2379, %v2603
      %v2605 = vpop.f32.mrf.mxu0
      %2606 = vmatprep.mubr.f32.mxu0 %v240
      %2607 = vmatmul.mubr.f32.gmra.mxu0 %v239
      %v2608 = vpop.f32.mrf.mxu0
      %v2609 = vadd.f32 %v2384, %v2608
      %v2610 = vpop.f32.mrf.mxu0
      %2611 = vmatprep.mubr.f32.mxu0 %v256
      %2612 = vmatmul.mubr.f32.gmra.mxu0 %v255
      %v2613 = vpop.f32.mrf.mxu0
      %v2614 = vadd.f32 %v2389, %v2613
      %v2615 = vpop.f32.mrf.mxu0
      %2616 = vmatprep.mubr.f32.mxu0 %v272
      %2617 = vmatmul.mubr.f32.gmra.mxu0 %v271
      %v2618 = vpop.f32.mrf.mxu0
      %v2619 = vadd.f32 %v2394, %v2618
      %v2620 = vpop.f32.mrf.mxu0
      %2621 = vmatprep.mubr.f32.mxu0 %v288
      %2622 = vmatmul.mubr.f32.gmra.mxu0 %v287
      %v2623 = vpop.f32.mrf.mxu0
      %v2624 = vadd.f32 %v2399, %v2623
      %v2625 = vpop.f32.mrf.mxu0
      %2626 = vmatprep.mubr.f32.mxu0 %v304
      %2627 = vmatmul.mubr.f32.gmra.mxu0 %v303
      %v2628 = vpop.f32.mrf.mxu0
      %v2629 = vadd.f32 %v2404, %v2628
      %v2630 = vpop.f32.mrf.mxu0
      %2631 = vmatprep.mubr.f32.mxu0 %v320
      %2632 = vmatmul.mubr.f32.gmra.mxu0 %v319
      %v2633 = vpop.f32.mrf.mxu0
      %v2634 = vadd.f32 %v2409, %v2633
      %v2635 = vpop.f32.mrf.mxu0
      %2636 = vmatprep.mubr.f32.mxu0 %v336
      %2637 = vmatmul.mubr.f32.gmra.mxu0 %v335
      %v2638 = vpop.f32.mrf.mxu0
      %v2639 = vadd.f32 %v2414, %v2638
      %v2640 = vpop.f32.mrf.mxu0
      %2641 = vmatprep.mubr.f32.mxu0 %v352
      %2642 = vmatmul.mubr.f32.gmra.mxu0 %v351
      %v2643 = vpop.f32.mrf.mxu0
      %v2644 = vadd.f32 %v2419, %v2643
      %v2645 = vpop.f32.mrf.mxu0
      %2646 = vmatprep.mubr.f32.mxu0 %v368
      %2647 = vmatmul.mubr.f32.gmra.mxu0 %v367
      %v2648 = vpop.f32.mrf.mxu0
      %v2649 = vadd.f32 %v2424, %v2648
      %v2650 = vpop.f32.mrf.mxu0
      %2651 = vmatprep.mubr.f32.mxu0 %v384
      %2652 = vmatmul.mubr.f32.gmra.mxu0 %v383
      %v2653 = vpop.f32.mrf.mxu0
      %v2654 = vadd.f32 %v2429, %v2653
      %v2655 = vpop.f32.mrf.mxu0
      %2656 = vmatprep.mubr.f32.mxu0 %v400
      %2657 = vmatmul.mubr.f32.gmra.mxu0 %v399
      %v2658 = vpop.f32.mrf.mxu0
      %v2659 = vadd.f32 %v2434, %v2658
      %v2660 = vpop.f32.mrf.mxu0
      %2661 = vmatprep.mubr.f32.mxu0 %v416
      %2662 = vmatmul.mubr.f32.gmra.mxu0 %v415
      %v2663 = vpop.f32.mrf.mxu0
      %v2664 = vadd.f32 %v2439, %v2663
      %v2665 = vpop.f32.mrf.mxu0
      %2666 = vmatprep.mubr.f32.mxu0 %v432
      %2667 = vmatmul.mubr.f32.gmra.mxu0 %v431
      %v2668 = vpop.f32.mrf.mxu0
      %v2669 = vadd.f32 %v2444, %v2668
      %v2670 = vpop.f32.mrf.mxu0
      %2671 = vmatprep.mubr.f32.mxu0 %v448
      %2672 = vmatmul.mubr.f32.gmra.mxu0 %v447
      %v2673 = vpop.f32.mrf.mxu0
      %v2674 = vadd.f32 %v2449, %v2673
      %v2675 = vpop.f32.mrf.mxu0
      %2676 = vmatprep.mubr.f32.mxu0 %v464
      %2677 = vmatmul.mubr.f32.gmra.mxu0 %v463
      %v2678 = vpop.f32.mrf.mxu0
      %v2679 = vadd.f32 %v2454, %v2678
      %v2680 = vpop.f32.mrf.mxu0
      %2681 = vmatprep.mubr.f32.mxu0 %v480
      %2682 = vmatmul.mubr.f32.gmra.mxu0 %v479
      %v2683 = vpop.f32.mrf.mxu0
      %v2684 = vadd.f32 %v2459, %v2683
      %v2685 = vpop.f32.mrf.mxu0
      %2686 = vmatprep.mubr.f32.mxu0 %v496
      %2687 = vmatmul.mubr.f32.gmra.mxu0 %v495
      %v2688 = vpop.f32.mrf.mxu0
      %v2689 = vadd.f32 %v2464, %v2688
      %v2690 = vpop.f32.mrf.mxu0
      %2691 = vmatprep.mubr.f32.mxu0 %v512
      %2692 = vmatmul.mubr.f32.gmra.mxu0 %v511
      %v2693 = vpop.f32.mrf.mxu0
      %v2694 = vadd.f32 %v2469, %v2693
      %v2695 = vpop.f32.mrf.mxu0
      %2696 = vmatprep.mubr.f32.mxu0 %v528
      %2697 = vmatmul.mubr.f32.gmra.mxu0 %v527
      %v2698 = vpop.f32.mrf.mxu0
      %v2699 = vadd.f32 %v2474, %v2698
      %v2700 = vpop.f32.mrf.mxu0
      %2701 = vmatprep.mubr.f32.mxu0 %v544
      %2702 = vmatmul.mubr.f32.gmra.mxu0 %v543
      %v2703 = vpop.f32.mrf.mxu0
      %v2704 = vadd.f32 %v2479, %v2703
      %v2705 = vpop.f32.mrf.mxu0
      %2706 = vmatprep.mubr.f32.mxu0 %v560
      %2707 = vmatmul.mubr.f32.gmra.mxu0 %v559
      %v2708 = vpop.f32.mrf.mxu0
      %v2709 = vadd.f32 %v2484, %v2708
      %v2710 = vpop.f32.mrf.mxu0
      %2711 = vmatprep.mubr.f32.mxu0 %v576
      %2712 = vmatmul.mubr.f32.gmra.mxu0 %v575
      %v2713 = vpop.f32.mrf.mxu0
      %v2714 = vadd.f32 %v2489, %v2713
      %v2715 = vpop.f32.mrf.mxu0
      %2716 = vmatprep.mubr.f32.mxu0 %v592
      %2717 = vmatmul.mubr.f32.gmra.mxu0 %v591
      %v2718 = vpop.f32.mrf.mxu0
      %v2719 = vadd.f32 %v2494, %v2718
      %v2720 = vpop.f32.mrf.mxu0
      %2721 = vmatprep.mubr.f32.mxu0 %v608
      %2722 = vmatmul.mubr.f32.gmra.mxu0 %v607
      %v2723 = vpop.f32.mrf.mxu0
      %v2724 = vadd.f32 %v2499, %v2723
      %v2725 = vpop.f32.mrf.mxu0
      %2726 = vmatprep.mubr.f32.mxu0 %v624
      %2727 = vmatmul.mubr.f32.gmra.mxu0 %v623
      %v2728 = vpop.f32.mrf.mxu0
      %v2729 = vadd.f32 %v2504, %v2728
      %v2730 = vpop.f32.mrf.mxu0
      %2731 = vmatprep.mubr.f32.mxu0 %v640
      %2732 = vmatmul.mubr.f32.gmra.mxu0 %v639
      %v2733 = vpop.f32.mrf.mxu0
      %v2734 = vadd.f32 %v2509, %v2733
      %v2735 = vpop.f32.mrf.mxu0
      %2736 = vmatprep.mubr.f32.mxu0 %v656
      %2737 = vmatmul.mubr.f32.gmra.mxu0 %v655
      %v2738 = vpop.f32.mrf.mxu0
      %v2739 = vadd.f32 %v2514, %v2738
      %v2740 = vpop.f32.mrf.mxu0
      %2741 = vmatprep.mubr.f32.mxu0 %v672
      %2742 = vmatmul.mubr.f32.gmra.mxu0 %v671
      %v2743 = vpop.f32.mrf.mxu0
      %v2744 = vadd.f32 %v2519, %v2743
      %v2745 = vpop.f32.mrf.mxu0
      %2746 = vmatprep.mubr.f32.mxu0 %v688
      %2747 = vmatmul.mubr.f32.gmra.mxu0 %v687
      %v2748 = vpop.f32.mrf.mxu0
      %v2749 = vadd.f32 %v2524, %v2748
      %v2750 = vpop.f32.mrf.mxu0
      %2751 = vdwg.mxu0
      %v2752 = vtanh.pop %v2594
      %v2753 = vtanh.pop %v2599
      %v2754 = vtanh.pop %v2604
      %v2755 = vtanh.pop %v2609
      %v2756 = vtanh.pop %v2614
      %v2757 = vtanh.pop %v2619
      %v2758 = vtanh.pop %v2624
      %v2759 = vtanh.pop %v2629
      %v2760 = vtanh.pop %v2634
      %v2761 = vtanh.pop %v2639
      %v2762 = vtanh.pop %v2644
      %v2763 = vtanh.pop %v2649
      %v2764 = vtanh.pop %v2654
      %v2765 = vtanh.pop %v2659
      %v2766 = vtanh.pop %v2664
      %v2767 = vtanh.pop %v2669
      %v2768 = vtanh.pop %v2674
      %v2769 = vtanh.pop %v2679
      %v2770 = vtanh.pop %v2684
      %v2771 = vtanh.pop %v2689
      %v2772 = vtanh.pop %v2694
      %v2773 = vtanh.pop %v2699
      %v2774 = vtanh.pop %v2704
      %v2775 = vtanh.pop %v2709
      %v2776 = vtanh.pop %v2714
      %v2777 = vtanh.pop %v2719
      %v2778 = vtanh.pop %v2724
      %v2779 = vtanh.pop %v2729
      %v2780 = vtanh.pop %v2734
      %v2781 = vtanh.pop %v2739
      %v2782 = vtanh.pop %v2744
      %v2783 = vtanh.pop %v2749
      %2784 = vst [vmem:[%s175] sm:$0xff] %v2752
      %2785 = vst [vmem:[%s175 + $0x8] sm:$0xff] %v2753
      %2786 = vst [vmem:[%s175 + $0x10] sm:$0xff] %v2754
      %2787 = vst [vmem:[%s175 + $0x18] sm:$0xff] %v2755
      %2788 = vst [vmem:[%s175 + $0x20] sm:$0xff] %v2756
      %2789 = vst [vmem:[%s175 + $0x28] sm:$0xff] %v2757
      %2790 = vst [vmem:[%s175 + $0x30] sm:$0xff] %v2758
      %2791 = vst [vmem:[%s175 + $0x38] sm:$0xff] %v2759
      %2792 = vst [vmem:[%s175 + $0x40] sm:$0xff] %v2760
      %2793 = vst [vmem:[%s175 + $0x48] sm:$0xff] %v2761
      %2794 = vst [vmem:[%s175 + $0x50] sm:$0xff] %v2762
      %2795 = vst [vmem:[%s175 + $0x58] sm:$0xff] %v2763
      %2796 = vst [vmem:[%s175 + $0x60] sm:$0xff] %v2764
      %2797 = vst [vmem:[%s175 + $0x68] sm:$0xff] %v2765
      %2798 = vst [vmem:[%s175 + $0x70] sm:$0xff] %v2766
      %2799 = vst [vmem:[%s175 + $0x78] sm:$0xff] %v2767
      %2800 = vst [vmem:[%s175 + $0x80] sm:$0xff] %v2768
      %2801 = vst [vmem:[%s175 + $0x88] sm:$0xff] %v2769
      %2802 = vst [vmem:[%s175 + $0x90] sm:$0xff] %v2770
      %2803 = vst [vmem:[%s175 + $0x98] sm:$0xff] %v2771
      %2804 = vst [vmem:[%s175 + $0xa0] sm:$0xff] %v2772
      %2805 = vst [vmem:[%s175 + $0xa8] sm:$0xff] %v2773
      %2806 = vst [vmem:[%s175 + $0xb0] sm:$0xff] %v2774
      %2807 = vst [vmem:[%s175 + $0xb8] sm:$0xff] %v2775
      %2808 = vst [vmem:[%s175 + $0xc0] sm:$0xff] %v2776
      %2809 = vst [vmem:[%s175 + $0xc8] sm:$0xff] %v2777
      %2810 = vst [vmem:[%s175 + $0xd0] sm:$0xff] %v2778
      %2811 = vst [vmem:[%s175 + $0xd8] sm:$0xff] %v2779
      %2812 = vst [vmem:[%s175 + $0xe0] sm:$0xff] %v2780
      %2813 = vst [vmem:[%s175 + $0xe8] sm:$0xff] %v2781
      %2814 = vst [vmem:[%s175 + $0xf0] sm:$0xff] %v2782
      %2815 = vst [vmem:[%s175 + $0xf8] sm:$0xff] %v2783
      %s2816 = smul.u32 32, %s14
      %p2817 = scmp.lt.s32.totalorder %s2816, 63
      %s2818 = scalar_select %p2817, %s2816, 63
      %s2819 = smul.addr %s2818, 8
      %s2820 = scalar_lea.vmem %s3, %s2819
      // Predicated region
      $region33: #{generator_forward.9} parent=31 // pred_check
        %p2821 = pneg %p100
      $region34: #{generator_forward.9} parent=31 // pred_check_branch
        %2823 = sbr.rel (%p2821) target = $region36
      $region35: #{generator_forward.9} parent=31 // pred_region
        %s2824 = smul.u32 32, %s14
      $region36: #{generator_forward.9} parent=31 // pred_fallthru
        _
    $region32: #{generator_forward.9} parent=5 // pred_fallthru
      _
    %p2825 = scmp.le.s32.totalorder 2, %s9
    // Predicated region
    $region37: #{generator_forward.9} parent=5 // pred_check
      %p2826 = pneg %p2825
    $region38: #{generator_forward.9} parent=5 // pred_check_branch
      %2828 = sbr.rel (%p2826) target = $region40
    $region39: #{generator_forward.9} parent=5 // pred_region
      %s2829 = ssub.s32 %s9, 2
      // Predicated region
      $region41: #{generator_forward.9} parent=39 // pred_check
        %p2830 = pneg %p106
      $region42: #{generator_forward.9} parent=39 // pred_check_branch
        %2832 = sbr.rel (%p2830) target = $region44
      $region43: #{generator_forward.9} parent=39 // pred_region
        %s2833 = smul.u32 32, %s15
        %p2834 = scmp.lt.s32.totalorder %s2833, 63
        %s2835 = scalar_select %p2834, %s2833, 63
        %s2836 = smul.addr %s2835, 8
        %s2837 = scalar_lea.vmem %s3, %s2836
      $region44: #{generator_forward.9} parent=39 // pred_fallthru
        _
    $region40: #{generator_forward.9} parent=5 // pred_fallthru
      _
  $region6: #{generator_forward.9} parent=0 // loop_footer
    %s13 = sadd.s32 1, %s9
  $region7: #{generator_forward.9} parent=0 // loop_footer_branch
    %8 = sbr.rel target = $region3
  $region8: #{generator_forward.9} parent=0 // loop_exit
    _

</llo_original>
